<compile_context>
chip_gen: v5e
topology: v5e:2x2
jax: 0.10.0
libtpu: 0.0.40
codegen_flags: <defaults>
</compile_context>

<pallas_src>
import math
import functools

import numpy as np
import jax
import jax.numpy as jnp
from jax.experimental import pallas as pl
from jax.experimental.pallas import tpu as pltpu

SQRT2 = float(np.sqrt(2.0))
INV_SQRT2 = float(1.0 / np.sqrt(2.0))


def _round_up(x, m):
    return ((x + m - 1) // m) * m


def _pick_tile(v, candidates):
    for c in candidates:
        if v % c == 0:
            return c
    return v


# --------------------------------------------------------------------------
# Pallas kernel 1: tiled bf16 matmul, f32 accumulate, fused bias +
# FusedLeakyReLU epilogue, optional fused residual merge (out+res)*1/sqrt(2).
# --------------------------------------------------------------------------
def _mm_kernel(*refs, act, has_res, res_scale):
    if has_res:
        x_ref, w_ref, b_ref, res_ref, o_ref, acc_ref = refs
    else:
        x_ref, w_ref, b_ref, o_ref, acc_ref = refs
        res_ref = None

    @pl.when(pl.program_id(2) == 0)
    def _init():
        acc_ref[...] = jnp.zeros_like(acc_ref)

    acc_ref[...] += jnp.dot(x_ref[...], w_ref[...],
                            preferred_element_type=jnp.float32)

    @pl.when(pl.program_id(2) == pl.num_programs(2) - 1)
    def _fin():
        out = acc_ref[...] + b_ref[...]
        if act:
            # FusedLeakyReLU: leaky_relu(x + bias, 0.2) * sqrt(2)
            out = jnp.where(out >= 0.0, out, 0.2 * out) * SQRT2
        if res_ref is not None:
            out = (out + res_ref[...].astype(jnp.float32)) * res_scale
        o_ref[...] = out.astype(o_ref.dtype)


def matmul_bias_act(x, w_pad, b_pad, n_valid, *, act,
                    res=None, res_scale=None, out_dtype=jnp.bfloat16):
    """out = act(x @ w + b)[, fused (+res)*res_scale].

    w_pad: (Kp, Np) bf16, pre-scaled & pre-padded to multiples of 128.
    b_pad: (1, Np) f32.  n_valid: logical output width (<= Np).
    """
    M, K = x.shape
    Kp, Np = w_pad.shape

    tm = min(256, _round_up(M, 16))          # bf16 second-minor tile = 16
    Mp = _round_up(M, tm)
    tn = _pick_tile(Np, (256, 128))
    if Mp // tm == 1 and Np // 128 >= 4:
        tn = 128                              # expose >=4 parallel tiles (dual-TC)
    tk = _pick_tile(Kp, (1024, 512, 256, 128))

    x = x.astype(jnp.bfloat16)
    if Mp > M or Kp > K:
        x = jnp.pad(x, ((0, Mp - M), (0, Kp - K)))

    inputs = [x, w_pad, b_pad]
    in_specs = [
        pl.BlockSpec((tm, tk), lambda i, j, k: (i, k)),
        pl.BlockSpec((tk, tn), lambda i, j, k: (k, j)),
        # bias block index is constant across k -> fetched once per (i,j)
        pl.BlockSpec((1, tn), lambda i, j, k: (0, j)),
    ]
    if res is not None:
        r = res.astype(jnp.bfloat16)
        if Mp > r.shape[0] or Np > r.shape[1]:
            r = jnp.pad(r, ((0, Mp - r.shape[0]), (0, Np - r.shape[1])))
        inputs.append(r)
        in_specs.append(pl.BlockSpec((tm, tn), lambda i, j, k: (i, j)))

    grid = (Mp // tm, Np // tn, Kp // tk)
    out = pl.pallas_call(
        functools.partial(_mm_kernel, act=act, has_res=res is not None,
                          res_scale=res_scale),
        out_shape=jax.ShapeDtypeStruct((Mp, Np), out_dtype),
        grid_spec=pltpu.PrefetchScalarGridSpec(
            num_scalar_prefetch=0,
            grid=grid,
            in_specs=in_specs,
            out_specs=pl.BlockSpec((tm, tn), lambda i, j, k: (i, j)),
            scratch_shapes=[pltpu.VMEM((tm, tn), jnp.float32)],
        ),
        compiler_params=pltpu.CompilerParams(
            dimension_semantics=("parallel", "parallel", "arbitrary")),
    )(*inputs)

    if Mp > M or Np > n_valid:
        out = out[:M, :n_valid]
    return out


# --------------------------------------------------------------------------
# Pallas kernel 2: Blur == upfirdn2d(x, make_kernel((1,3,3,1)), up=1, down=1, pad)
# Separable (vertical 4-tap then horizontal 4-tap), tiled over (batch, channels).
# --------------------------------------------------------------------------
def _blur_kernel(x_ref, o_ref, *, taps):
    Ho, Wo = o_ref.shape[1], o_ref.shape[2]
    x = x_ref[...].astype(jnp.float32)            # (1, Hp, Wp, tc)
    v = taps[0] * x[:, 0:Ho]
    for i in range(1, len(taps)):
        v = v + taps[i] * x[:, i:i + Ho]          # vertical pass -> (1, Ho, Wp, tc)
    out = taps[0] * v[:, :, 0:Wo, :]
    for j in range(1, len(taps)):
        out = out + taps[j] * v[:, :, j:j + Wo, :]  # horizontal pass
    o_ref[...] = out.astype(o_ref.dtype)


def blur(x, pad, blur_kernel=(1, 3, 3, 1)):
    k1 = np.asarray(blur_kernel, np.float64)
    k1 = k1 / k1.sum()                 # 2D kernel = outer(k1,k1)/sum -> separable
    k1 = k1[::-1]                      # upfirdn2d flips the FIR (symmetric: no-op)
    taps = tuple(float(v) for v in k1)

    pad0, pad1 = pad
    xp = jnp.pad(x, ((0, 0), (pad0, pad1), (pad0, pad1), (0, 0)))
    N, Hp, Wp, C = xp.shape
    kt = len(blur_kernel)
    Ho, Wo = Hp - kt + 1, Wp - kt + 1
    tc = 128 if C % 128 == 0 else C

    return pl.pallas_call(
        functools.partial(_blur_kernel, taps=taps),
        out_shape=jax.ShapeDtypeStruct((N, Ho, Wo, C), x.dtype),
        grid_spec=pltpu.PrefetchScalarGridSpec(
            num_scalar_prefetch=0,
            grid=(N, C // tc),
            in_specs=[pl.BlockSpec((1, Hp, Wp, tc), lambda n, c: (n, 0, 0, c))],
            out_specs=pl.BlockSpec((1, Ho, Wo, tc), lambda n, c: (n, 0, 0, c)),
        ),
        compiler_params=pltpu.CompilerParams(
            dimension_semantics=("parallel", "parallel")),
    )(xp)


# --------------------------------------------------------------------------
# EqualConv2d (+ optional FusedLeakyReLU, + optional fused residual) via
# bf16 im2col glue + Pallas matmul.
# --------------------------------------------------------------------------
def equal_conv2d(x, cp, *, stride=1, padding=0, act=False,
                 res=None, res_scale=None, out_dtype=jnp.bfloat16):
    kh, kw, cin, cout = cp['kh'], cp['kw'], cp['cin'], cp['cout']
    if padding > 0:
        x = jnp.pad(x, ((0, 0), (padding, padding), (padding, padding), (0, 0)))
    N, H, W, _ = x.shape
    Ho = (H - kh) // stride + 1
    Wo = (W - kw) // stride + 1

    patches = []
    for i in range(kh):
        for j in range(kw):
            patches.append(x[:, i:i + (Ho - 1) * stride + 1:stride,
                              j:j + (Wo - 1) * stride + 1:stride, :])
    xm = patches[0] if len(patches) == 1 else jnp.concatenate(patches, axis=-1)
    xm = xm.reshape(N * Ho * Wo, kh * kw * cin)

    res_m = None if res is None else res.reshape(N * Ho * Wo, cout)
    out = matmul_bias_act(xm, cp['w'], cp['b'], cout, act=act,
                          res=res_m, res_scale=res_scale, out_dtype=out_dtype)
    return out.reshape(N, Ho, Wo, cout)


# --------------------------------------------------------------------------
# Parameter preparation (done once): transpose + equal-lr scale + pad + bf16.
# --------------------------------------------------------------------------
def _prep_conv(weight, bias):
    # weight: (Cout, Cin, kh, kw) torch layout
    cout, cin, kh, kw = weight.shape
    scale = 1.0 / math.sqrt(cin * kh * kw)                 # EqualConv2d scale
    w_mat = (jnp.transpose(weight, (2, 3, 1, 0)) * scale).reshape(kh * kw * cin, cout)
    K, Nc = w_mat.shape
    Kp, Np = _round_up(K, 128), _round_up(Nc, 128)
    w_mat = jnp.pad(w_mat, ((0, Kp - K), (0, Np - Nc))).astype(jnp.bfloat16)
    b = bias if bias is not None else jnp.zeros((Nc,), jnp.float32)
    b = jnp.pad(b.astype(jnp.float32), (0, Np - Nc)).reshape(1, Np)
    return dict(w=w_mat, b=b, kh=kh, kw=kw, cin=cin, cout=cout)


def _prep_linear(weight, bias, lr_mul=1.0):
    # weight: (out, in) torch layout
    nout, nin = weight.shape
    scale = (1.0 / math.sqrt(nin)) * lr_mul                # EqualLinear scale
    w_mat = jnp.transpose(weight) * scale
    Kp, Np = _round_up(nin, 128), _round_up(nout, 128)
    w_mat = jnp.pad(w_mat, ((0, Kp - nin), (0, Np - nout))).astype(jnp.bfloat16)
    b = (bias * lr_mul).astype(jnp.float32)
    b = jnp.pad(b, (0, Np - nout)).reshape(1, Np)
    return dict(w=w_mat, b=b, nout=nout)


def _channels(cm):
    return {4: 512, 8: 512, 16: 512, 32: 512, 64: 256 * cm, 128: 128 * cm,
            256: 64 * cm, 512: 32 * cm, 1024: 16 * cm}


def init_discriminator_params(key, size, channel_multiplier=1):
    ch = _channels(channel_multiplier)
    keys = iter(jax.random.split(key, 64))

    def randn(shape):
        return jax.random.normal(next(keys), shape, dtype=jnp.float32)

    p = {}
    # ConvLayer(3, ch[size], 1): EqualConv2d(bias=False) + FusedLeakyReLU(bias)
    p['conv0'] = _prep_conv(randn((ch[size], 3, 1, 1)),
                            jnp.zeros((ch[size],), jnp.float32))

    log_size = int(math.log2(size))
    in_ch = ch[size]
    blocks = []
    for i in range(log_size, 2, -1):
        out_ch = ch[2 ** (i - 1)]
        blocks.append({
            'conv1': _prep_conv(randn((out_ch, in_ch, 3, 3)),
                                jnp.zeros((out_ch,), jnp.float32)),
            'conv2': _prep_conv(randn((out_ch, out_ch, 3, 3)),
                                jnp.zeros((out_ch,), jnp.float32)),
            'skip': _prep_conv(randn((out_ch, in_ch, 1, 1)), None),  # no bias/act
        })
        in_ch = out_ch
    p['blocks'] = blocks

    p['final_conv'] = _prep_conv(randn((ch[4], in_ch, 3, 3)),
                                 jnp.zeros((ch[4],), jnp.float32))
    # EqualLinear(ch[4]*4*4, ch[4], activation='fused_lrelu'); EqualLinear(ch[4], 1)
    p['lin1'] = _prep_linear(randn((ch[4], ch[4] * 4 * 4)),
                             jnp.zeros((ch[4],), jnp.float32))
    p['lin2'] = _prep_linear(randn((1, ch[4])), jnp.zeros((1,), jnp.float32))
    return p


# --------------------------------------------------------------------------
# Forward pass (matches Discriminator.forward semantics)
# --------------------------------------------------------------------------
def discriminator_forward(params, x_nchw):
    # accept NCHW (PyTorch), compute internally in NHWC bf16
    x = jnp.transpose(x_nchw, (0, 2, 3, 1)).astype(jnp.bfloat16)

    # ConvLayer(3, C, 1)
    x = equal_conv2d(x, params['conv0'], stride=1, padding=0, act=True)

    for blk in params['blocks']:
        # conv1: 3x3, zero pad 1, + FusedLeakyReLU
        out = equal_conv2d(x, blk['conv1'], stride=1, padding=1, act=True)
        # conv2 (downsample): Blur(pad=(2,2)) -> 3x3 stride 2 -> FusedLeakyReLU
        out = blur(out, (2, 2))
        out = equal_conv2d(out, blk['conv2'], stride=2, padding=0, act=True)
        # skip: Blur(pad=(1,1)) -> 1x1 stride 2 (no bias, no act),
        # residual merge (out + skip)/sqrt(2) fused into the skip matmul epilogue.
        skip_in = blur(x, (1, 1))
        x = equal_conv2d(skip_in, blk['skip'], stride=2, padding=0, act=False,
                         res=out, res_scale=INV_SQRT2)

    # final ConvLayer(in, 512, 3)
    x = equal_conv2d(x, params['final_conv'], stride=1, padding=1, act=True)

    # out.view(N, -1) in PyTorch flattens NCHW -> (N, C*H*W)
    N = x.shape[0]
    x_flat = jnp.transpose(x, (0, 3, 1, 2)).reshape(N, -1)

    # EqualLinear(8192, 512, activation='fused_lrelu')
    h = matmul_bias_act(x_flat, params['lin1']['w'], params['lin1']['b'],
                        params['lin1']['nout'], act=True, out_dtype=jnp.bfloat16)
    # EqualLinear(512, 1)
    return matmul_bias_act(h, params['lin2']['w'], params['lin2']['b'],
                           params['lin2']['nout'], act=False,
                           out_dtype=jnp.float32)


if __name__ == "__main__":
    size = 8       # Discriminator(size=8): 1x1 stem + 1 downsampling ResBlock -> 4x4
    batch = 2
    key = jax.random.PRNGKey(0)
    pkey, xkey = jax.random.split(key)
    params = init_discriminator_params(pkey, size)
    x = jax.random.normal(xkey, (batch, 3, size, size), dtype=jnp.float32)

    # params hold Python-int metadata -> close over them instead of tracing.
    fwd = jax.jit(lambda inp: discriminator_forward(params, inp))
    out = jax.block_until_ready(fwd(x))

    assert out.shape == (batch, 1), out.shape
    assert bool(jnp.all(jnp.isfinite(out)))
    print("KERNEL_OK")
</pallas_src>

<mosaic_0001>
module attributes {stable_mosaic.version = 11 : i64} {
  func.func @_mm_kernel(%arg0: i32, %arg1: i32, %arg2: i32, %arg3: memref<128x128xbf16, #tpu.memory_space<vmem>>, %arg4: memref<128x128xbf16, #tpu.memory_space<vmem>>, %arg5: memref<1x128xf32, #tpu.memory_space<vmem>>, %arg6: memref<128x128xbf16, #tpu.memory_space<vmem>>, %arg7: memref<128x128xf32, #tpu.memory_space<vmem>>) attributes {dimension_semantics = [#tpu.dimension_semantics<parallel>, #tpu.dimension_semantics<parallel>, #tpu.dimension_semantics<arbitrary>], iteration_bounds = array<i64: 1, 4, 1>, scalar_prefetch = 0 : i64, scratch_operands = 1 : i64, tpu.core_type = #tpu.core_type<tc>, window_params = [{transform_indices = @transform_0, window_bounds = array<i64: 128, 128>}, {transform_indices = @transform_1, window_bounds = array<i64: 128, 128>}, {transform_indices = @transform_2, window_bounds = array<i64: 1, 128>}, {transform_indices = @transform_3, window_bounds = array<i64: 128, 128>}]} {
    %c0_i32 = arith.constant 0 : i32
    %0 = arith.cmpi eq, %arg2, %c0_i32 : i32
    %1 = arith.extui %0 : i1 to i32
    %c0_i32_0 = arith.constant 0 : i32
    %2 = arith.cmpi ne, %1, %c0_i32_0 : i32
    scf.if %2 {
      %cst_10 = arith.constant 0.000000e+00 : f32
      %12 = vector.broadcast %cst_10 : f32 to vector<128x128xf32>
      %c0_11 = arith.constant 0 : index
      %c0_12 = arith.constant 0 : index
      %13 = vector.load %arg7[%c0_11, %c0_12] : memref<128x128xf32, #tpu.memory_space<vmem>>, vector<128x128xf32>
      tpu.vector_store %arg7[%c0_11, %c0_12], %12 {strides = array<i32>} : memref<128x128xf32, #tpu.memory_space<vmem>>, vector<128x128xf32>,
    } else {
    }
    %c0 = arith.constant 0 : index
    %c0_1 = arith.constant 0 : index
    %3 = vector.load %arg7[%c0, %c0_1] : memref<128x128xf32, #tpu.memory_space<vmem>>, vector<128x128xf32>
    %c0_2 = arith.constant 0 : index
    %c0_3 = arith.constant 0 : index
    %4 = vector.load %arg3[%c0_2, %c0_3] : memref<128x128xbf16, #tpu.memory_space<vmem>>, vector<128x128xbf16>
    %c0_4 = arith.constant 0 : index
    %c0_5 = arith.constant 0 : index
    %5 = vector.load %arg4[%c0_4, %c0_5] : memref<128x128xbf16, #tpu.memory_space<vmem>>, vector<128x128xbf16>
    %cst = arith.constant dense<0.000000e+00> : vector<128x128xf32>
    %6 = tpu.matmul %4, %5, %cst {dimension_numbers = #tpu.dot_dimension_numbers<[1], [0], [0], [1], [0, 0, 1, 1], [], []>} : vector<128x128xbf16>, vector<128x128xbf16>, vector<128x128xf32> -> vector<128x128xf32>
    %7 = arith.addf %3, %6 : vector<128x128xf32>
    %c0_6 = arith.constant 0 : index
    %c0_7 = arith.constant 0 : index
    %8 = vector.load %arg7[%c0_6, %c0_7] : memref<128x128xf32, #tpu.memory_space<vmem>>, vector<128x128xf32>
    tpu.vector_store %arg7[%c0_6, %c0_7], %7 {strides = array<i32>} : memref<128x128xf32, #tpu.memory_space<vmem>>, vector<128x128xf32>,
    %c0_i32_8 = arith.constant 0 : i32
    %9 = arith.cmpi eq, %arg2, %c0_i32_8 : i32
    %10 = arith.extui %9 : i1 to i32
    %c0_i32_9 = arith.constant 0 : i32
    %11 = arith.cmpi ne, %10, %c0_i32_9 : i32
    scf.if %11 {
      %c0_10 = arith.constant 0 : index
      %c0_11 = arith.constant 0 : index
      %12 = vector.load %arg7[%c0_10, %c0_11] : memref<128x128xf32, #tpu.memory_space<vmem>>, vector<128x128xf32>
      %c0_12 = arith.constant 0 : index
      %c0_13 = arith.constant 0 : index
      %13 = vector.load %arg5[%c0_12, %c0_13] : memref<1x128xf32, #tpu.memory_space<vmem>>, vector<1x128xf32>
      %14 = vector.broadcast %13 : vector<1x128xf32> to vector<128x128xf32>
      %15 = arith.addf %12, %14 : vector<128x128xf32>
      %cst_14 = arith.constant 0.000000e+00 : f32
      %16 = vector.broadcast %cst_14 : f32 to vector<128x128xf32>
      %17 = arith.cmpf oge, %15, %16 : vector<128x128xf32>
      %cst_15 = arith.constant 2.000000e-01 : f32
      %18 = vector.broadcast %cst_15 : f32 to vector<128x128xf32>
      %19 = arith.mulf %18, %15 : vector<128x128xf32>
      %20 = arith.select %17, %15, %19 : vector<128x128xi1>, vector<128x128xf32>
      %cst_16 = arith.constant 1.41421354 : f32
      %21 = vector.broadcast %cst_16 : f32 to vector<128x128xf32>
      %22 = arith.mulf %20, %21 : vector<128x128xf32>
      %23 = arith.truncf %22 : vector<128x128xf32> to vector<128x128xbf16>
      %c0_17 = arith.constant 0 : index
      %c0_18 = arith.constant 0 : index
      %24 = vector.load %arg6[%c0_17, %c0_18] : memref<128x128xbf16, #tpu.memory_space<vmem>>, vector<128x128xbf16>
      tpu.vector_store %arg6[%c0_17, %c0_18], %23 {strides = array<i32>} : memref<128x128xbf16, #tpu.memory_space<vmem>>, vector<128x128xbf16>,
    } else {
    }
    return
  }
  func.func @transform_0(%arg0: i32, %arg1: i32, %arg2: i32) -> (i32, i32) {
    %c0_i32 = arith.constant 0 : i32
    return %arg0, %arg2 : i32, i32
  }
  func.func @transform_1(%arg0: i32, %arg1: i32, %arg2: i32) -> (i32, i32) {
    %c0_i32 = arith.constant 0 : i32
    return %arg2, %arg1 : i32, i32
  }
  func.func @transform_2(%arg0: i32, %arg1: i32, %arg2: i32) -> (i32, i32) {
    %c0_i32 = arith.constant 0 : i32
    %c0_i32_0 = arith.constant 0 : i32
    return %c0_i32, %arg1 : i32, i32
  }
  func.func @transform_3(%arg0: i32, %arg1: i32, %arg2: i32) -> (i32, i32) {
    %c0_i32 = arith.constant 0 : i32
    return %arg0, %arg1 : i32, i32
  }
}

module attributes {stable_mosaic.version = 11 : i64} {
  func.func @_mm_kernel(%arg0: i32, %arg1: i32, %arg2: i32, %arg3: memref<128x512xbf16, #tpu.memory_space<vmem>>, %arg4: memref<512x128xbf16, #tpu.memory_space<vmem>>, %arg5: memref<1x128xf32, #tpu.memory_space<vmem>>, %arg6: memref<128x128xbf16, #tpu.memory_space<vmem>>, %arg7: memref<128x128xf32, #tpu.memory_space<vmem>>) attributes {dimension_semantics = [#tpu.dimension_semantics<parallel>, #tpu.dimension_semantics<parallel>, #tpu.dimension_semantics<arbitrary>], iteration_bounds = array<i64: 1, 4, 9>, scalar_prefetch = 0 : i64, scratch_operands = 1 : i64, tpu.core_type = #tpu.core_type<tc>, window_params = [{transform_indices = @transform_0, window_bounds = array<i64: 128, 512>}, {transform_indices = @transform_1, window_bounds = array<i64: 512, 128>}, {transform_indices = @transform_2, window_bounds = array<i64: 1, 128>}, {transform_indices = @transform_3, window_bounds = array<i64: 128, 128>}]} {
    %c0_i32 = arith.constant 0 : i32
    %0 = arith.cmpi eq, %arg2, %c0_i32 : i32
    %1 = arith.extui %0 : i1 to i32
    %c0_i32_0 = arith.constant 0 : i32
    %2 = arith.cmpi ne, %1, %c0_i32_0 : i32
    scf.if %2 {
      %cst_9 = arith.constant 0.000000e+00 : f32
      %12 = vector.broadcast %cst_9 : f32 to vector<128x128xf32>
      %c0_10 = arith.constant 0 : index
      %c0_11 = arith.constant 0 : index
      %13 = vector.load %arg7[%c0_10, %c0_11] : memref<128x128xf32, #tpu.memory_space<vmem>>, vector<128x128xf32>
      tpu.vector_store %arg7[%c0_10, %c0_11], %12 {strides = array<i32>} : memref<128x128xf32, #tpu.memory_space<vmem>>, vector<128x128xf32>,
    } else {
    }
    %c0 = arith.constant 0 : index
    %c0_1 = arith.constant 0 : index
    %3 = vector.load %arg7[%c0, %c0_1] : memref<128x128xf32, #tpu.memory_space<vmem>>, vector<128x128xf32>
    %c0_2 = arith.constant 0 : index
    %c0_3 = arith.constant 0 : index
    %4 = vector.load %arg3[%c0_2, %c0_3] : memref<128x512xbf16, #tpu.memory_space<vmem>>, vector<128x512xbf16>
    %c0_4 = arith.constant 0 : index
    %c0_5 = arith.constant 0 : index
    %5 = vector.load %arg4[%c0_4, %c0_5] : memref<512x128xbf16, #tpu.memory_space<vmem>>, vector<512x128xbf16>
    %cst = arith.constant dense<0.000000e+00> : vector<128x128xf32>
    %6 = tpu.matmul %4, %5, %cst {dimension_numbers = #tpu.dot_dimension_numbers<[1], [0], [0], [1], [0, 0, 1, 1], [], []>} : vector<128x512xbf16>, vector<512x128xbf16>, vector<128x128xf32> -> vector<128x128xf32>
    %7 = arith.addf %3, %6 : vector<128x128xf32>
    %c0_6 = arith.constant 0 : index
    %c0_7 = arith.constant 0 : index
    %8 = vector.load %arg7[%c0_6, %c0_7] : memref<128x128xf32, #tpu.memory_space<vmem>>, vector<128x128xf32>
    tpu.vector_store %arg7[%c0_6, %c0_7], %7 {strides = array<i32>} : memref<128x128xf32, #tpu.memory_space<vmem>>, vector<128x128xf32>,
    %c8_i32 = arith.constant 8 : i32
    %9 = arith.cmpi eq, %arg2, %c8_i32 : i32
    %10 = arith.extui %9 : i1 to i32
    %c0_i32_8 = arith.constant 0 : i32
    %11 = arith.cmpi ne, %10, %c0_i32_8 : i32
    scf.if %11 {
      %c0_9 = arith.constant 0 : index
      %c0_10 = arith.constant 0 : index
      %12 = vector.load %arg7[%c0_9, %c0_10] : memref<128x128xf32, #tpu.memory_space<vmem>>, vector<128x128xf32>
      %c0_11 = arith.constant 0 : index
      %c0_12 = arith.constant 0 : index
      %13 = vector.load %arg5[%c0_11, %c0_12] : memref<1x128xf32, #tpu.memory_space<vmem>>, vector<1x128xf32>
      %14 = vector.broadcast %13 : vector<1x128xf32> to vector<128x128xf32>
      %15 = arith.addf %12, %14 : vector<128x128xf32>
      %cst_13 = arith.constant 0.000000e+00 : f32
      %16 = vector.broadcast %cst_13 : f32 to vector<128x128xf32>
      %17 = arith.cmpf oge, %15, %16 : vector<128x128xf32>
      %cst_14 = arith.constant 2.000000e-01 : f32
      %18 = vector.broadcast %cst_14 : f32 to vector<128x128xf32>
      %19 = arith.mulf %18, %15 : vector<128x128xf32>
      %20 = arith.select %17, %15, %19 : vector<128x128xi1>, vector<128x128xf32>
      %cst_15 = arith.constant 1.41421354 : f32
      %21 = vector.broadcast %cst_15 : f32 to vector<128x128xf32>
      %22 = arith.mulf %20, %21 : vector<128x128xf32>
      %23 = arith.truncf %22 : vector<128x128xf32> to vector<128x128xbf16>
      %c0_16 = arith.constant 0 : index
      %c0_17 = arith.constant 0 : index
      %24 = vector.load %arg6[%c0_16, %c0_17] : memref<128x128xbf16, #tpu.memory_space<vmem>>, vector<128x128xbf16>
      tpu.vector_store %arg6[%c0_16, %c0_17], %23 {strides = array<i32>} : memref<128x128xbf16, #tpu.memory_space<vmem>>, vector<128x128xbf16>,
    } else {
    }
    return
  }
  func.func @transform_0(%arg0: i32, %arg1: i32, %arg2: i32) -> (i32, i32) {
    %c0_i32 = arith.constant 0 : i32
    return %arg0, %arg2 : i32, i32
  }
  func.func @transform_1(%arg0: i32, %arg1: i32, %arg2: i32) -> (i32, i32) {
    %c0_i32 = arith.constant 0 : i32
    return %arg2, %arg1 : i32, i32
  }
  func.func @transform_2(%arg0: i32, %arg1: i32, %arg2: i32) -> (i32, i32) {
    %c0_i32 = arith.constant 0 : i32
    %c0_i32_0 = arith.constant 0 : i32
    return %c0_i32, %arg1 : i32, i32
  }
  func.func @transform_3(%arg0: i32, %arg1: i32, %arg2: i32) -> (i32, i32) {
    %c0_i32 = arith.constant 0 : i32
    return %arg0, %arg1 : i32, i32
  }
}

module attributes {stable_mosaic.version = 11 : i64} {
  func.func @_blur_kernel(%arg0: i32, %arg1: i32, %arg2: memref<1x12x12x128xbf16, #tpu.memory_space<vmem>>, %arg3: memref<1x9x9x128xbf16, #tpu.memory_space<vmem>>) attributes {dimension_semantics = [#tpu.dimension_semantics<parallel>, #tpu.dimension_semantics<parallel>], iteration_bounds = array<i64: 2, 4>, scalar_prefetch = 0 : i64, scratch_operands = 0 : i64, tpu.core_type = #tpu.core_type<tc>, window_params = [{transform_indices = @transform_0, window_bounds = array<i64: 1, 12, 12, 128>}, {transform_indices = @transform_1, window_bounds = array<i64: 1, 9, 9, 128>}]} {
    %c0 = arith.constant 0 : index
    %c0_0 = arith.constant 0 : index
    %c0_1 = arith.constant 0 : index
    %c0_2 = arith.constant 0 : index
    %0 = vector.load %arg2[%c0, %c0_0, %c0_1, %c0_2] : memref<1x12x12x128xbf16, #tpu.memory_space<vmem>>, vector<1x12x12x128xbf16>
    %1 = arith.extf %0 : vector<1x12x12x128xbf16> to vector<1x12x12x128xf32>
    %2 = vector.extract_strided_slice %1 {offsets = [0, 0, 0, 0], sizes = [1, 9, 12, 128], strides = [1, 1, 1, 1]} : vector<1x12x12x128xf32> to vector<1x9x12x128xf32>
    %cst = arith.constant 1.250000e-01 : f32
    %3 = vector.broadcast %cst : f32 to vector<1x9x12x128xf32>
    %4 = arith.mulf %3, %2 : vector<1x9x12x128xf32>
    %5 = vector.extract_strided_slice %1 {offsets = [0, 1, 0, 0], sizes = [1, 9, 12, 128], strides = [1, 1, 1, 1]} : vector<1x12x12x128xf32> to vector<1x9x12x128xf32>
    %cst_3 = arith.constant 3.750000e-01 : f32
    %6 = vector.broadcast %cst_3 : f32 to vector<1x9x12x128xf32>
    %7 = arith.mulf %6, %5 : vector<1x9x12x128xf32>
    %8 = arith.addf %4, %7 : vector<1x9x12x128xf32>
    %9 = vector.extract_strided_slice %1 {offsets = [0, 2, 0, 0], sizes = [1, 9, 12, 128], strides = [1, 1, 1, 1]} : vector<1x12x12x128xf32> to vector<1x9x12x128xf32>
    %cst_4 = arith.constant 3.750000e-01 : f32
    %10 = vector.broadcast %cst_4 : f32 to vector<1x9x12x128xf32>
    %11 = arith.mulf %10, %9 : vector<1x9x12x128xf32>
    %12 = arith.addf %8, %11 : vector<1x9x12x128xf32>
    %13 = vector.extract_strided_slice %1 {offsets = [0, 3, 0, 0], sizes = [1, 9, 12, 128], strides = [1, 1, 1, 1]} : vector<1x12x12x128xf32> to vector<1x9x12x128xf32>
    %cst_5 = arith.constant 1.250000e-01 : f32
    %14 = vector.broadcast %cst_5 : f32 to vector<1x9x12x128xf32>
    %15 = arith.mulf %14, %13 : vector<1x9x12x128xf32>
    %16 = arith.addf %12, %15 : vector<1x9x12x128xf32>
    %17 = vector.extract_strided_slice %16 {offsets = [0, 0, 0, 0], sizes = [1, 9, 9, 128], strides = [1, 1, 1, 1]} : vector<1x9x12x128xf32> to vector<1x9x9x128xf32>
    %cst_6 = arith.constant 1.250000e-01 : f32
    %18 = vector.broadcast %cst_6 : f32 to vector<1x9x9x128xf32>
    %19 = arith.mulf %18, %17 : vector<1x9x9x128xf32>
    %20 = vector.extract_strided_slice %16 {offsets = [0, 0, 1, 0], sizes = [1, 9, 9, 128], strides = [1, 1, 1, 1]} : vector<1x9x12x128xf32> to vector<1x9x9x128xf32>
    %cst_7 = arith.constant 3.750000e-01 : f32
    %21 = vector.broadcast %cst_7 : f32 to vector<1x9x9x128xf32>
    %22 = arith.mulf %21, %20 : vector<1x9x9x128xf32>
    %23 = arith.addf %19, %22 : vector<1x9x9x128xf32>
    %24 = vector.extract_strided_slice %16 {offsets = [0, 0, 2, 0], sizes = [1, 9, 9, 128], strides = [1, 1, 1, 1]} : vector<1x9x12x128xf32> to vector<1x9x9x128xf32>
    %cst_8 = arith.constant 3.750000e-01 : f32
    %25 = vector.broadcast %cst_8 : f32 to vector<1x9x9x128xf32>
    %26 = arith.mulf %25, %24 : vector<1x9x9x128xf32>
    %27 = arith.addf %23, %26 : vector<1x9x9x128xf32>
    %28 = vector.extract_strided_slice %16 {offsets = [0, 0, 3, 0], sizes = [1, 9, 9, 128], strides = [1, 1, 1, 1]} : vector<1x9x12x128xf32> to vector<1x9x9x128xf32>
    %cst_9 = arith.constant 1.250000e-01 : f32
    %29 = vector.broadcast %cst_9 : f32 to vector<1x9x9x128xf32>
    %30 = arith.mulf %29, %28 : vector<1x9x9x128xf32>
    %31 = arith.addf %27, %30 : vector<1x9x9x128xf32>
    %32 = arith.truncf %31 : vector<1x9x9x128xf32> to vector<1x9x9x128xbf16>
    %c0_10 = arith.constant 0 : index
    %c0_11 = arith.constant 0 : index
    %c0_12 = arith.constant 0 : index
    %c0_13 = arith.constant 0 : index
    %33 = vector.load %arg3[%c0_10, %c0_11, %c0_12, %c0_13] : memref<1x9x9x128xbf16, #tpu.memory_space<vmem>>, vector<1x9x9x128xbf16>
    tpu.vector_store %arg3[%c0_10, %c0_11, %c0_12, %c0_13], %32 {strides = array<i32>} : memref<1x9x9x128xbf16, #tpu.memory_space<vmem>>, vector<1x9x9x128xbf16>,
    return
  }
  func.func @transform_0(%arg0: i32, %arg1: i32) -> (i32, i32, i32, i32) {
    %c0_i32 = arith.constant 0 : i32
    %c0_i32_0 = arith.constant 0 : i32
    %c0_i32_1 = arith.constant 0 : i32
    return %arg0, %c0_i32, %c0_i32_0, %arg1 : i32, i32, i32, i32
  }
  func.func @transform_1(%arg0: i32, %arg1: i32) -> (i32, i32, i32, i32) {
    %c0_i32 = arith.constant 0 : i32
    %c0_i32_0 = arith.constant 0 : i32
    %c0_i32_1 = arith.constant 0 : i32
    return %arg0, %c0_i32, %c0_i32_0, %arg1 : i32, i32, i32, i32
  }
}

module attributes {stable_mosaic.version = 11 : i64} {
  func.func @_mm_kernel(%arg0: i32, %arg1: i32, %arg2: i32, %arg3: memref<32x512xbf16, #tpu.memory_space<vmem>>, %arg4: memref<512x128xbf16, #tpu.memory_space<vmem>>, %arg5: memref<1x128xf32, #tpu.memory_space<vmem>>, %arg6: memref<32x128xbf16, #tpu.memory_space<vmem>>, %arg7: memref<32x128xf32, #tpu.memory_space<vmem>>) attributes {dimension_semantics = [#tpu.dimension_semantics<parallel>, #tpu.dimension_semantics<parallel>, #tpu.dimension_semantics<arbitrary>], iteration_bounds = array<i64: 1, 4, 9>, scalar_prefetch = 0 : i64, scratch_operands = 1 : i64, tpu.core_type = #tpu.core_type<tc>, window_params = [{transform_indices = @transform_0, window_bounds = array<i64: 32, 512>}, {transform_indices = @transform_1, window_bounds = array<i64: 512, 128>}, {transform_indices = @transform_2, window_bounds = array<i64: 1, 128>}, {transform_indices = @transform_3, window_bounds = array<i64: 32, 128>}]} {
    %c0_i32 = arith.constant 0 : i32
    %0 = arith.cmpi eq, %arg2, %c0_i32 : i32
    %1 = arith.extui %0 : i1 to i32
    %c0_i32_0 = arith.constant 0 : i32
    %2 = arith.cmpi ne, %1, %c0_i32_0 : i32
    scf.if %2 {
      %cst_9 = arith.constant 0.000000e+00 : f32
      %12 = vector.broadcast %cst_9 : f32 to vector<32x128xf32>
      %c0_10 = arith.constant 0 : index
      %c0_11 = arith.constant 0 : index
      %13 = vector.load %arg7[%c0_10, %c0_11] : memref<32x128xf32, #tpu.memory_space<vmem>>, vector<32x128xf32>
      tpu.vector_store %arg7[%c0_10, %c0_11], %12 {strides = array<i32>} : memref<32x128xf32, #tpu.memory_space<vmem>>, vector<32x128xf32>,
    } else {
    }
    %c0 = arith.constant 0 : index
    %c0_1 = arith.constant 0 : index
    %3 = vector.load %arg7[%c0, %c0_1] : memref<32x128xf32, #tpu.memory_space<vmem>>, vector<32x128xf32>
    %c0_2 = arith.constant 0 : index
    %c0_3 = arith.constant 0 : index
    %4 = vector.load %arg3[%c0_2, %c0_3] : memref<32x512xbf16, #tpu.memory_space<vmem>>, vector<32x512xbf16>
    %c0_4 = arith.constant 0 : index
    %c0_5 = arith.constant 0 : index
    %5 = vector.load %arg4[%c0_4, %c0_5] : memref<512x128xbf16, #tpu.memory_space<vmem>>, vector<512x128xbf16>
    %cst = arith.constant dense<0.000000e+00> : vector<32x128xf32>
    %6 = tpu.matmul %4, %5, %cst {dimension_numbers = #tpu.dot_dimension_numbers<[1], [0], [0], [1], [0, 0, 1, 1], [], []>} : vector<32x512xbf16>, vector<512x128xbf16>, vector<32x128xf32> -> vector<32x128xf32>
    %7 = arith.addf %3, %6 : vector<32x128xf32>
    %c0_6 = arith.constant 0 : index
    %c0_7 = arith.constant 0 : index
    %8 = vector.load %arg7[%c0_6, %c0_7] : memref<32x128xf32, #tpu.memory_space<vmem>>, vector<32x128xf32>
    tpu.vector_store %arg7[%c0_6, %c0_7], %7 {strides = array<i32>} : memref<32x128xf32, #tpu.memory_space<vmem>>, vector<32x128xf32>,
    %c8_i32 = arith.constant 8 : i32
    %9 = arith.cmpi eq, %arg2, %c8_i32 : i32
    %10 = arith.extui %9 : i1 to i32
    %c0_i32_8 = arith.constant 0 : i32
    %11 = arith.cmpi ne, %10, %c0_i32_8 : i32
    scf.if %11 {
      %c0_9 = arith.constant 0 : index
      %c0_10 = arith.constant 0 : index
      %12 = vector.load %arg7[%c0_9, %c0_10] : memref<32x128xf32, #tpu.memory_space<vmem>>, vector<32x128xf32>
      %c0_11 = arith.constant 0 : index
      %c0_12 = arith.constant 0 : index
      %13 = vector.load %arg5[%c0_11, %c0_12] : memref<1x128xf32, #tpu.memory_space<vmem>>, vector<1x128xf32>
      %14 = vector.broadcast %13 : vector<1x128xf32> to vector<32x128xf32>
      %15 = arith.addf %12, %14 : vector<32x128xf32>
      %cst_13 = arith.constant 0.000000e+00 : f32
      %16 = vector.broadcast %cst_13 : f32 to vector<32x128xf32>
      %17 = arith.cmpf oge, %15, %16 : vector<32x128xf32>
      %cst_14 = arith.constant 2.000000e-01 : f32
      %18 = vector.broadcast %cst_14 : f32 to vector<32x128xf32>
      %19 = arith.mulf %18, %15 : vector<32x128xf32>
      %20 = arith.select %17, %15, %19 : vector<32x128xi1>, vector<32x128xf32>
      %cst_15 = arith.constant 1.41421354 : f32
      %21 = vector.broadcast %cst_15 : f32 to vector<32x128xf32>
      %22 = arith.mulf %20, %21 : vector<32x128xf32>
      %23 = arith.truncf %22 : vector<32x128xf32> to vector<32x128xbf16>
      %c0_16 = arith.constant 0 : index
      %c0_17 = arith.constant 0 : index
      %24 = vector.load %arg6[%c0_16, %c0_17] : memref<32x128xbf16, #tpu.memory_space<vmem>>, vector<32x128xbf16>
      tpu.vector_store %arg6[%c0_16, %c0_17], %23 {strides = array<i32>} : memref<32x128xbf16, #tpu.memory_space<vmem>>, vector<32x128xbf16>,
    } else {
    }
    return
  }
  func.func @transform_0(%arg0: i32, %arg1: i32, %arg2: i32) -> (i32, i32) {
    %c0_i32 = arith.constant 0 : i32
    return %arg0, %arg2 : i32, i32
  }
  func.func @transform_1(%arg0: i32, %arg1: i32, %arg2: i32) -> (i32, i32) {
    %c0_i32 = arith.constant 0 : i32
    return %arg2, %arg1 : i32, i32
  }
  func.func @transform_2(%arg0: i32, %arg1: i32, %arg2: i32) -> (i32, i32) {
    %c0_i32 = arith.constant 0 : i32
    %c0_i32_0 = arith.constant 0 : i32
    return %c0_i32, %arg1 : i32, i32
  }
  func.func @transform_3(%arg0: i32, %arg1: i32, %arg2: i32) -> (i32, i32) {
    %c0_i32 = arith.constant 0 : i32
    return %arg0, %arg1 : i32, i32
  }
}

module attributes {stable_mosaic.version = 11 : i64} {
  func.func @_blur_kernel(%arg0: i32, %arg1: i32, %arg2: memref<1x10x10x128xbf16, #tpu.memory_space<vmem>>, %arg3: memref<1x7x7x128xbf16, #tpu.memory_space<vmem>>) attributes {dimension_semantics = [#tpu.dimension_semantics<parallel>, #tpu.dimension_semantics<parallel>], iteration_bounds = array<i64: 2, 4>, scalar_prefetch = 0 : i64, scratch_operands = 0 : i64, tpu.core_type = #tpu.core_type<tc>, window_params = [{transform_indices = @transform_0, window_bounds = array<i64: 1, 10, 10, 128>}, {transform_indices = @transform_1, window_bounds = array<i64: 1, 7, 7, 128>}]} {
    %c0 = arith.constant 0 : index
    %c0_0 = arith.constant 0 : index
    %c0_1 = arith.constant 0 : index
    %c0_2 = arith.constant 0 : index
    %0 = vector.load %arg2[%c0, %c0_0, %c0_1, %c0_2] : memref<1x10x10x128xbf16, #tpu.memory_space<vmem>>, vector<1x10x10x128xbf16>
    %1 = arith.extf %0 : vector<1x10x10x128xbf16> to vector<1x10x10x128xf32>
    %2 = vector.extract_strided_slice %1 {offsets = [0, 0, 0, 0], sizes = [1, 7, 10, 128], strides = [1, 1, 1, 1]} : vector<1x10x10x128xf32> to vector<1x7x10x128xf32>
    %cst = arith.constant 1.250000e-01 : f32
    %3 = vector.broadcast %cst : f32 to vector<1x7x10x128xf32>
    %4 = arith.mulf %3, %2 : vector<1x7x10x128xf32>
    %5 = vector.extract_strided_slice %1 {offsets = [0, 1, 0, 0], sizes = [1, 7, 10, 128], strides = [1, 1, 1, 1]} : vector<1x10x10x128xf32> to vector<1x7x10x128xf32>
    %cst_3 = arith.constant 3.750000e-01 : f32
    %6 = vector.broadcast %cst_3 : f32 to vector<1x7x10x128xf32>
    %7 = arith.mulf %6, %5 : vector<1x7x10x128xf32>
    %8 = arith.addf %4, %7 : vector<1x7x10x128xf32>
    %9 = vector.extract_strided_slice %1 {offsets = [0, 2, 0, 0], sizes = [1, 7, 10, 128], strides = [1, 1, 1, 1]} : vector<1x10x10x128xf32> to vector<1x7x10x128xf32>
    %cst_4 = arith.constant 3.750000e-01 : f32
    %10 = vector.broadcast %cst_4 : f32 to vector<1x7x10x128xf32>
    %11 = arith.mulf %10, %9 : vector<1x7x10x128xf32>
    %12 = arith.addf %8, %11 : vector<1x7x10x128xf32>
    %13 = vector.extract_strided_slice %1 {offsets = [0, 3, 0, 0], sizes = [1, 7, 10, 128], strides = [1, 1, 1, 1]} : vector<1x10x10x128xf32> to vector<1x7x10x128xf32>
    %cst_5 = arith.constant 1.250000e-01 : f32
    %14 = vector.broadcast %cst_5 : f32 to vector<1x7x10x128xf32>
    %15 = arith.mulf %14, %13 : vector<1x7x10x128xf32>
    %16 = arith.addf %12, %15 : vector<1x7x10x128xf32>
    %17 = vector.extract_strided_slice %16 {offsets = [0, 0, 0, 0], sizes = [1, 7, 7, 128], strides = [1, 1, 1, 1]} : vector<1x7x10x128xf32> to vector<1x7x7x128xf32>
    %cst_6 = arith.constant 1.250000e-01 : f32
    %18 = vector.broadcast %cst_6 : f32 to vector<1x7x7x128xf32>
    %19 = arith.mulf %18, %17 : vector<1x7x7x128xf32>
    %20 = vector.extract_strided_slice %16 {offsets = [0, 0, 1, 0], sizes = [1, 7, 7, 128], strides = [1, 1, 1, 1]} : vector<1x7x10x128xf32> to vector<1x7x7x128xf32>
    %cst_7 = arith.constant 3.750000e-01 : f32
    %21 = vector.broadcast %cst_7 : f32 to vector<1x7x7x128xf32>
    %22 = arith.mulf %21, %20 : vector<1x7x7x128xf32>
    %23 = arith.addf %19, %22 : vector<1x7x7x128xf32>
    %24 = vector.extract_strided_slice %16 {offsets = [0, 0, 2, 0], sizes = [1, 7, 7, 128], strides = [1, 1, 1, 1]} : vector<1x7x10x128xf32> to vector<1x7x7x128xf32>
    %cst_8 = arith.constant 3.750000e-01 : f32
    %25 = vector.broadcast %cst_8 : f32 to vector<1x7x7x128xf32>
    %26 = arith.mulf %25, %24 : vector<1x7x7x128xf32>
    %27 = arith.addf %23, %26 : vector<1x7x7x128xf32>
    %28 = vector.extract_strided_slice %16 {offsets = [0, 0, 3, 0], sizes = [1, 7, 7, 128], strides = [1, 1, 1, 1]} : vector<1x7x10x128xf32> to vector<1x7x7x128xf32>
    %cst_9 = arith.constant 1.250000e-01 : f32
    %29 = vector.broadcast %cst_9 : f32 to vector<1x7x7x128xf32>
    %30 = arith.mulf %29, %28 : vector<1x7x7x128xf32>
    %31 = arith.addf %27, %30 : vector<1x7x7x128xf32>
    %32 = arith.truncf %31 : vector<1x7x7x128xf32> to vector<1x7x7x128xbf16>
    %c0_10 = arith.constant 0 : index
    %c0_11 = arith.constant 0 : index
    %c0_12 = arith.constant 0 : index
    %c0_13 = arith.constant 0 : index
    %33 = vector.load %arg3[%c0_10, %c0_11, %c0_12, %c0_13] : memref<1x7x7x128xbf16, #tpu.memory_space<vmem>>, vector<1x7x7x128xbf16>
    tpu.vector_store %arg3[%c0_10, %c0_11, %c0_12, %c0_13], %32 {strides = array<i32>} : memref<1x7x7x128xbf16, #tpu.memory_space<vmem>>, vector<1x7x7x128xbf16>,
    return
  }
  func.func @transform_0(%arg0: i32, %arg1: i32) -> (i32, i32, i32, i32) {
    %c0_i32 = arith.constant 0 : i32
    %c0_i32_0 = arith.constant 0 : i32
    %c0_i32_1 = arith.constant 0 : i32
    return %arg0, %c0_i32, %c0_i32_0, %arg1 : i32, i32, i32, i32
  }
  func.func @transform_1(%arg0: i32, %arg1: i32) -> (i32, i32, i32, i32) {
    %c0_i32 = arith.constant 0 : i32
    %c0_i32_0 = arith.constant 0 : i32
    %c0_i32_1 = arith.constant 0 : i32
    return %arg0, %c0_i32, %c0_i32_0, %arg1 : i32, i32, i32, i32
  }
}

module attributes {stable_mosaic.version = 11 : i64} {
  func.func @_mm_kernel(%arg0: i32, %arg1: i32, %arg2: i32, %arg3: memref<32x512xbf16, #tpu.memory_space<vmem>>, %arg4: memref<512x128xbf16, #tpu.memory_space<vmem>>, %arg5: memref<1x128xf32, #tpu.memory_space<vmem>>, %arg6: memref<32x128xbf16, #tpu.memory_space<vmem>>, %arg7: memref<32x128xbf16, #tpu.memory_space<vmem>>, %arg8: memref<32x128xf32, #tpu.memory_space<vmem>>) attributes {dimension_semantics = [#tpu.dimension_semantics<parallel>, #tpu.dimension_semantics<parallel>, #tpu.dimension_semantics<arbitrary>], iteration_bounds = array<i64: 1, 4, 1>, scalar_prefetch = 0 : i64, scratch_operands = 1 : i64, tpu.core_type = #tpu.core_type<tc>, window_params = [{transform_indices = @transform_0, window_bounds = array<i64: 32, 512>}, {transform_indices = @transform_1, window_bounds = array<i64: 512, 128>}, {transform_indices = @transform_2, window_bounds = array<i64: 1, 128>}, {transform_indices = @transform_3, window_bounds = array<i64: 32, 128>}, {transform_indices = @transform_4, window_bounds = array<i64: 32, 128>}]} {
    %c0_i32 = arith.constant 0 : i32
    %0 = arith.cmpi eq, %arg2, %c0_i32 : i32
    %1 = arith.extui %0 : i1 to i32
    %c0_i32_0 = arith.constant 0 : i32
    %2 = arith.cmpi ne, %1, %c0_i32_0 : i32
    scf.if %2 {
      %cst_10 = arith.constant 0.000000e+00 : f32
      %12 = vector.broadcast %cst_10 : f32 to vector<32x128xf32>
      %c0_11 = arith.constant 0 : index
      %c0_12 = arith.constant 0 : index
      %13 = vector.load %arg8[%c0_11, %c0_12] : memref<32x128xf32, #tpu.memory_space<vmem>>, vector<32x128xf32>
      tpu.vector_store %arg8[%c0_11, %c0_12], %12 {strides = array<i32>} : memref<32x128xf32, #tpu.memory_space<vmem>>, vector<32x128xf32>,
    } else {
    }
    %c0 = arith.constant 0 : index
    %c0_1 = arith.constant 0 : index
    %3 = vector.load %arg8[%c0, %c0_1] : memref<32x128xf32, #tpu.memory_space<vmem>>, vector<32x128xf32>
    %c0_2 = arith.constant 0 : index
    %c0_3 = arith.constant 0 : index
    %4 = vector.load %arg3[%c0_2, %c0_3] : memref<32x512xbf16, #tpu.memory_space<vmem>>, vector<32x512xbf16>
    %c0_4 = arith.constant 0 : index
    %c0_5 = arith.constant 0 : index
    %5 = vector.load %arg4[%c0_4, %c0_5] : memref<512x128xbf16, #tpu.memory_space<vmem>>, vector<512x128xbf16>
    %cst = arith.constant dense<0.000000e+00> : vector<32x128xf32>
    %6 = tpu.matmul %4, %5, %cst {dimension_numbers = #tpu.dot_dimension_numbers<[1], [0], [0], [1], [0, 0, 1, 1], [], []>} : vector<32x512xbf16>, vector<512x128xbf16>, vector<32x128xf32> -> vector<32x128xf32>
    %7 = arith.addf %3, %6 : vector<32x128xf32>
    %c0_6 = arith.constant 0 : index
    %c0_7 = arith.constant 0 : index
    %8 = vector.load %arg8[%c0_6, %c0_7] : memref<32x128xf32, #tpu.memory_space<vmem>>, vector<32x128xf32>
    tpu.vector_store %arg8[%c0_6, %c0_7], %7 {strides = array<i32>} : memref<32x128xf32, #tpu.memory_space<vmem>>, vector<32x128xf32>,
    %c0_i32_8 = arith.constant 0 : i32
    %9 = arith.cmpi eq, %arg2, %c0_i32_8 : i32
    %10 = arith.extui %9 : i1 to i32
    %c0_i32_9 = arith.constant 0 : i32
    %11 = arith.cmpi ne, %10, %c0_i32_9 : i32
    scf.if %11 {
      %c0_10 = arith.constant 0 : index
      %c0_11 = arith.constant 0 : index
      %12 = vector.load %arg8[%c0_10, %c0_11] : memref<32x128xf32, #tpu.memory_space<vmem>>, vector<32x128xf32>
      %c0_12 = arith.constant 0 : index
      %c0_13 = arith.constant 0 : index
      %13 = vector.load %arg5[%c0_12, %c0_13] : memref<1x128xf32, #tpu.memory_space<vmem>>, vector<1x128xf32>
      %14 = vector.broadcast %13 : vector<1x128xf32> to vector<32x128xf32>
      %15 = arith.addf %12, %14 : vector<32x128xf32>
      %c0_14 = arith.constant 0 : index
      %c0_15 = arith.constant 0 : index
      %16 = vector.load %arg6[%c0_14, %c0_15] : memref<32x128xbf16, #tpu.memory_space<vmem>>, vector<32x128xbf16>
      %17 = arith.extf %16 : vector<32x128xbf16> to vector<32x128xf32>
      %18 = arith.addf %15, %17 : vector<32x128xf32>
      %cst_16 = arith.constant 0.707106769 : f32
      %19 = vector.broadcast %cst_16 : f32 to vector<32x128xf32>
      %20 = arith.mulf %18, %19 : vector<32x128xf32>
      %21 = arith.truncf %20 : vector<32x128xf32> to vector<32x128xbf16>
      %c0_17 = arith.constant 0 : index
      %c0_18 = arith.constant 0 : index
      %22 = vector.load %arg7[%c0_17, %c0_18] : memref<32x128xbf16, #tpu.memory_space<vmem>>, vector<32x128xbf16>
      tpu.vector_store %arg7[%c0_17, %c0_18], %21 {strides = array<i32>} : memref<32x128xbf16, #tpu.memory_space<vmem>>, vector<32x128xbf16>,
    } else {
    }
    return
  }
  func.func @transform_0(%arg0: i32, %arg1: i32, %arg2: i32) -> (i32, i32) {
    %c0_i32 = arith.constant 0 : i32
    return %arg0, %arg2 : i32, i32
  }
  func.func @transform_1(%arg0: i32, %arg1: i32, %arg2: i32) -> (i32, i32) {
    %c0_i32 = arith.constant 0 : i32
    return %arg2, %arg1 : i32, i32
  }
  func.func @transform_2(%arg0: i32, %arg1: i32, %arg2: i32) -> (i32, i32) {
    %c0_i32 = arith.constant 0 : i32
    %c0_i32_0 = arith.constant 0 : i32
    return %c0_i32, %arg1 : i32, i32
  }
  func.func @transform_3(%arg0: i32, %arg1: i32, %arg2: i32) -> (i32, i32) {
    %c0_i32 = arith.constant 0 : i32
    return %arg0, %arg1 : i32, i32
  }
  func.func @transform_4(%arg0: i32, %arg1: i32, %arg2: i32) -> (i32, i32) {
    %c0_i32 = arith.constant 0 : i32
    return %arg0, %arg1 : i32, i32
  }
}

module attributes {stable_mosaic.version = 11 : i64} {
  func.func @_mm_kernel(%arg0: i32, %arg1: i32, %arg2: i32, %arg3: memref<16x1024xbf16, #tpu.memory_space<vmem>>, %arg4: memref<1024x128xbf16, #tpu.memory_space<vmem>>, %arg5: memref<1x128xf32, #tpu.memory_space<vmem>>, %arg6: memref<16x128xbf16, #tpu.memory_space<vmem>>, %arg7: memref<16x128xf32, #tpu.memory_space<vmem>>) attributes {dimension_semantics = [#tpu.dimension_semantics<parallel>, #tpu.dimension_semantics<parallel>, #tpu.dimension_semantics<arbitrary>], iteration_bounds = array<i64: 1, 4, 8>, scalar_prefetch = 0 : i64, scratch_operands = 1 : i64, tpu.core_type = #tpu.core_type<tc>, window_params = [{transform_indices = @transform_0, window_bounds = array<i64: 16, 1024>}, {transform_indices = @transform_1, window_bounds = array<i64: 1024, 128>}, {transform_indices = @transform_2, window_bounds = array<i64: 1, 128>}, {transform_indices = @transform_3, window_bounds = array<i64: 16, 128>}]} {
    %c0_i32 = arith.constant 0 : i32
    %0 = arith.cmpi eq, %arg2, %c0_i32 : i32
    %1 = arith.extui %0 : i1 to i32
    %c0_i32_0 = arith.constant 0 : i32
    %2 = arith.cmpi ne, %1, %c0_i32_0 : i32
    scf.if %2 {
      %cst_9 = arith.constant 0.000000e+00 : f32
      %12 = vector.broadcast %cst_9 : f32 to vector<16x128xf32>
      %c0_10 = arith.constant 0 : index
      %c0_11 = arith.constant 0 : index
      %13 = vector.load %arg7[%c0_10, %c0_11] : memref<16x128xf32, #tpu.memory_space<vmem>>, vector<16x128xf32>
      tpu.vector_store %arg7[%c0_10, %c0_11], %12 {strides = array<i32>} : memref<16x128xf32, #tpu.memory_space<vmem>>, vector<16x128xf32>,
    } else {
    }
    %c0 = arith.constant 0 : index
    %c0_1 = arith.constant 0 : index
    %3 = vector.load %arg7[%c0, %c0_1] : memref<16x128xf32, #tpu.memory_space<vmem>>, vector<16x128xf32>
    %c0_2 = arith.constant 0 : index
    %c0_3 = arith.constant 0 : index
    %4 = vector.load %arg3[%c0_2, %c0_3] : memref<16x1024xbf16, #tpu.memory_space<vmem>>, vector<16x1024xbf16>
    %c0_4 = arith.constant 0 : index
    %c0_5 = arith.constant 0 : index
    %5 = vector.load %arg4[%c0_4, %c0_5] : memref<1024x128xbf16, #tpu.memory_space<vmem>>, vector<1024x128xbf16>
    %cst = arith.constant dense<0.000000e+00> : vector<16x128xf32>
    %6 = tpu.matmul %4, %5, %cst {dimension_numbers = #tpu.dot_dimension_numbers<[1], [0], [0], [1], [0, 0, 1, 1], [], []>} : vector<16x1024xbf16>, vector<1024x128xbf16>, vector<16x128xf32> -> vector<16x128xf32>
    %7 = arith.addf %3, %6 : vector<16x128xf32>
    %c0_6 = arith.constant 0 : index
    %c0_7 = arith.constant 0 : index
    %8 = vector.load %arg7[%c0_6, %c0_7] : memref<16x128xf32, #tpu.memory_space<vmem>>, vector<16x128xf32>
    tpu.vector_store %arg7[%c0_6, %c0_7], %7 {strides = array<i32>} : memref<16x128xf32, #tpu.memory_space<vmem>>, vector<16x128xf32>,
    %c7_i32 = arith.constant 7 : i32
    %9 = arith.cmpi eq, %arg2, %c7_i32 : i32
    %10 = arith.extui %9 : i1 to i32
    %c0_i32_8 = arith.constant 0 : i32
    %11 = arith.cmpi ne, %10, %c0_i32_8 : i32
    scf.if %11 {
      %c0_9 = arith.constant 0 : index
      %c0_10 = arith.constant 0 : index
      %12 = vector.load %arg7[%c0_9, %c0_10] : memref<16x128xf32, #tpu.memory_space<vmem>>, vector<16x128xf32>
      %c0_11 = arith.constant 0 : index
      %c0_12 = arith.constant 0 : index
      %13 = vector.load %arg5[%c0_11, %c0_12] : memref<1x128xf32, #tpu.memory_space<vmem>>, vector<1x128xf32>
      %14 = vector.broadcast %13 : vector<1x128xf32> to vector<16x128xf32>
      %15 = arith.addf %12, %14 : vector<16x128xf32>
      %cst_13 = arith.constant 0.000000e+00 : f32
      %16 = vector.broadcast %cst_13 : f32 to vector<16x128xf32>
      %17 = arith.cmpf oge, %15, %16 : vector<16x128xf32>
      %cst_14 = arith.constant 2.000000e-01 : f32
      %18 = vector.broadcast %cst_14 : f32 to vector<16x128xf32>
      %19 = arith.mulf %18, %15 : vector<16x128xf32>
      %20 = arith.select %17, %15, %19 : vector<16x128xi1>, vector<16x128xf32>
      %cst_15 = arith.constant 1.41421354 : f32
      %21 = vector.broadcast %cst_15 : f32 to vector<16x128xf32>
      %22 = arith.mulf %20, %21 : vector<16x128xf32>
      %23 = arith.truncf %22 : vector<16x128xf32> to vector<16x128xbf16>
      %c0_16 = arith.constant 0 : index
      %c0_17 = arith.constant 0 : index
      %24 = vector.load %arg6[%c0_16, %c0_17] : memref<16x128xbf16, #tpu.memory_space<vmem>>, vector<16x128xbf16>
      tpu.vector_store %arg6[%c0_16, %c0_17], %23 {strides = array<i32>} : memref<16x128xbf16, #tpu.memory_space<vmem>>, vector<16x128xbf16>,
    } else {
    }
    return
  }
  func.func @transform_0(%arg0: i32, %arg1: i32, %arg2: i32) -> (i32, i32) {
    %c0_i32 = arith.constant 0 : i32
    return %arg0, %arg2 : i32, i32
  }
  func.func @transform_1(%arg0: i32, %arg1: i32, %arg2: i32) -> (i32, i32) {
    %c0_i32 = arith.constant 0 : i32
    return %arg2, %arg1 : i32, i32
  }
  func.func @transform_2(%arg0: i32, %arg1: i32, %arg2: i32) -> (i32, i32) {
    %c0_i32 = arith.constant 0 : i32
    %c0_i32_0 = arith.constant 0 : i32
    return %c0_i32, %arg1 : i32, i32
  }
  func.func @transform_3(%arg0: i32, %arg1: i32, %arg2: i32) -> (i32, i32) {
    %c0_i32 = arith.constant 0 : i32
    return %arg0, %arg1 : i32, i32
  }
}

module attributes {stable_mosaic.version = 11 : i64} {
  func.func @_mm_kernel(%arg0: i32, %arg1: i32, %arg2: i32, %arg3: memref<16x512xbf16, #tpu.memory_space<vmem>>, %arg4: memref<512x128xbf16, #tpu.memory_space<vmem>>, %arg5: memref<1x128xf32, #tpu.memory_space<vmem>>, %arg6: memref<16x128xf32, #tpu.memory_space<vmem>>, %arg7: memref<16x128xf32, #tpu.memory_space<vmem>>) attributes {dimension_semantics = [#tpu.dimension_semantics<parallel>, #tpu.dimension_semantics<parallel>, #tpu.dimension_semantics<arbitrary>], iteration_bounds = array<i64: 1, 1, 1>, scalar_prefetch = 0 : i64, scratch_operands = 1 : i64, tpu.core_type = #tpu.core_type<tc>, window_params = [{transform_indices = @transform_0, window_bounds = array<i64: 16, 512>}, {transform_indices = @transform_1, window_bounds = array<i64: 512, 128>}, {transform_indices = @transform_2, window_bounds = array<i64: 1, 128>}, {transform_indices = @transform_3, window_bounds = array<i64: 16, 128>}]} {
    %c0_i32 = arith.constant 0 : i32
    %0 = arith.cmpi eq, %arg2, %c0_i32 : i32
    %1 = arith.extui %0 : i1 to i32
    %c0_i32_0 = arith.constant 0 : i32
    %2 = arith.cmpi ne, %1, %c0_i32_0 : i32
    scf.if %2 {
      %cst_10 = arith.constant 0.000000e+00 : f32
      %12 = vector.broadcast %cst_10 : f32 to vector<16x128xf32>
      %c0_11 = arith.constant 0 : index
      %c0_12 = arith.constant 0 : index
      %13 = vector.load %arg7[%c0_11, %c0_12] : memref<16x128xf32, #tpu.memory_space<vmem>>, vector<16x128xf32>
      tpu.vector_store %arg7[%c0_11, %c0_12], %12 {strides = array<i32>} : memref<16x128xf32, #tpu.memory_space<vmem>>, vector<16x128xf32>,
    } else {
    }
    %c0 = arith.constant 0 : index
    %c0_1 = arith.constant 0 : index
    %3 = vector.load %arg7[%c0, %c0_1] : memref<16x128xf32, #tpu.memory_space<vmem>>, vector<16x128xf32>
    %c0_2 = arith.constant 0 : index
    %c0_3 = arith.constant 0 : index
    %4 = vector.load %arg3[%c0_2, %c0_3] : memref<16x512xbf16, #tpu.memory_space<vmem>>, vector<16x512xbf16>
    %c0_4 = arith.constant 0 : index
    %c0_5 = arith.constant 0 : index
    %5 = vector.load %arg4[%c0_4, %c0_5] : memref<512x128xbf16, #tpu.memory_space<vmem>>, vector<512x128xbf16>
    %cst = arith.constant dense<0.000000e+00> : vector<16x128xf32>
    %6 = tpu.matmul %4, %5, %cst {dimension_numbers = #tpu.dot_dimension_numbers<[1], [0], [0], [1], [0, 0, 1, 1], [], []>} : vector<16x512xbf16>, vector<512x128xbf16>, vector<16x128xf32> -> vector<16x128xf32>
    %7 = arith.addf %3, %6 : vector<16x128xf32>
    %c0_6 = arith.constant 0 : index
    %c0_7 = arith.constant 0 : index
    %8 = vector.load %arg7[%c0_6, %c0_7] : memref<16x128xf32, #tpu.memory_space<vmem>>, vector<16x128xf32>
    tpu.vector_store %arg7[%c0_6, %c0_7], %7 {strides = array<i32>} : memref<16x128xf32, #tpu.memory_space<vmem>>, vector<16x128xf32>,
    %c0_i32_8 = arith.constant 0 : i32
    %9 = arith.cmpi eq, %arg2, %c0_i32_8 : i32
    %10 = arith.extui %9 : i1 to i32
    %c0_i32_9 = arith.constant 0 : i32
    %11 = arith.cmpi ne, %10, %c0_i32_9 : i32
    scf.if %11 {
      %c0_10 = arith.constant 0 : index
      %c0_11 = arith.constant 0 : index
      %12 = vector.load %arg7[%c0_10, %c0_11] : memref<16x128xf32, #tpu.memory_space<vmem>>, vector<16x128xf32>
      %c0_12 = arith.constant 0 : index
      %c0_13 = arith.constant 0 : index
      %13 = vector.load %arg5[%c0_12, %c0_13] : memref<1x128xf32, #tpu.memory_space<vmem>>, vector<1x128xf32>
      %14 = vector.broadcast %13 : vector<1x128xf32> to vector<16x128xf32>
      %15 = arith.addf %12, %14 : vector<16x128xf32>
      %c0_14 = arith.constant 0 : index
      %c0_15 = arith.constant 0 : index
      %16 = vector.load %arg6[%c0_14, %c0_15] : memref<16x128xf32, #tpu.memory_space<vmem>>, vector<16x128xf32>
      tpu.vector_store %arg6[%c0_14, %c0_15], %15 {strides = array<i32>} : memref<16x128xf32, #tpu.memory_space<vmem>>, vector<16x128xf32>,
    } else {
    }
    return
  }
  func.func @transform_0(%arg0: i32, %arg1: i32, %arg2: i32) -> (i32, i32) {
    %c0_i32 = arith.constant 0 : i32
    return %arg0, %arg2 : i32, i32
  }
  func.func @transform_1(%arg0: i32, %arg1: i32, %arg2: i32) -> (i32, i32) {
    %c0_i32 = arith.constant 0 : i32
    return %arg2, %arg1 : i32, i32
  }
  func.func @transform_2(%arg0: i32, %arg1: i32, %arg2: i32) -> (i32, i32) {
    %c0_i32 = arith.constant 0 : i32
    %c0_i32_0 = arith.constant 0 : i32
    return %c0_i32, %arg1 : i32, i32
  }
  func.func @transform_3(%arg0: i32, %arg1: i32, %arg2: i32) -> (i32, i32) {
    %c0_i32 = arith.constant 0 : i32
    return %arg0, %arg1 : i32, i32
  }
}

</mosaic_0001>

<llo_original>
// kernel: _lambda_.9
$region0: #{_lambda_.9}
  #allocation0 [shape = 'u32[]', space=smem, size = 0x4, offset = 0x4, fixed_abs, tag = 'smem constant byte address 0x4 - core index']
  #allocation1 [shape = 'u32[72,128]{1,0:T(1,128)}', space=vmem, size = 0x9000, scoped, tag = 'internal scratch']
  #allocation2 [shape = 'f32[128,128]{1,0:T(8,128)}', space=vmem, size = 0x10000, scoped, tag = 'scratch operand']
  %s0 = inlined_call_operand.vmem [shape: bf16[128,128], index: 0, kind: input, shape index: {}]
  %s1 = inlined_call_operand.hbm [shape: bf16[128,512], index: 1, kind: input, shape index: {}]
  %s2 = inlined_call_operand.vmem [shape: f32[1,512], index: 2, kind: input, shape index: {}]
  %s3 = inlined_call_operand.vmem [shape: bf16[128,512], index: 3, kind: output, shape index: {}]
  %s4 = sld [smem:[#allocation0]]
  $region94: #{_lambda_.9} parent=0
    _
  %s6 = ssub.s32 1, %s4
  %s7 = scalar_select 0, %s6, %s4
  $region1: #{_lambda_.9} parent=0
    #allocation3 [shape = 'u8[65536]{0}', space=vmem, size = 0x10000, scoped, tag = 'input window, operand 1']
    #allocation4 [shape = 's32[2]{0}', space=sflag, size = 0x8, scoped, tag = 'scoped memory for _lambda_.9']
    #allocation5 [shape = 'u8[65536]{0}', space=vmem, size = 0x10000, scoped, tag = 'output window, operand 0']
    %8 = vsyncpa [#allocation4], 0
    %s9 = scalar_lea.sflag [#allocation4], 1
    %10 = vsyncpa %s9, 0
    loop: start=0, step=1, limit=6
    $region2: #{_lambda_.9} parent=1 // loop_pre_header
      _
    $region3: #{_lambda_.9} parent=1 // loop_header
      %s12 = sphi 0, %s16
      %p13 = scmp.ge.s32.totalorder %s12, 6
      %s19 = sphi 0, %s38
      %s20 = sphi 0, %s34
      %s21 = sphi 0, %s30
      %s22 = sphi 0, %s19
      %s23 = sphi 0, %s20
      %s24 = sphi 0, %s21
      %s25 = sphi 0, %s22
      %s26 = sphi 0, %s23
      %s27 = sphi 0, %s24
      %s43 = sphi 0, %s45
      %s46 = sphi 0, %s43
      %s47 = sphi 0, %s46
      %s63 = sphi 0, %s47
      %s71 = sphi 0, %s73
      %s74 = sphi 0, %s71
      %s75 = sphi 0, %s74
      %s91 = sphi 0, %s75
      %s97 = sphi 0, %s99
      %s100 = sphi 0, %s97
      %s101 = sphi 0, %s100
      %s117 = sphi 0, %s101
      %s125 = sphi 0, %s127
      %s128 = sphi 0, %s125
      %s129 = sphi 0, %s128
      %s145 = sphi 0, %s129
    $region4: #{_lambda_.9} parent=1 // loop_header_branch
      %15 = sbr.rel (%p13) target = $region8
    $region5: #{_lambda_.9} parent=1 // loop_body
      %s17 = ssub.s32 %s12, 1
      %s18 = ssub.s32 %s12, 2
      %s28 = sadd.s32 1, %s21
      %p29 = scmp.ge.s32.totalorder %s28, 1
      %s30 = scalar_select %p29, 0, %s28
      %s31 = sadd.s32 1, %s20
      %s32 = scalar_select %p29, %s31, %s20
      %p33 = scmp.ge.s32.totalorder %s32, 4
      %s34 = scalar_select %p33, 0, %s32
      %s35 = sadd.s32 1, %s19
      %s36 = scalar_select %p33, %s35, %s19
      %p37 = scmp.ge.s32.totalorder %s36, 1
      %s38 = scalar_select %p37, 0, %s36
      %s39 = ssub.s32 %s19, %s38
      %s40 = ssub.s32 %s21, %s30
      %s41 = sor.u32 %s39, %s40
      %p42 = scmp.eq.s32.totalorder %s41, 0
      %s44 = sadd.s32 %s43, 1
      %s45 = scalar_select %p42, %s43, %s44
      %p48 = pneg %p42
      %p49 = scmp.eq.s32.totalorder %s12, 3
      %p50 = por %p48, %p49
      %p51 = scmp.ne.s32.totalorder %s43, %s46
      %p52 = scmp.eq.s32.totalorder %s12, 0
      %p53 = por %p51, %p52
      %p54 = scmp.ne.s32.totalorder %s43, %s46
      %p55 = scmp.eq.s32.totalorder %s17, 3
      %p56 = por %p54, %p55
      %p57 = scmp.ne.s32.totalorder %s46, %s47
      %p58 = scmp.eq.s32.totalorder %s17, 0
      %p59 = por %p57, %p58
      %p60 = scmp.ne.s32.totalorder %s46, %s47
      %p61 = scmp.eq.s32.totalorder %s18, 3
      %p62 = por %p60, %p61
      %p64 = scmp.ne.s32.totalorder %s47, %s63
      %p65 = scmp.eq.s32.totalorder %s18, 0
      %p66 = por %p64, %p65
      %s67 = ssub.s32 %s21, %s30
      %s68 = ssub.s32 %s20, %s34
      %s69 = sor.u32 %s67, %s68
      %p70 = scmp.eq.s32.totalorder %s69, 0
      %s72 = sadd.s32 %s71, 1
      %s73 = scalar_select %p70, %s71, %s72
      %p76 = pneg %p70
      %p77 = scmp.eq.s32.totalorder %s12, 3
      %p78 = por %p76, %p77
      %p79 = scmp.ne.s32.totalorder %s71, %s74
      %p80 = scmp.eq.s32.totalorder %s12, 0
      %p81 = por %p79, %p80
      %p82 = scmp.ne.s32.totalorder %s71, %s74
      %p83 = scmp.eq.s32.totalorder %s17, 3
      %p84 = por %p82, %p83
      %p85 = scmp.ne.s32.totalorder %s74, %s75
      %p86 = scmp.eq.s32.totalorder %s17, 0
      %p87 = por %p85, %p86
      %p88 = scmp.ne.s32.totalorder %s74, %s75
      %p89 = scmp.eq.s32.totalorder %s18, 3
      %p90 = por %p88, %p89
      %p92 = scmp.ne.s32.totalorder %s75, %s91
      %p93 = scmp.eq.s32.totalorder %s18, 0
      %p94 = por %p92, %p93
      %s95 = ssub.s32 %s20, %s34
      %p96 = scmp.eq.s32.totalorder %s95, 0
      %s98 = sadd.s32 %s97, 1
      %s99 = scalar_select %p96, %s97, %s98
      %p102 = pneg %p96
      %p103 = scmp.eq.s32.totalorder %s12, 3
      %p104 = por %p102, %p103
      %p105 = scmp.ne.s32.totalorder %s97, %s100
      %p106 = scmp.eq.s32.totalorder %s12, 0
      %p107 = por %p105, %p106
      %p108 = scmp.ne.s32.totalorder %s97, %s100
      %p109 = scmp.eq.s32.totalorder %s17, 3
      %p110 = por %p108, %p109
      %p111 = scmp.ne.s32.totalorder %s100, %s101
      %p112 = scmp.eq.s32.totalorder %s17, 0
      %p113 = por %p111, %p112
      %p114 = scmp.ne.s32.totalorder %s100, %s101
      %p115 = scmp.eq.s32.totalorder %s18, 3
      %p116 = por %p114, %p115
      %p118 = scmp.ne.s32.totalorder %s101, %s117
      %p119 = scmp.eq.s32.totalorder %s18, 0
      %p120 = por %p118, %p119
      %s121 = ssub.s32 %s19, %s38
      %s122 = ssub.s32 %s20, %s34
      %s123 = sor.u32 %s121, %s122
      %p124 = scmp.eq.s32.totalorder %s123, 0
      %s126 = sadd.s32 %s125, 1
      %s127 = scalar_select %p124, %s125, %s126
      %p130 = pneg %p124
      %p131 = scmp.eq.s32.totalorder %s12, 3
      %p132 = por %p130, %p131
      %p133 = scmp.ne.s32.totalorder %s125, %s128
      %p134 = scmp.eq.s32.totalorder %s12, 0
      %p135 = por %p133, %p134
      %p136 = scmp.ne.s32.totalorder %s125, %s128
      %p137 = scmp.eq.s32.totalorder %s17, 3
      %p138 = por %p136, %p137
      %p139 = scmp.ne.s32.totalorder %s128, %s129
      %p140 = scmp.eq.s32.totalorder %s17, 0
      %p141 = por %p139, %p140
      %p142 = scmp.ne.s32.totalorder %s128, %s129
      %p143 = scmp.eq.s32.totalorder %s18, 3
      %p144 = por %p142, %p143
      %p146 = scmp.ne.s32.totalorder %s129, %s145
      %p147 = scmp.eq.s32.totalorder %s18, 0
      %p148 = por %p146, %p147
      %p149 = scmp.le.s32.totalorder 1, %s12
      %p150 = scmp.lt.s32.totalorder %s12, 5
      %p151 = pnand %p149, %p150
      %p152 = pneg %p151
      // Predicated region
      $region9: #{_lambda_.9} parent=5 // pred_check
        _
      $region10: #{_lambda_.9} parent=5 // pred_check_branch
        %154 = sbr.rel (%p151) target = $region12
      $region11: #{_lambda_.9} parent=5 // pred_region
        %s155 = ssub.s32 %s12, 1
        // Predicated region
        $region13: #{_lambda_.9} parent=11 // pred_check
          %p156 = pneg %p59
        $region14: #{_lambda_.9} parent=11 // pred_check_branch
          %158 = sbr.rel (%p156) target = $region16
        $region15: #{_lambda_.9} parent=11 // pred_region
          %s159 = smul.u32 16, %s22
          %p160 = scmp.lt.s32.totalorder %s159, 15
          %s161 = scalar_select %p160, %s159, 15
          %p162 = scmp.lt.s32.totalorder %s24, 0
          %s163 = scalar_select %p162, %s24, 0
          %s164 = sadd.s32 %s163, %s161
          %s165 = smul.addr %s164, 4
          %s166 = scalar_lea.vmem %s0, %s165
          %s167 = smul.u32 16, %s22
        $region16: #{_lambda_.9} parent=11 // pred_fallthru
          _
      $region12: #{_lambda_.9} parent=5 // pred_fallthru
        _
      %p168 = scmp.lt.s32.totalorder %s12, 4
      // Predicated region
      $region17: #{_lambda_.9} parent=5 // pred_check
        %p169 = pneg %p168
      $region18: #{_lambda_.9} parent=5 // pred_check_branch
        %171 = sbr.rel (%p169) target = $region20
      $region19: #{_lambda_.9} parent=5 // pred_region
        // Predicated region
        $region21: #{_lambda_.9} parent=19 // pred_check
          %p172 = pneg %p81
        $region22: #{_lambda_.9} parent=19 // pred_check_branch
          %174 = sbr.rel (%p172) target = $region24
        $region23: #{_lambda_.9} parent=19 // pred_region
          %s175 = sand.u32 %s71, 1
          %s176 = scalar_lea.sflag [#allocation4], %s175
          %s177 = sand.u32 %s71, 1
          %s178 = smul.addr %s177, 64
          %s179 = scalar_lea.vmem [#allocation3], %s178
          %s180 = smul.u32 16, %s21
          %182 = vsyncadd %s176, 0
          %s183 = smul.addr %s180, 4
          %s184 = sadd.s32 %s20, %s183
          %s185 = smul.addr %s184, 4
          %s186 = scalar_lea.hbm %s1, %s185
          %s187 = sshll.u32 %s186, 4
          %s188 = int_to_ptr.hbm [resolvable:$true] %s187
          %s189 = sshll.u32 %s179, 4
          %s190 = int_to_ptr.vmem [resolvable:$true] %s189
          %195 = dma.hbm_to_vmem [thread:$0]  %s188, 1024, %s190, %s176, 256, 64, 4
        $region24: #{_lambda_.9} parent=19 // pred_fallthru
          _
        // Predicated region
        $region25: #{_lambda_.9} parent=19 // pred_check
          %p196 = pneg %p107
        $region26: #{_lambda_.9} parent=19 // pred_check_branch
          %198 = sbr.rel (%p196) target = $region28
        $region27: #{_lambda_.9} parent=19 // pred_region
          %p199 = scmp.lt.s32.totalorder %s20, 3
          %s200 = scalar_select %p199, %s20, 3
          %s201 = scalar_lea.vmem %s2, %s200
        $region28: #{_lambda_.9} parent=19 // pred_fallthru
          _
      $region20: #{_lambda_.9} parent=5 // pred_fallthru
        _
      %p202 = scmp.le.s32.totalorder 1, %s12
      %p203 = scmp.lt.s32.totalorder %s12, 5
      %p204 = pnand %p202, %p203
      %p205 = pneg %p204
      // Predicated region
      $region29: #{_lambda_.9} parent=5 // pred_check
        _
      $region30: #{_lambda_.9} parent=5 // pred_check_branch
        %207 = sbr.rel (%p204) target = $region32
      $region31: #{_lambda_.9} parent=5 // pred_region
        %s208 = ssub.s32 %s12, 1
        %s209 = sand.u32 %s74, 1
        %s210 = scalar_lea.sflag [#allocation4], %s209
        %s211 = sand.u32 %s74, 1
        %s212 = smul.addr %s211, 64
        %s213 = scalar_lea.vmem [#allocation3], %s212
        // Predicated region
        $region33: #{_lambda_.9} parent=31 // pred_check
          %p214 = pneg %p87
        $region34: #{_lambda_.9} parent=31 // pred_check_branch
          %216 = sbr.rel (%p214) target = $region36
        $region35: #{_lambda_.9} parent=31 // pred_region
          %218 = dma.done %s210, 1024
        $region36: #{_lambda_.9} parent=31 // pred_fallthru
          _
        %s219 = smul.u32 16, %s22
        %p220 = scmp.lt.s32.totalorder %s219, 15
        %s221 = scalar_select %p220, %s219, 15
        %p222 = scmp.lt.s32.totalorder %s24, 0
        %s223 = scalar_select %p222, %s24, 0
        %s224 = sadd.s32 %s223, %s221
        %s225 = smul.addr %s224, 4
        %s226 = scalar_lea.vmem %s0, %s225
        %p227 = pneg %p59
        %p228 = pneg %p56
        %s229 = sand.u32 %s74, 1
        %s230 = scalar_lea.sflag [#allocation4], %s229
        %s231 = sand.u32 %s74, 1
        %s232 = smul.addr %s231, 64
        %s233 = scalar_lea.vmem [#allocation3], %s232
        %p234 = pneg %p87
        %p235 = pneg %p84
        %p236 = scmp.lt.s32.totalorder %s23, 3
        %s237 = scalar_select %p236, %s23, 3
        %s238 = scalar_lea.vmem %s2, %s237
        %p239 = pneg %p113
        %p240 = pneg %p110
        %p241 = pneg %p141
        %p242 = pneg %p138
        %s243 = sand.u32 %s128, 1
        %s244 = sand.u32 %s128, 1
        %s245 = smul.addr %s244, 64
        %s246 = scalar_lea.vmem [#allocation5], %s245
        %s247 = smul.u32 16, %s22
        %p248 = scmp.lt.s32.totalorder %s247, 15
        %s249 = scalar_select %p248, %s247, 15
        %p250 = scmp.lt.s32.totalorder %s24, 0
        %s251 = scalar_select %p250, %s24, 0
        %s252 = sadd.s32 %s251, %s249
        %s253 = smul.addr %s252, 4
        %s254 = scalar_lea.vmem %s0, %s253
        %s255 = smul.u32 16, %s22
        %s256 = smul.u32 16, %s24
        %p257 = scmp.lt.s32.totalorder %s23, 3
        %s258 = scalar_select %p257, %s23, 3
        %s259 = scalar_lea.vmem %s2, %s258
        %s260 = smul.u32 16, %s22
        %p261 = scmp.eq.s32.totalorder %s24, 0
        // Predicated region
        $region37: #{_lambda_.9} parent=31 // pred_check
          %p262 = pneg %p261
        $region38: #{_lambda_.9} parent=31 // pred_check_branch
          %264 = sbr.rel (%p262) target = $region40
        $region39: #{_lambda_.9} parent=31 // pred_region
          %265 = vst [vmem:[#allocation2] sm:$0xff] 0.0
          %266 = vst [vmem:[#allocation2 + $0x8] sm:$0xff] 0.0
          %267 = vst [vmem:[#allocation2 + $0x10] sm:$0xff] 0.0
          %268 = vst [vmem:[#allocation2 + $0x18] sm:$0xff] 0.0
          %269 = vst [vmem:[#allocation2 + $0x20] sm:$0xff] 0.0
          %270 = vst [vmem:[#allocation2 + $0x28] sm:$0xff] 0.0
          %271 = vst [vmem:[#allocation2 + $0x30] sm:$0xff] 0.0
          %272 = vst [vmem:[#allocation2 + $0x38] sm:$0xff] 0.0
          %273 = vst [vmem:[#allocation2 + $0x40] sm:$0xff] 0.0
          %274 = vst [vmem:[#allocation2 + $0x48] sm:$0xff] 0.0
          %275 = vst [vmem:[#allocation2 + $0x50] sm:$0xff] 0.0
          %276 = vst [vmem:[#allocation2 + $0x58] sm:$0xff] 0.0
          %277 = vst [vmem:[#allocation2 + $0x60] sm:$0xff] 0.0
          %278 = vst [vmem:[#allocation2 + $0x68] sm:$0xff] 0.0
          %279 = vst [vmem:[#allocation2 + $0x70] sm:$0xff] 0.0
          %280 = vst [vmem:[#allocation2 + $0x78] sm:$0xff] 0.0
        $region40: #{_lambda_.9} parent=31 // pred_fallthru
          _
        %v281 = vld [vmem:[#allocation2] sm:$0xff]
        %v282 = vld [vmem:[#allocation2 + $0x8] sm:$0xff]
        %v283 = vld [vmem:[#allocation2 + $0x10] sm:$0xff]
        %v284 = vld [vmem:[#allocation2 + $0x18] sm:$0xff]
        %v285 = vld [vmem:[#allocation2 + $0x20] sm:$0xff]
        %v286 = vld [vmem:[#allocation2 + $0x28] sm:$0xff]
        %v287 = vld [vmem:[#allocation2 + $0x30] sm:$0xff]
        %v288 = vld [vmem:[#allocation2 + $0x38] sm:$0xff]
        %v289 = vld [vmem:[#allocation2 + $0x40] sm:$0xff]
        %v290 = vld [vmem:[#allocation2 + $0x48] sm:$0xff]
        %v291 = vld [vmem:[#allocation2 + $0x50] sm:$0xff]
        %v292 = vld [vmem:[#allocation2 + $0x58] sm:$0xff]
        %v293 = vld [vmem:[#allocation2 + $0x60] sm:$0xff]
        %v294 = vld [vmem:[#allocation2 + $0x68] sm:$0xff]
        %v295 = vld [vmem:[#allocation2 + $0x70] sm:$0xff]
        %v296 = vld [vmem:[#allocation2 + $0x78] sm:$0xff]
        %v297 = vld [vmem:[%s254] sm:$0xf]
        %v298 = vld [vmem:[%s254 + $0x4] sm:$0xf]
        %v299 = vld [vmem:[%s254 + $0x8] sm:$0xf]
        %v300 = vld [vmem:[%s254 + $0xc] sm:$0xf]
        %v301 = vld [vmem:[%s254 + $0x10] sm:$0xf]
        %v302 = vld [vmem:[%s254 + $0x14] sm:$0xf]
        %v303 = vld [vmem:[%s254 + $0x18] sm:$0xf]
        %v304 = vld [vmem:[%s254 + $0x1c] sm:$0xf]
        %v305 = vld [vmem:[%s254 + $0x20] sm:$0xf]
        %v306 = vld [vmem:[%s254 + $0x24] sm:$0xf]
        %v307 = vld [vmem:[%s254 + $0x28] sm:$0xf]
        %v308 = vld [vmem:[%s254 + $0x2c] sm:$0xf]
        %v309 = vld [vmem:[%s254 + $0x30] sm:$0xf]
        %v310 = vld [vmem:[%s254 + $0x34] sm:$0xf]
        %v311 = vld [vmem:[%s254 + $0x38] sm:$0xf]
        %v312 = vld [vmem:[%s254 + $0x3c] sm:$0xf]
        %v313 = vld [vmem:[%s213] sm:$0xf]
        %v314 = vld [vmem:[%s213 + $0x4] sm:$0xf]
        %v315 = vld [vmem:[%s213 + $0x8] sm:$0xf]
        %v316 = vld [vmem:[%s213 + $0xc] sm:$0xf]
        %v317 = vld [vmem:[%s213 + $0x10] sm:$0xf]
        %v318 = vld [vmem:[%s213 + $0x14] sm:$0xf]
        %v319 = vld [vmem:[%s213 + $0x18] sm:$0xf]
        %v320 = vld [vmem:[%s213 + $0x1c] sm:$0xf]
        %v321 = vld [vmem:[%s213 + $0x20] sm:$0xf]
        %v322 = vld [vmem:[%s213 + $0x24] sm:$0xf]
        %v323 = vld [vmem:[%s213 + $0x28] sm:$0xf]
        %v324 = vld [vmem:[%s213 + $0x2c] sm:$0xf]
        %v325 = vld [vmem:[%s213 + $0x30] sm:$0xf]
        %v326 = vld [vmem:[%s213 + $0x34] sm:$0xf]
        %v327 = vld [vmem:[%s213 + $0x38] sm:$0xf]
        %v328 = vld [vmem:[%s213 + $0x3c] sm:$0xf]
        %v345 = vunpack.c.l.b16 %v297
        %v346 = vunpack.c.l.b16 %v298
        %v347 = vunpack.c.l.b16 %v299
        %v348 = vunpack.c.l.b16 %v300
        %v349 = vunpack.c.l.b16 %v301
        %v350 = vunpack.c.l.b16 %v302
        %v351 = vunpack.c.l.b16 %v303
        %v352 = vunpack.c.l.b16 %v304
        %v353 = vunpack.c.l.b16 %v305
        %v354 = vunpack.c.l.b16 %v306
        %v355 = vunpack.c.l.b16 %v307
        %v356 = vunpack.c.l.b16 %v308
        %v357 = vunpack.c.l.b16 %v309
        %v358 = vunpack.c.l.b16 %v310
        %v359 = vunpack.c.l.b16 %v311
        %v360 = vunpack.c.l.b16 %v312
        %v361 = vpack.c.b16 %v346, %v345
        %v362 = vpack.c.b16 %v348, %v347
        %v363 = vpack.c.b16 %v350, %v349
        %v364 = vpack.c.b16 %v352, %v351
        %v365 = vpack.c.b16 %v354, %v353
        %v366 = vpack.c.b16 %v356, %v355
        %v367 = vpack.c.b16 %v358, %v357
        %v368 = vpack.c.b16 %v360, %v359
        %v393 = vunpack.c.l.b16 %v313
        %v394 = vunpack.c.l.b16 %v314
        %v395 = vunpack.c.l.b16 %v315
        %v396 = vunpack.c.l.b16 %v316
        %v397 = vunpack.c.l.b16 %v317
        %v398 = vunpack.c.l.b16 %v318
        %v399 = vunpack.c.l.b16 %v319
        %v400 = vunpack.c.l.b16 %v320
        %v401 = vunpack.c.l.b16 %v321
        %v402 = vunpack.c.l.b16 %v322
        %v403 = vunpack.c.l.b16 %v323
        %v404 = vunpack.c.l.b16 %v324
        %v405 = vunpack.c.l.b16 %v325
        %v406 = vunpack.c.l.b16 %v326
        %v407 = vunpack.c.l.b16 %v327
        %v408 = vunpack.c.l.b16 %v328
        %v409 = vpack.c.b16 %v394, %v393
        %v410 = vpack.c.b16 %v396, %v395
        %v411 = vpack.c.b16 %v398, %v397
        %v412 = vpack.c.b16 %v400, %v399
        %v413 = vpack.c.b16 %v402, %v401
        %v414 = vpack.c.b16 %v404, %v403
        %v415 = vpack.c.b16 %v406, %v405
        %v416 = vpack.c.b16 %v408, %v407
        %425 = vmatpush.bf16.msra.mxu0 %v416
        %426 = vmatpush.bf16.msra.mxu0 %v415
        %427 = vmatpush.bf16.msra.mxu0 %v414
        %428 = vmatpush.bf16.msra.mxu0 %v413
        %429 = vmatpush.bf16.msra.mxu0 %v412
        %430 = vmatpush.bf16.msra.mxu0 %v411
        %431 = vmatpush.bf16.msra.mxu0 %v410
        %432 = vmatpush.bf16.msra.mxu0 %v409
        %433 = vmatmul.bf16.gmra.mxu0 %v361
        %v434 = vpop.f32.mrf.mxu0
        %v435 = vadd.f32 0.0, %v434
        %v436 = vpop.f32.mrf.mxu0
        %v437 = vadd.f32 0.0, %v436
        %438 = vmatmul.bf16.gmra.mxu0 %v362
        %v439 = vpop.f32.mrf.mxu0
        %v440 = vadd.f32 0.0, %v439
        %v441 = vpop.f32.mrf.mxu0
        %v442 = vadd.f32 0.0, %v441
        %443 = vmatmul.bf16.gmra.mxu0 %v363
        %v444 = vpop.f32.mrf.mxu0
        %v445 = vadd.f32 0.0, %v444
        %v446 = vpop.f32.mrf.mxu0
        %v447 = vadd.f32 0.0, %v446
        %448 = vmatmul.bf16.gmra.mxu0 %v364
        %v449 = vpop.f32.mrf.mxu0
        %v450 = vadd.f32 0.0, %v449
        %v451 = vpop.f32.mrf.mxu0
        %v452 = vadd.f32 0.0, %v451
        %453 = vmatmul.bf16.gmra.mxu0 %v365
        %v454 = vpop.f32.mrf.mxu0
        %v455 = vadd.f32 0.0, %v454
        %v456 = vpop.f32.mrf.mxu0
        %v457 = vadd.f32 0.0, %v456
        %458 = vmatmul.bf16.gmra.mxu0 %v366
        %v459 = vpop.f32.mrf.mxu0
        %v460 = vadd.f32 0.0, %v459
        %v461 = vpop.f32.mrf.mxu0
        %v462 = vadd.f32 0.0, %v461
        %463 = vmatmul.bf16.gmra.mxu0 %v367
        %v464 = vpop.f32.mrf.mxu0
        %v465 = vadd.f32 0.0, %v464
        %v466 = vpop.f32.mrf.mxu0
        %v467 = vadd.f32 0.0, %v466
        %468 = vmatmul.bf16.gmra.mxu0 %v368
        %v469 = vpop.f32.mrf.mxu0
        %v470 = vadd.f32 0.0, %v469
        %v471 = vpop.f32.mrf.mxu0
        %v472 = vadd.f32 0.0, %v471
        %473 = vdwg.mxu0
        %v474 = vadd.f32 %v281, %v435
        %v475 = vadd.f32 %v282, %v437
        %v476 = vadd.f32 %v283, %v440
        %v477 = vadd.f32 %v284, %v442
        %v478 = vadd.f32 %v285, %v445
        %v479 = vadd.f32 %v286, %v447
        %v480 = vadd.f32 %v287, %v450
        %v481 = vadd.f32 %v288, %v452
        %v482 = vadd.f32 %v289, %v455
        %v483 = vadd.f32 %v290, %v457
        %v484 = vadd.f32 %v291, %v460
        %v485 = vadd.f32 %v292, %v462
        %v486 = vadd.f32 %v293, %v465
        %v487 = vadd.f32 %v294, %v467
        %v488 = vadd.f32 %v295, %v470
        %v489 = vadd.f32 %v296, %v472
        %490 = vst [vmem:[#allocation2] sm:$0xff] %v474
        %491 = vst [vmem:[#allocation2 + $0x8] sm:$0xff] %v475
        %492 = vst [vmem:[#allocation2 + $0x10] sm:$0xff] %v476
        %493 = vst [vmem:[#allocation2 + $0x18] sm:$0xff] %v477
        %494 = vst [vmem:[#allocation2 + $0x20] sm:$0xff] %v478
        %495 = vst [vmem:[#allocation2 + $0x28] sm:$0xff] %v479
        %496 = vst [vmem:[#allocation2 + $0x30] sm:$0xff] %v480
        %497 = vst [vmem:[#allocation2 + $0x38] sm:$0xff] %v481
        %498 = vst [vmem:[#allocation2 + $0x40] sm:$0xff] %v482
        %499 = vst [vmem:[#allocation2 + $0x48] sm:$0xff] %v483
        %500 = vst [vmem:[#allocation2 + $0x50] sm:$0xff] %v484
        %501 = vst [vmem:[#allocation2 + $0x58] sm:$0xff] %v485
        %502 = vst [vmem:[#allocation2 + $0x60] sm:$0xff] %v486
        %503 = vst [vmem:[#allocation2 + $0x68] sm:$0xff] %v487
        %504 = vst [vmem:[#allocation2 + $0x70] sm:$0xff] %v488
        %505 = vst [vmem:[#allocation2 + $0x78] sm:$0xff] %v489
        // Predicated region
        $region41: #{_lambda_.9} parent=31 // pred_check
          %p506 = pneg %p261
        $region42: #{_lambda_.9} parent=31 // pred_check_branch
          %508 = sbr.rel (%p506) target = $region44
        $region43: #{_lambda_.9} parent=31 // pred_region
          %v509 = vld [vmem:[#allocation2] sm:$0xff]
          %v510 = vld [vmem:[#allocation2 + $0x8] sm:$0xff]
          %v511 = vld [vmem:[#allocation2 + $0x10] sm:$0xff]
          %v512 = vld [vmem:[#allocation2 + $0x18] sm:$0xff]
          %v513 = vld [vmem:[#allocation2 + $0x20] sm:$0xff]
          %v514 = vld [vmem:[#allocation2 + $0x28] sm:$0xff]
          %v515 = vld [vmem:[#allocation2 + $0x30] sm:$0xff]
          %v516 = vld [vmem:[#allocation2 + $0x38] sm:$0xff]
          %v517 = vld [vmem:[#allocation2 + $0x40] sm:$0xff]
          %v518 = vld [vmem:[#allocation2 + $0x48] sm:$0xff]
          %v519 = vld [vmem:[#allocation2 + $0x50] sm:$0xff]
          %v520 = vld [vmem:[#allocation2 + $0x58] sm:$0xff]
          %v521 = vld [vmem:[#allocation2 + $0x60] sm:$0xff]
          %v522 = vld [vmem:[#allocation2 + $0x68] sm:$0xff]
          %v523 = vld [vmem:[#allocation2 + $0x70] sm:$0xff]
          %v524 = vld [vmem:[#allocation2 + $0x78] sm:$0xff]
          %v525 = vld [vmem:[%s259] sm:$0x1]
          %v527 = vperm.slane %v525, 0
          %v529 = vadd.f32 %v509, %v527
          %v530 = vadd.f32 %v510, %v527
          %v531 = vadd.f32 %v511, %v527
          %v532 = vadd.f32 %v512, %v527
          %v533 = vadd.f32 %v513, %v527
          %v534 = vadd.f32 %v514, %v527
          %v535 = vadd.f32 %v515, %v527
          %v536 = vadd.f32 %v516, %v527
          %v537 = vadd.f32 %v517, %v527
          %v538 = vadd.f32 %v518, %v527
          %v539 = vadd.f32 %v519, %v527
          %v540 = vadd.f32 %v520, %v527
          %v541 = vadd.f32 %v521, %v527
          %v542 = vadd.f32 %v522, %v527
          %v543 = vadd.f32 %v523, %v527
          %v544 = vadd.f32 %v524, %v527
          %vm545 = vcmp.ge.f32.partialorder %v529, 0.0
          %vm546 = vcmp.ge.f32.partialorder %v530, 0.0
          %vm547 = vcmp.ge.f32.partialorder %v531, 0.0
          %vm548 = vcmp.ge.f32.partialorder %v532, 0.0
          %vm549 = vcmp.ge.f32.partialorder %v533, 0.0
          %vm550 = vcmp.ge.f32.partialorder %v534, 0.0
          %vm551 = vcmp.ge.f32.partialorder %v535, 0.0
          %vm552 = vcmp.ge.f32.partialorder %v536, 0.0
          %vm553 = vcmp.ge.f32.partialorder %v537, 0.0
          %vm554 = vcmp.ge.f32.partialorder %v538, 0.0
          %vm555 = vcmp.ge.f32.partialorder %v539, 0.0
          %vm556 = vcmp.ge.f32.partialorder %v540, 0.0
          %vm557 = vcmp.ge.f32.partialorder %v541, 0.0
          %vm558 = vcmp.ge.f32.partialorder %v542, 0.0
          %vm559 = vcmp.ge.f32.partialorder %v543, 0.0
          %vm560 = vcmp.ge.f32.partialorder %v544, 0.0
          %v561 = vmul.f32 %v529, 0.2
          %v562 = vmul.f32 %v530, 0.2
          %v563 = vmul.f32 %v531, 0.2
          %v564 = vmul.f32 %v532, 0.2
          %v565 = vmul.f32 %v533, 0.2
          %v566 = vmul.f32 %v534, 0.2
          %v567 = vmul.f32 %v535, 0.2
          %v568 = vmul.f32 %v536, 0.2
          %v569 = vmul.f32 %v537, 0.2
          %v570 = vmul.f32 %v538, 0.2
          %v571 = vmul.f32 %v539, 0.2
          %v572 = vmul.f32 %v540, 0.2
          %v573 = vmul.f32 %v541, 0.2
          %v574 = vmul.f32 %v542, 0.2
          %v575 = vmul.f32 %v543, 0.2
          %v576 = vmul.f32 %v544, 0.2
          %v577 = vsel %vm545, %v529, %v561
          %v578 = vsel %vm546, %v530, %v562
          %v579 = vsel %vm547, %v531, %v563
          %v580 = vsel %vm548, %v532, %v564
          %v581 = vsel %vm549, %v533, %v565
          %v582 = vsel %vm550, %v534, %v566
          %v583 = vsel %vm551, %v535, %v567
          %v584 = vsel %vm552, %v536, %v568
          %v585 = vsel %vm553, %v537, %v569
          %v586 = vsel %vm554, %v538, %v570
          %v587 = vsel %vm555, %v539, %v571
          %v588 = vsel %vm556, %v540, %v572
          %v589 = vsel %vm557, %v541, %v573
          %v590 = vsel %vm558, %v542, %v574
          %v591 = vsel %vm559, %v543, %v575
          %v592 = vsel %vm560, %v544, %v576
          %v593 = vmul.f32 %v577, 1.4142135
          %v594 = vmul.f32 %v578, 1.4142135
          %v595 = vmul.f32 %v579, 1.4142135
          %v596 = vmul.f32 %v580, 1.4142135
          %v597 = vmul.f32 %v581, 1.4142135
          %v598 = vmul.f32 %v582, 1.4142135
          %v599 = vmul.f32 %v583, 1.4142135
          %v600 = vmul.f32 %v584, 1.4142135
          %v601 = vmul.f32 %v585, 1.4142135
          %v602 = vmul.f32 %v586, 1.4142135
          %v603 = vmul.f32 %v587, 1.4142135
          %v604 = vmul.f32 %v588, 1.4142135
          %v605 = vmul.f32 %v589, 1.4142135
          %v606 = vmul.f32 %v590, 1.4142135
          %v607 = vmul.f32 %v591, 1.4142135
          %v608 = vmul.f32 %v592, 1.4142135
          %v609 = vpack.c.bf16 %v593, %v593
          %v610 = vpack.c.bf16 %v594, %v594
          %v611 = vpack.c.bf16 %v595, %v595
          %v612 = vpack.c.bf16 %v596, %v596
          %v613 = vpack.c.bf16 %v597, %v597
          %v614 = vpack.c.bf16 %v598, %v598
          %v615 = vpack.c.bf16 %v599, %v599
          %v616 = vpack.c.bf16 %v600, %v600
          %v617 = vpack.c.bf16 %v601, %v601
          %v618 = vpack.c.bf16 %v602, %v602
          %v619 = vpack.c.bf16 %v603, %v603
          %v620 = vpack.c.bf16 %v604, %v604
          %v621 = vpack.c.bf16 %v605, %v605
          %v622 = vpack.c.bf16 %v606, %v606
          %v623 = vpack.c.bf16 %v607, %v607
          %v624 = vpack.c.bf16 %v608, %v608
          %625 = vst [vmem:[%s246] sm:$0xf] %v609
          %626 = vst [vmem:[%s246 + $0x4] sm:$0xf] %v610
          %627 = vst [vmem:[%s246 + $0x8] sm:$0xf] %v611
          %628 = vst [vmem:[%s246 + $0xc] sm:$0xf] %v612
          %629 = vst [vmem:[%s246 + $0x10] sm:$0xf] %v613
          %630 = vst [vmem:[%s246 + $0x14] sm:$0xf] %v614
          %631 = vst [vmem:[%s246 + $0x18] sm:$0xf] %v615
          %632 = vst [vmem:[%s246 + $0x1c] sm:$0xf] %v616
          %633 = vst [vmem:[%s246 + $0x20] sm:$0xf] %v617
          %634 = vst [vmem:[%s246 + $0x24] sm:$0xf] %v618
          %635 = vst [vmem:[%s246 + $0x28] sm:$0xf] %v619
          %636 = vst [vmem:[%s246 + $0x2c] sm:$0xf] %v620
          %637 = vst [vmem:[%s246 + $0x30] sm:$0xf] %v621
          %638 = vst [vmem:[%s246 + $0x34] sm:$0xf] %v622
          %639 = vst [vmem:[%s246 + $0x38] sm:$0xf] %v623
          %640 = vst [vmem:[%s246 + $0x3c] sm:$0xf] %v624
        $region44: #{_lambda_.9} parent=31 // pred_fallthru
          _
        %s641 = sand.u32 %s128, 1
        %s642 = sand.u32 %s128, 1
        %s643 = smul.addr %s642, 64
        %s644 = scalar_lea.vmem [#allocation5], %s643
        // Predicated region
        $region45: #{_lambda_.9} parent=31 // pred_check
          %p645 = pneg %p138
        $region46: #{_lambda_.9} parent=31 // pred_check_branch
          %647 = sbr.rel (%p645) target = $region48
        $region47: #{_lambda_.9} parent=31 // pred_region
          %s648 = smul.u32 16, %s22
          %s649 = smul.addr %s648, 4
          %s650 = sadd.s32 %s23, %s649
          %s651 = smul.addr %s650, 4
          %s652 = scalar_lea.vmem %s3, %s651
          // Predicated region
          $region49: #{_lambda_.9} parent=47 // pred_check
            _
          $region50: #{_lambda_.9} parent=47 // pred_check_branch
            %654 = sbr.rel (0) target = $region52
          $region51: #{_lambda_.9} parent=47 // pred_region
            // Predicated region
            $region53: #{_lambda_.9} parent=51 // pred_check
              _
            $region54: #{_lambda_.9} parent=51 // pred_check_branch
              %656 = sbr.rel target = $region56
            $region55: #{_lambda_.9} parent=51 // pred_region
              // Predicated region
              $region68: #{_lambda_.9} parent=55 // pred_check
                _
              $region69: #{_lambda_.9} parent=55 // pred_check_branch
                %702 = sbr.rel (0) target = $region71
              $region70: #{_lambda_.9} parent=55 // pred_region
                loop: start=0, step=1, limit=1
                $region72: #{_lambda_.9} parent=70 // loop_pre_header
                  _
                $region73: #{_lambda_.9} parent=70 // loop_header
                  %s704 = sphi 0, %s708
                  %p705 = scmp.ge.s32.totalorder %s704, 1
                  %s709 = sphi %s644, %s644
                  %s710 = sphi %s652, %s652
                $region74: #{_lambda_.9} parent=70 // loop_header_branch
                  %707 = sbr.rel (%p705) target = $region78
                $region75: #{_lambda_.9} parent=70 // loop_body
                  _
                $region76: #{_lambda_.9} parent=70 // loop_footer
                  %s708 = sadd.s32 1, %s704
                $region77: #{_lambda_.9} parent=70 // loop_footer_branch
                  %703 = sbr.rel target = $region73
                $region78: #{_lambda_.9} parent=70 // loop_exit
                  _
                %s712 = ssub.s32 16, 1
                loop: start=0, step=1, limit=1
                $region79: #{_lambda_.9} parent=70 // loop_pre_header
                  _
                $region80: #{_lambda_.9} parent=70 // loop_header
                  %s714 = sphi 0, %s718
                  %p715 = scmp.ge.s32.totalorder %s714, 1
                  %s719 = sphi %s644, %s644
                  %s720 = sphi %s652, %s652
                $region81: #{_lambda_.9} parent=70 // loop_header_branch
                  %717 = sbr.rel (%p715) target = $region85
                $region82: #{_lambda_.9} parent=70 // loop_body
                  %v721 = vld [vmem:[%s719] sm:%s712]
                  %722 = vst [vmem:[%s720] sm:%s712] %v721
                  %v723 = vld [vmem:[%s719 + $0x4] sm:%s712]
                  %724 = vst [vmem:[%s720 + $0x10] sm:%s712] %v723
                  %v725 = vld [vmem:[%s719 + $0x8] sm:%s712]
                  %726 = vst [vmem:[%s720 + $0x20] sm:%s712] %v725
                  %v727 = vld [vmem:[%s719 + $0xc] sm:%s712]
                  %728 = vst [vmem:[%s720 + $0x30] sm:%s712] %v727
                  %v729 = vld [vmem:[%s719 + $0x10] sm:%s712]
                  %730 = vst [vmem:[%s720 + $0x40] sm:%s712] %v729
                  %v731 = vld [vmem:[%s719 + $0x14] sm:%s712]
                  %732 = vst [vmem:[%s720 + $0x50] sm:%s712] %v731
                  %v733 = vld [vmem:[%s719 + $0x18] sm:%s712]
                  %734 = vst [vmem:[%s720 + $0x60] sm:%s712] %v733
                  %v735 = vld [vmem:[%s719 + $0x1c] sm:%s712]
                  %736 = vst [vmem:[%s720 + $0x70] sm:%s712] %v735
                  %v737 = vld [vmem:[%s719 + $0x20] sm:%s712]
                  %738 = vst [vmem:[%s720 + $0x80] sm:%s712] %v737
                  %v739 = vld [vmem:[%s719 + $0x24] sm:%s712]
                  %740 = vst [vmem:[%s720 + $0x90] sm:%s712] %v739
                  %v741 = vld [vmem:[%s719 + $0x28] sm:%s712]
                  %742 = vst [vmem:[%s720 + $0xa0] sm:%s712] %v741
                  %v743 = vld [vmem:[%s719 + $0x2c] sm:%s712]
                  %744 = vst [vmem:[%s720 + $0xb0] sm:%s712] %v743
                  %v745 = vld [vmem:[%s719 + $0x30] sm:%s712]
                  %746 = vst [vmem:[%s720 + $0xc0] sm:%s712] %v745
                  %v747 = vld [vmem:[%s719 + $0x34] sm:%s712]
                  %748 = vst [vmem:[%s720 + $0xd0] sm:%s712] %v747
                  %v749 = vld [vmem:[%s719 + $0x38] sm:%s712]
                  %750 = vst [vmem:[%s720 + $0xe0] sm:%s712] %v749
                  %v751 = vld [vmem:[%s719 + $0x3c] sm:%s712]
                  %752 = vst [vmem:[%s720 + $0xf0] sm:%s712] %v751
                $region83: #{_lambda_.9} parent=70 // loop_footer
                  %s718 = sadd.s32 1, %s714
                $region84: #{_lambda_.9} parent=70 // loop_footer_branch
                  %713 = sbr.rel target = $region80
                $region85: #{_lambda_.9} parent=70 // loop_exit
                  _
              $region71: #{_lambda_.9} parent=55 // pred_fallthru
                _
            $region56: #{_lambda_.9} parent=51 // pred_fallthru
              _
            // Predicated region
            $region57: #{_lambda_.9} parent=51 // pred_check
              _
            $region58: #{_lambda_.9} parent=51 // pred_check_branch
              %658 = sbr.rel (0) target = $region60
            $region59: #{_lambda_.9} parent=51 // pred_region
              %s660 = ssub.s32 16, 1
              loop: start=0, step=1, limit=1
              $region61: #{_lambda_.9} parent=59 // loop_pre_header
                _
              $region62: #{_lambda_.9} parent=59 // loop_header
                %s662 = sphi 0, %s666
                %p663 = scmp.ge.s32.totalorder %s662, 1
                %s667 = sphi %s644, %s644
                %s668 = sphi %s652, %s652
              $region63: #{_lambda_.9} parent=59 // loop_header_branch
                %665 = sbr.rel (%p663) target = $region67
              $region64: #{_lambda_.9} parent=59 // loop_body
                %v669 = vld [vmem:[%s667] sm:%s660]
                %670 = vst [vmem:[%s668] sm:%s660] %v669
                %v671 = vld [vmem:[%s667 + $0x4] sm:%s660]
                %672 = vst [vmem:[%s668 + $0x10] sm:%s660] %v671
                %v673 = vld [vmem:[%s667 + $0x8] sm:%s660]
                %674 = vst [vmem:[%s668 + $0x20] sm:%s660] %v673
                %v675 = vld [vmem:[%s667 + $0xc] sm:%s660]
                %676 = vst [vmem:[%s668 + $0x30] sm:%s660] %v675
                %v677 = vld [vmem:[%s667 + $0x10] sm:%s660]
                %678 = vst [vmem:[%s668 + $0x40] sm:%s660] %v677
                %v679 = vld [vmem:[%s667 + $0x14] sm:%s660]
                %680 = vst [vmem:[%s668 + $0x50] sm:%s660] %v679
                %v681 = vld [vmem:[%s667 + $0x18] sm:%s660]
                %682 = vst [vmem:[%s668 + $0x60] sm:%s660] %v681
                %v683 = vld [vmem:[%s667 + $0x1c] sm:%s660]
                %684 = vst [vmem:[%s668 + $0x70] sm:%s660] %v683
                %v685 = vld [vmem:[%s667 + $0x20] sm:%s660]
                %686 = vst [vmem:[%s668 + $0x80] sm:%s660] %v685
                %v687 = vld [vmem:[%s667 + $0x24] sm:%s660]
                %688 = vst [vmem:[%s668 + $0x90] sm:%s660] %v687
                %v689 = vld [vmem:[%s667 + $0x28] sm:%s660]
                %690 = vst [vmem:[%s668 + $0xa0] sm:%s660] %v689
                %v691 = vld [vmem:[%s667 + $0x2c] sm:%s660]
                %692 = vst [vmem:[%s668 + $0xb0] sm:%s660] %v691
                %v693 = vld [vmem:[%s667 + $0x30] sm:%s660]
                %694 = vst [vmem:[%s668 + $0xc0] sm:%s660] %v693
                %v695 = vld [vmem:[%s667 + $0x34] sm:%s660]
                %696 = vst [vmem:[%s668 + $0xd0] sm:%s660] %v695
                %v697 = vld [vmem:[%s667 + $0x38] sm:%s660]
                %698 = vst [vmem:[%s668 + $0xe0] sm:%s660] %v697
                %v699 = vld [vmem:[%s667 + $0x3c] sm:%s660]
                %700 = vst [vmem:[%s668 + $0xf0] sm:%s660] %v699
              $region65: #{_lambda_.9} parent=59 // loop_footer
                %s666 = sadd.s32 1, %s662
              $region66: #{_lambda_.9} parent=59 // loop_footer_branch
                %661 = sbr.rel target = $region62
              $region67: #{_lambda_.9} parent=59 // loop_exit
                _
            $region60: #{_lambda_.9} parent=51 // pred_fallthru
              _
          $region52: #{_lambda_.9} parent=47 // pred_fallthru
            _
          %753 = vnop
        $region48: #{_lambda_.9} parent=31 // pred_fallthru
          _
      $region32: #{_lambda_.9} parent=5 // pred_fallthru
        _
      %p754 = scmp.le.s32.totalorder 2, %s12
      // Predicated region
      $region86: #{_lambda_.9} parent=5 // pred_check
        %p755 = pneg %p754
      $region87: #{_lambda_.9} parent=5 // pred_check_branch
        %757 = sbr.rel (%p755) target = $region89
      $region88: #{_lambda_.9} parent=5 // pred_region
        %s758 = ssub.s32 %s12, 2
        // Predicated region
        $region90: #{_lambda_.9} parent=88 // pred_check
          %p759 = pneg %p144
        $region91: #{_lambda_.9} parent=88 // pred_check_branch
          %761 = sbr.rel (%p759) target = $region93
        $region92: #{_lambda_.9} parent=88 // pred_region
          %s762 = sand.u32 %s129, 1
          %s763 = sand.u32 %s129, 1
          %s764 = smul.addr %s763, 64
          %s765 = scalar_lea.vmem [#allocation5], %s764
        $region93: #{_lambda_.9} parent=88 // pred_fallthru
          _
      $region89: #{_lambda_.9} parent=5 // pred_fallthru
        _
    $region6: #{_lambda_.9} parent=1 // loop_footer
      %s16 = sadd.s32 1, %s12
    $region7: #{_lambda_.9} parent=1 // loop_footer_branch
      %11 = sbr.rel target = $region3
    $region8: #{_lambda_.9} parent=1 // loop_exit
      _
    %766 = vsyncpa [#allocation4], 1
    %s767 = scalar_lea.sflag [#allocation4], 1
    %768 = vsyncpa %s767, 1

// kernel: _lambda_.10
$region0: #{_lambda_.10}
  #allocation0 [shape = 'u32[]', space=smem, size = 0x4, offset = 0x4, fixed_abs, tag = 'smem constant byte address 0x4 - core index']
  #allocation1 [shape = 'u32[72,128]{1,0:T(1,128)}', space=vmem, size = 0x9000, scoped, tag = 'internal scratch']
  #allocation2 [shape = 'f32[128,128]{1,0:T(8,128)}', space=vmem, size = 0x10000, scoped, tag = 'scratch operand']
  %s0 = inlined_call_operand.vmem [shape: bf16[128,4608], index: 0, kind: input, shape index: {}]
  %s1 = inlined_call_operand.hbm [shape: bf16[4608,512], index: 1, kind: input, shape index: {}]
  %s2 = inlined_call_operand.vmem [shape: f32[1,512], index: 2, kind: input, shape index: {}]
  %s3 = inlined_call_operand.vmem [shape: bf16[128,512], index: 3, kind: output, shape index: {}]
  %s4 = sld [smem:[#allocation0]]
  $region117: #{_lambda_.10} parent=0
    _
  %s6 = ssub.s32 1, %s4
  %s7 = scalar_select 0, %s6, %s4
  $region1: #{_lambda_.10} parent=0
    #allocation3 [shape = 'u8[262144]{0}', space=vmem, size = 0x40000, scoped, tag = 'input window, operand 0']
    #allocation4 [shape = 'u8[262144]{0}', space=vmem, size = 0x40000, scoped, tag = 'input window, operand 1']
    #allocation5 [shape = 's32[2]{0}', space=sflag, size = 0x8, scoped, tag = 'scoped memory for _lambda_.10']
    #allocation6 [shape = 'u8[65536]{0}', space=vmem, size = 0x10000, scoped, tag = 'output window, operand 0']
    %8 = vsyncpa [#allocation5], 0
    %s9 = scalar_lea.sflag [#allocation5], 1
    %10 = vsyncpa %s9, 0
    loop: start=0, step=1, limit=38
    $region2: #{_lambda_.10} parent=1 // loop_pre_header
      _
    $region3: #{_lambda_.10} parent=1 // loop_header
      %s12 = sphi 0, %s16
      %p13 = scmp.ge.s32.totalorder %s12, 38
      %s19 = sphi 0, %s38
      %s20 = sphi 0, %s34
      %s21 = sphi 0, %s30
      %s22 = sphi 0, %s19
      %s23 = sphi 0, %s20
      %s24 = sphi 0, %s21
      %s25 = sphi 0, %s22
      %s26 = sphi 0, %s23
      %s27 = sphi 0, %s24
      %s43 = sphi 0, %s45
      %s46 = sphi 0, %s43
      %s47 = sphi 0, %s46
      %s63 = sphi 0, %s47
      %s71 = sphi 0, %s73
      %s74 = sphi 0, %s71
      %s75 = sphi 0, %s74
      %s91 = sphi 0, %s75
      %s97 = sphi 0, %s99
      %s100 = sphi 0, %s97
      %s101 = sphi 0, %s100
      %s117 = sphi 0, %s101
      %s125 = sphi 0, %s127
      %s128 = sphi 0, %s125
      %s129 = sphi 0, %s128
      %s145 = sphi 0, %s129
    $region4: #{_lambda_.10} parent=1 // loop_header_branch
      %15 = sbr.rel (%p13) target = $region8
    $region5: #{_lambda_.10} parent=1 // loop_body
      %s17 = ssub.s32 %s12, 1
      %s18 = ssub.s32 %s12, 2
      %s28 = sadd.s32 1, %s21
      %p29 = scmp.ge.s32.totalorder %s28, 9
      %s30 = scalar_select %p29, 0, %s28
      %s31 = sadd.s32 1, %s20
      %s32 = scalar_select %p29, %s31, %s20
      %p33 = scmp.ge.s32.totalorder %s32, 4
      %s34 = scalar_select %p33, 0, %s32
      %s35 = sadd.s32 1, %s19
      %s36 = scalar_select %p33, %s35, %s19
      %p37 = scmp.ge.s32.totalorder %s36, 1
      %s38 = scalar_select %p37, 0, %s36
      %s39 = ssub.s32 %s19, %s38
      %s40 = ssub.s32 %s21, %s30
      %s41 = sor.u32 %s39, %s40
      %p42 = scmp.eq.s32.totalorder %s41, 0
      %s44 = sadd.s32 %s43, 1
      %s45 = scalar_select %p42, %s43, %s44
      %p48 = pneg %p42
      %p49 = scmp.eq.s32.totalorder %s12, 35
      %p50 = por %p48, %p49
      %p51 = scmp.ne.s32.totalorder %s43, %s46
      %p52 = scmp.eq.s32.totalorder %s12, 0
      %p53 = por %p51, %p52
      %p54 = scmp.ne.s32.totalorder %s43, %s46
      %p55 = scmp.eq.s32.totalorder %s17, 35
      %p56 = por %p54, %p55
      %p57 = scmp.ne.s32.totalorder %s46, %s47
      %p58 = scmp.eq.s32.totalorder %s17, 0
      %p59 = por %p57, %p58
      %p60 = scmp.ne.s32.totalorder %s46, %s47
      %p61 = scmp.eq.s32.totalorder %s18, 35
      %p62 = por %p60, %p61
      %p64 = scmp.ne.s32.totalorder %s47, %s63
      %p65 = scmp.eq.s32.totalorder %s18, 0
      %p66 = por %p64, %p65
      %s67 = ssub.s32 %s21, %s30
      %s68 = ssub.s32 %s20, %s34
      %s69 = sor.u32 %s67, %s68
      %p70 = scmp.eq.s32.totalorder %s69, 0
      %s72 = sadd.s32 %s71, 1
      %s73 = scalar_select %p70, %s71, %s72
      %p76 = pneg %p70
      %p77 = scmp.eq.s32.totalorder %s12, 35
      %p78 = por %p76, %p77
      %p79 = scmp.ne.s32.totalorder %s71, %s74
      %p80 = scmp.eq.s32.totalorder %s12, 0
      %p81 = por %p79, %p80
      %p82 = scmp.ne.s32.totalorder %s71, %s74
      %p83 = scmp.eq.s32.totalorder %s17, 35
      %p84 = por %p82, %p83
      %p85 = scmp.ne.s32.totalorder %s74, %s75
      %p86 = scmp.eq.s32.totalorder %s17, 0
      %p87 = por %p85, %p86
      %p88 = scmp.ne.s32.totalorder %s74, %s75
      %p89 = scmp.eq.s32.totalorder %s18, 35
      %p90 = por %p88, %p89
      %p92 = scmp.ne.s32.totalorder %s75, %s91
      %p93 = scmp.eq.s32.totalorder %s18, 0
      %p94 = por %p92, %p93
      %s95 = ssub.s32 %s20, %s34
      %p96 = scmp.eq.s32.totalorder %s95, 0
      %s98 = sadd.s32 %s97, 1
      %s99 = scalar_select %p96, %s97, %s98
      %p102 = pneg %p96
      %p103 = scmp.eq.s32.totalorder %s12, 35
      %p104 = por %p102, %p103
      %p105 = scmp.ne.s32.totalorder %s97, %s100
      %p106 = scmp.eq.s32.totalorder %s12, 0
      %p107 = por %p105, %p106
      %p108 = scmp.ne.s32.totalorder %s97, %s100
      %p109 = scmp.eq.s32.totalorder %s17, 35
      %p110 = por %p108, %p109
      %p111 = scmp.ne.s32.totalorder %s100, %s101
      %p112 = scmp.eq.s32.totalorder %s17, 0
      %p113 = por %p111, %p112
      %p114 = scmp.ne.s32.totalorder %s100, %s101
      %p115 = scmp.eq.s32.totalorder %s18, 35
      %p116 = por %p114, %p115
      %p118 = scmp.ne.s32.totalorder %s101, %s117
      %p119 = scmp.eq.s32.totalorder %s18, 0
      %p120 = por %p118, %p119
      %s121 = ssub.s32 %s19, %s38
      %s122 = ssub.s32 %s20, %s34
      %s123 = sor.u32 %s121, %s122
      %p124 = scmp.eq.s32.totalorder %s123, 0
      %s126 = sadd.s32 %s125, 1
      %s127 = scalar_select %p124, %s125, %s126
      %p130 = pneg %p124
      %p131 = scmp.eq.s32.totalorder %s12, 35
      %p132 = por %p130, %p131
      %p133 = scmp.ne.s32.totalorder %s125, %s128
      %p134 = scmp.eq.s32.totalorder %s12, 0
      %p135 = por %p133, %p134
      %p136 = scmp.ne.s32.totalorder %s125, %s128
      %p137 = scmp.eq.s32.totalorder %s17, 35
      %p138 = por %p136, %p137
      %p139 = scmp.ne.s32.totalorder %s128, %s129
      %p140 = scmp.eq.s32.totalorder %s17, 0
      %p141 = por %p139, %p140
      %p142 = scmp.ne.s32.totalorder %s128, %s129
      %p143 = scmp.eq.s32.totalorder %s18, 35
      %p144 = por %p142, %p143
      %p146 = scmp.ne.s32.totalorder %s129, %s145
      %p147 = scmp.eq.s32.totalorder %s18, 0
      %p148 = por %p146, %p147
      %p149 = scmp.le.s32.totalorder 1, %s12
      %p150 = scmp.lt.s32.totalorder %s12, 37
      %p151 = pnand %p149, %p150
      %p152 = pneg %p151
      // Predicated region
      $region9: #{_lambda_.10} parent=5 // pred_check
        _
      $region10: #{_lambda_.10} parent=5 // pred_check_branch
        %154 = sbr.rel (%p151) target = $region12
      $region11: #{_lambda_.10} parent=5 // pred_region
        %s155 = ssub.s32 %s12, 1
      $region12: #{_lambda_.10} parent=5 // pred_fallthru
        _
      %p156 = scmp.lt.s32.totalorder %s12, 36
      // Predicated region
      $region13: #{_lambda_.10} parent=5 // pred_check
        %p157 = pneg %p156
      $region14: #{_lambda_.10} parent=5 // pred_check_branch
        %159 = sbr.rel (%p157) target = $region16
      $region15: #{_lambda_.10} parent=5 // pred_region
        // Predicated region
        $region17: #{_lambda_.10} parent=15 // pred_check
          %p160 = pneg %p53
        $region18: #{_lambda_.10} parent=15 // pred_check_branch
          %162 = sbr.rel (%p160) target = $region20
        $region19: #{_lambda_.10} parent=15 // pred_region
          %s163 = sand.u32 %s43, 1
          %s164 = sand.u32 %s43, 1
          %s165 = smul.addr %s164, 256
          %s166 = scalar_lea.vmem [#allocation3], %s165
          %s167 = smul.u32 16, %s19
          %s168 = smul.u32 4, %s21
          %s169 = smul.addr %s167, 36
          %s170 = sadd.s32 %s168, %s169
          %s171 = smul.addr %s170, 4
          %s172 = scalar_lea.vmem %s0, %s171
          // Predicated region
          $region21: #{_lambda_.10} parent=19 // pred_check
            _
          $region22: #{_lambda_.10} parent=19 // pred_check_branch
            %174 = sbr.rel (0) target = $region24
          $region23: #{_lambda_.10} parent=19 // pred_region
            // Predicated region
            $region25: #{_lambda_.10} parent=23 // pred_check
              _
            $region26: #{_lambda_.10} parent=23 // pred_check_branch
              %176 = sbr.rel (0) target = $region28
            $region27: #{_lambda_.10} parent=23 // pred_region
              loop: start=0, step=1, limit=1
              $region29: #{_lambda_.10} parent=27 // loop_pre_header
                _
              $region30: #{_lambda_.10} parent=27 // loop_header
                %s178 = sphi 0, %s182
                %p179 = scmp.ge.s32.totalorder %s178, 1
                %s183 = sphi %s172, %s172
                %s184 = sphi %s166, %s166
              $region31: #{_lambda_.10} parent=27 // loop_header_branch
                %181 = sbr.rel (%p179) target = $region35
              $region32: #{_lambda_.10} parent=27 // loop_body
                %v185 = vld [vmem:[%s183] sm:$0xff]
                %186 = vst [vmem:[%s184] sm:$0xff] %v185
                %v187 = vld [vmem:[%s183 + $0x8] sm:$0xff]
                %188 = vst [vmem:[%s184 + $0x8] sm:$0xff] %v187
                %v189 = vld [vmem:[%s183 + $0x90] sm:$0xff]
                %190 = vst [vmem:[%s184 + $0x10] sm:$0xff] %v189
                %v191 = vld [vmem:[%s183 + $0x98] sm:$0xff]
                %192 = vst [vmem:[%s184 + $0x18] sm:$0xff] %v191
                %v193 = vld [vmem:[%s183 + $0x120] sm:$0xff]
                %194 = vst [vmem:[%s184 + $0x20] sm:$0xff] %v193
                %v195 = vld [vmem:[%s183 + $0x128] sm:$0xff]
                %196 = vst [vmem:[%s184 + $0x28] sm:$0xff] %v195
                %v197 = vld [vmem:[%s183 + $0x1b0] sm:$0xff]
                %198 = vst [vmem:[%s184 + $0x30] sm:$0xff] %v197
                %v199 = vld [vmem:[%s183 + $0x1b8] sm:$0xff]
                %200 = vst [vmem:[%s184 + $0x38] sm:$0xff] %v199
                %v201 = vld [vmem:[%s183 + $0x240] sm:$0xff]
                %202 = vst [vmem:[%s184 + $0x40] sm:$0xff] %v201
                %v203 = vld [vmem:[%s183 + $0x248] sm:$0xff]
                %204 = vst [vmem:[%s184 + $0x48] sm:$0xff] %v203
                %v205 = vld [vmem:[%s183 + $0x2d0] sm:$0xff]
                %206 = vst [vmem:[%s184 + $0x50] sm:$0xff] %v205
                %v207 = vld [vmem:[%s183 + $0x2d8] sm:$0xff]
                %208 = vst [vmem:[%s184 + $0x58] sm:$0xff] %v207
                %v209 = vld [vmem:[%s183 + $0x360] sm:$0xff]
                %210 = vst [vmem:[%s184 + $0x60] sm:$0xff] %v209
                %v211 = vld [vmem:[%s183 + $0x368] sm:$0xff]
                %212 = vst [vmem:[%s184 + $0x68] sm:$0xff] %v211
                %v213 = vld [vmem:[%s183 + $0x3f0] sm:$0xff]
                %214 = vst [vmem:[%s184 + $0x70] sm:$0xff] %v213
                %v215 = vld [vmem:[%s183 + $0x3f8] sm:$0xff]
                %216 = vst [vmem:[%s184 + $0x78] sm:$0xff] %v215
                %v217 = vld [vmem:[%s183 + $0x480] sm:$0xff]
                %218 = vst [vmem:[%s184 + $0x80] sm:$0xff] %v217
                %v219 = vld [vmem:[%s183 + $0x488] sm:$0xff]
                %220 = vst [vmem:[%s184 + $0x88] sm:$0xff] %v219
                %v221 = vld [vmem:[%s183 + $0x510] sm:$0xff]
                %222 = vst [vmem:[%s184 + $0x90] sm:$0xff] %v221
                %v223 = vld [vmem:[%s183 + $0x518] sm:$0xff]
                %224 = vst [vmem:[%s184 + $0x98] sm:$0xff] %v223
                %v225 = vld [vmem:[%s183 + $0x5a0] sm:$0xff]
                %226 = vst [vmem:[%s184 + $0xa0] sm:$0xff] %v225
                %v227 = vld [vmem:[%s183 + $0x5a8] sm:$0xff]
                %228 = vst [vmem:[%s184 + $0xa8] sm:$0xff] %v227
                %v229 = vld [vmem:[%s183 + $0x630] sm:$0xff]
                %230 = vst [vmem:[%s184 + $0xb0] sm:$0xff] %v229
                %v231 = vld [vmem:[%s183 + $0x638] sm:$0xff]
                %232 = vst [vmem:[%s184 + $0xb8] sm:$0xff] %v231
                %v233 = vld [vmem:[%s183 + $0x6c0] sm:$0xff]
                %234 = vst [vmem:[%s184 + $0xc0] sm:$0xff] %v233
                %v235 = vld [vmem:[%s183 + $0x6c8] sm:$0xff]
                %236 = vst [vmem:[%s184 + $0xc8] sm:$0xff] %v235
                %v237 = vld [vmem:[%s183 + $0x750] sm:$0xff]
                %238 = vst [vmem:[%s184 + $0xd0] sm:$0xff] %v237
                %v239 = vld [vmem:[%s183 + $0x758] sm:$0xff]
                %240 = vst [vmem:[%s184 + $0xd8] sm:$0xff] %v239
                %v241 = vld [vmem:[%s183 + $0x7e0] sm:$0xff]
                %242 = vst [vmem:[%s184 + $0xe0] sm:$0xff] %v241
                %v243 = vld [vmem:[%s183 + $0x7e8] sm:$0xff]
                %244 = vst [vmem:[%s184 + $0xe8] sm:$0xff] %v243
                %v245 = vld [vmem:[%s183 + $0x870] sm:$0xff]
                %246 = vst [vmem:[%s184 + $0xf0] sm:$0xff] %v245
                %v247 = vld [vmem:[%s183 + $0x878] sm:$0xff]
                %248 = vst [vmem:[%s184 + $0xf8] sm:$0xff] %v247
              $region33: #{_lambda_.10} parent=27 // loop_footer
                %s182 = sadd.s32 1, %s178
              $region34: #{_lambda_.10} parent=27 // loop_footer_branch
                %177 = sbr.rel target = $region30
              $region35: #{_lambda_.10} parent=27 // loop_exit
                _
            $region28: #{_lambda_.10} parent=23 // pred_fallthru
              _
            // Predicated region
            $region36: #{_lambda_.10} parent=23 // pred_check
              _
            $region37: #{_lambda_.10} parent=23 // pred_check_branch
              %250 = sbr.rel target = $region39
            $region38: #{_lambda_.10} parent=23 // pred_region
              _
            $region39: #{_lambda_.10} parent=23 // pred_fallthru
              _
          $region24: #{_lambda_.10} parent=19 // pred_fallthru
            _
          %251 = vnop
        $region20: #{_lambda_.10} parent=15 // pred_fallthru
          _
        // Predicated region
        $region40: #{_lambda_.10} parent=15 // pred_check
          %p252 = pneg %p81
        $region41: #{_lambda_.10} parent=15 // pred_check_branch
          %254 = sbr.rel (%p252) target = $region43
        $region42: #{_lambda_.10} parent=15 // pred_region
          %s255 = sand.u32 %s71, 1
          %s256 = scalar_lea.sflag [#allocation5], %s255
          %s257 = sand.u32 %s71, 1
          %s258 = smul.addr %s257, 256
          %s259 = scalar_lea.vmem [#allocation4], %s258
          %s260 = smul.u32 64, %s21
          %262 = vsyncadd %s256, 0
          %s263 = smul.addr %s260, 4
          %s264 = sadd.s32 %s20, %s263
          %s265 = smul.addr %s264, 4
          %s266 = scalar_lea.hbm %s1, %s265
          %s267 = sshll.u32 %s266, 4
          %s268 = int_to_ptr.hbm [resolvable:$true] %s267
          %s269 = sshll.u32 %s259, 4
          %s270 = int_to_ptr.vmem [resolvable:$true] %s269
          %275 = dma.hbm_to_vmem [thread:$0]  %s268, 4096, %s270, %s256, 256, 64, 4
        $region43: #{_lambda_.10} parent=15 // pred_fallthru
          _
        // Predicated region
        $region44: #{_lambda_.10} parent=15 // pred_check
          %p276 = pneg %p107
        $region45: #{_lambda_.10} parent=15 // pred_check_branch
          %278 = sbr.rel (%p276) target = $region47
        $region46: #{_lambda_.10} parent=15 // pred_region
          %p279 = scmp.lt.s32.totalorder %s20, 3
          %s280 = scalar_select %p279, %s20, 3
          %s281 = scalar_lea.vmem %s2, %s280
        $region47: #{_lambda_.10} parent=15 // pred_fallthru
          _
      $region16: #{_lambda_.10} parent=5 // pred_fallthru
        _
      %p282 = scmp.le.s32.totalorder 1, %s12
      %p283 = scmp.lt.s32.totalorder %s12, 37
      %p284 = pnand %p282, %p283
      %p285 = pneg %p284
      // Predicated region
      $region48: #{_lambda_.10} parent=5 // pred_check
        _
      $region49: #{_lambda_.10} parent=5 // pred_check_branch
        %287 = sbr.rel (%p284) target = $region51
      $region50: #{_lambda_.10} parent=5 // pred_region
        %s288 = ssub.s32 %s12, 1
        %s289 = sand.u32 %s46, 1
        %s290 = sand.u32 %s46, 1
        %s291 = smul.addr %s290, 256
        %s292 = scalar_lea.vmem [#allocation3], %s291
        // Predicated region
        $region52: #{_lambda_.10} parent=50 // pred_check
          %p293 = pneg %p59
        $region53: #{_lambda_.10} parent=50 // pred_check_branch
          %295 = sbr.rel (%p293) target = $region55
        $region54: #{_lambda_.10} parent=50 // pred_region
          _
        $region55: #{_lambda_.10} parent=50 // pred_fallthru
          _
        %s296 = sand.u32 %s74, 1
        %s297 = scalar_lea.sflag [#allocation5], %s296
        %s298 = sand.u32 %s74, 1
        %s299 = smul.addr %s298, 256
        %s300 = scalar_lea.vmem [#allocation4], %s299
        // Predicated region
        $region56: #{_lambda_.10} parent=50 // pred_check
          %p301 = pneg %p87
        $region57: #{_lambda_.10} parent=50 // pred_check_branch
          %303 = sbr.rel (%p301) target = $region59
        $region58: #{_lambda_.10} parent=50 // pred_region
          %305 = dma.done %s297, 4096
        $region59: #{_lambda_.10} parent=50 // pred_fallthru
          _
        %s306 = sand.u32 %s46, 1
        %s307 = sand.u32 %s46, 1
        %s308 = smul.addr %s307, 256
        %s309 = scalar_lea.vmem [#allocation3], %s308
        %p310 = pneg %p59
        %p311 = pneg %p56
        %s312 = sand.u32 %s74, 1
        %s313 = scalar_lea.sflag [#allocation5], %s312
        %s314 = sand.u32 %s74, 1
        %s315 = smul.addr %s314, 256
        %s316 = scalar_lea.vmem [#allocation4], %s315
        %p317 = pneg %p87
        %p318 = pneg %p84
        %p319 = scmp.lt.s32.totalorder %s23, 3
        %s320 = scalar_select %p319, %s23, 3
        %s321 = scalar_lea.vmem %s2, %s320
        %p322 = pneg %p113
        %p323 = pneg %p110
        %p324 = pneg %p141
        %p325 = pneg %p138
        %s326 = sand.u32 %s128, 1
        %s327 = sand.u32 %s128, 1
        %s328 = smul.addr %s327, 64
        %s329 = scalar_lea.vmem [#allocation6], %s328
        %s330 = smul.u32 16, %s22
        %s331 = smul.u32 4, %s24
        %s332 = smul.u32 64, %s24
        %p333 = scmp.lt.s32.totalorder %s23, 3
        %s334 = scalar_select %p333, %s23, 3
        %s335 = scalar_lea.vmem %s2, %s334
        %s336 = smul.u32 16, %s22
        %p337 = scmp.eq.s32.totalorder %s24, 0
        // Predicated region
        $region60: #{_lambda_.10} parent=50 // pred_check
          %p338 = pneg %p337
        $region61: #{_lambda_.10} parent=50 // pred_check_branch
          %340 = sbr.rel (%p338) target = $region63
        $region62: #{_lambda_.10} parent=50 // pred_region
          %341 = vst [vmem:[#allocation2] sm:$0xff] 0.0
          %342 = vst [vmem:[#allocation2 + $0x8] sm:$0xff] 0.0
          %343 = vst [vmem:[#allocation2 + $0x10] sm:$0xff] 0.0
          %344 = vst [vmem:[#allocation2 + $0x18] sm:$0xff] 0.0
          %345 = vst [vmem:[#allocation2 + $0x20] sm:$0xff] 0.0
          %346 = vst [vmem:[#allocation2 + $0x28] sm:$0xff] 0.0
          %347 = vst [vmem:[#allocation2 + $0x30] sm:$0xff] 0.0
          %348 = vst [vmem:[#allocation2 + $0x38] sm:$0xff] 0.0
          %349 = vst [vmem:[#allocation2 + $0x40] sm:$0xff] 0.0
          %350 = vst [vmem:[#allocation2 + $0x48] sm:$0xff] 0.0
          %351 = vst [vmem:[#allocation2 + $0x50] sm:$0xff] 0.0
          %352 = vst [vmem:[#allocation2 + $0x58] sm:$0xff] 0.0
          %353 = vst [vmem:[#allocation2 + $0x60] sm:$0xff] 0.0
          %354 = vst [vmem:[#allocation2 + $0x68] sm:$0xff] 0.0
          %355 = vst [vmem:[#allocation2 + $0x70] sm:$0xff] 0.0
          %356 = vst [vmem:[#allocation2 + $0x78] sm:$0xff] 0.0
        $region63: #{_lambda_.10} parent=50 // pred_fallthru
          _
        %v357 = vld [vmem:[#allocation2] sm:$0xff]
        %v358 = vld [vmem:[#allocation2 + $0x8] sm:$0xff]
        %v359 = vld [vmem:[#allocation2 + $0x10] sm:$0xff]
        %v360 = vld [vmem:[#allocation2 + $0x18] sm:$0xff]
        %v361 = vld [vmem:[#allocation2 + $0x20] sm:$0xff]
        %v362 = vld [vmem:[#allocation2 + $0x28] sm:$0xff]
        %v363 = vld [vmem:[#allocation2 + $0x30] sm:$0xff]
        %v364 = vld [vmem:[#allocation2 + $0x38] sm:$0xff]
        %v365 = vld [vmem:[#allocation2 + $0x40] sm:$0xff]
        %v366 = vld [vmem:[#allocation2 + $0x48] sm:$0xff]
        %v367 = vld [vmem:[#allocation2 + $0x50] sm:$0xff]
        %v368 = vld [vmem:[#allocation2 + $0x58] sm:$0xff]
        %v369 = vld [vmem:[#allocation2 + $0x60] sm:$0xff]
        %v370 = vld [vmem:[#allocation2 + $0x68] sm:$0xff]
        %v371 = vld [vmem:[#allocation2 + $0x70] sm:$0xff]
        %v372 = vld [vmem:[#allocation2 + $0x78] sm:$0xff]
        %v373 = vld [vmem:[%s292] sm:$0xff]
        %v374 = vld [vmem:[%s292 + $0x8] sm:$0xff]
        %v375 = vld [vmem:[%s292 + $0x10] sm:$0xff]
        %v376 = vld [vmem:[%s292 + $0x18] sm:$0xff]
        %v377 = vld [vmem:[%s292 + $0x20] sm:$0xff]
        %v378 = vld [vmem:[%s292 + $0x28] sm:$0xff]
        %v379 = vld [vmem:[%s292 + $0x30] sm:$0xff]
        %v380 = vld [vmem:[%s292 + $0x38] sm:$0xff]
        %v381 = vld [vmem:[%s292 + $0x40] sm:$0xff]
        %v382 = vld [vmem:[%s292 + $0x48] sm:$0xff]
        %v383 = vld [vmem:[%s292 + $0x50] sm:$0xff]
        %v384 = vld [vmem:[%s292 + $0x58] sm:$0xff]
        %v385 = vld [vmem:[%s292 + $0x60] sm:$0xff]
        %v386 = vld [vmem:[%s292 + $0x68] sm:$0xff]
        %v387 = vld [vmem:[%s292 + $0x70] sm:$0xff]
        %v388 = vld [vmem:[%s292 + $0x78] sm:$0xff]
        %v389 = vld [vmem:[%s292 + $0x80] sm:$0xff]
        %v390 = vld [vmem:[%s292 + $0x88] sm:$0xff]
        %v391 = vld [vmem:[%s292 + $0x90] sm:$0xff]
        %v392 = vld [vmem:[%s292 + $0x98] sm:$0xff]
        %v393 = vld [vmem:[%s292 + $0xa0] sm:$0xff]
        %v394 = vld [vmem:[%s292 + $0xa8] sm:$0xff]
        %v395 = vld [vmem:[%s292 + $0xb0] sm:$0xff]
        %v396 = vld [vmem:[%s292 + $0xb8] sm:$0xff]
        %v397 = vld [vmem:[%s292 + $0xc0] sm:$0xff]
        %v398 = vld [vmem:[%s292 + $0xc8] sm:$0xff]
        %v399 = vld [vmem:[%s292 + $0xd0] sm:$0xff]
        %v400 = vld [vmem:[%s292 + $0xd8] sm:$0xff]
        %v401 = vld [vmem:[%s292 + $0xe0] sm:$0xff]
        %v402 = vld [vmem:[%s292 + $0xe8] sm:$0xff]
        %v403 = vld [vmem:[%s292 + $0xf0] sm:$0xff]
        %v404 = vld [vmem:[%s292 + $0xf8] sm:$0xff]
        %v405 = vld [vmem:[%s300] sm:$0xf]
        %v406 = vld [vmem:[%s300 + $0x4] sm:$0xf]
        %v407 = vld [vmem:[%s300 + $0x8] sm:$0xf]
        %v408 = vld [vmem:[%s300 + $0xc] sm:$0xf]
        %v409 = vld [vmem:[%s300 + $0x10] sm:$0xf]
        %v410 = vld [vmem:[%s300 + $0x14] sm:$0xf]
        %v411 = vld [vmem:[%s300 + $0x18] sm:$0xf]
        %v412 = vld [vmem:[%s300 + $0x1c] sm:$0xf]
        %v413 = vld [vmem:[%s300 + $0x20] sm:$0xf]
        %v414 = vld [vmem:[%s300 + $0x24] sm:$0xf]
        %v415 = vld [vmem:[%s300 + $0x28] sm:$0xf]
        %v416 = vld [vmem:[%s300 + $0x2c] sm:$0xf]
        %v417 = vld [vmem:[%s300 + $0x30] sm:$0xf]
        %v418 = vld [vmem:[%s300 + $0x34] sm:$0xf]
        %v419 = vld [vmem:[%s300 + $0x38] sm:$0xf]
        %v420 = vld [vmem:[%s300 + $0x3c] sm:$0xf]
        %v421 = vld [vmem:[%s300 + $0x40] sm:$0xf]
        %v422 = vld [vmem:[%s300 + $0x44] sm:$0xf]
        %v423 = vld [vmem:[%s300 + $0x48] sm:$0xf]
        %v424 = vld [vmem:[%s300 + $0x4c] sm:$0xf]
        %v425 = vld [vmem:[%s300 + $0x50] sm:$0xf]
        %v426 = vld [vmem:[%s300 + $0x54] sm:$0xf]
        %v427 = vld [vmem:[%s300 + $0x58] sm:$0xf]
        %v428 = vld [vmem:[%s300 + $0x5c] sm:$0xf]
        %v429 = vld [vmem:[%s300 + $0x60] sm:$0xf]
        %v430 = vld [vmem:[%s300 + $0x64] sm:$0xf]
        %v431 = vld [vmem:[%s300 + $0x68] sm:$0xf]
        %v432 = vld [vmem:[%s300 + $0x6c] sm:$0xf]
        %v433 = vld [vmem:[%s300 + $0x70] sm:$0xf]
        %v434 = vld [vmem:[%s300 + $0x74] sm:$0xf]
        %v435 = vld [vmem:[%s300 + $0x78] sm:$0xf]
        %v436 = vld [vmem:[%s300 + $0x7c] sm:$0xf]
        %v437 = vld [vmem:[%s300 + $0x80] sm:$0xf]
        %v438 = vld [vmem:[%s300 + $0x84] sm:$0xf]
        %v439 = vld [vmem:[%s300 + $0x88] sm:$0xf]
        %v440 = vld [vmem:[%s300 + $0x8c] sm:$0xf]
        %v441 = vld [vmem:[%s300 + $0x90] sm:$0xf]
        %v442 = vld [vmem:[%s300 + $0x94] sm:$0xf]
        %v443 = vld [vmem:[%s300 + $0x98] sm:$0xf]
        %v444 = vld [vmem:[%s300 + $0x9c] sm:$0xf]
        %v445 = vld [vmem:[%s300 + $0xa0] sm:$0xf]
        %v446 = vld [vmem:[%s300 + $0xa4] sm:$0xf]
        %v447 = vld [vmem:[%s300 + $0xa8] sm:$0xf]
        %v448 = vld [vmem:[%s300 + $0xac] sm:$0xf]
        %v449 = vld [vmem:[%s300 + $0xb0] sm:$0xf]
        %v450 = vld [vmem:[%s300 + $0xb4] sm:$0xf]
        %v451 = vld [vmem:[%s300 + $0xb8] sm:$0xf]
        %v452 = vld [vmem:[%s300 + $0xbc] sm:$0xf]
        %v453 = vld [vmem:[%s300 + $0xc0] sm:$0xf]
        %v454 = vld [vmem:[%s300 + $0xc4] sm:$0xf]
        %v455 = vld [vmem:[%s300 + $0xc8] sm:$0xf]
        %v456 = vld [vmem:[%s300 + $0xcc] sm:$0xf]
        %v457 = vld [vmem:[%s300 + $0xd0] sm:$0xf]
        %v458 = vld [vmem:[%s300 + $0xd4] sm:$0xf]
        %v459 = vld [vmem:[%s300 + $0xd8] sm:$0xf]
        %v460 = vld [vmem:[%s300 + $0xdc] sm:$0xf]
        %v461 = vld [vmem:[%s300 + $0xe0] sm:$0xf]
        %v462 = vld [vmem:[%s300 + $0xe4] sm:$0xf]
        %v463 = vld [vmem:[%s300 + $0xe8] sm:$0xf]
        %v464 = vld [vmem:[%s300 + $0xec] sm:$0xf]
        %v465 = vld [vmem:[%s300 + $0xf0] sm:$0xf]
        %v466 = vld [vmem:[%s300 + $0xf4] sm:$0xf]
        %v467 = vld [vmem:[%s300 + $0xf8] sm:$0xf]
        %v468 = vld [vmem:[%s300 + $0xfc] sm:$0xf]
        %v501 = vunpack.c.l.b16 %v373
        %v502 = vunpack.c.h.b16 %v373
        %v503 = vunpack.c.l.b16 %v374
        %v504 = vunpack.c.h.b16 %v374
        %v505 = vunpack.c.l.b16 %v375
        %v506 = vunpack.c.h.b16 %v375
        %v507 = vunpack.c.l.b16 %v376
        %v508 = vunpack.c.h.b16 %v376
        %v509 = vunpack.c.l.b16 %v377
        %v510 = vunpack.c.h.b16 %v377
        %v511 = vunpack.c.l.b16 %v378
        %v512 = vunpack.c.h.b16 %v378
        %v513 = vunpack.c.l.b16 %v379
        %v514 = vunpack.c.h.b16 %v379
        %v515 = vunpack.c.l.b16 %v380
        %v516 = vunpack.c.h.b16 %v380
        %v517 = vunpack.c.l.b16 %v381
        %v518 = vunpack.c.h.b16 %v381
        %v519 = vunpack.c.l.b16 %v382
        %v520 = vunpack.c.h.b16 %v382
        %v521 = vunpack.c.l.b16 %v383
        %v522 = vunpack.c.h.b16 %v383
        %v523 = vunpack.c.l.b16 %v384
        %v524 = vunpack.c.h.b16 %v384
        %v525 = vunpack.c.l.b16 %v385
        %v526 = vunpack.c.h.b16 %v385
        %v527 = vunpack.c.l.b16 %v386
        %v528 = vunpack.c.h.b16 %v386
        %v529 = vunpack.c.l.b16 %v387
        %v530 = vunpack.c.h.b16 %v387
        %v531 = vunpack.c.l.b16 %v388
        %v532 = vunpack.c.h.b16 %v388
        %v533 = vunpack.c.l.b16 %v389
        %v534 = vunpack.c.h.b16 %v389
        %v535 = vunpack.c.l.b16 %v390
        %v536 = vunpack.c.h.b16 %v390
        %v537 = vunpack.c.l.b16 %v391
        %v538 = vunpack.c.h.b16 %v391
        %v539 = vunpack.c.l.b16 %v392
        %v540 = vunpack.c.h.b16 %v392
        %v541 = vunpack.c.l.b16 %v393
        %v542 = vunpack.c.h.b16 %v393
        %v543 = vunpack.c.l.b16 %v394
        %v544 = vunpack.c.h.b16 %v394
        %v545 = vunpack.c.l.b16 %v395
        %v546 = vunpack.c.h.b16 %v395
        %v547 = vunpack.c.l.b16 %v396
        %v548 = vunpack.c.h.b16 %v396
        %v549 = vunpack.c.l.b16 %v397
        %v550 = vunpack.c.h.b16 %v397
        %v551 = vunpack.c.l.b16 %v398
        %v552 = vunpack.c.h.b16 %v398
        %v553 = vunpack.c.l.b16 %v399
        %v554 = vunpack.c.h.b16 %v399
        %v555 = vunpack.c.l.b16 %v400
        %v556 = vunpack.c.h.b16 %v400
        %v557 = vunpack.c.l.b16 %v401
        %v558 = vunpack.c.h.b16 %v401
        %v559 = vunpack.c.l.b16 %v402
        %v560 = vunpack.c.h.b16 %v402
        %v561 = vunpack.c.l.b16 %v403
        %v562 = vunpack.c.h.b16 %v403
        %v563 = vunpack.c.l.b16 %v404
        %v564 = vunpack.c.h.b16 %v404
        %v565 = vpack.c.b16 %v505, %v501
        %v566 = vpack.c.b16 %v506, %v502
        %v567 = vpack.c.b16 %v507, %v503
        %v568 = vpack.c.b16 %v508, %v504
        %v569 = vpack.c.b16 %v513, %v509
        %v570 = vpack.c.b16 %v514, %v510
        %v571 = vpack.c.b16 %v515, %v511
        %v572 = vpack.c.b16 %v516, %v512
        %v573 = vpack.c.b16 %v521, %v517
        %v574 = vpack.c.b16 %v522, %v518
        %v575 = vpack.c.b16 %v523, %v519
        %v576 = vpack.c.b16 %v524, %v520
        %v577 = vpack.c.b16 %v529, %v525
        %v578 = vpack.c.b16 %v530, %v526
        %v579 = vpack.c.b16 %v531, %v527
        %v580 = vpack.c.b16 %v532, %v528
        %v581 = vpack.c.b16 %v537, %v533
        %v582 = vpack.c.b16 %v538, %v534
        %v583 = vpack.c.b16 %v539, %v535
        %v584 = vpack.c.b16 %v540, %v536
        %v585 = vpack.c.b16 %v545, %v541
        %v586 = vpack.c.b16 %v546, %v542
        %v587 = vpack.c.b16 %v547, %v543
        %v588 = vpack.c.b16 %v548, %v544
        %v589 = vpack.c.b16 %v553, %v549
        %v590 = vpack.c.b16 %v554, %v550
        %v591 = vpack.c.b16 %v555, %v551
        %v592 = vpack.c.b16 %v556, %v552
        %v593 = vpack.c.b16 %v561, %v557
        %v594 = vpack.c.b16 %v562, %v558
        %v595 = vpack.c.b16 %v563, %v559
        %v596 = vpack.c.b16 %v564, %v560
        %v693 = vunpack.c.l.b16 %v405
        %v694 = vunpack.c.l.b16 %v406
        %v695 = vunpack.c.l.b16 %v407
        %v696 = vunpack.c.l.b16 %v408
        %v697 = vunpack.c.l.b16 %v409
        %v698 = vunpack.c.l.b16 %v410
        %v699 = vunpack.c.l.b16 %v411
        %v700 = vunpack.c.l.b16 %v412
        %v701 = vunpack.c.l.b16 %v413
        %v702 = vunpack.c.l.b16 %v414
        %v703 = vunpack.c.l.b16 %v415
        %v704 = vunpack.c.l.b16 %v416
        %v705 = vunpack.c.l.b16 %v417
        %v706 = vunpack.c.l.b16 %v418
        %v707 = vunpack.c.l.b16 %v419
        %v708 = vunpack.c.l.b16 %v420
        %v709 = vunpack.c.l.b16 %v421
        %v710 = vunpack.c.l.b16 %v422
        %v711 = vunpack.c.l.b16 %v423
        %v712 = vunpack.c.l.b16 %v424
        %v713 = vunpack.c.l.b16 %v425
        %v714 = vunpack.c.l.b16 %v426
        %v715 = vunpack.c.l.b16 %v427
        %v716 = vunpack.c.l.b16 %v428
        %v717 = vunpack.c.l.b16 %v429
        %v718 = vunpack.c.l.b16 %v430
        %v719 = vunpack.c.l.b16 %v431
        %v720 = vunpack.c.l.b16 %v432
        %v721 = vunpack.c.l.b16 %v433
        %v722 = vunpack.c.l.b16 %v434
        %v723 = vunpack.c.l.b16 %v435
        %v724 = vunpack.c.l.b16 %v436
        %v725 = vunpack.c.l.b16 %v437
        %v726 = vunpack.c.l.b16 %v438
        %v727 = vunpack.c.l.b16 %v439
        %v728 = vunpack.c.l.b16 %v440
        %v729 = vunpack.c.l.b16 %v441
        %v730 = vunpack.c.l.b16 %v442
        %v731 = vunpack.c.l.b16 %v443
        %v732 = vunpack.c.l.b16 %v444
        %v733 = vunpack.c.l.b16 %v445
        %v734 = vunpack.c.l.b16 %v446
        %v735 = vunpack.c.l.b16 %v447
        %v736 = vunpack.c.l.b16 %v448
        %v737 = vunpack.c.l.b16 %v449
        %v738 = vunpack.c.l.b16 %v450
        %v739 = vunpack.c.l.b16 %v451
        %v740 = vunpack.c.l.b16 %v452
        %v741 = vunpack.c.l.b16 %v453
        %v742 = vunpack.c.l.b16 %v454
        %v743 = vunpack.c.l.b16 %v455
        %v744 = vunpack.c.l.b16 %v456
        %v745 = vunpack.c.l.b16 %v457
        %v746 = vunpack.c.l.b16 %v458
        %v747 = vunpack.c.l.b16 %v459
        %v748 = vunpack.c.l.b16 %v460
        %v749 = vunpack.c.l.b16 %v461
        %v750 = vunpack.c.l.b16 %v462
        %v751 = vunpack.c.l.b16 %v463
        %v752 = vunpack.c.l.b16 %v464
        %v753 = vunpack.c.l.b16 %v465
        %v754 = vunpack.c.l.b16 %v466
        %v755 = vunpack.c.l.b16 %v467
        %v756 = vunpack.c.l.b16 %v468
        %v757 = vpack.c.b16 %v694, %v693
        %v758 = vpack.c.b16 %v696, %v695
        %v759 = vpack.c.b16 %v698, %v697
        %v760 = vpack.c.b16 %v700, %v699
        %v761 = vpack.c.b16 %v702, %v701
        %v762 = vpack.c.b16 %v704, %v703
        %v763 = vpack.c.b16 %v706, %v705
        %v764 = vpack.c.b16 %v708, %v707
        %v765 = vpack.c.b16 %v710, %v709
        %v766 = vpack.c.b16 %v712, %v711
        %v767 = vpack.c.b16 %v714, %v713
        %v768 = vpack.c.b16 %v716, %v715
        %v769 = vpack.c.b16 %v718, %v717
        %v770 = vpack.c.b16 %v720, %v719
        %v771 = vpack.c.b16 %v722, %v721
        %v772 = vpack.c.b16 %v724, %v723
        %v773 = vpack.c.b16 %v726, %v725
        %v774 = vpack.c.b16 %v728, %v727
        %v775 = vpack.c.b16 %v730, %v729
        %v776 = vpack.c.b16 %v732, %v731
        %v777 = vpack.c.b16 %v734, %v733
        %v778 = vpack.c.b16 %v736, %v735
        %v779 = vpack.c.b16 %v738, %v737
        %v780 = vpack.c.b16 %v740, %v739
        %v781 = vpack.c.b16 %v742, %v741
        %v782 = vpack.c.b16 %v744, %v743
        %v783 = vpack.c.b16 %v746, %v745
        %v784 = vpack.c.b16 %v748, %v747
        %v785 = vpack.c.b16 %v750, %v749
        %v786 = vpack.c.b16 %v752, %v751
        %v787 = vpack.c.b16 %v754, %v753
        %v788 = vpack.c.b16 %v756, %v755
        %821 = vmatpush.bf16.msra.mxu0 %v764
        %822 = vmatpush.bf16.msra.mxu0 %v763
        %823 = vmatpush.bf16.msra.mxu0 %v762
        %824 = vmatpush.bf16.msra.mxu0 %v761
        %825 = vmatpush.bf16.msra.mxu0 %v760
        %826 = vmatpush.bf16.msra.mxu0 %v759
        %827 = vmatpush.bf16.msra.mxu0 %v758
        %828 = vmatpush.bf16.msra.mxu0 %v757
        %829 = vmatmul.bf16.gmra.mxu0 %v565
        %v830 = vpop.f32.mrf.mxu0
        %v831 = vadd.f32 0.0, %v830
        %v832 = vpop.f32.mrf.mxu0
        %v833 = vadd.f32 0.0, %v832
        %834 = vmatmul.bf16.gmra.mxu0 %v569
        %v835 = vpop.f32.mrf.mxu0
        %v836 = vadd.f32 0.0, %v835
        %v837 = vpop.f32.mrf.mxu0
        %v838 = vadd.f32 0.0, %v837
        %839 = vmatmul.bf16.gmra.mxu0 %v573
        %v840 = vpop.f32.mrf.mxu0
        %v841 = vadd.f32 0.0, %v840
        %v842 = vpop.f32.mrf.mxu0
        %v843 = vadd.f32 0.0, %v842
        %844 = vmatmul.bf16.gmra.mxu0 %v577
        %v845 = vpop.f32.mrf.mxu0
        %v846 = vadd.f32 0.0, %v845
        %v847 = vpop.f32.mrf.mxu0
        %v848 = vadd.f32 0.0, %v847
        %849 = vmatmul.bf16.gmra.mxu0 %v581
        %v850 = vpop.f32.mrf.mxu0
        %v851 = vadd.f32 0.0, %v850
        %v852 = vpop.f32.mrf.mxu0
        %v853 = vadd.f32 0.0, %v852
        %854 = vmatmul.bf16.gmra.mxu0 %v585
        %v855 = vpop.f32.mrf.mxu0
        %v856 = vadd.f32 0.0, %v855
        %v857 = vpop.f32.mrf.mxu0
        %v858 = vadd.f32 0.0, %v857
        %859 = vmatmul.bf16.gmra.mxu0 %v589
        %v860 = vpop.f32.mrf.mxu0
        %v861 = vadd.f32 0.0, %v860
        %v862 = vpop.f32.mrf.mxu0
        %v863 = vadd.f32 0.0, %v862
        %864 = vmatmul.bf16.gmra.mxu0 %v593
        %v865 = vpop.f32.mrf.mxu0
        %v866 = vadd.f32 0.0, %v865
        %v867 = vpop.f32.mrf.mxu0
        %v868 = vadd.f32 0.0, %v867
        %869 = vdwg.mxu0
        %870 = vmatpush.bf16.msra.mxu0 %v772
        %871 = vmatpush.bf16.msra.mxu0 %v771
        %872 = vmatpush.bf16.msra.mxu0 %v770
        %873 = vmatpush.bf16.msra.mxu0 %v769
        %874 = vmatpush.bf16.msra.mxu0 %v768
        %875 = vmatpush.bf16.msra.mxu0 %v767
        %876 = vmatpush.bf16.msra.mxu0 %v766
        %877 = vmatpush.bf16.msra.mxu0 %v765
        %878 = vmatmul.bf16.gmra.mxu0 %v566
        %v879 = vpop.f32.mrf.mxu0
        %v880 = vadd.f32 %v831, %v879
        %v881 = vpop.f32.mrf.mxu0
        %v882 = vadd.f32 %v833, %v881
        %883 = vmatmul.bf16.gmra.mxu0 %v570
        %v884 = vpop.f32.mrf.mxu0
        %v885 = vadd.f32 %v836, %v884
        %v886 = vpop.f32.mrf.mxu0
        %v887 = vadd.f32 %v838, %v886
        %888 = vmatmul.bf16.gmra.mxu0 %v574
        %v889 = vpop.f32.mrf.mxu0
        %v890 = vadd.f32 %v841, %v889
        %v891 = vpop.f32.mrf.mxu0
        %v892 = vadd.f32 %v843, %v891
        %893 = vmatmul.bf16.gmra.mxu0 %v578
        %v894 = vpop.f32.mrf.mxu0
        %v895 = vadd.f32 %v846, %v894
        %v896 = vpop.f32.mrf.mxu0
        %v897 = vadd.f32 %v848, %v896
        %898 = vmatmul.bf16.gmra.mxu0 %v582
        %v899 = vpop.f32.mrf.mxu0
        %v900 = vadd.f32 %v851, %v899
        %v901 = vpop.f32.mrf.mxu0
        %v902 = vadd.f32 %v853, %v901
        %903 = vmatmul.bf16.gmra.mxu0 %v586
        %v904 = vpop.f32.mrf.mxu0
        %v905 = vadd.f32 %v856, %v904
        %v906 = vpop.f32.mrf.mxu0
        %v907 = vadd.f32 %v858, %v906
        %908 = vmatmul.bf16.gmra.mxu0 %v590
        %v909 = vpop.f32.mrf.mxu0
        %v910 = vadd.f32 %v861, %v909
        %v911 = vpop.f32.mrf.mxu0
        %v912 = vadd.f32 %v863, %v911
        %913 = vmatmul.bf16.gmra.mxu0 %v594
        %v914 = vpop.f32.mrf.mxu0
        %v915 = vadd.f32 %v866, %v914
        %v916 = vpop.f32.mrf.mxu0
        %v917 = vadd.f32 %v868, %v916
        %918 = vdwg.mxu0
        %919 = vmatpush.bf16.msra.mxu0 %v780
        %920 = vmatpush.bf16.msra.mxu0 %v779
        %921 = vmatpush.bf16.msra.mxu0 %v778
        %922 = vmatpush.bf16.msra.mxu0 %v777
        %923 = vmatpush.bf16.msra.mxu0 %v776
        %924 = vmatpush.bf16.msra.mxu0 %v775
        %925 = vmatpush.bf16.msra.mxu0 %v774
        %926 = vmatpush.bf16.msra.mxu0 %v773
        %927 = vmatmul.bf16.gmra.mxu0 %v567
        %v928 = vpop.f32.mrf.mxu0
        %v929 = vadd.f32 %v880, %v928
        %v930 = vpop.f32.mrf.mxu0
        %v931 = vadd.f32 %v882, %v930
        %932 = vmatmul.bf16.gmra.mxu0 %v571
        %v933 = vpop.f32.mrf.mxu0
        %v934 = vadd.f32 %v885, %v933
        %v935 = vpop.f32.mrf.mxu0
        %v936 = vadd.f32 %v887, %v935
        %937 = vmatmul.bf16.gmra.mxu0 %v575
        %v938 = vpop.f32.mrf.mxu0
        %v939 = vadd.f32 %v890, %v938
        %v940 = vpop.f32.mrf.mxu0
        %v941 = vadd.f32 %v892, %v940
        %942 = vmatmul.bf16.gmra.mxu0 %v579
        %v943 = vpop.f32.mrf.mxu0
        %v944 = vadd.f32 %v895, %v943
        %v945 = vpop.f32.mrf.mxu0
        %v946 = vadd.f32 %v897, %v945
        %947 = vmatmul.bf16.gmra.mxu0 %v583
        %v948 = vpop.f32.mrf.mxu0
        %v949 = vadd.f32 %v900, %v948
        %v950 = vpop.f32.mrf.mxu0
        %v951 = vadd.f32 %v902, %v950
        %952 = vmatmul.bf16.gmra.mxu0 %v587
        %v953 = vpop.f32.mrf.mxu0
        %v954 = vadd.f32 %v905, %v953
        %v955 = vpop.f32.mrf.mxu0
        %v956 = vadd.f32 %v907, %v955
        %957 = vmatmul.bf16.gmra.mxu0 %v591
        %v958 = vpop.f32.mrf.mxu0
        %v959 = vadd.f32 %v910, %v958
        %v960 = vpop.f32.mrf.mxu0
        %v961 = vadd.f32 %v912, %v960
        %962 = vmatmul.bf16.gmra.mxu0 %v595
        %v963 = vpop.f32.mrf.mxu0
        %v964 = vadd.f32 %v915, %v963
        %v965 = vpop.f32.mrf.mxu0
        %v966 = vadd.f32 %v917, %v965
        %967 = vdwg.mxu0
        %968 = vmatpush.bf16.msra.mxu0 %v788
        %969 = vmatpush.bf16.msra.mxu0 %v787
        %970 = vmatpush.bf16.msra.mxu0 %v786
        %971 = vmatpush.bf16.msra.mxu0 %v785
        %972 = vmatpush.bf16.msra.mxu0 %v784
        %973 = vmatpush.bf16.msra.mxu0 %v783
        %974 = vmatpush.bf16.msra.mxu0 %v782
        %975 = vmatpush.bf16.msra.mxu0 %v781
        %976 = vmatmul.bf16.gmra.mxu0 %v568
        %v977 = vpop.f32.mrf.mxu0
        %v978 = vadd.f32 %v929, %v977
        %v979 = vpop.f32.mrf.mxu0
        %v980 = vadd.f32 %v931, %v979
        %981 = vmatmul.bf16.gmra.mxu0 %v572
        %v982 = vpop.f32.mrf.mxu0
        %v983 = vadd.f32 %v934, %v982
        %v984 = vpop.f32.mrf.mxu0
        %v985 = vadd.f32 %v936, %v984
        %986 = vmatmul.bf16.gmra.mxu0 %v576
        %v987 = vpop.f32.mrf.mxu0
        %v988 = vadd.f32 %v939, %v987
        %v989 = vpop.f32.mrf.mxu0
        %v990 = vadd.f32 %v941, %v989
        %991 = vmatmul.bf16.gmra.mxu0 %v580
        %v992 = vpop.f32.mrf.mxu0
        %v993 = vadd.f32 %v944, %v992
        %v994 = vpop.f32.mrf.mxu0
        %v995 = vadd.f32 %v946, %v994
        %996 = vmatmul.bf16.gmra.mxu0 %v584
        %v997 = vpop.f32.mrf.mxu0
        %v998 = vadd.f32 %v949, %v997
        %v999 = vpop.f32.mrf.mxu0
        %v1000 = vadd.f32 %v951, %v999
        %1001 = vmatmul.bf16.gmra.mxu0 %v588
        %v1002 = vpop.f32.mrf.mxu0
        %v1003 = vadd.f32 %v954, %v1002
        %v1004 = vpop.f32.mrf.mxu0
        %v1005 = vadd.f32 %v956, %v1004
        %1006 = vmatmul.bf16.gmra.mxu0 %v592
        %v1007 = vpop.f32.mrf.mxu0
        %v1008 = vadd.f32 %v959, %v1007
        %v1009 = vpop.f32.mrf.mxu0
        %v1010 = vadd.f32 %v961, %v1009
        %1011 = vmatmul.bf16.gmra.mxu0 %v596
        %v1012 = vpop.f32.mrf.mxu0
        %v1013 = vadd.f32 %v964, %v1012
        %v1014 = vpop.f32.mrf.mxu0
        %v1015 = vadd.f32 %v966, %v1014
        %1016 = vdwg.mxu0
        %v1017 = vadd.f32 %v357, %v978
        %v1018 = vadd.f32 %v358, %v980
        %v1019 = vadd.f32 %v359, %v983
        %v1020 = vadd.f32 %v360, %v985
        %v1021 = vadd.f32 %v361, %v988
        %v1022 = vadd.f32 %v362, %v990
        %v1023 = vadd.f32 %v363, %v993
        %v1024 = vadd.f32 %v364, %v995
        %v1025 = vadd.f32 %v365, %v998
        %v1026 = vadd.f32 %v366, %v1000
        %v1027 = vadd.f32 %v367, %v1003
        %v1028 = vadd.f32 %v368, %v1005
        %v1029 = vadd.f32 %v369, %v1008
        %v1030 = vadd.f32 %v370, %v1010
        %v1031 = vadd.f32 %v371, %v1013
        %v1032 = vadd.f32 %v372, %v1015
        %1033 = vst [vmem:[#allocation2] sm:$0xff] %v1017
        %1034 = vst [vmem:[#allocation2 + $0x8] sm:$0xff] %v1018
        %1035 = vst [vmem:[#allocation2 + $0x10] sm:$0xff] %v1019
        %1036 = vst [vmem:[#allocation2 + $0x18] sm:$0xff] %v1020
        %1037 = vst [vmem:[#allocation2 + $0x20] sm:$0xff] %v1021
        %1038 = vst [vmem:[#allocation2 + $0x28] sm:$0xff] %v1022
        %1039 = vst [vmem:[#allocation2 + $0x30] sm:$0xff] %v1023
        %1040 = vst [vmem:[#allocation2 + $0x38] sm:$0xff] %v1024
        %1041 = vst [vmem:[#allocation2 + $0x40] sm:$0xff] %v1025
        %1042 = vst [vmem:[#allocation2 + $0x48] sm:$0xff] %v1026
        %1043 = vst [vmem:[#allocation2 + $0x50] sm:$0xff] %v1027
        %1044 = vst [vmem:[#allocation2 + $0x58] sm:$0xff] %v1028
        %1045 = vst [vmem:[#allocation2 + $0x60] sm:$0xff] %v1029
        %1046 = vst [vmem:[#allocation2 + $0x68] sm:$0xff] %v1030
        %1047 = vst [vmem:[#allocation2 + $0x70] sm:$0xff] %v1031
        %1048 = vst [vmem:[#allocation2 + $0x78] sm:$0xff] %v1032
        %p1049 = scmp.eq.s32.totalorder %s24, 8
        // Predicated region
        $region64: #{_lambda_.10} parent=50 // pred_check
          %p1050 = pneg %p1049
        $region65: #{_lambda_.10} parent=50 // pred_check_branch
          %1052 = sbr.rel (%p1050) target = $region67
        $region66: #{_lambda_.10} parent=50 // pred_region
          %v1053 = vld [vmem:[#allocation2] sm:$0xff]
          %v1054 = vld [vmem:[#allocation2 + $0x8] sm:$0xff]
          %v1055 = vld [vmem:[#allocation2 + $0x10] sm:$0xff]
          %v1056 = vld [vmem:[#allocation2 + $0x18] sm:$0xff]
          %v1057 = vld [vmem:[#allocation2 + $0x20] sm:$0xff]
          %v1058 = vld [vmem:[#allocation2 + $0x28] sm:$0xff]
          %v1059 = vld [vmem:[#allocation2 + $0x30] sm:$0xff]
          %v1060 = vld [vmem:[#allocation2 + $0x38] sm:$0xff]
          %v1061 = vld [vmem:[#allocation2 + $0x40] sm:$0xff]
          %v1062 = vld [vmem:[#allocation2 + $0x48] sm:$0xff]
          %v1063 = vld [vmem:[#allocation2 + $0x50] sm:$0xff]
          %v1064 = vld [vmem:[#allocation2 + $0x58] sm:$0xff]
          %v1065 = vld [vmem:[#allocation2 + $0x60] sm:$0xff]
          %v1066 = vld [vmem:[#allocation2 + $0x68] sm:$0xff]
          %v1067 = vld [vmem:[#allocation2 + $0x70] sm:$0xff]
          %v1068 = vld [vmem:[#allocation2 + $0x78] sm:$0xff]
          %v1069 = vld [vmem:[%s335] sm:$0x1]
          %v1071 = vperm.slane %v1069, 0
          %v1073 = vadd.f32 %v1053, %v1071
          %v1074 = vadd.f32 %v1054, %v1071
          %v1075 = vadd.f32 %v1055, %v1071
          %v1076 = vadd.f32 %v1056, %v1071
          %v1077 = vadd.f32 %v1057, %v1071
          %v1078 = vadd.f32 %v1058, %v1071
          %v1079 = vadd.f32 %v1059, %v1071
          %v1080 = vadd.f32 %v1060, %v1071
          %v1081 = vadd.f32 %v1061, %v1071
          %v1082 = vadd.f32 %v1062, %v1071
          %v1083 = vadd.f32 %v1063, %v1071
          %v1084 = vadd.f32 %v1064, %v1071
          %v1085 = vadd.f32 %v1065, %v1071
          %v1086 = vadd.f32 %v1066, %v1071
          %v1087 = vadd.f32 %v1067, %v1071
          %v1088 = vadd.f32 %v1068, %v1071
          %vm1089 = vcmp.ge.f32.partialorder %v1073, 0.0
          %vm1090 = vcmp.ge.f32.partialorder %v1074, 0.0
          %vm1091 = vcmp.ge.f32.partialorder %v1075, 0.0
          %vm1092 = vcmp.ge.f32.partialorder %v1076, 0.0
          %vm1093 = vcmp.ge.f32.partialorder %v1077, 0.0
          %vm1094 = vcmp.ge.f32.partialorder %v1078, 0.0
          %vm1095 = vcmp.ge.f32.partialorder %v1079, 0.0
          %vm1096 = vcmp.ge.f32.partialorder %v1080, 0.0
          %vm1097 = vcmp.ge.f32.partialorder %v1081, 0.0
          %vm1098 = vcmp.ge.f32.partialorder %v1082, 0.0
          %vm1099 = vcmp.ge.f32.partialorder %v1083, 0.0
          %vm1100 = vcmp.ge.f32.partialorder %v1084, 0.0
          %vm1101 = vcmp.ge.f32.partialorder %v1085, 0.0
          %vm1102 = vcmp.ge.f32.partialorder %v1086, 0.0
          %vm1103 = vcmp.ge.f32.partialorder %v1087, 0.0
          %vm1104 = vcmp.ge.f32.partialorder %v1088, 0.0
          %v1105 = vmul.f32 %v1073, 0.2
          %v1106 = vmul.f32 %v1074, 0.2
          %v1107 = vmul.f32 %v1075, 0.2
          %v1108 = vmul.f32 %v1076, 0.2
          %v1109 = vmul.f32 %v1077, 0.2
          %v1110 = vmul.f32 %v1078, 0.2
          %v1111 = vmul.f32 %v1079, 0.2
          %v1112 = vmul.f32 %v1080, 0.2
          %v1113 = vmul.f32 %v1081, 0.2
          %v1114 = vmul.f32 %v1082, 0.2
          %v1115 = vmul.f32 %v1083, 0.2
          %v1116 = vmul.f32 %v1084, 0.2
          %v1117 = vmul.f32 %v1085, 0.2
          %v1118 = vmul.f32 %v1086, 0.2
          %v1119 = vmul.f32 %v1087, 0.2
          %v1120 = vmul.f32 %v1088, 0.2
          %v1121 = vsel %vm1089, %v1073, %v1105
          %v1122 = vsel %vm1090, %v1074, %v1106
          %v1123 = vsel %vm1091, %v1075, %v1107
          %v1124 = vsel %vm1092, %v1076, %v1108
          %v1125 = vsel %vm1093, %v1077, %v1109
          %v1126 = vsel %vm1094, %v1078, %v1110
          %v1127 = vsel %vm1095, %v1079, %v1111
          %v1128 = vsel %vm1096, %v1080, %v1112
          %v1129 = vsel %vm1097, %v1081, %v1113
          %v1130 = vsel %vm1098, %v1082, %v1114
          %v1131 = vsel %vm1099, %v1083, %v1115
          %v1132 = vsel %vm1100, %v1084, %v1116
          %v1133 = vsel %vm1101, %v1085, %v1117
          %v1134 = vsel %vm1102, %v1086, %v1118
          %v1135 = vsel %vm1103, %v1087, %v1119
          %v1136 = vsel %vm1104, %v1088, %v1120
          %v1137 = vmul.f32 %v1121, 1.4142135
          %v1138 = vmul.f32 %v1122, 1.4142135
          %v1139 = vmul.f32 %v1123, 1.4142135
          %v1140 = vmul.f32 %v1124, 1.4142135
          %v1141 = vmul.f32 %v1125, 1.4142135
          %v1142 = vmul.f32 %v1126, 1.4142135
          %v1143 = vmul.f32 %v1127, 1.4142135
          %v1144 = vmul.f32 %v1128, 1.4142135
          %v1145 = vmul.f32 %v1129, 1.4142135
          %v1146 = vmul.f32 %v1130, 1.4142135
          %v1147 = vmul.f32 %v1131, 1.4142135
          %v1148 = vmul.f32 %v1132, 1.4142135
          %v1149 = vmul.f32 %v1133, 1.4142135
          %v1150 = vmul.f32 %v1134, 1.4142135
          %v1151 = vmul.f32 %v1135, 1.4142135
          %v1152 = vmul.f32 %v1136, 1.4142135
          %v1153 = vpack.c.bf16 %v1137, %v1137
          %v1154 = vpack.c.bf16 %v1138, %v1138
          %v1155 = vpack.c.bf16 %v1139, %v1139
          %v1156 = vpack.c.bf16 %v1140, %v1140
          %v1157 = vpack.c.bf16 %v1141, %v1141
          %v1158 = vpack.c.bf16 %v1142, %v1142
          %v1159 = vpack.c.bf16 %v1143, %v1143
          %v1160 = vpack.c.bf16 %v1144, %v1144
          %v1161 = vpack.c.bf16 %v1145, %v1145
          %v1162 = vpack.c.bf16 %v1146, %v1146
          %v1163 = vpack.c.bf16 %v1147, %v1147
          %v1164 = vpack.c.bf16 %v1148, %v1148
          %v1165 = vpack.c.bf16 %v1149, %v1149
          %v1166 = vpack.c.bf16 %v1150, %v1150
          %v1167 = vpack.c.bf16 %v1151, %v1151
          %v1168 = vpack.c.bf16 %v1152, %v1152
          %1169 = vst [vmem:[%s329] sm:$0xf] %v1153
          %1170 = vst [vmem:[%s329 + $0x4] sm:$0xf] %v1154
          %1171 = vst [vmem:[%s329 + $0x8] sm:$0xf] %v1155
          %1172 = vst [vmem:[%s329 + $0xc] sm:$0xf] %v1156
          %1173 = vst [vmem:[%s329 + $0x10] sm:$0xf] %v1157
          %1174 = vst [vmem:[%s329 + $0x14] sm:$0xf] %v1158
          %1175 = vst [vmem:[%s329 + $0x18] sm:$0xf] %v1159
          %1176 = vst [vmem:[%s329 + $0x1c] sm:$0xf] %v1160
          %1177 = vst [vmem:[%s329 + $0x20] sm:$0xf] %v1161
          %1178 = vst [vmem:[%s329 + $0x24] sm:$0xf] %v1162
          %1179 = vst [vmem:[%s329 + $0x28] sm:$0xf] %v1163
          %1180 = vst [vmem:[%s329 + $0x2c] sm:$0xf] %v1164
          %1181 = vst [vmem:[%s329 + $0x30] sm:$0xf] %v1165
          %1182 = vst [vmem:[%s329 + $0x34] sm:$0xf] %v1166
          %1183 = vst [vmem:[%s329 + $0x38] sm:$0xf] %v1167
          %1184 = vst [vmem:[%s329 + $0x3c] sm:$0xf] %v1168
        $region67: #{_lambda_.10} parent=50 // pred_fallthru
          _
        %s1185 = sand.u32 %s128, 1
        %s1186 = sand.u32 %s128, 1
        %s1187 = smul.addr %s1186, 64
        %s1188 = scalar_lea.vmem [#allocation6], %s1187
        // Predicated region
        $region68: #{_lambda_.10} parent=50 // pred_check
          %p1189 = pneg %p138
        $region69: #{_lambda_.10} parent=50 // pred_check_branch
          %1191 = sbr.rel (%p1189) target = $region71
        $region70: #{_lambda_.10} parent=50 // pred_region
          %s1192 = smul.u32 16, %s22
          %s1193 = smul.addr %s1192, 4
          %s1194 = sadd.s32 %s23, %s1193
          %s1195 = smul.addr %s1194, 4
          %s1196 = scalar_lea.vmem %s3, %s1195
          // Predicated region
          $region72: #{_lambda_.10} parent=70 // pred_check
            _
          $region73: #{_lambda_.10} parent=70 // pred_check_branch
            %1198 = sbr.rel (0) target = $region75
          $region74: #{_lambda_.10} parent=70 // pred_region
            // Predicated region
            $region76: #{_lambda_.10} parent=74 // pred_check
              _
            $region77: #{_lambda_.10} parent=74 // pred_check_branch
              %1200 = sbr.rel target = $region79
            $region78: #{_lambda_.10} parent=74 // pred_region
              // Predicated region
              $region91: #{_lambda_.10} parent=78 // pred_check
                _
              $region92: #{_lambda_.10} parent=78 // pred_check_branch
                %1246 = sbr.rel (0) target = $region94
              $region93: #{_lambda_.10} parent=78 // pred_region
                loop: start=0, step=1, limit=1
                $region95: #{_lambda_.10} parent=93 // loop_pre_header
                  _
                $region96: #{_lambda_.10} parent=93 // loop_header
                  %s1248 = sphi 0, %s1252
                  %p1249 = scmp.ge.s32.totalorder %s1248, 1
                  %s1253 = sphi %s1188, %s1188
                  %s1254 = sphi %s1196, %s1196
                $region97: #{_lambda_.10} parent=93 // loop_header_branch
                  %1251 = sbr.rel (%p1249) target = $region101
                $region98: #{_lambda_.10} parent=93 // loop_body
                  _
                $region99: #{_lambda_.10} parent=93 // loop_footer
                  %s1252 = sadd.s32 1, %s1248
                $region100: #{_lambda_.10} parent=93 // loop_footer_branch
                  %1247 = sbr.rel target = $region96
                $region101: #{_lambda_.10} parent=93 // loop_exit
                  _
                %s1256 = ssub.s32 16, 1
                loop: start=0, step=1, limit=1
                $region102: #{_lambda_.10} parent=93 // loop_pre_header
                  _
                $region103: #{_lambda_.10} parent=93 // loop_header
                  %s1258 = sphi 0, %s1262
                  %p1259 = scmp.ge.s32.totalorder %s1258, 1
                  %s1263 = sphi %s1188, %s1188
                  %s1264 = sphi %s1196, %s1196
                $region104: #{_lambda_.10} parent=93 // loop_header_branch
                  %1261 = sbr.rel (%p1259) target = $region108
                $region105: #{_lambda_.10} parent=93 // loop_body
                  %v1265 = vld [vmem:[%s1263] sm:%s1256]
                  %1266 = vst [vmem:[%s1264] sm:%s1256] %v1265
                  %v1267 = vld [vmem:[%s1263 + $0x4] sm:%s1256]
                  %1268 = vst [vmem:[%s1264 + $0x10] sm:%s1256] %v1267
                  %v1269 = vld [vmem:[%s1263 + $0x8] sm:%s1256]
                  %1270 = vst [vmem:[%s1264 + $0x20] sm:%s1256] %v1269
                  %v1271 = vld [vmem:[%s1263 + $0xc] sm:%s1256]
                  %1272 = vst [vmem:[%s1264 + $0x30] sm:%s1256] %v1271
                  %v1273 = vld [vmem:[%s1263 + $0x10] sm:%s1256]
                  %1274 = vst [vmem:[%s1264 + $0x40] sm:%s1256] %v1273
                  %v1275 = vld [vmem:[%s1263 + $0x14] sm:%s1256]
                  %1276 = vst [vmem:[%s1264 + $0x50] sm:%s1256] %v1275
                  %v1277 = vld [vmem:[%s1263 + $0x18] sm:%s1256]
                  %1278 = vst [vmem:[%s1264 + $0x60] sm:%s1256] %v1277
                  %v1279 = vld [vmem:[%s1263 + $0x1c] sm:%s1256]
                  %1280 = vst [vmem:[%s1264 + $0x70] sm:%s1256] %v1279
                  %v1281 = vld [vmem:[%s1263 + $0x20] sm:%s1256]
                  %1282 = vst [vmem:[%s1264 + $0x80] sm:%s1256] %v1281
                  %v1283 = vld [vmem:[%s1263 + $0x24] sm:%s1256]
                  %1284 = vst [vmem:[%s1264 + $0x90] sm:%s1256] %v1283
                  %v1285 = vld [vmem:[%s1263 + $0x28] sm:%s1256]
                  %1286 = vst [vmem:[%s1264 + $0xa0] sm:%s1256] %v1285
                  %v1287 = vld [vmem:[%s1263 + $0x2c] sm:%s1256]
                  %1288 = vst [vmem:[%s1264 + $0xb0] sm:%s1256] %v1287
                  %v1289 = vld [vmem:[%s1263 + $0x30] sm:%s1256]
                  %1290 = vst [vmem:[%s1264 + $0xc0] sm:%s1256] %v1289
                  %v1291 = vld [vmem:[%s1263 + $0x34] sm:%s1256]
                  %1292 = vst [vmem:[%s1264 + $0xd0] sm:%s1256] %v1291
                  %v1293 = vld [vmem:[%s1263 + $0x38] sm:%s1256]
                  %1294 = vst [vmem:[%s1264 + $0xe0] sm:%s1256] %v1293
                  %v1295 = vld [vmem:[%s1263 + $0x3c] sm:%s1256]
                  %1296 = vst [vmem:[%s1264 + $0xf0] sm:%s1256] %v1295
                $region106: #{_lambda_.10} parent=93 // loop_footer
                  %s1262 = sadd.s32 1, %s1258
                $region107: #{_lambda_.10} parent=93 // loop_footer_branch
                  %1257 = sbr.rel target = $region103
                $region108: #{_lambda_.10} parent=93 // loop_exit
                  _
              $region94: #{_lambda_.10} parent=78 // pred_fallthru
                _
            $region79: #{_lambda_.10} parent=74 // pred_fallthru
              _
            // Predicated region
            $region80: #{_lambda_.10} parent=74 // pred_check
              _
            $region81: #{_lambda_.10} parent=74 // pred_check_branch
              %1202 = sbr.rel (0) target = $region83
            $region82: #{_lambda_.10} parent=74 // pred_region
              %s1204 = ssub.s32 16, 1
              loop: start=0, step=1, limit=1
              $region84: #{_lambda_.10} parent=82 // loop_pre_header
                _
              $region85: #{_lambda_.10} parent=82 // loop_header
                %s1206 = sphi 0, %s1210
                %p1207 = scmp.ge.s32.totalorder %s1206, 1
                %s1211 = sphi %s1188, %s1188
                %s1212 = sphi %s1196, %s1196
              $region86: #{_lambda_.10} parent=82 // loop_header_branch
                %1209 = sbr.rel (%p1207) target = $region90
              $region87: #{_lambda_.10} parent=82 // loop_body
                %v1213 = vld [vmem:[%s1211] sm:%s1204]
                %1214 = vst [vmem:[%s1212] sm:%s1204] %v1213
                %v1215 = vld [vmem:[%s1211 + $0x4] sm:%s1204]
                %1216 = vst [vmem:[%s1212 + $0x10] sm:%s1204] %v1215
                %v1217 = vld [vmem:[%s1211 + $0x8] sm:%s1204]
                %1218 = vst [vmem:[%s1212 + $0x20] sm:%s1204] %v1217
                %v1219 = vld [vmem:[%s1211 + $0xc] sm:%s1204]
                %1220 = vst [vmem:[%s1212 + $0x30] sm:%s1204] %v1219
                %v1221 = vld [vmem:[%s1211 + $0x10] sm:%s1204]
                %1222 = vst [vmem:[%s1212 + $0x40] sm:%s1204] %v1221
                %v1223 = vld [vmem:[%s1211 + $0x14] sm:%s1204]
                %1224 = vst [vmem:[%s1212 + $0x50] sm:%s1204] %v1223
                %v1225 = vld [vmem:[%s1211 + $0x18] sm:%s1204]
                %1226 = vst [vmem:[%s1212 + $0x60] sm:%s1204] %v1225
                %v1227 = vld [vmem:[%s1211 + $0x1c] sm:%s1204]
                %1228 = vst [vmem:[%s1212 + $0x70] sm:%s1204] %v1227
                %v1229 = vld [vmem:[%s1211 + $0x20] sm:%s1204]
                %1230 = vst [vmem:[%s1212 + $0x80] sm:%s1204] %v1229
                %v1231 = vld [vmem:[%s1211 + $0x24] sm:%s1204]
                %1232 = vst [vmem:[%s1212 + $0x90] sm:%s1204] %v1231
                %v1233 = vld [vmem:[%s1211 + $0x28] sm:%s1204]
                %1234 = vst [vmem:[%s1212 + $0xa0] sm:%s1204] %v1233
                %v1235 = vld [vmem:[%s1211 + $0x2c] sm:%s1204]
                %1236 = vst [vmem:[%s1212 + $0xb0] sm:%s1204] %v1235
                %v1237 = vld [vmem:[%s1211 + $0x30] sm:%s1204]
                %1238 = vst [vmem:[%s1212 + $0xc0] sm:%s1204] %v1237
                %v1239 = vld [vmem:[%s1211 + $0x34] sm:%s1204]
                %1240 = vst [vmem:[%s1212 + $0xd0] sm:%s1204] %v1239
                %v1241 = vld [vmem:[%s1211 + $0x38] sm:%s1204]
                %1242 = vst [vmem:[%s1212 + $0xe0] sm:%s1204] %v1241
                %v1243 = vld [vmem:[%s1211 + $0x3c] sm:%s1204]
                %1244 = vst [vmem:[%s1212 + $0xf0] sm:%s1204] %v1243
              $region88: #{_lambda_.10} parent=82 // loop_footer
                %s1210 = sadd.s32 1, %s1206
              $region89: #{_lambda_.10} parent=82 // loop_footer_branch
                %1205 = sbr.rel target = $region85
              $region90: #{_lambda_.10} parent=82 // loop_exit
                _
            $region83: #{_lambda_.10} parent=74 // pred_fallthru
              _
          $region75: #{_lambda_.10} parent=70 // pred_fallthru
            _
          %1297 = vnop
        $region71: #{_lambda_.10} parent=50 // pred_fallthru
          _
      $region51: #{_lambda_.10} parent=5 // pred_fallthru
        _
      %p1298 = scmp.le.s32.totalorder 2, %s12
      // Predicated region
      $region109: #{_lambda_.10} parent=5 // pred_check
        %p1299 = pneg %p1298
      $region110: #{_lambda_.10} parent=5 // pred_check_branch
        %1301 = sbr.rel (%p1299) target = $region112
      $region111: #{_lambda_.10} parent=5 // pred_region
        %s1302 = ssub.s32 %s12, 2
        // Predicated region
        $region113: #{_lambda_.10} parent=111 // pred_check
          %p1303 = pneg %p144
        $region114: #{_lambda_.10} parent=111 // pred_check_branch
          %1305 = sbr.rel (%p1303) target = $region116
        $region115: #{_lambda_.10} parent=111 // pred_region
          %s1306 = sand.u32 %s129, 1
          %s1307 = sand.u32 %s129, 1
          %s1308 = smul.addr %s1307, 64
          %s1309 = scalar_lea.vmem [#allocation6], %s1308
        $region116: #{_lambda_.10} parent=111 // pred_fallthru
          _
      $region112: #{_lambda_.10} parent=5 // pred_fallthru
        _
    $region6: #{_lambda_.10} parent=1 // loop_footer
      %s16 = sadd.s32 1, %s12
    $region7: #{_lambda_.10} parent=1 // loop_footer_branch
      %11 = sbr.rel target = $region3
    $region8: #{_lambda_.10} parent=1 // loop_exit
      _
    %1310 = vsyncpa [#allocation5], 1
    %s1311 = scalar_lea.sflag [#allocation5], 1
    %1312 = vsyncpa %s1311, 1

// kernel: _lambda_.11
$region0: #{_lambda_.11}
  #allocation0 [shape = 'u32[]', space=smem, size = 0x4, offset = 0x4, fixed_abs, tag = 'smem constant byte address 0x4 - core index']
  #allocation1 [shape = 'u32[72,128]{1,0:T(1,128)}', space=vmem, size = 0x9000, scoped, tag = 'internal scratch']
  %s0 = inlined_call_operand.vmem [shape: bf16[2,12,12,512], index: 0, kind: input, shape index: {}]
  %s1 = inlined_call_operand.vmem [shape: bf16[2,9,9,512], index: 1, kind: output, shape index: {}]
  %s2 = sld [smem:[#allocation0]]
  $region115: #{_lambda_.11} parent=0
    _
  %s4 = ssub.s32 1, %s2
  %s5 = scalar_select 0, %s4, %s2
  $region1: #{_lambda_.11} parent=0
    #allocation2 [shape = 'u8[98304]{0}', space=vmem, size = 0x18000, scoped, tag = 'input window, operand 0']
    #allocation3 [shape = 'u8[73728]{0}', space=vmem, size = 0x12000, scoped, tag = 'output window, operand 0']
    loop: start=0, step=1, limit=10
    $region2: #{_lambda_.11} parent=1 // loop_pre_header
      _
    $region3: #{_lambda_.11} parent=1 // loop_header
      %s7 = sphi 0, %s11
      %p8 = scmp.ge.s32.totalorder %s7, 10
      %s14 = sphi 0, %s26
      %s15 = sphi 0, %s22
      %s16 = sphi 0, %s14
      %s17 = sphi 0, %s15
      %s18 = sphi 0, %s16
      %s19 = sphi 0, %s17
      %s31 = sphi 0, %s33
      %s34 = sphi 0, %s31
      %s35 = sphi 0, %s34
      %s51 = sphi 0, %s35
      %s59 = sphi 0, %s61
      %s62 = sphi 0, %s59
      %s63 = sphi 0, %s62
      %s79 = sphi 0, %s63
    $region4: #{_lambda_.11} parent=1 // loop_header_branch
      %10 = sbr.rel (%p8) target = $region8
    $region5: #{_lambda_.11} parent=1 // loop_body
      %s12 = ssub.s32 %s7, 1
      %s13 = ssub.s32 %s7, 2
      %s20 = sadd.s32 1, %s15
      %p21 = scmp.ge.s32.totalorder %s20, 4
      %s22 = scalar_select %p21, 0, %s20
      %s23 = sadd.s32 1, %s14
      %s24 = scalar_select %p21, %s23, %s14
      %p25 = scmp.ge.s32.totalorder %s24, 2
      %s26 = scalar_select %p25, 0, %s24
      %s27 = ssub.s32 %s14, %s26
      %s28 = ssub.s32 %s15, %s22
      %s29 = sor.u32 %s27, %s28
      %p30 = scmp.eq.s32.totalorder %s29, 0
      %s32 = sadd.s32 %s31, 1
      %s33 = scalar_select %p30, %s31, %s32
      %p36 = pneg %p30
      %p37 = scmp.eq.s32.totalorder %s7, 7
      %p38 = por %p36, %p37
      %p39 = scmp.ne.s32.totalorder %s31, %s34
      %p40 = scmp.eq.s32.totalorder %s7, 0
      %p41 = por %p39, %p40
      %p42 = scmp.ne.s32.totalorder %s31, %s34
      %p43 = scmp.eq.s32.totalorder %s12, 7
      %p44 = por %p42, %p43
      %p45 = scmp.ne.s32.totalorder %s34, %s35
      %p46 = scmp.eq.s32.totalorder %s12, 0
      %p47 = por %p45, %p46
      %p48 = scmp.ne.s32.totalorder %s34, %s35
      %p49 = scmp.eq.s32.totalorder %s13, 7
      %p50 = por %p48, %p49
      %p52 = scmp.ne.s32.totalorder %s35, %s51
      %p53 = scmp.eq.s32.totalorder %s13, 0
      %p54 = por %p52, %p53
      %s55 = ssub.s32 %s14, %s26
      %s56 = ssub.s32 %s15, %s22
      %s57 = sor.u32 %s55, %s56
      %p58 = scmp.eq.s32.totalorder %s57, 0
      %s60 = sadd.s32 %s59, 1
      %s61 = scalar_select %p58, %s59, %s60
      %p64 = pneg %p58
      %p65 = scmp.eq.s32.totalorder %s7, 7
      %p66 = por %p64, %p65
      %p67 = scmp.ne.s32.totalorder %s59, %s62
      %p68 = scmp.eq.s32.totalorder %s7, 0
      %p69 = por %p67, %p68
      %p70 = scmp.ne.s32.totalorder %s59, %s62
      %p71 = scmp.eq.s32.totalorder %s12, 7
      %p72 = por %p70, %p71
      %p73 = scmp.ne.s32.totalorder %s62, %s63
      %p74 = scmp.eq.s32.totalorder %s12, 0
      %p75 = por %p73, %p74
      %p76 = scmp.ne.s32.totalorder %s62, %s63
      %p77 = scmp.eq.s32.totalorder %s13, 7
      %p78 = por %p76, %p77
      %p80 = scmp.ne.s32.totalorder %s63, %s79
      %p81 = scmp.eq.s32.totalorder %s13, 0
      %p82 = por %p80, %p81
      %p83 = scmp.le.s32.totalorder 1, %s7
      %p84 = scmp.lt.s32.totalorder %s7, 9
      %p85 = pnand %p83, %p84
      %p86 = pneg %p85
      // Predicated region
      $region9: #{_lambda_.11} parent=5 // pred_check
        _
      $region10: #{_lambda_.11} parent=5 // pred_check_branch
        %88 = sbr.rel (%p85) target = $region12
      $region11: #{_lambda_.11} parent=5 // pred_region
        %s89 = ssub.s32 %s7, 1
      $region12: #{_lambda_.11} parent=5 // pred_fallthru
        _
      %p90 = scmp.lt.s32.totalorder %s7, 8
      // Predicated region
      $region13: #{_lambda_.11} parent=5 // pred_check
        %p91 = pneg %p90
      $region14: #{_lambda_.11} parent=5 // pred_check_branch
        %93 = sbr.rel (%p91) target = $region16
      $region15: #{_lambda_.11} parent=5 // pred_region
        // Predicated region
        $region17: #{_lambda_.11} parent=15 // pred_check
          %p94 = pneg %p41
        $region18: #{_lambda_.11} parent=15 // pred_check_branch
          %96 = sbr.rel (%p94) target = $region20
        $region19: #{_lambda_.11} parent=15 // pred_region
          %s97 = sand.u32 %s31, 1
          %s98 = sand.u32 %s31, 1
          %s99 = smul.addr %s98, 96
          %s100 = scalar_lea.vmem [#allocation2], %s99
          %s101 = smul.addr %s14, 96
          %s102 = sadd.s32 %s15, %s101
          %s103 = smul.addr %s102, 4
          %s104 = scalar_lea.vmem %s0, %s103
          // Predicated region
          $region21: #{_lambda_.11} parent=19 // pred_check
            _
          $region22: #{_lambda_.11} parent=19 // pred_check_branch
            %106 = sbr.rel (0) target = $region24
          $region23: #{_lambda_.11} parent=19 // pred_region
            // Predicated region
            $region25: #{_lambda_.11} parent=23 // pred_check
              _
            $region26: #{_lambda_.11} parent=23 // pred_check_branch
              %108 = sbr.rel target = $region28
            $region27: #{_lambda_.11} parent=23 // pred_region
              // Predicated region
              $region40: #{_lambda_.11} parent=27 // pred_check
                _
              $region41: #{_lambda_.11} parent=27 // pred_check_branch
                %170 = sbr.rel (0) target = $region43
              $region42: #{_lambda_.11} parent=27 // pred_region
                loop: start=0, step=1, limit=1
                $region44: #{_lambda_.11} parent=42 // loop_pre_header
                  _
                $region45: #{_lambda_.11} parent=42 // loop_header
                  %s172 = sphi 0, %s176
                  %p173 = scmp.ge.s32.totalorder %s172, 1
                  %s177 = sphi %s104, %s104
                  %s178 = sphi %s100, %s100
                $region46: #{_lambda_.11} parent=42 // loop_header_branch
                  %175 = sbr.rel (%p173) target = $region50
                $region47: #{_lambda_.11} parent=42 // loop_body
                  _
                $region48: #{_lambda_.11} parent=42 // loop_footer
                  %s176 = sadd.s32 1, %s172
                $region49: #{_lambda_.11} parent=42 // loop_footer_branch
                  %171 = sbr.rel target = $region45
                $region50: #{_lambda_.11} parent=42 // loop_exit
                  _
                %s180 = ssub.s32 16, 1
                loop: start=0, step=1, limit=1
                $region51: #{_lambda_.11} parent=42 // loop_pre_header
                  _
                $region52: #{_lambda_.11} parent=42 // loop_header
                  %s182 = sphi 0, %s186
                  %p183 = scmp.ge.s32.totalorder %s182, 1
                  %s187 = sphi %s104, %s104
                  %s188 = sphi %s100, %s100
                $region53: #{_lambda_.11} parent=42 // loop_header_branch
                  %185 = sbr.rel (%p183) target = $region57
                $region54: #{_lambda_.11} parent=42 // loop_body
                  %v189 = vld [vmem:[%s187] sm:%s180]
                  %190 = vst [vmem:[%s188] sm:%s180] %v189
                  %v191 = vld [vmem:[%s187 + $0x10] sm:%s180]
                  %192 = vst [vmem:[%s188 + $0x4] sm:%s180] %v191
                  %v193 = vld [vmem:[%s187 + $0x20] sm:%s180]
                  %194 = vst [vmem:[%s188 + $0x8] sm:%s180] %v193
                  %v195 = vld [vmem:[%s187 + $0x30] sm:%s180]
                  %196 = vst [vmem:[%s188 + $0xc] sm:%s180] %v195
                  %v197 = vld [vmem:[%s187 + $0x40] sm:%s180]
                  %198 = vst [vmem:[%s188 + $0x10] sm:%s180] %v197
                  %v199 = vld [vmem:[%s187 + $0x50] sm:%s180]
                  %200 = vst [vmem:[%s188 + $0x14] sm:%s180] %v199
                  %v201 = vld [vmem:[%s187 + $0x60] sm:%s180]
                  %202 = vst [vmem:[%s188 + $0x18] sm:%s180] %v201
                  %v203 = vld [vmem:[%s187 + $0x70] sm:%s180]
                  %204 = vst [vmem:[%s188 + $0x1c] sm:%s180] %v203
                  %v205 = vld [vmem:[%s187 + $0x80] sm:%s180]
                  %206 = vst [vmem:[%s188 + $0x20] sm:%s180] %v205
                  %v207 = vld [vmem:[%s187 + $0x90] sm:%s180]
                  %208 = vst [vmem:[%s188 + $0x24] sm:%s180] %v207
                  %v209 = vld [vmem:[%s187 + $0xa0] sm:%s180]
                  %210 = vst [vmem:[%s188 + $0x28] sm:%s180] %v209
                  %v211 = vld [vmem:[%s187 + $0xb0] sm:%s180]
                  %212 = vst [vmem:[%s188 + $0x2c] sm:%s180] %v211
                  %v213 = vld [vmem:[%s187 + $0xc0] sm:%s180]
                  %214 = vst [vmem:[%s188 + $0x30] sm:%s180] %v213
                  %v215 = vld [vmem:[%s187 + $0xd0] sm:%s180]
                  %216 = vst [vmem:[%s188 + $0x34] sm:%s180] %v215
                  %v217 = vld [vmem:[%s187 + $0xe0] sm:%s180]
                  %218 = vst [vmem:[%s188 + $0x38] sm:%s180] %v217
                  %v219 = vld [vmem:[%s187 + $0xf0] sm:%s180]
                  %220 = vst [vmem:[%s188 + $0x3c] sm:%s180] %v219
                  %v221 = vld [vmem:[%s187 + $0x100] sm:%s180]
                  %222 = vst [vmem:[%s188 + $0x40] sm:%s180] %v221
                  %v223 = vld [vmem:[%s187 + $0x110] sm:%s180]
                  %224 = vst [vmem:[%s188 + $0x44] sm:%s180] %v223
                  %v225 = vld [vmem:[%s187 + $0x120] sm:%s180]
                  %226 = vst [vmem:[%s188 + $0x48] sm:%s180] %v225
                  %v227 = vld [vmem:[%s187 + $0x130] sm:%s180]
                  %228 = vst [vmem:[%s188 + $0x4c] sm:%s180] %v227
                  %v229 = vld [vmem:[%s187 + $0x140] sm:%s180]
                  %230 = vst [vmem:[%s188 + $0x50] sm:%s180] %v229
                  %v231 = vld [vmem:[%s187 + $0x150] sm:%s180]
                  %232 = vst [vmem:[%s188 + $0x54] sm:%s180] %v231
                  %v233 = vld [vmem:[%s187 + $0x160] sm:%s180]
                  %234 = vst [vmem:[%s188 + $0x58] sm:%s180] %v233
                  %v235 = vld [vmem:[%s187 + $0x170] sm:%s180]
                  %236 = vst [vmem:[%s188 + $0x5c] sm:%s180] %v235
                $region55: #{_lambda_.11} parent=42 // loop_footer
                  %s186 = sadd.s32 1, %s182
                $region56: #{_lambda_.11} parent=42 // loop_footer_branch
                  %181 = sbr.rel target = $region52
                $region57: #{_lambda_.11} parent=42 // loop_exit
                  _
              $region43: #{_lambda_.11} parent=27 // pred_fallthru
                _
            $region28: #{_lambda_.11} parent=23 // pred_fallthru
              _
            // Predicated region
            $region29: #{_lambda_.11} parent=23 // pred_check
              _
            $region30: #{_lambda_.11} parent=23 // pred_check_branch
              %110 = sbr.rel (0) target = $region32
            $region31: #{_lambda_.11} parent=23 // pred_region
              %s112 = ssub.s32 16, 1
              loop: start=0, step=1, limit=1
              $region33: #{_lambda_.11} parent=31 // loop_pre_header
                _
              $region34: #{_lambda_.11} parent=31 // loop_header
                %s114 = sphi 0, %s118
                %p115 = scmp.ge.s32.totalorder %s114, 1
                %s119 = sphi %s104, %s104
                %s120 = sphi %s100, %s100
              $region35: #{_lambda_.11} parent=31 // loop_header_branch
                %117 = sbr.rel (%p115) target = $region39
              $region36: #{_lambda_.11} parent=31 // loop_body
                %v121 = vld [vmem:[%s119] sm:%s112]
                %122 = vst [vmem:[%s120] sm:%s112] %v121
                %v123 = vld [vmem:[%s119 + $0x10] sm:%s112]
                %124 = vst [vmem:[%s120 + $0x4] sm:%s112] %v123
                %v125 = vld [vmem:[%s119 + $0x20] sm:%s112]
                %126 = vst [vmem:[%s120 + $0x8] sm:%s112] %v125
                %v127 = vld [vmem:[%s119 + $0x30] sm:%s112]
                %128 = vst [vmem:[%s120 + $0xc] sm:%s112] %v127
                %v129 = vld [vmem:[%s119 + $0x40] sm:%s112]
                %130 = vst [vmem:[%s120 + $0x10] sm:%s112] %v129
                %v131 = vld [vmem:[%s119 + $0x50] sm:%s112]
                %132 = vst [vmem:[%s120 + $0x14] sm:%s112] %v131
                %v133 = vld [vmem:[%s119 + $0x60] sm:%s112]
                %134 = vst [vmem:[%s120 + $0x18] sm:%s112] %v133
                %v135 = vld [vmem:[%s119 + $0x70] sm:%s112]
                %136 = vst [vmem:[%s120 + $0x1c] sm:%s112] %v135
                %v137 = vld [vmem:[%s119 + $0x80] sm:%s112]
                %138 = vst [vmem:[%s120 + $0x20] sm:%s112] %v137
                %v139 = vld [vmem:[%s119 + $0x90] sm:%s112]
                %140 = vst [vmem:[%s120 + $0x24] sm:%s112] %v139
                %v141 = vld [vmem:[%s119 + $0xa0] sm:%s112]
                %142 = vst [vmem:[%s120 + $0x28] sm:%s112] %v141
                %v143 = vld [vmem:[%s119 + $0xb0] sm:%s112]
                %144 = vst [vmem:[%s120 + $0x2c] sm:%s112] %v143
                %v145 = vld [vmem:[%s119 + $0xc0] sm:%s112]
                %146 = vst [vmem:[%s120 + $0x30] sm:%s112] %v145
                %v147 = vld [vmem:[%s119 + $0xd0] sm:%s112]
                %148 = vst [vmem:[%s120 + $0x34] sm:%s112] %v147
                %v149 = vld [vmem:[%s119 + $0xe0] sm:%s112]
                %150 = vst [vmem:[%s120 + $0x38] sm:%s112] %v149
                %v151 = vld [vmem:[%s119 + $0xf0] sm:%s112]
                %152 = vst [vmem:[%s120 + $0x3c] sm:%s112] %v151
                %v153 = vld [vmem:[%s119 + $0x100] sm:%s112]
                %154 = vst [vmem:[%s120 + $0x40] sm:%s112] %v153
                %v155 = vld [vmem:[%s119 + $0x110] sm:%s112]
                %156 = vst [vmem:[%s120 + $0x44] sm:%s112] %v155
                %v157 = vld [vmem:[%s119 + $0x120] sm:%s112]
                %158 = vst [vmem:[%s120 + $0x48] sm:%s112] %v157
                %v159 = vld [vmem:[%s119 + $0x130] sm:%s112]
                %160 = vst [vmem:[%s120 + $0x4c] sm:%s112] %v159
                %v161 = vld [vmem:[%s119 + $0x140] sm:%s112]
                %162 = vst [vmem:[%s120 + $0x50] sm:%s112] %v161
                %v163 = vld [vmem:[%s119 + $0x150] sm:%s112]
                %164 = vst [vmem:[%s120 + $0x54] sm:%s112] %v163
                %v165 = vld [vmem:[%s119 + $0x160] sm:%s112]
                %166 = vst [vmem:[%s120 + $0x58] sm:%s112] %v165
                %v167 = vld [vmem:[%s119 + $0x170] sm:%s112]
                %168 = vst [vmem:[%s120 + $0x5c] sm:%s112] %v167
              $region37: #{_lambda_.11} parent=31 // loop_footer
                %s118 = sadd.s32 1, %s114
              $region38: #{_lambda_.11} parent=31 // loop_footer_branch
                %113 = sbr.rel target = $region34
              $region39: #{_lambda_.11} parent=31 // loop_exit
                _
            $region32: #{_lambda_.11} parent=23 // pred_fallthru
              _
          $region24: #{_lambda_.11} parent=19 // pred_fallthru
            _
          %237 = vnop
        $region20: #{_lambda_.11} parent=15 // pred_fallthru
          _
      $region16: #{_lambda_.11} parent=5 // pred_fallthru
        _
      %p238 = scmp.le.s32.totalorder 1, %s7
      %p239 = scmp.lt.s32.totalorder %s7, 9
      %p240 = pnand %p238, %p239
      %p241 = pneg %p240
      // Predicated region
      $region58: #{_lambda_.11} parent=5 // pred_check
        _
      $region59: #{_lambda_.11} parent=5 // pred_check_branch
        %243 = sbr.rel (%p240) target = $region61
      $region60: #{_lambda_.11} parent=5 // pred_region
        %s244 = ssub.s32 %s7, 1
        %s245 = sand.u32 %s34, 1
        %s246 = sand.u32 %s34, 1
        %s247 = smul.addr %s246, 96
        %s248 = scalar_lea.vmem [#allocation2], %s247
        // Predicated region
        $region62: #{_lambda_.11} parent=60 // pred_check
          %p249 = pneg %p47
        $region63: #{_lambda_.11} parent=60 // pred_check_branch
          %251 = sbr.rel (%p249) target = $region65
        $region64: #{_lambda_.11} parent=60 // pred_region
          _
        $region65: #{_lambda_.11} parent=60 // pred_fallthru
          _
        %s252 = sand.u32 %s34, 1
        %s253 = sand.u32 %s34, 1
        %s254 = smul.addr %s253, 96
        %s255 = scalar_lea.vmem [#allocation2], %s254
        %p256 = pneg %p47
        %p257 = pneg %p44
        %p258 = pneg %p75
        %p259 = pneg %p72
        %s260 = sand.u32 %s62, 1
        %s261 = sand.u32 %s62, 1
        %s262 = smul.addr %s261, 72
        %s263 = scalar_lea.vmem [#allocation3], %s262
        %v264 = vld [vmem:[%s248] sm:$0xf]
        %v265 = vld [vmem:[%s248 + $0x4] sm:$0x3]
        %v266 = vld [vmem:[%s248 + $0x8] sm:$0xf]
        %v267 = vld [vmem:[%s248 + $0xc] sm:$0x3]
        %v268 = vld [vmem:[%s248 + $0x10] sm:$0xf]
        %v269 = vld [vmem:[%s248 + $0x14] sm:$0x3]
        %v270 = vld [vmem:[%s248 + $0x18] sm:$0xf]
        %v271 = vld [vmem:[%s248 + $0x1c] sm:$0x3]
        %v272 = vld [vmem:[%s248 + $0x20] sm:$0xf]
        %v273 = vld [vmem:[%s248 + $0x24] sm:$0x3]
        %v274 = vld [vmem:[%s248 + $0x28] sm:$0xf]
        %v275 = vld [vmem:[%s248 + $0x2c] sm:$0x3]
        %v276 = vld [vmem:[%s248 + $0x30] sm:$0xf]
        %v277 = vld [vmem:[%s248 + $0x34] sm:$0x3]
        %v278 = vld [vmem:[%s248 + $0x38] sm:$0xf]
        %v279 = vld [vmem:[%s248 + $0x3c] sm:$0x3]
        %v280 = vld [vmem:[%s248 + $0x40] sm:$0xf]
        %v281 = vld [vmem:[%s248 + $0x44] sm:$0x3]
        %v282 = vld [vmem:[%s248 + $0x48] sm:$0xf]
        %v283 = vld [vmem:[%s248 + $0x4c] sm:$0x3]
        %v284 = vld [vmem:[%s248 + $0x50] sm:$0xf]
        %v285 = vld [vmem:[%s248 + $0x54] sm:$0x3]
        %v286 = vld [vmem:[%s248 + $0x58] sm:$0xf]
        %v287 = vld [vmem:[%s248 + $0x5c] sm:$0x3]
        %v288 = vunpack.c.l.bf16 %v264
        %v289 = vunpack.c.l.bf16 %v265
        %v290 = vunpack.c.l.bf16 %v266
        %v291 = vunpack.c.l.bf16 %v267
        %v292 = vunpack.c.l.bf16 %v268
        %v293 = vunpack.c.l.bf16 %v269
        %v294 = vunpack.c.l.bf16 %v270
        %v295 = vunpack.c.l.bf16 %v271
        %v296 = vunpack.c.l.bf16 %v272
        %v297 = vunpack.c.l.bf16 %v273
        %v298 = vunpack.c.l.bf16 %v274
        %v299 = vunpack.c.l.bf16 %v275
        %v300 = vunpack.c.l.bf16 %v276
        %v301 = vunpack.c.l.bf16 %v277
        %v302 = vunpack.c.l.bf16 %v278
        %v303 = vunpack.c.l.bf16 %v279
        %v304 = vunpack.c.l.bf16 %v280
        %v305 = vunpack.c.l.bf16 %v281
        %v306 = vunpack.c.l.bf16 %v282
        %v307 = vunpack.c.l.bf16 %v283
        %v308 = vunpack.c.l.bf16 %v284
        %v309 = vunpack.c.l.bf16 %v285
        %v310 = vunpack.c.l.bf16 %v286
        %v311 = vunpack.c.l.bf16 %v287
        %v312 = vmul.f32 %v288, 0.125
        %v313 = vmul.f32 %v289, 0.125
        %v314 = vmul.f32 %v290, 0.125
        %v315 = vmul.f32 %v291, 0.125
        %v316 = vmul.f32 %v292, 0.125
        %v317 = vmul.f32 %v293, 0.125
        %v318 = vmul.f32 %v294, 0.125
        %v319 = vmul.f32 %v295, 0.125
        %v320 = vmul.f32 %v296, 0.125
        %v321 = vmul.f32 %v297, 0.125
        %v322 = vmul.f32 %v298, 0.125
        %v323 = vmul.f32 %v299, 0.125
        %v324 = vmul.f32 %v300, 0.125
        %v325 = vmul.f32 %v301, 0.125
        %v326 = vmul.f32 %v302, 0.125
        %v327 = vmul.f32 %v303, 0.125
        %v328 = vmul.f32 %v304, 0.125
        %v329 = vmul.f32 %v305, 0.125
        %v330 = vmul.f32 %v290, 0.375
        %v331 = vmul.f32 %v291, 0.375
        %v332 = vmul.f32 %v292, 0.375
        %v333 = vmul.f32 %v293, 0.375
        %v334 = vmul.f32 %v294, 0.375
        %v335 = vmul.f32 %v295, 0.375
        %v336 = vmul.f32 %v296, 0.375
        %v337 = vmul.f32 %v297, 0.375
        %v338 = vmul.f32 %v298, 0.375
        %v339 = vmul.f32 %v299, 0.375
        %v340 = vmul.f32 %v300, 0.375
        %v341 = vmul.f32 %v301, 0.375
        %v342 = vmul.f32 %v302, 0.375
        %v343 = vmul.f32 %v303, 0.375
        %v344 = vmul.f32 %v304, 0.375
        %v345 = vmul.f32 %v305, 0.375
        %v346 = vmul.f32 %v306, 0.375
        %v347 = vmul.f32 %v307, 0.375
        %v348 = vadd.f32 %v312, %v330
        %v349 = vadd.f32 %v313, %v331
        %v350 = vadd.f32 %v314, %v332
        %v351 = vadd.f32 %v315, %v333
        %v352 = vadd.f32 %v316, %v334
        %v353 = vadd.f32 %v317, %v335
        %v354 = vadd.f32 %v318, %v336
        %v355 = vadd.f32 %v319, %v337
        %v356 = vadd.f32 %v320, %v338
        %v357 = vadd.f32 %v321, %v339
        %v358 = vadd.f32 %v322, %v340
        %v359 = vadd.f32 %v323, %v341
        %v360 = vadd.f32 %v324, %v342
        %v361 = vadd.f32 %v325, %v343
        %v362 = vadd.f32 %v326, %v344
        %v363 = vadd.f32 %v327, %v345
        %v364 = vadd.f32 %v328, %v346
        %v365 = vadd.f32 %v329, %v347
        %v366 = vmul.f32 %v308, 0.375
        %v367 = vmul.f32 %v309, 0.375
        %v368 = vadd.f32 %v348, %v332
        %v369 = vadd.f32 %v349, %v333
        %v370 = vadd.f32 %v350, %v334
        %v371 = vadd.f32 %v351, %v335
        %v372 = vadd.f32 %v352, %v336
        %v373 = vadd.f32 %v353, %v337
        %v374 = vadd.f32 %v354, %v338
        %v375 = vadd.f32 %v355, %v339
        %v376 = vadd.f32 %v356, %v340
        %v377 = vadd.f32 %v357, %v341
        %v378 = vadd.f32 %v358, %v342
        %v379 = vadd.f32 %v359, %v343
        %v380 = vadd.f32 %v360, %v344
        %v381 = vadd.f32 %v361, %v345
        %v382 = vadd.f32 %v362, %v346
        %v383 = vadd.f32 %v363, %v347
        %v384 = vadd.f32 %v364, %v366
        %v385 = vadd.f32 %v365, %v367
        %v386 = vmul.f32 %v306, 0.125
        %v387 = vmul.f32 %v307, 0.125
        %v388 = vmul.f32 %v308, 0.125
        %v389 = vmul.f32 %v309, 0.125
        %v390 = vmul.f32 %v310, 0.125
        %v391 = vmul.f32 %v311, 0.125
        %v392 = vadd.f32 %v368, %v318
        %v393 = vadd.f32 %v369, %v319
        %v394 = vadd.f32 %v370, %v320
        %v395 = vadd.f32 %v371, %v321
        %v396 = vadd.f32 %v372, %v322
        %v397 = vadd.f32 %v373, %v323
        %v398 = vadd.f32 %v374, %v324
        %v399 = vadd.f32 %v375, %v325
        %v400 = vadd.f32 %v376, %v326
        %v401 = vadd.f32 %v377, %v327
        %v402 = vadd.f32 %v378, %v328
        %v403 = vadd.f32 %v379, %v329
        %v404 = vadd.f32 %v380, %v386
        %v405 = vadd.f32 %v381, %v387
        %v406 = vadd.f32 %v382, %v388
        %v407 = vadd.f32 %v383, %v389
        %v408 = vadd.f32 %v384, %v390
        %v409 = vadd.f32 %v385, %v391
        %v410 = vmul.f32 %v392, 0.125
        %v411 = vmul.f32 %v393, 0.125
        %v412 = vmul.f32 %v394, 0.125
        %v413 = vmul.f32 %v395, 0.125
        %v414 = vmul.f32 %v396, 0.125
        %v415 = vmul.f32 %v397, 0.125
        %v416 = vmul.f32 %v398, 0.125
        %v417 = vmul.f32 %v399, 0.125
        %v418 = vmul.f32 %v400, 0.125
        %v419 = vmul.f32 %v401, 0.125
        %v420 = vmul.f32 %v402, 0.125
        %v421 = vmul.f32 %v403, 0.125
        %v422 = vmul.f32 %v404, 0.125
        %v423 = vmul.f32 %v405, 0.125
        %v424 = vmul.f32 %v406, 0.125
        %v425 = vmul.f32 %v407, 0.125
        %v426 = vmul.f32 %v408, 0.125
        %v427 = vmul.f32 %v409, 0.125
        %v428 = vmul.f32 %v392, 0.375
        %v429 = vmul.f32 %v393, 0.375
        %v430 = vmul.f32 %v394, 0.375
        %v431 = vmul.f32 %v395, 0.375
        %v432 = vmul.f32 %v396, 0.375
        %v433 = vmul.f32 %v397, 0.375
        %v434 = vmul.f32 %v398, 0.375
        %v435 = vmul.f32 %v399, 0.375
        %v436 = vmul.f32 %v400, 0.375
        %v437 = vmul.f32 %v401, 0.375
        %v438 = vmul.f32 %v402, 0.375
        %v439 = vmul.f32 %v403, 0.375
        %v440 = vmul.f32 %v404, 0.375
        %v441 = vmul.f32 %v405, 0.375
        %v442 = vmul.f32 %v406, 0.375
        %v443 = vmul.f32 %v407, 0.375
        %v444 = vmul.f32 %v408, 0.375
        %v445 = vmul.f32 %v409, 0.375
        %vm464 = vcmask 1046528
        %v465 = vrot.slane %v428, 1
        %v466 = vrot.slane %v429, 1
        %v467 = vsel %vm464, %v465, %v466
        %v468 = vrot.slane %v430, 1
        %v469 = vrot.slane %v431, 1
        %v470 = vsel %vm464, %v468, %v469
        %v471 = vrot.slane %v432, 1
        %v472 = vrot.slane %v433, 1
        %v473 = vsel %vm464, %v471, %v472
        %v474 = vrot.slane %v434, 1
        %v475 = vrot.slane %v435, 1
        %v476 = vsel %vm464, %v474, %v475
        %v477 = vrot.slane %v436, 1
        %v478 = vrot.slane %v437, 1
        %v479 = vsel %vm464, %v477, %v478
        %v480 = vrot.slane %v438, 1
        %v481 = vrot.slane %v439, 1
        %v482 = vsel %vm464, %v480, %v481
        %v483 = vrot.slane %v440, 1
        %v484 = vrot.slane %v441, 1
        %v485 = vsel %vm464, %v483, %v484
        %v486 = vrot.slane %v442, 1
        %v487 = vrot.slane %v443, 1
        %v488 = vsel %vm464, %v486, %v487
        %v489 = vrot.slane %v444, 1
        %v490 = vrot.slane %v445, 1
        %v491 = vsel %vm464, %v489, %v490
        %v510 = vadd.f32 %v410, %v467
        %v511 = vadd.f32 %v411, %v466
        %v512 = vadd.f32 %v412, %v470
        %v513 = vadd.f32 %v413, %v469
        %v514 = vadd.f32 %v414, %v473
        %v515 = vadd.f32 %v415, %v472
        %v516 = vadd.f32 %v416, %v476
        %v517 = vadd.f32 %v417, %v475
        %v518 = vadd.f32 %v418, %v479
        %v519 = vadd.f32 %v419, %v478
        %v520 = vadd.f32 %v420, %v482
        %v521 = vadd.f32 %v421, %v481
        %v522 = vadd.f32 %v422, %v485
        %v523 = vadd.f32 %v423, %v484
        %v524 = vadd.f32 %v424, %v488
        %v525 = vadd.f32 %v425, %v487
        %v526 = vadd.f32 %v426, %v491
        %v527 = vadd.f32 %v427, %v490
        %vm528 = vcmask 1045504
        %v529 = vrot.slane %v428, 2
        %v530 = vrot.slane %v429, 2
        %v531 = vsel %vm528, %v529, %v530
        %v532 = vrot.slane %v430, 2
        %v533 = vrot.slane %v431, 2
        %v534 = vsel %vm528, %v532, %v533
        %v535 = vrot.slane %v432, 2
        %v536 = vrot.slane %v433, 2
        %v537 = vsel %vm528, %v535, %v536
        %v538 = vrot.slane %v434, 2
        %v539 = vrot.slane %v435, 2
        %v540 = vsel %vm528, %v538, %v539
        %v541 = vrot.slane %v436, 2
        %v542 = vrot.slane %v437, 2
        %v543 = vsel %vm528, %v541, %v542
        %v544 = vrot.slane %v438, 2
        %v545 = vrot.slane %v439, 2
        %v546 = vsel %vm528, %v544, %v545
        %v547 = vrot.slane %v440, 2
        %v548 = vrot.slane %v441, 2
        %v549 = vsel %vm528, %v547, %v548
        %v550 = vrot.slane %v442, 2
        %v551 = vrot.slane %v443, 2
        %v552 = vsel %vm528, %v550, %v551
        %v553 = vrot.slane %v444, 2
        %v554 = vrot.slane %v445, 2
        %v555 = vsel %vm528, %v553, %v554
        %v574 = vadd.f32 %v510, %v531
        %v575 = vadd.f32 %v511, %v530
        %v576 = vadd.f32 %v512, %v534
        %v577 = vadd.f32 %v513, %v533
        %v578 = vadd.f32 %v514, %v537
        %v579 = vadd.f32 %v515, %v536
        %v580 = vadd.f32 %v516, %v540
        %v581 = vadd.f32 %v517, %v539
        %v582 = vadd.f32 %v518, %v543
        %v583 = vadd.f32 %v519, %v542
        %v584 = vadd.f32 %v520, %v546
        %v585 = vadd.f32 %v521, %v545
        %v586 = vadd.f32 %v522, %v549
        %v587 = vadd.f32 %v523, %v548
        %v588 = vadd.f32 %v524, %v552
        %v589 = vadd.f32 %v525, %v551
        %v590 = vadd.f32 %v526, %v555
        %v591 = vadd.f32 %v527, %v554
        %vm610 = vcmask 1044480
        %v611 = vrot.slane %v410, 3
        %v612 = vrot.slane %v411, 3
        %v613 = vsel %vm610, %v611, %v612
        %v614 = vrot.slane %v412, 3
        %v615 = vrot.slane %v413, 3
        %v616 = vsel %vm610, %v614, %v615
        %v617 = vrot.slane %v414, 3
        %v618 = vrot.slane %v415, 3
        %v619 = vsel %vm610, %v617, %v618
        %v620 = vrot.slane %v416, 3
        %v621 = vrot.slane %v417, 3
        %v622 = vsel %vm610, %v620, %v621
        %v623 = vrot.slane %v418, 3
        %v624 = vrot.slane %v419, 3
        %v625 = vsel %vm610, %v623, %v624
        %v626 = vrot.slane %v420, 3
        %v627 = vrot.slane %v421, 3
        %v628 = vsel %vm610, %v626, %v627
        %v629 = vrot.slane %v422, 3
        %v630 = vrot.slane %v423, 3
        %v631 = vsel %vm610, %v629, %v630
        %v632 = vrot.slane %v424, 3
        %v633 = vrot.slane %v425, 3
        %v634 = vsel %vm610, %v632, %v633
        %v635 = vrot.slane %v426, 3
        %v636 = vrot.slane %v427, 3
        %v637 = vsel %vm610, %v635, %v636
        %v656 = vadd.f32 %v574, %v613
        %v657 = vadd.f32 %v575, %v612
        %v658 = vadd.f32 %v576, %v616
        %v659 = vadd.f32 %v577, %v615
        %v660 = vadd.f32 %v578, %v619
        %v661 = vadd.f32 %v579, %v618
        %v662 = vadd.f32 %v580, %v622
        %v663 = vadd.f32 %v581, %v621
        %v664 = vadd.f32 %v582, %v625
        %v665 = vadd.f32 %v583, %v624
        %v666 = vadd.f32 %v584, %v628
        %v667 = vadd.f32 %v585, %v627
        %v668 = vadd.f32 %v586, %v631
        %v669 = vadd.f32 %v587, %v630
        %v670 = vadd.f32 %v588, %v634
        %v671 = vadd.f32 %v589, %v633
        %v672 = vadd.f32 %v590, %v637
        %v673 = vadd.f32 %v591, %v636
        %v674 = vpack.c.bf16 %v656, %v656
        %v675 = vpack.c.bf16 %v657, %v657
        %v676 = vpack.c.bf16 %v658, %v658
        %v677 = vpack.c.bf16 %v659, %v659
        %v678 = vpack.c.bf16 %v660, %v660
        %v679 = vpack.c.bf16 %v661, %v661
        %v680 = vpack.c.bf16 %v662, %v662
        %v681 = vpack.c.bf16 %v663, %v663
        %v682 = vpack.c.bf16 %v664, %v664
        %v683 = vpack.c.bf16 %v665, %v665
        %v684 = vpack.c.bf16 %v666, %v666
        %v685 = vpack.c.bf16 %v667, %v667
        %v686 = vpack.c.bf16 %v668, %v668
        %v687 = vpack.c.bf16 %v669, %v669
        %v688 = vpack.c.bf16 %v670, %v670
        %v689 = vpack.c.bf16 %v671, %v671
        %v690 = vpack.c.bf16 %v672, %v672
        %v691 = vpack.c.bf16 %v673, %v673
        %692 = vst [vmem:[%s263] sm:$0xf] %v674
        %vm693 = vcmask 1040384
        %vm694 = vsmask.f32 256
        %vm695 = vmand %vm693, %vm694
        %v696 = vld [vmem:[%s263 + $0x4] sm:$0x1]
        %v697 = vsel %vm695, %v675, %v696
        %698 = vst [vmem:[%s263 + $0x4] sm:$0x1] %v697
        %699 = vst [vmem:[%s263 + $0x8] sm:$0xf] %v676
        %v700 = vld [vmem:[%s263 + $0xc] sm:$0x1]
        %v701 = vsel %vm695, %v677, %v700
        %702 = vst [vmem:[%s263 + $0xc] sm:$0x1] %v701
        %703 = vst [vmem:[%s263 + $0x10] sm:$0xf] %v678
        %v704 = vld [vmem:[%s263 + $0x14] sm:$0x1]
        %v705 = vsel %vm695, %v679, %v704
        %706 = vst [vmem:[%s263 + $0x14] sm:$0x1] %v705
        %707 = vst [vmem:[%s263 + $0x18] sm:$0xf] %v680
        %v708 = vld [vmem:[%s263 + $0x1c] sm:$0x1]
        %v709 = vsel %vm695, %v681, %v708
        %710 = vst [vmem:[%s263 + $0x1c] sm:$0x1] %v709
        %711 = vst [vmem:[%s263 + $0x20] sm:$0xf] %v682
        %v712 = vld [vmem:[%s263 + $0x24] sm:$0x1]
        %v713 = vsel %vm695, %v683, %v712
        %714 = vst [vmem:[%s263 + $0x24] sm:$0x1] %v713
        %715 = vst [vmem:[%s263 + $0x28] sm:$0xf] %v684
        %v716 = vld [vmem:[%s263 + $0x2c] sm:$0x1]
        %v717 = vsel %vm695, %v685, %v716
        %718 = vst [vmem:[%s263 + $0x2c] sm:$0x1] %v717
        %719 = vst [vmem:[%s263 + $0x30] sm:$0xf] %v686
        %v720 = vld [vmem:[%s263 + $0x34] sm:$0x1]
        %v721 = vsel %vm695, %v687, %v720
        %722 = vst [vmem:[%s263 + $0x34] sm:$0x1] %v721
        %723 = vst [vmem:[%s263 + $0x38] sm:$0xf] %v688
        %v724 = vld [vmem:[%s263 + $0x3c] sm:$0x1]
        %v725 = vsel %vm695, %v689, %v724
        %726 = vst [vmem:[%s263 + $0x3c] sm:$0x1] %v725
        %727 = vst [vmem:[%s263 + $0x40] sm:$0xf] %v690
        %v728 = vld [vmem:[%s263 + $0x44] sm:$0x1]
        %v729 = vsel %vm695, %v691, %v728
        %730 = vst [vmem:[%s263 + $0x44] sm:$0x1] %v729
        %s731 = sand.u32 %s62, 1
        %s732 = sand.u32 %s62, 1
        %s733 = smul.addr %s732, 72
        %s734 = scalar_lea.vmem [#allocation3], %s733
        // Predicated region
        $region66: #{_lambda_.11} parent=60 // pred_check
          %p735 = pneg %p72
        $region67: #{_lambda_.11} parent=60 // pred_check_branch
          %737 = sbr.rel (%p735) target = $region69
        $region68: #{_lambda_.11} parent=60 // pred_region
          %s738 = smul.addr %s16, 72
          %s739 = sadd.s32 %s17, %s738
          %s740 = smul.addr %s739, 4
          %s741 = scalar_lea.vmem %s1, %s740
          // Predicated region
          $region70: #{_lambda_.11} parent=68 // pred_check
            _
          $region71: #{_lambda_.11} parent=68 // pred_check_branch
            %743 = sbr.rel (0) target = $region73
          $region72: #{_lambda_.11} parent=68 // pred_region
            // Predicated region
            $region74: #{_lambda_.11} parent=72 // pred_check
              _
            $region75: #{_lambda_.11} parent=72 // pred_check_branch
              %745 = sbr.rel target = $region77
            $region76: #{_lambda_.11} parent=72 // pred_region
              // Predicated region
              $region89: #{_lambda_.11} parent=76 // pred_check
                _
              $region90: #{_lambda_.11} parent=76 // pred_check_branch
                %795 = sbr.rel (0) target = $region92
              $region91: #{_lambda_.11} parent=76 // pred_region
                loop: start=0, step=1, limit=1
                $region93: #{_lambda_.11} parent=91 // loop_pre_header
                  _
                $region94: #{_lambda_.11} parent=91 // loop_header
                  %s797 = sphi 0, %s801
                  %p798 = scmp.ge.s32.totalorder %s797, 1
                  %s802 = sphi %s734, %s734
                  %s803 = sphi %s741, %s741
                $region95: #{_lambda_.11} parent=91 // loop_header_branch
                  %800 = sbr.rel (%p798) target = $region99
                $region96: #{_lambda_.11} parent=91 // loop_body
                  _
                $region97: #{_lambda_.11} parent=91 // loop_footer
                  %s801 = sadd.s32 1, %s797
                $region98: #{_lambda_.11} parent=91 // loop_footer_branch
                  %796 = sbr.rel target = $region94
                $region99: #{_lambda_.11} parent=91 // loop_exit
                  _
                %s805 = ssub.s32 16, 1
                loop: start=0, step=1, limit=1
                $region100: #{_lambda_.11} parent=91 // loop_pre_header
                  _
                $region101: #{_lambda_.11} parent=91 // loop_header
                  %s807 = sphi 0, %s811
                  %p808 = scmp.ge.s32.totalorder %s807, 1
                  %s812 = sphi %s734, %s734
                  %s813 = sphi %s741, %s741
                $region102: #{_lambda_.11} parent=91 // loop_header_branch
                  %810 = sbr.rel (%p808) target = $region106
                $region103: #{_lambda_.11} parent=91 // loop_body
                  %v814 = vld [vmem:[%s812] sm:%s805]
                  %815 = vst [vmem:[%s813] sm:%s805] %v814
                  %v816 = vld [vmem:[%s812 + $0x4] sm:%s805]
                  %817 = vst [vmem:[%s813 + $0x10] sm:%s805] %v816
                  %v818 = vld [vmem:[%s812 + $0x8] sm:%s805]
                  %819 = vst [vmem:[%s813 + $0x20] sm:%s805] %v818
                  %v820 = vld [vmem:[%s812 + $0xc] sm:%s805]
                  %821 = vst [vmem:[%s813 + $0x30] sm:%s805] %v820
                  %v822 = vld [vmem:[%s812 + $0x10] sm:%s805]
                  %823 = vst [vmem:[%s813 + $0x40] sm:%s805] %v822
                  %v824 = vld [vmem:[%s812 + $0x14] sm:%s805]
                  %825 = vst [vmem:[%s813 + $0x50] sm:%s805] %v824
                  %v826 = vld [vmem:[%s812 + $0x18] sm:%s805]
                  %827 = vst [vmem:[%s813 + $0x60] sm:%s805] %v826
                  %v828 = vld [vmem:[%s812 + $0x1c] sm:%s805]
                  %829 = vst [vmem:[%s813 + $0x70] sm:%s805] %v828
                  %v830 = vld [vmem:[%s812 + $0x20] sm:%s805]
                  %831 = vst [vmem:[%s813 + $0x80] sm:%s805] %v830
                  %v832 = vld [vmem:[%s812 + $0x24] sm:%s805]
                  %833 = vst [vmem:[%s813 + $0x90] sm:%s805] %v832
                  %v834 = vld [vmem:[%s812 + $0x28] sm:%s805]
                  %835 = vst [vmem:[%s813 + $0xa0] sm:%s805] %v834
                  %v836 = vld [vmem:[%s812 + $0x2c] sm:%s805]
                  %837 = vst [vmem:[%s813 + $0xb0] sm:%s805] %v836
                  %v838 = vld [vmem:[%s812 + $0x30] sm:%s805]
                  %839 = vst [vmem:[%s813 + $0xc0] sm:%s805] %v838
                  %v840 = vld [vmem:[%s812 + $0x34] sm:%s805]
                  %841 = vst [vmem:[%s813 + $0xd0] sm:%s805] %v840
                  %v842 = vld [vmem:[%s812 + $0x38] sm:%s805]
                  %843 = vst [vmem:[%s813 + $0xe0] sm:%s805] %v842
                  %v844 = vld [vmem:[%s812 + $0x3c] sm:%s805]
                  %845 = vst [vmem:[%s813 + $0xf0] sm:%s805] %v844
                  %v846 = vld [vmem:[%s812 + $0x40] sm:%s805]
                  %847 = vst [vmem:[%s813 + $0x100] sm:%s805] %v846
                  %v848 = vld [vmem:[%s812 + $0x44] sm:%s805]
                  %849 = vst [vmem:[%s813 + $0x110] sm:%s805] %v848
                $region104: #{_lambda_.11} parent=91 // loop_footer
                  %s811 = sadd.s32 1, %s807
                $region105: #{_lambda_.11} parent=91 // loop_footer_branch
                  %806 = sbr.rel target = $region101
                $region106: #{_lambda_.11} parent=91 // loop_exit
                  _
              $region92: #{_lambda_.11} parent=76 // pred_fallthru
                _
            $region77: #{_lambda_.11} parent=72 // pred_fallthru
              _
            // Predicated region
            $region78: #{_lambda_.11} parent=72 // pred_check
              _
            $region79: #{_lambda_.11} parent=72 // pred_check_branch
              %747 = sbr.rel (0) target = $region81
            $region80: #{_lambda_.11} parent=72 // pred_region
              %s749 = ssub.s32 16, 1
              loop: start=0, step=1, limit=1
              $region82: #{_lambda_.11} parent=80 // loop_pre_header
                _
              $region83: #{_lambda_.11} parent=80 // loop_header
                %s751 = sphi 0, %s755
                %p752 = scmp.ge.s32.totalorder %s751, 1
                %s756 = sphi %s734, %s734
                %s757 = sphi %s741, %s741
              $region84: #{_lambda_.11} parent=80 // loop_header_branch
                %754 = sbr.rel (%p752) target = $region88
              $region85: #{_lambda_.11} parent=80 // loop_body
                %v758 = vld [vmem:[%s756] sm:%s749]
                %759 = vst [vmem:[%s757] sm:%s749] %v758
                %v760 = vld [vmem:[%s756 + $0x4] sm:%s749]
                %761 = vst [vmem:[%s757 + $0x10] sm:%s749] %v760
                %v762 = vld [vmem:[%s756 + $0x8] sm:%s749]
                %763 = vst [vmem:[%s757 + $0x20] sm:%s749] %v762
                %v764 = vld [vmem:[%s756 + $0xc] sm:%s749]
                %765 = vst [vmem:[%s757 + $0x30] sm:%s749] %v764
                %v766 = vld [vmem:[%s756 + $0x10] sm:%s749]
                %767 = vst [vmem:[%s757 + $0x40] sm:%s749] %v766
                %v768 = vld [vmem:[%s756 + $0x14] sm:%s749]
                %769 = vst [vmem:[%s757 + $0x50] sm:%s749] %v768
                %v770 = vld [vmem:[%s756 + $0x18] sm:%s749]
                %771 = vst [vmem:[%s757 + $0x60] sm:%s749] %v770
                %v772 = vld [vmem:[%s756 + $0x1c] sm:%s749]
                %773 = vst [vmem:[%s757 + $0x70] sm:%s749] %v772
                %v774 = vld [vmem:[%s756 + $0x20] sm:%s749]
                %775 = vst [vmem:[%s757 + $0x80] sm:%s749] %v774
                %v776 = vld [vmem:[%s756 + $0x24] sm:%s749]
                %777 = vst [vmem:[%s757 + $0x90] sm:%s749] %v776
                %v778 = vld [vmem:[%s756 + $0x28] sm:%s749]
                %779 = vst [vmem:[%s757 + $0xa0] sm:%s749] %v778
                %v780 = vld [vmem:[%s756 + $0x2c] sm:%s749]
                %781 = vst [vmem:[%s757 + $0xb0] sm:%s749] %v780
                %v782 = vld [vmem:[%s756 + $0x30] sm:%s749]
                %783 = vst [vmem:[%s757 + $0xc0] sm:%s749] %v782
                %v784 = vld [vmem:[%s756 + $0x34] sm:%s749]
                %785 = vst [vmem:[%s757 + $0xd0] sm:%s749] %v784
                %v786 = vld [vmem:[%s756 + $0x38] sm:%s749]
                %787 = vst [vmem:[%s757 + $0xe0] sm:%s749] %v786
                %v788 = vld [vmem:[%s756 + $0x3c] sm:%s749]
                %789 = vst [vmem:[%s757 + $0xf0] sm:%s749] %v788
                %v790 = vld [vmem:[%s756 + $0x40] sm:%s749]
                %791 = vst [vmem:[%s757 + $0x100] sm:%s749] %v790
                %v792 = vld [vmem:[%s756 + $0x44] sm:%s749]
                %793 = vst [vmem:[%s757 + $0x110] sm:%s749] %v792
              $region86: #{_lambda_.11} parent=80 // loop_footer
                %s755 = sadd.s32 1, %s751
              $region87: #{_lambda_.11} parent=80 // loop_footer_branch
                %750 = sbr.rel target = $region83
              $region88: #{_lambda_.11} parent=80 // loop_exit
                _
            $region81: #{_lambda_.11} parent=72 // pred_fallthru
              _
          $region73: #{_lambda_.11} parent=68 // pred_fallthru
            _
          %850 = vnop
        $region69: #{_lambda_.11} parent=60 // pred_fallthru
          _
      $region61: #{_lambda_.11} parent=5 // pred_fallthru
        _
      %p851 = scmp.le.s32.totalorder 2, %s7
      // Predicated region
      $region107: #{_lambda_.11} parent=5 // pred_check
        %p852 = pneg %p851
      $region108: #{_lambda_.11} parent=5 // pred_check_branch
        %854 = sbr.rel (%p852) target = $region110
      $region109: #{_lambda_.11} parent=5 // pred_region
        %s855 = ssub.s32 %s7, 2
        // Predicated region
        $region111: #{_lambda_.11} parent=109 // pred_check
          %p856 = pneg %p78
        $region112: #{_lambda_.11} parent=109 // pred_check_branch
          %858 = sbr.rel (%p856) target = $region114
        $region113: #{_lambda_.11} parent=109 // pred_region
          %s859 = sand.u32 %s63, 1
          %s860 = sand.u32 %s63, 1
          %s861 = smul.addr %s860, 72
          %s862 = scalar_lea.vmem [#allocation3], %s861
        $region114: #{_lambda_.11} parent=109 // pred_fallthru
          _
      $region110: #{_lambda_.11} parent=5 // pred_fallthru
        _
    $region6: #{_lambda_.11} parent=1 // loop_footer
      %s11 = sadd.s32 1, %s7
    $region7: #{_lambda_.11} parent=1 // loop_footer_branch
      %6 = sbr.rel target = $region3
    $region8: #{_lambda_.11} parent=1 // loop_exit
      _

// kernel: _lambda_.12
$region0: #{_lambda_.12}
  #allocation0 [shape = 'u32[]', space=smem, size = 0x4, offset = 0x4, fixed_abs, tag = 'smem constant byte address 0x4 - core index']
  #allocation1 [shape = 'u32[72,128]{1,0:T(1,128)}', space=vmem, size = 0x9000, scoped, tag = 'internal scratch']
  #allocation2 [shape = 'f32[32,128]{1,0:T(8,128)}', space=vmem, size = 0x4000, scoped, tag = 'scratch operand']
  %s0 = inlined_call_operand.vmem [shape: bf16[32,4608], index: 0, kind: input, shape index: {}]
  %s1 = inlined_call_operand.hbm [shape: bf16[4608,512], index: 1, kind: input, shape index: {}]
  %s2 = inlined_call_operand.vmem [shape: f32[1,512], index: 2, kind: input, shape index: {}]
  %s3 = inlined_call_operand.vmem [shape: bf16[32,512], index: 3, kind: output, shape index: {}]
  %s4 = sld [smem:[#allocation0]]
  $region117: #{_lambda_.12} parent=0
    _
  %s6 = ssub.s32 1, %s4
  %s7 = scalar_select 0, %s6, %s4
  $region1: #{_lambda_.12} parent=0
    #allocation3 [shape = 'u8[65536]{0}', space=vmem, size = 0x10000, scoped, tag = 'input window, operand 0']
    #allocation4 [shape = 'u8[262144]{0}', space=vmem, size = 0x40000, scoped, tag = 'input window, operand 1']
    #allocation5 [shape = 's32[2]{0}', space=sflag, size = 0x8, scoped, tag = 'scoped memory for _lambda_.12']
    #allocation6 [shape = 'u8[16384]{0}', space=vmem, size = 0x4000, scoped, tag = 'output window, operand 0']
    %8 = vsyncpa [#allocation5], 0
    %s9 = scalar_lea.sflag [#allocation5], 1
    %10 = vsyncpa %s9, 0
    loop: start=0, step=1, limit=38
    $region2: #{_lambda_.12} parent=1 // loop_pre_header
      _
    $region3: #{_lambda_.12} parent=1 // loop_header
      %s12 = sphi 0, %s16
      %p13 = scmp.ge.s32.totalorder %s12, 38
      %s19 = sphi 0, %s38
      %s20 = sphi 0, %s34
      %s21 = sphi 0, %s30
      %s22 = sphi 0, %s19
      %s23 = sphi 0, %s20
      %s24 = sphi 0, %s21
      %s25 = sphi 0, %s22
      %s26 = sphi 0, %s23
      %s27 = sphi 0, %s24
      %s43 = sphi 0, %s45
      %s46 = sphi 0, %s43
      %s47 = sphi 0, %s46
      %s63 = sphi 0, %s47
      %s71 = sphi 0, %s73
      %s74 = sphi 0, %s71
      %s75 = sphi 0, %s74
      %s91 = sphi 0, %s75
      %s97 = sphi 0, %s99
      %s100 = sphi 0, %s97
      %s101 = sphi 0, %s100
      %s117 = sphi 0, %s101
      %s125 = sphi 0, %s127
      %s128 = sphi 0, %s125
      %s129 = sphi 0, %s128
      %s145 = sphi 0, %s129
    $region4: #{_lambda_.12} parent=1 // loop_header_branch
      %15 = sbr.rel (%p13) target = $region8
    $region5: #{_lambda_.12} parent=1 // loop_body
      %s17 = ssub.s32 %s12, 1
      %s18 = ssub.s32 %s12, 2
      %s28 = sadd.s32 1, %s21
      %p29 = scmp.ge.s32.totalorder %s28, 9
      %s30 = scalar_select %p29, 0, %s28
      %s31 = sadd.s32 1, %s20
      %s32 = scalar_select %p29, %s31, %s20
      %p33 = scmp.ge.s32.totalorder %s32, 4
      %s34 = scalar_select %p33, 0, %s32
      %s35 = sadd.s32 1, %s19
      %s36 = scalar_select %p33, %s35, %s19
      %p37 = scmp.ge.s32.totalorder %s36, 1
      %s38 = scalar_select %p37, 0, %s36
      %s39 = ssub.s32 %s19, %s38
      %s40 = ssub.s32 %s21, %s30
      %s41 = sor.u32 %s39, %s40
      %p42 = scmp.eq.s32.totalorder %s41, 0
      %s44 = sadd.s32 %s43, 1
      %s45 = scalar_select %p42, %s43, %s44
      %p48 = pneg %p42
      %p49 = scmp.eq.s32.totalorder %s12, 35
      %p50 = por %p48, %p49
      %p51 = scmp.ne.s32.totalorder %s43, %s46
      %p52 = scmp.eq.s32.totalorder %s12, 0
      %p53 = por %p51, %p52
      %p54 = scmp.ne.s32.totalorder %s43, %s46
      %p55 = scmp.eq.s32.totalorder %s17, 35
      %p56 = por %p54, %p55
      %p57 = scmp.ne.s32.totalorder %s46, %s47
      %p58 = scmp.eq.s32.totalorder %s17, 0
      %p59 = por %p57, %p58
      %p60 = scmp.ne.s32.totalorder %s46, %s47
      %p61 = scmp.eq.s32.totalorder %s18, 35
      %p62 = por %p60, %p61
      %p64 = scmp.ne.s32.totalorder %s47, %s63
      %p65 = scmp.eq.s32.totalorder %s18, 0
      %p66 = por %p64, %p65
      %s67 = ssub.s32 %s21, %s30
      %s68 = ssub.s32 %s20, %s34
      %s69 = sor.u32 %s67, %s68
      %p70 = scmp.eq.s32.totalorder %s69, 0
      %s72 = sadd.s32 %s71, 1
      %s73 = scalar_select %p70, %s71, %s72
      %p76 = pneg %p70
      %p77 = scmp.eq.s32.totalorder %s12, 35
      %p78 = por %p76, %p77
      %p79 = scmp.ne.s32.totalorder %s71, %s74
      %p80 = scmp.eq.s32.totalorder %s12, 0
      %p81 = por %p79, %p80
      %p82 = scmp.ne.s32.totalorder %s71, %s74
      %p83 = scmp.eq.s32.totalorder %s17, 35
      %p84 = por %p82, %p83
      %p85 = scmp.ne.s32.totalorder %s74, %s75
      %p86 = scmp.eq.s32.totalorder %s17, 0
      %p87 = por %p85, %p86
      %p88 = scmp.ne.s32.totalorder %s74, %s75
      %p89 = scmp.eq.s32.totalorder %s18, 35
      %p90 = por %p88, %p89
      %p92 = scmp.ne.s32.totalorder %s75, %s91
      %p93 = scmp.eq.s32.totalorder %s18, 0
      %p94 = por %p92, %p93
      %s95 = ssub.s32 %s20, %s34
      %p96 = scmp.eq.s32.totalorder %s95, 0
      %s98 = sadd.s32 %s97, 1
      %s99 = scalar_select %p96, %s97, %s98
      %p102 = pneg %p96
      %p103 = scmp.eq.s32.totalorder %s12, 35
      %p104 = por %p102, %p103
      %p105 = scmp.ne.s32.totalorder %s97, %s100
      %p106 = scmp.eq.s32.totalorder %s12, 0
      %p107 = por %p105, %p106
      %p108 = scmp.ne.s32.totalorder %s97, %s100
      %p109 = scmp.eq.s32.totalorder %s17, 35
      %p110 = por %p108, %p109
      %p111 = scmp.ne.s32.totalorder %s100, %s101
      %p112 = scmp.eq.s32.totalorder %s17, 0
      %p113 = por %p111, %p112
      %p114 = scmp.ne.s32.totalorder %s100, %s101
      %p115 = scmp.eq.s32.totalorder %s18, 35
      %p116 = por %p114, %p115
      %p118 = scmp.ne.s32.totalorder %s101, %s117
      %p119 = scmp.eq.s32.totalorder %s18, 0
      %p120 = por %p118, %p119
      %s121 = ssub.s32 %s19, %s38
      %s122 = ssub.s32 %s20, %s34
      %s123 = sor.u32 %s121, %s122
      %p124 = scmp.eq.s32.totalorder %s123, 0
      %s126 = sadd.s32 %s125, 1
      %s127 = scalar_select %p124, %s125, %s126
      %p130 = pneg %p124
      %p131 = scmp.eq.s32.totalorder %s12, 35
      %p132 = por %p130, %p131
      %p133 = scmp.ne.s32.totalorder %s125, %s128
      %p134 = scmp.eq.s32.totalorder %s12, 0
      %p135 = por %p133, %p134
      %p136 = scmp.ne.s32.totalorder %s125, %s128
      %p137 = scmp.eq.s32.totalorder %s17, 35
      %p138 = por %p136, %p137
      %p139 = scmp.ne.s32.totalorder %s128, %s129
      %p140 = scmp.eq.s32.totalorder %s17, 0
      %p141 = por %p139, %p140
      %p142 = scmp.ne.s32.totalorder %s128, %s129
      %p143 = scmp.eq.s32.totalorder %s18, 35
      %p144 = por %p142, %p143
      %p146 = scmp.ne.s32.totalorder %s129, %s145
      %p147 = scmp.eq.s32.totalorder %s18, 0
      %p148 = por %p146, %p147
      %p149 = scmp.le.s32.totalorder 1, %s12
      %p150 = scmp.lt.s32.totalorder %s12, 37
      %p151 = pnand %p149, %p150
      %p152 = pneg %p151
      // Predicated region
      $region9: #{_lambda_.12} parent=5 // pred_check
        _
      $region10: #{_lambda_.12} parent=5 // pred_check_branch
        %154 = sbr.rel (%p151) target = $region12
      $region11: #{_lambda_.12} parent=5 // pred_region
        %s155 = ssub.s32 %s12, 1
      $region12: #{_lambda_.12} parent=5 // pred_fallthru
        _
      %p156 = scmp.lt.s32.totalorder %s12, 36
      // Predicated region
      $region13: #{_lambda_.12} parent=5 // pred_check
        %p157 = pneg %p156
      $region14: #{_lambda_.12} parent=5 // pred_check_branch
        %159 = sbr.rel (%p157) target = $region16
      $region15: #{_lambda_.12} parent=5 // pred_region
        // Predicated region
        $region17: #{_lambda_.12} parent=15 // pred_check
          %p160 = pneg %p53
        $region18: #{_lambda_.12} parent=15 // pred_check_branch
          %162 = sbr.rel (%p160) target = $region20
        $region19: #{_lambda_.12} parent=15 // pred_region
          %s163 = sand.u32 %s43, 1
          %s164 = sand.u32 %s43, 1
          %s165 = smul.addr %s164, 64
          %s166 = scalar_lea.vmem [#allocation3], %s165
          %s167 = smul.u32 4, %s19
          %s168 = smul.u32 4, %s21
          %s169 = smul.addr %s167, 36
          %s170 = sadd.s32 %s168, %s169
          %s171 = smul.addr %s170, 4
          %s172 = scalar_lea.vmem %s0, %s171
          // Predicated region
          $region21: #{_lambda_.12} parent=19 // pred_check
            _
          $region22: #{_lambda_.12} parent=19 // pred_check_branch
            %174 = sbr.rel (0) target = $region24
          $region23: #{_lambda_.12} parent=19 // pred_region
            // Predicated region
            $region25: #{_lambda_.12} parent=23 // pred_check
              _
            $region26: #{_lambda_.12} parent=23 // pred_check_branch
              %176 = sbr.rel (0) target = $region28
            $region27: #{_lambda_.12} parent=23 // pred_region
              loop: start=0, step=1, limit=1
              $region29: #{_lambda_.12} parent=27 // loop_pre_header
                _
              $region30: #{_lambda_.12} parent=27 // loop_header
                %s178 = sphi 0, %s182
                %p179 = scmp.ge.s32.totalorder %s178, 1
                %s183 = sphi %s172, %s172
                %s184 = sphi %s166, %s166
              $region31: #{_lambda_.12} parent=27 // loop_header_branch
                %181 = sbr.rel (%p179) target = $region35
              $region32: #{_lambda_.12} parent=27 // loop_body
                %v185 = vld [vmem:[%s183] sm:$0xff]
                %186 = vst [vmem:[%s184] sm:$0xff] %v185
                %v187 = vld [vmem:[%s183 + $0x8] sm:$0xff]
                %188 = vst [vmem:[%s184 + $0x8] sm:$0xff] %v187
                %v189 = vld [vmem:[%s183 + $0x90] sm:$0xff]
                %190 = vst [vmem:[%s184 + $0x10] sm:$0xff] %v189
                %v191 = vld [vmem:[%s183 + $0x98] sm:$0xff]
                %192 = vst [vmem:[%s184 + $0x18] sm:$0xff] %v191
                %v193 = vld [vmem:[%s183 + $0x120] sm:$0xff]
                %194 = vst [vmem:[%s184 + $0x20] sm:$0xff] %v193
                %v195 = vld [vmem:[%s183 + $0x128] sm:$0xff]
                %196 = vst [vmem:[%s184 + $0x28] sm:$0xff] %v195
                %v197 = vld [vmem:[%s183 + $0x1b0] sm:$0xff]
                %198 = vst [vmem:[%s184 + $0x30] sm:$0xff] %v197
                %v199 = vld [vmem:[%s183 + $0x1b8] sm:$0xff]
                %200 = vst [vmem:[%s184 + $0x38] sm:$0xff] %v199
              $region33: #{_lambda_.12} parent=27 // loop_footer
                %s182 = sadd.s32 1, %s178
              $region34: #{_lambda_.12} parent=27 // loop_footer_branch
                %177 = sbr.rel target = $region30
              $region35: #{_lambda_.12} parent=27 // loop_exit
                _
            $region28: #{_lambda_.12} parent=23 // pred_fallthru
              _
            // Predicated region
            $region36: #{_lambda_.12} parent=23 // pred_check
              _
            $region37: #{_lambda_.12} parent=23 // pred_check_branch
              %202 = sbr.rel target = $region39
            $region38: #{_lambda_.12} parent=23 // pred_region
              _
            $region39: #{_lambda_.12} parent=23 // pred_fallthru
              _
          $region24: #{_lambda_.12} parent=19 // pred_fallthru
            _
          %203 = vnop
        $region20: #{_lambda_.12} parent=15 // pred_fallthru
          _
        // Predicated region
        $region40: #{_lambda_.12} parent=15 // pred_check
          %p204 = pneg %p81
        $region41: #{_lambda_.12} parent=15 // pred_check_branch
          %206 = sbr.rel (%p204) target = $region43
        $region42: #{_lambda_.12} parent=15 // pred_region
          %s207 = sand.u32 %s71, 1
          %s208 = scalar_lea.sflag [#allocation5], %s207
          %s209 = sand.u32 %s71, 1
          %s210 = smul.addr %s209, 256
          %s211 = scalar_lea.vmem [#allocation4], %s210
          %s212 = smul.u32 64, %s21
          %214 = vsyncadd %s208, 0
          %s215 = smul.addr %s212, 4
          %s216 = sadd.s32 %s20, %s215
          %s217 = smul.addr %s216, 4
          %s218 = scalar_lea.hbm %s1, %s217
          %s219 = sshll.u32 %s218, 4
          %s220 = int_to_ptr.hbm [resolvable:$true] %s219
          %s221 = sshll.u32 %s211, 4
          %s222 = int_to_ptr.vmem [resolvable:$true] %s221
          %227 = dma.hbm_to_vmem [thread:$0]  %s220, 4096, %s222, %s208, 256, 64, 4
        $region43: #{_lambda_.12} parent=15 // pred_fallthru
          _
        // Predicated region
        $region44: #{_lambda_.12} parent=15 // pred_check
          %p228 = pneg %p107
        $region45: #{_lambda_.12} parent=15 // pred_check_branch
          %230 = sbr.rel (%p228) target = $region47
        $region46: #{_lambda_.12} parent=15 // pred_region
          %p231 = scmp.lt.s32.totalorder %s20, 3
          %s232 = scalar_select %p231, %s20, 3
          %s233 = scalar_lea.vmem %s2, %s232
        $region47: #{_lambda_.12} parent=15 // pred_fallthru
          _
      $region16: #{_lambda_.12} parent=5 // pred_fallthru
        _
      %p234 = scmp.le.s32.totalorder 1, %s12
      %p235 = scmp.lt.s32.totalorder %s12, 37
      %p236 = pnand %p234, %p235
      %p237 = pneg %p236
      // Predicated region
      $region48: #{_lambda_.12} parent=5 // pred_check
        _
      $region49: #{_lambda_.12} parent=5 // pred_check_branch
        %239 = sbr.rel (%p236) target = $region51
      $region50: #{_lambda_.12} parent=5 // pred_region
        %s240 = ssub.s32 %s12, 1
        %s241 = sand.u32 %s46, 1
        %s242 = sand.u32 %s46, 1
        %s243 = smul.addr %s242, 64
        %s244 = scalar_lea.vmem [#allocation3], %s243
        // Predicated region
        $region52: #{_lambda_.12} parent=50 // pred_check
          %p245 = pneg %p59
        $region53: #{_lambda_.12} parent=50 // pred_check_branch
          %247 = sbr.rel (%p245) target = $region55
        $region54: #{_lambda_.12} parent=50 // pred_region
          _
        $region55: #{_lambda_.12} parent=50 // pred_fallthru
          _
        %s248 = sand.u32 %s74, 1
        %s249 = scalar_lea.sflag [#allocation5], %s248
        %s250 = sand.u32 %s74, 1
        %s251 = smul.addr %s250, 256
        %s252 = scalar_lea.vmem [#allocation4], %s251
        // Predicated region
        $region56: #{_lambda_.12} parent=50 // pred_check
          %p253 = pneg %p87
        $region57: #{_lambda_.12} parent=50 // pred_check_branch
          %255 = sbr.rel (%p253) target = $region59
        $region58: #{_lambda_.12} parent=50 // pred_region
          %257 = dma.done %s249, 4096
        $region59: #{_lambda_.12} parent=50 // pred_fallthru
          _
        %s258 = sand.u32 %s46, 1
        %s259 = sand.u32 %s46, 1
        %s260 = smul.addr %s259, 64
        %s261 = scalar_lea.vmem [#allocation3], %s260
        %p262 = pneg %p59
        %p263 = pneg %p56
        %s264 = sand.u32 %s74, 1
        %s265 = scalar_lea.sflag [#allocation5], %s264
        %s266 = sand.u32 %s74, 1
        %s267 = smul.addr %s266, 256
        %s268 = scalar_lea.vmem [#allocation4], %s267
        %p269 = pneg %p87
        %p270 = pneg %p84
        %p271 = scmp.lt.s32.totalorder %s23, 3
        %s272 = scalar_select %p271, %s23, 3
        %s273 = scalar_lea.vmem %s2, %s272
        %p274 = pneg %p113
        %p275 = pneg %p110
        %p276 = pneg %p141
        %p277 = pneg %p138
        %s278 = sand.u32 %s128, 1
        %s279 = sand.u32 %s128, 1
        %s280 = smul.addr %s279, 16
        %s281 = scalar_lea.vmem [#allocation6], %s280
        %s282 = smul.u32 4, %s22
        %s283 = smul.u32 4, %s24
        %s284 = smul.u32 64, %s24
        %p285 = scmp.lt.s32.totalorder %s23, 3
        %s286 = scalar_select %p285, %s23, 3
        %s287 = scalar_lea.vmem %s2, %s286
        %s288 = smul.u32 4, %s22
        %p289 = scmp.eq.s32.totalorder %s24, 0
        // Predicated region
        $region60: #{_lambda_.12} parent=50 // pred_check
          %p290 = pneg %p289
        $region61: #{_lambda_.12} parent=50 // pred_check_branch
          %292 = sbr.rel (%p290) target = $region63
        $region62: #{_lambda_.12} parent=50 // pred_region
          %293 = vst [vmem:[#allocation2] sm:$0xff] 0.0
          %294 = vst [vmem:[#allocation2 + $0x8] sm:$0xff] 0.0
          %295 = vst [vmem:[#allocation2 + $0x10] sm:$0xff] 0.0
          %296 = vst [vmem:[#allocation2 + $0x18] sm:$0xff] 0.0
        $region63: #{_lambda_.12} parent=50 // pred_fallthru
          _
        %v297 = vld [vmem:[#allocation2] sm:$0xff]
        %v298 = vld [vmem:[#allocation2 + $0x8] sm:$0xff]
        %v299 = vld [vmem:[#allocation2 + $0x10] sm:$0xff]
        %v300 = vld [vmem:[#allocation2 + $0x18] sm:$0xff]
        %v301 = vld [vmem:[%s244] sm:$0xff]
        %v302 = vld [vmem:[%s244 + $0x8] sm:$0xff]
        %v303 = vld [vmem:[%s244 + $0x10] sm:$0xff]
        %v304 = vld [vmem:[%s244 + $0x18] sm:$0xff]
        %v305 = vld [vmem:[%s244 + $0x20] sm:$0xff]
        %v306 = vld [vmem:[%s244 + $0x28] sm:$0xff]
        %v307 = vld [vmem:[%s244 + $0x30] sm:$0xff]
        %v308 = vld [vmem:[%s244 + $0x38] sm:$0xff]
        %v309 = vld [vmem:[%s252] sm:$0xf]
        %v310 = vld [vmem:[%s252 + $0x4] sm:$0xf]
        %v311 = vld [vmem:[%s252 + $0x8] sm:$0xf]
        %v312 = vld [vmem:[%s252 + $0xc] sm:$0xf]
        %v313 = vld [vmem:[%s252 + $0x10] sm:$0xf]
        %v314 = vld [vmem:[%s252 + $0x14] sm:$0xf]
        %v315 = vld [vmem:[%s252 + $0x18] sm:$0xf]
        %v316 = vld [vmem:[%s252 + $0x1c] sm:$0xf]
        %v317 = vld [vmem:[%s252 + $0x20] sm:$0xf]
        %v318 = vld [vmem:[%s252 + $0x24] sm:$0xf]
        %v319 = vld [vmem:[%s252 + $0x28] sm:$0xf]
        %v320 = vld [vmem:[%s252 + $0x2c] sm:$0xf]
        %v321 = vld [vmem:[%s252 + $0x30] sm:$0xf]
        %v322 = vld [vmem:[%s252 + $0x34] sm:$0xf]
        %v323 = vld [vmem:[%s252 + $0x38] sm:$0xf]
        %v324 = vld [vmem:[%s252 + $0x3c] sm:$0xf]
        %v325 = vld [vmem:[%s252 + $0x40] sm:$0xf]
        %v326 = vld [vmem:[%s252 + $0x44] sm:$0xf]
        %v327 = vld [vmem:[%s252 + $0x48] sm:$0xf]
        %v328 = vld [vmem:[%s252 + $0x4c] sm:$0xf]
        %v329 = vld [vmem:[%s252 + $0x50] sm:$0xf]
        %v330 = vld [vmem:[%s252 + $0x54] sm:$0xf]
        %v331 = vld [vmem:[%s252 + $0x58] sm:$0xf]
        %v332 = vld [vmem:[%s252 + $0x5c] sm:$0xf]
        %v333 = vld [vmem:[%s252 + $0x60] sm:$0xf]
        %v334 = vld [vmem:[%s252 + $0x64] sm:$0xf]
        %v335 = vld [vmem:[%s252 + $0x68] sm:$0xf]
        %v336 = vld [vmem:[%s252 + $0x6c] sm:$0xf]
        %v337 = vld [vmem:[%s252 + $0x70] sm:$0xf]
        %v338 = vld [vmem:[%s252 + $0x74] sm:$0xf]
        %v339 = vld [vmem:[%s252 + $0x78] sm:$0xf]
        %v340 = vld [vmem:[%s252 + $0x7c] sm:$0xf]
        %v341 = vld [vmem:[%s252 + $0x80] sm:$0xf]
        %v342 = vld [vmem:[%s252 + $0x84] sm:$0xf]
        %v343 = vld [vmem:[%s252 + $0x88] sm:$0xf]
        %v344 = vld [vmem:[%s252 + $0x8c] sm:$0xf]
        %v345 = vld [vmem:[%s252 + $0x90] sm:$0xf]
        %v346 = vld [vmem:[%s252 + $0x94] sm:$0xf]
        %v347 = vld [vmem:[%s252 + $0x98] sm:$0xf]
        %v348 = vld [vmem:[%s252 + $0x9c] sm:$0xf]
        %v349 = vld [vmem:[%s252 + $0xa0] sm:$0xf]
        %v350 = vld [vmem:[%s252 + $0xa4] sm:$0xf]
        %v351 = vld [vmem:[%s252 + $0xa8] sm:$0xf]
        %v352 = vld [vmem:[%s252 + $0xac] sm:$0xf]
        %v353 = vld [vmem:[%s252 + $0xb0] sm:$0xf]
        %v354 = vld [vmem:[%s252 + $0xb4] sm:$0xf]
        %v355 = vld [vmem:[%s252 + $0xb8] sm:$0xf]
        %v356 = vld [vmem:[%s252 + $0xbc] sm:$0xf]
        %v357 = vld [vmem:[%s252 + $0xc0] sm:$0xf]
        %v358 = vld [vmem:[%s252 + $0xc4] sm:$0xf]
        %v359 = vld [vmem:[%s252 + $0xc8] sm:$0xf]
        %v360 = vld [vmem:[%s252 + $0xcc] sm:$0xf]
        %v361 = vld [vmem:[%s252 + $0xd0] sm:$0xf]
        %v362 = vld [vmem:[%s252 + $0xd4] sm:$0xf]
        %v363 = vld [vmem:[%s252 + $0xd8] sm:$0xf]
        %v364 = vld [vmem:[%s252 + $0xdc] sm:$0xf]
        %v365 = vld [vmem:[%s252 + $0xe0] sm:$0xf]
        %v366 = vld [vmem:[%s252 + $0xe4] sm:$0xf]
        %v367 = vld [vmem:[%s252 + $0xe8] sm:$0xf]
        %v368 = vld [vmem:[%s252 + $0xec] sm:$0xf]
        %v369 = vld [vmem:[%s252 + $0xf0] sm:$0xf]
        %v370 = vld [vmem:[%s252 + $0xf4] sm:$0xf]
        %v371 = vld [vmem:[%s252 + $0xf8] sm:$0xf]
        %v372 = vld [vmem:[%s252 + $0xfc] sm:$0xf]
        %v381 = vunpack.c.l.b16 %v301
        %v382 = vunpack.c.h.b16 %v301
        %v383 = vunpack.c.l.b16 %v302
        %v384 = vunpack.c.h.b16 %v302
        %v385 = vunpack.c.l.b16 %v303
        %v386 = vunpack.c.h.b16 %v303
        %v387 = vunpack.c.l.b16 %v304
        %v388 = vunpack.c.h.b16 %v304
        %v389 = vunpack.c.l.b16 %v305
        %v390 = vunpack.c.h.b16 %v305
        %v391 = vunpack.c.l.b16 %v306
        %v392 = vunpack.c.h.b16 %v306
        %v393 = vunpack.c.l.b16 %v307
        %v394 = vunpack.c.h.b16 %v307
        %v395 = vunpack.c.l.b16 %v308
        %v396 = vunpack.c.h.b16 %v308
        %v397 = vpack.c.b16 %v385, %v381
        %v398 = vpack.c.b16 %v386, %v382
        %v399 = vpack.c.b16 %v387, %v383
        %v400 = vpack.c.b16 %v388, %v384
        %v401 = vpack.c.b16 %v393, %v389
        %v402 = vpack.c.b16 %v394, %v390
        %v403 = vpack.c.b16 %v395, %v391
        %v404 = vpack.c.b16 %v396, %v392
        %v477 = vunpack.c.l.b16 %v309
        %v478 = vunpack.c.l.b16 %v310
        %v479 = vunpack.c.l.b16 %v311
        %v480 = vunpack.c.l.b16 %v312
        %v481 = vunpack.c.l.b16 %v313
        %v482 = vunpack.c.l.b16 %v314
        %v483 = vunpack.c.l.b16 %v315
        %v484 = vunpack.c.l.b16 %v316
        %v485 = vunpack.c.l.b16 %v317
        %v486 = vunpack.c.l.b16 %v318
        %v487 = vunpack.c.l.b16 %v319
        %v488 = vunpack.c.l.b16 %v320
        %v489 = vunpack.c.l.b16 %v321
        %v490 = vunpack.c.l.b16 %v322
        %v491 = vunpack.c.l.b16 %v323
        %v492 = vunpack.c.l.b16 %v324
        %v493 = vunpack.c.l.b16 %v325
        %v494 = vunpack.c.l.b16 %v326
        %v495 = vunpack.c.l.b16 %v327
        %v496 = vunpack.c.l.b16 %v328
        %v497 = vunpack.c.l.b16 %v329
        %v498 = vunpack.c.l.b16 %v330
        %v499 = vunpack.c.l.b16 %v331
        %v500 = vunpack.c.l.b16 %v332
        %v501 = vunpack.c.l.b16 %v333
        %v502 = vunpack.c.l.b16 %v334
        %v503 = vunpack.c.l.b16 %v335
        %v504 = vunpack.c.l.b16 %v336
        %v505 = vunpack.c.l.b16 %v337
        %v506 = vunpack.c.l.b16 %v338
        %v507 = vunpack.c.l.b16 %v339
        %v508 = vunpack.c.l.b16 %v340
        %v509 = vunpack.c.l.b16 %v341
        %v510 = vunpack.c.l.b16 %v342
        %v511 = vunpack.c.l.b16 %v343
        %v512 = vunpack.c.l.b16 %v344
        %v513 = vunpack.c.l.b16 %v345
        %v514 = vunpack.c.l.b16 %v346
        %v515 = vunpack.c.l.b16 %v347
        %v516 = vunpack.c.l.b16 %v348
        %v517 = vunpack.c.l.b16 %v349
        %v518 = vunpack.c.l.b16 %v350
        %v519 = vunpack.c.l.b16 %v351
        %v520 = vunpack.c.l.b16 %v352
        %v521 = vunpack.c.l.b16 %v353
        %v522 = vunpack.c.l.b16 %v354
        %v523 = vunpack.c.l.b16 %v355
        %v524 = vunpack.c.l.b16 %v356
        %v525 = vunpack.c.l.b16 %v357
        %v526 = vunpack.c.l.b16 %v358
        %v527 = vunpack.c.l.b16 %v359
        %v528 = vunpack.c.l.b16 %v360
        %v529 = vunpack.c.l.b16 %v361
        %v530 = vunpack.c.l.b16 %v362
        %v531 = vunpack.c.l.b16 %v363
        %v532 = vunpack.c.l.b16 %v364
        %v533 = vunpack.c.l.b16 %v365
        %v534 = vunpack.c.l.b16 %v366
        %v535 = vunpack.c.l.b16 %v367
        %v536 = vunpack.c.l.b16 %v368
        %v537 = vunpack.c.l.b16 %v369
        %v538 = vunpack.c.l.b16 %v370
        %v539 = vunpack.c.l.b16 %v371
        %v540 = vunpack.c.l.b16 %v372
        %v541 = vpack.c.b16 %v478, %v477
        %v542 = vpack.c.b16 %v480, %v479
        %v543 = vpack.c.b16 %v482, %v481
        %v544 = vpack.c.b16 %v484, %v483
        %v545 = vpack.c.b16 %v486, %v485
        %v546 = vpack.c.b16 %v488, %v487
        %v547 = vpack.c.b16 %v490, %v489
        %v548 = vpack.c.b16 %v492, %v491
        %v549 = vpack.c.b16 %v494, %v493
        %v550 = vpack.c.b16 %v496, %v495
        %v551 = vpack.c.b16 %v498, %v497
        %v552 = vpack.c.b16 %v500, %v499
        %v553 = vpack.c.b16 %v502, %v501
        %v554 = vpack.c.b16 %v504, %v503
        %v555 = vpack.c.b16 %v506, %v505
        %v556 = vpack.c.b16 %v508, %v507
        %v557 = vpack.c.b16 %v510, %v509
        %v558 = vpack.c.b16 %v512, %v511
        %v559 = vpack.c.b16 %v514, %v513
        %v560 = vpack.c.b16 %v516, %v515
        %v561 = vpack.c.b16 %v518, %v517
        %v562 = vpack.c.b16 %v520, %v519
        %v563 = vpack.c.b16 %v522, %v521
        %v564 = vpack.c.b16 %v524, %v523
        %v565 = vpack.c.b16 %v526, %v525
        %v566 = vpack.c.b16 %v528, %v527
        %v567 = vpack.c.b16 %v530, %v529
        %v568 = vpack.c.b16 %v532, %v531
        %v569 = vpack.c.b16 %v534, %v533
        %v570 = vpack.c.b16 %v536, %v535
        %v571 = vpack.c.b16 %v538, %v537
        %v572 = vpack.c.b16 %v540, %v539
        %605 = vmatpush.bf16.msra.mxu0 %v548
        %606 = vmatpush.bf16.msra.mxu0 %v547
        %607 = vmatpush.bf16.msra.mxu0 %v546
        %608 = vmatpush.bf16.msra.mxu0 %v545
        %609 = vmatpush.bf16.msra.mxu0 %v544
        %610 = vmatpush.bf16.msra.mxu0 %v543
        %611 = vmatpush.bf16.msra.mxu0 %v542
        %612 = vmatpush.bf16.msra.mxu0 %v541
        %613 = vmatmul.bf16.gmra.mxu0 %v397
        %v614 = vpop.f32.mrf.mxu0
        %v615 = vadd.f32 0.0, %v614
        %v616 = vpop.f32.mrf.mxu0
        %v617 = vadd.f32 0.0, %v616
        %618 = vmatmul.bf16.gmra.mxu0 %v401
        %v619 = vpop.f32.mrf.mxu0
        %v620 = vadd.f32 0.0, %v619
        %v621 = vpop.f32.mrf.mxu0
        %v622 = vadd.f32 0.0, %v621
        %623 = vdwg.mxu0
        %624 = vmatpush.bf16.msra.mxu0 %v556
        %625 = vmatpush.bf16.msra.mxu0 %v555
        %626 = vmatpush.bf16.msra.mxu0 %v554
        %627 = vmatpush.bf16.msra.mxu0 %v553
        %628 = vmatpush.bf16.msra.mxu0 %v552
        %629 = vmatpush.bf16.msra.mxu0 %v551
        %630 = vmatpush.bf16.msra.mxu0 %v550
        %631 = vmatpush.bf16.msra.mxu0 %v549
        %632 = vmatmul.bf16.gmra.mxu0 %v398
        %v633 = vpop.f32.mrf.mxu0
        %v634 = vadd.f32 %v615, %v633
        %v635 = vpop.f32.mrf.mxu0
        %v636 = vadd.f32 %v617, %v635
        %637 = vmatmul.bf16.gmra.mxu0 %v402
        %v638 = vpop.f32.mrf.mxu0
        %v639 = vadd.f32 %v620, %v638
        %v640 = vpop.f32.mrf.mxu0
        %v641 = vadd.f32 %v622, %v640
        %642 = vdwg.mxu0
        %643 = vmatpush.bf16.msra.mxu0 %v564
        %644 = vmatpush.bf16.msra.mxu0 %v563
        %645 = vmatpush.bf16.msra.mxu0 %v562
        %646 = vmatpush.bf16.msra.mxu0 %v561
        %647 = vmatpush.bf16.msra.mxu0 %v560
        %648 = vmatpush.bf16.msra.mxu0 %v559
        %649 = vmatpush.bf16.msra.mxu0 %v558
        %650 = vmatpush.bf16.msra.mxu0 %v557
        %651 = vmatmul.bf16.gmra.mxu0 %v399
        %v652 = vpop.f32.mrf.mxu0
        %v653 = vadd.f32 %v634, %v652
        %v654 = vpop.f32.mrf.mxu0
        %v655 = vadd.f32 %v636, %v654
        %656 = vmatmul.bf16.gmra.mxu0 %v403
        %v657 = vpop.f32.mrf.mxu0
        %v658 = vadd.f32 %v639, %v657
        %v659 = vpop.f32.mrf.mxu0
        %v660 = vadd.f32 %v641, %v659
        %661 = vdwg.mxu0
        %662 = vmatpush.bf16.msra.mxu0 %v572
        %663 = vmatpush.bf16.msra.mxu0 %v571
        %664 = vmatpush.bf16.msra.mxu0 %v570
        %665 = vmatpush.bf16.msra.mxu0 %v569
        %666 = vmatpush.bf16.msra.mxu0 %v568
        %667 = vmatpush.bf16.msra.mxu0 %v567
        %668 = vmatpush.bf16.msra.mxu0 %v566
        %669 = vmatpush.bf16.msra.mxu0 %v565
        %670 = vmatmul.bf16.gmra.mxu0 %v400
        %v671 = vpop.f32.mrf.mxu0
        %v672 = vadd.f32 %v653, %v671
        %v673 = vpop.f32.mrf.mxu0
        %v674 = vadd.f32 %v655, %v673
        %675 = vmatmul.bf16.gmra.mxu0 %v404
        %v676 = vpop.f32.mrf.mxu0
        %v677 = vadd.f32 %v658, %v676
        %v678 = vpop.f32.mrf.mxu0
        %v679 = vadd.f32 %v660, %v678
        %680 = vdwg.mxu0
        %v681 = vadd.f32 %v297, %v672
        %v682 = vadd.f32 %v298, %v674
        %v683 = vadd.f32 %v299, %v677
        %v684 = vadd.f32 %v300, %v679
        %685 = vst [vmem:[#allocation2] sm:$0xff] %v681
        %686 = vst [vmem:[#allocation2 + $0x8] sm:$0xff] %v682
        %687 = vst [vmem:[#allocation2 + $0x10] sm:$0xff] %v683
        %688 = vst [vmem:[#allocation2 + $0x18] sm:$0xff] %v684
        %p689 = scmp.eq.s32.totalorder %s24, 8
        // Predicated region
        $region64: #{_lambda_.12} parent=50 // pred_check
          %p690 = pneg %p689
        $region65: #{_lambda_.12} parent=50 // pred_check_branch
          %692 = sbr.rel (%p690) target = $region67
        $region66: #{_lambda_.12} parent=50 // pred_region
          %v693 = vld [vmem:[#allocation2] sm:$0xff]
          %v694 = vld [vmem:[#allocation2 + $0x8] sm:$0xff]
          %v695 = vld [vmem:[#allocation2 + $0x10] sm:$0xff]
          %v696 = vld [vmem:[#allocation2 + $0x18] sm:$0xff]
          %v697 = vld [vmem:[%s287] sm:$0x1]
          %v699 = vperm.slane %v697, 0
          %v701 = vadd.f32 %v693, %v699
          %v702 = vadd.f32 %v694, %v699
          %v703 = vadd.f32 %v695, %v699
          %v704 = vadd.f32 %v696, %v699
          %vm705 = vcmp.ge.f32.partialorder %v701, 0.0
          %vm706 = vcmp.ge.f32.partialorder %v702, 0.0
          %vm707 = vcmp.ge.f32.partialorder %v703, 0.0
          %vm708 = vcmp.ge.f32.partialorder %v704, 0.0
          %v709 = vmul.f32 %v701, 0.2
          %v710 = vmul.f32 %v702, 0.2
          %v711 = vmul.f32 %v703, 0.2
          %v712 = vmul.f32 %v704, 0.2
          %v713 = vsel %vm705, %v701, %v709
          %v714 = vsel %vm706, %v702, %v710
          %v715 = vsel %vm707, %v703, %v711
          %v716 = vsel %vm708, %v704, %v712
          %v717 = vmul.f32 %v713, 1.4142135
          %v718 = vmul.f32 %v714, 1.4142135
          %v719 = vmul.f32 %v715, 1.4142135
          %v720 = vmul.f32 %v716, 1.4142135
          %v721 = vpack.c.bf16 %v717, %v717
          %v722 = vpack.c.bf16 %v718, %v718
          %v723 = vpack.c.bf16 %v719, %v719
          %v724 = vpack.c.bf16 %v720, %v720
          %725 = vst [vmem:[%s281] sm:$0xf] %v721
          %726 = vst [vmem:[%s281 + $0x4] sm:$0xf] %v722
          %727 = vst [vmem:[%s281 + $0x8] sm:$0xf] %v723
          %728 = vst [vmem:[%s281 + $0xc] sm:$0xf] %v724
        $region67: #{_lambda_.12} parent=50 // pred_fallthru
          _
        %s729 = sand.u32 %s128, 1
        %s730 = sand.u32 %s128, 1
        %s731 = smul.addr %s730, 16
        %s732 = scalar_lea.vmem [#allocation6], %s731
        // Predicated region
        $region68: #{_lambda_.12} parent=50 // pred_check
          %p733 = pneg %p138
        $region69: #{_lambda_.12} parent=50 // pred_check_branch
          %735 = sbr.rel (%p733) target = $region71
        $region70: #{_lambda_.12} parent=50 // pred_region
          %s736 = smul.u32 4, %s22
          %s737 = smul.addr %s736, 4
          %s738 = sadd.s32 %s23, %s737
          %s739 = smul.addr %s738, 4
          %s740 = scalar_lea.vmem %s3, %s739
          // Predicated region
          $region72: #{_lambda_.12} parent=70 // pred_check
            _
          $region73: #{_lambda_.12} parent=70 // pred_check_branch
            %742 = sbr.rel (0) target = $region75
          $region74: #{_lambda_.12} parent=70 // pred_region
            // Predicated region
            $region76: #{_lambda_.12} parent=74 // pred_check
              _
            $region77: #{_lambda_.12} parent=74 // pred_check_branch
              %744 = sbr.rel target = $region79
            $region78: #{_lambda_.12} parent=74 // pred_region
              // Predicated region
              $region91: #{_lambda_.12} parent=78 // pred_check
                _
              $region92: #{_lambda_.12} parent=78 // pred_check_branch
                %766 = sbr.rel (0) target = $region94
              $region93: #{_lambda_.12} parent=78 // pred_region
                loop: start=0, step=1, limit=1
                $region95: #{_lambda_.12} parent=93 // loop_pre_header
                  _
                $region96: #{_lambda_.12} parent=93 // loop_header
                  %s768 = sphi 0, %s772
                  %p769 = scmp.ge.s32.totalorder %s768, 1
                  %s773 = sphi %s732, %s732
                  %s774 = sphi %s740, %s740
                $region97: #{_lambda_.12} parent=93 // loop_header_branch
                  %771 = sbr.rel (%p769) target = $region101
                $region98: #{_lambda_.12} parent=93 // loop_body
                  _
                $region99: #{_lambda_.12} parent=93 // loop_footer
                  %s772 = sadd.s32 1, %s768
                $region100: #{_lambda_.12} parent=93 // loop_footer_branch
                  %767 = sbr.rel target = $region96
                $region101: #{_lambda_.12} parent=93 // loop_exit
                  _
                %s776 = ssub.s32 16, 1
                loop: start=0, step=1, limit=1
                $region102: #{_lambda_.12} parent=93 // loop_pre_header
                  _
                $region103: #{_lambda_.12} parent=93 // loop_header
                  %s778 = sphi 0, %s782
                  %p779 = scmp.ge.s32.totalorder %s778, 1
                  %s783 = sphi %s732, %s732
                  %s784 = sphi %s740, %s740
                $region104: #{_lambda_.12} parent=93 // loop_header_branch
                  %781 = sbr.rel (%p779) target = $region108
                $region105: #{_lambda_.12} parent=93 // loop_body
                  %v785 = vld [vmem:[%s783] sm:%s776]
                  %786 = vst [vmem:[%s784] sm:%s776] %v785
                  %v787 = vld [vmem:[%s783 + $0x4] sm:%s776]
                  %788 = vst [vmem:[%s784 + $0x10] sm:%s776] %v787
                  %v789 = vld [vmem:[%s783 + $0x8] sm:%s776]
                  %790 = vst [vmem:[%s784 + $0x20] sm:%s776] %v789
                  %v791 = vld [vmem:[%s783 + $0xc] sm:%s776]
                  %792 = vst [vmem:[%s784 + $0x30] sm:%s776] %v791
                $region106: #{_lambda_.12} parent=93 // loop_footer
                  %s782 = sadd.s32 1, %s778
                $region107: #{_lambda_.12} parent=93 // loop_footer_branch
                  %777 = sbr.rel target = $region103
                $region108: #{_lambda_.12} parent=93 // loop_exit
                  _
              $region94: #{_lambda_.12} parent=78 // pred_fallthru
                _
            $region79: #{_lambda_.12} parent=74 // pred_fallthru
              _
            // Predicated region
            $region80: #{_lambda_.12} parent=74 // pred_check
              _
            $region81: #{_lambda_.12} parent=74 // pred_check_branch
              %746 = sbr.rel (0) target = $region83
            $region82: #{_lambda_.12} parent=74 // pred_region
              %s748 = ssub.s32 16, 1
              loop: start=0, step=1, limit=1
              $region84: #{_lambda_.12} parent=82 // loop_pre_header
                _
              $region85: #{_lambda_.12} parent=82 // loop_header
                %s750 = sphi 0, %s754
                %p751 = scmp.ge.s32.totalorder %s750, 1
                %s755 = sphi %s732, %s732
                %s756 = sphi %s740, %s740
              $region86: #{_lambda_.12} parent=82 // loop_header_branch
                %753 = sbr.rel (%p751) target = $region90
              $region87: #{_lambda_.12} parent=82 // loop_body
                %v757 = vld [vmem:[%s755] sm:%s748]
                %758 = vst [vmem:[%s756] sm:%s748] %v757
                %v759 = vld [vmem:[%s755 + $0x4] sm:%s748]
                %760 = vst [vmem:[%s756 + $0x10] sm:%s748] %v759
                %v761 = vld [vmem:[%s755 + $0x8] sm:%s748]
                %762 = vst [vmem:[%s756 + $0x20] sm:%s748] %v761
                %v763 = vld [vmem:[%s755 + $0xc] sm:%s748]
                %764 = vst [vmem:[%s756 + $0x30] sm:%s748] %v763
              $region88: #{_lambda_.12} parent=82 // loop_footer
                %s754 = sadd.s32 1, %s750
              $region89: #{_lambda_.12} parent=82 // loop_footer_branch
                %749 = sbr.rel target = $region85
              $region90: #{_lambda_.12} parent=82 // loop_exit
                _
            $region83: #{_lambda_.12} parent=74 // pred_fallthru
              _
          $region75: #{_lambda_.12} parent=70 // pred_fallthru
            _
          %793 = vnop
        $region71: #{_lambda_.12} parent=50 // pred_fallthru
          _
      $region51: #{_lambda_.12} parent=5 // pred_fallthru
        _
      %p794 = scmp.le.s32.totalorder 2, %s12
      // Predicated region
      $region109: #{_lambda_.12} parent=5 // pred_check
        %p795 = pneg %p794
      $region110: #{_lambda_.12} parent=5 // pred_check_branch
        %797 = sbr.rel (%p795) target = $region112
      $region111: #{_lambda_.12} parent=5 // pred_region
        %s798 = ssub.s32 %s12, 2
        // Predicated region
        $region113: #{_lambda_.12} parent=111 // pred_check
          %p799 = pneg %p144
        $region114: #{_lambda_.12} parent=111 // pred_check_branch
          %801 = sbr.rel (%p799) target = $region116
        $region115: #{_lambda_.12} parent=111 // pred_region
          %s802 = sand.u32 %s129, 1
          %s803 = sand.u32 %s129, 1
          %s804 = smul.addr %s803, 16
          %s805 = scalar_lea.vmem [#allocation6], %s804
        $region116: #{_lambda_.12} parent=111 // pred_fallthru
          _
      $region112: #{_lambda_.12} parent=5 // pred_fallthru
        _
    $region6: #{_lambda_.12} parent=1 // loop_footer
      %s16 = sadd.s32 1, %s12
    $region7: #{_lambda_.12} parent=1 // loop_footer_branch
      %11 = sbr.rel target = $region3
    $region8: #{_lambda_.12} parent=1 // loop_exit
      _
    %806 = vsyncpa [#allocation5], 1
    %s807 = scalar_lea.sflag [#allocation5], 1
    %808 = vsyncpa %s807, 1

// kernel: _lambda_.13
$region0: #{_lambda_.13}
  #allocation0 [shape = 'u32[]', space=smem, size = 0x4, offset = 0x4, fixed_abs, tag = 'smem constant byte address 0x4 - core index']
  #allocation1 [shape = 'u32[72,128]{1,0:T(1,128)}', space=vmem, size = 0x9000, scoped, tag = 'internal scratch']
  %s0 = inlined_call_operand.vmem [shape: bf16[2,10,10,512], index: 0, kind: input, shape index: {}]
  %s1 = inlined_call_operand.vmem [shape: bf16[2,7,7,512], index: 1, kind: output, shape index: {}]
  %s2 = sld [smem:[#allocation0]]
  $region115: #{_lambda_.13} parent=0
    _
  %s4 = ssub.s32 1, %s2
  %s5 = scalar_select 0, %s4, %s2
  $region1: #{_lambda_.13} parent=0
    #allocation2 [shape = 'u8[81920]{0}', space=vmem, size = 0x14000, scoped, tag = 'input window, operand 0']
    #allocation3 [shape = 'u8[28672]{0}', space=vmem, size = 0x7000, scoped, tag = 'output window, operand 0']
    loop: start=0, step=1, limit=10
    $region2: #{_lambda_.13} parent=1 // loop_pre_header
      _
    $region3: #{_lambda_.13} parent=1 // loop_header
      %s7 = sphi 0, %s11
      %p8 = scmp.ge.s32.totalorder %s7, 10
      %s14 = sphi 0, %s26
      %s15 = sphi 0, %s22
      %s16 = sphi 0, %s14
      %s17 = sphi 0, %s15
      %s18 = sphi 0, %s16
      %s19 = sphi 0, %s17
      %s31 = sphi 0, %s33
      %s34 = sphi 0, %s31
      %s35 = sphi 0, %s34
      %s51 = sphi 0, %s35
      %s59 = sphi 0, %s61
      %s62 = sphi 0, %s59
      %s63 = sphi 0, %s62
      %s79 = sphi 0, %s63
    $region4: #{_lambda_.13} parent=1 // loop_header_branch
      %10 = sbr.rel (%p8) target = $region8
    $region5: #{_lambda_.13} parent=1 // loop_body
      %s12 = ssub.s32 %s7, 1
      %s13 = ssub.s32 %s7, 2
      %s20 = sadd.s32 1, %s15
      %p21 = scmp.ge.s32.totalorder %s20, 4
      %s22 = scalar_select %p21, 0, %s20
      %s23 = sadd.s32 1, %s14
      %s24 = scalar_select %p21, %s23, %s14
      %p25 = scmp.ge.s32.totalorder %s24, 2
      %s26 = scalar_select %p25, 0, %s24
      %s27 = ssub.s32 %s14, %s26
      %s28 = ssub.s32 %s15, %s22
      %s29 = sor.u32 %s27, %s28
      %p30 = scmp.eq.s32.totalorder %s29, 0
      %s32 = sadd.s32 %s31, 1
      %s33 = scalar_select %p30, %s31, %s32
      %p36 = pneg %p30
      %p37 = scmp.eq.s32.totalorder %s7, 7
      %p38 = por %p36, %p37
      %p39 = scmp.ne.s32.totalorder %s31, %s34
      %p40 = scmp.eq.s32.totalorder %s7, 0
      %p41 = por %p39, %p40
      %p42 = scmp.ne.s32.totalorder %s31, %s34
      %p43 = scmp.eq.s32.totalorder %s12, 7
      %p44 = por %p42, %p43
      %p45 = scmp.ne.s32.totalorder %s34, %s35
      %p46 = scmp.eq.s32.totalorder %s12, 0
      %p47 = por %p45, %p46
      %p48 = scmp.ne.s32.totalorder %s34, %s35
      %p49 = scmp.eq.s32.totalorder %s13, 7
      %p50 = por %p48, %p49
      %p52 = scmp.ne.s32.totalorder %s35, %s51
      %p53 = scmp.eq.s32.totalorder %s13, 0
      %p54 = por %p52, %p53
      %s55 = ssub.s32 %s14, %s26
      %s56 = ssub.s32 %s15, %s22
      %s57 = sor.u32 %s55, %s56
      %p58 = scmp.eq.s32.totalorder %s57, 0
      %s60 = sadd.s32 %s59, 1
      %s61 = scalar_select %p58, %s59, %s60
      %p64 = pneg %p58
      %p65 = scmp.eq.s32.totalorder %s7, 7
      %p66 = por %p64, %p65
      %p67 = scmp.ne.s32.totalorder %s59, %s62
      %p68 = scmp.eq.s32.totalorder %s7, 0
      %p69 = por %p67, %p68
      %p70 = scmp.ne.s32.totalorder %s59, %s62
      %p71 = scmp.eq.s32.totalorder %s12, 7
      %p72 = por %p70, %p71
      %p73 = scmp.ne.s32.totalorder %s62, %s63
      %p74 = scmp.eq.s32.totalorder %s12, 0
      %p75 = por %p73, %p74
      %p76 = scmp.ne.s32.totalorder %s62, %s63
      %p77 = scmp.eq.s32.totalorder %s13, 7
      %p78 = por %p76, %p77
      %p80 = scmp.ne.s32.totalorder %s63, %s79
      %p81 = scmp.eq.s32.totalorder %s13, 0
      %p82 = por %p80, %p81
      %p83 = scmp.le.s32.totalorder 1, %s7
      %p84 = scmp.lt.s32.totalorder %s7, 9
      %p85 = pnand %p83, %p84
      %p86 = pneg %p85
      // Predicated region
      $region9: #{_lambda_.13} parent=5 // pred_check
        _
      $region10: #{_lambda_.13} parent=5 // pred_check_branch
        %88 = sbr.rel (%p85) target = $region12
      $region11: #{_lambda_.13} parent=5 // pred_region
        %s89 = ssub.s32 %s7, 1
      $region12: #{_lambda_.13} parent=5 // pred_fallthru
        _
      %p90 = scmp.lt.s32.totalorder %s7, 8
      // Predicated region
      $region13: #{_lambda_.13} parent=5 // pred_check
        %p91 = pneg %p90
      $region14: #{_lambda_.13} parent=5 // pred_check_branch
        %93 = sbr.rel (%p91) target = $region16
      $region15: #{_lambda_.13} parent=5 // pred_region
        // Predicated region
        $region17: #{_lambda_.13} parent=15 // pred_check
          %p94 = pneg %p41
        $region18: #{_lambda_.13} parent=15 // pred_check_branch
          %96 = sbr.rel (%p94) target = $region20
        $region19: #{_lambda_.13} parent=15 // pred_region
          %s97 = sand.u32 %s31, 1
          %s98 = sand.u32 %s31, 1
          %s99 = smul.addr %s98, 80
          %s100 = scalar_lea.vmem [#allocation2], %s99
          %s101 = smul.addr %s14, 80
          %s102 = sadd.s32 %s15, %s101
          %s103 = smul.addr %s102, 4
          %s104 = scalar_lea.vmem %s0, %s103
          // Predicated region
          $region21: #{_lambda_.13} parent=19 // pred_check
            _
          $region22: #{_lambda_.13} parent=19 // pred_check_branch
            %106 = sbr.rel (0) target = $region24
          $region23: #{_lambda_.13} parent=19 // pred_region
            // Predicated region
            $region25: #{_lambda_.13} parent=23 // pred_check
              _
            $region26: #{_lambda_.13} parent=23 // pred_check_branch
              %108 = sbr.rel target = $region28
            $region27: #{_lambda_.13} parent=23 // pred_region
              // Predicated region
              $region40: #{_lambda_.13} parent=27 // pred_check
                _
              $region41: #{_lambda_.13} parent=27 // pred_check_branch
                %162 = sbr.rel (0) target = $region43
              $region42: #{_lambda_.13} parent=27 // pred_region
                loop: start=0, step=1, limit=1
                $region44: #{_lambda_.13} parent=42 // loop_pre_header
                  _
                $region45: #{_lambda_.13} parent=42 // loop_header
                  %s164 = sphi 0, %s168
                  %p165 = scmp.ge.s32.totalorder %s164, 1
                  %s169 = sphi %s104, %s104
                  %s170 = sphi %s100, %s100
                $region46: #{_lambda_.13} parent=42 // loop_header_branch
                  %167 = sbr.rel (%p165) target = $region50
                $region47: #{_lambda_.13} parent=42 // loop_body
                  _
                $region48: #{_lambda_.13} parent=42 // loop_footer
                  %s168 = sadd.s32 1, %s164
                $region49: #{_lambda_.13} parent=42 // loop_footer_branch
                  %163 = sbr.rel target = $region45
                $region50: #{_lambda_.13} parent=42 // loop_exit
                  _
                %s172 = ssub.s32 16, 1
                loop: start=0, step=1, limit=1
                $region51: #{_lambda_.13} parent=42 // loop_pre_header
                  _
                $region52: #{_lambda_.13} parent=42 // loop_header
                  %s174 = sphi 0, %s178
                  %p175 = scmp.ge.s32.totalorder %s174, 1
                  %s179 = sphi %s104, %s104
                  %s180 = sphi %s100, %s100
                $region53: #{_lambda_.13} parent=42 // loop_header_branch
                  %177 = sbr.rel (%p175) target = $region57
                $region54: #{_lambda_.13} parent=42 // loop_body
                  %v181 = vld [vmem:[%s179] sm:%s172]
                  %182 = vst [vmem:[%s180] sm:%s172] %v181
                  %v183 = vld [vmem:[%s179 + $0x10] sm:%s172]
                  %184 = vst [vmem:[%s180 + $0x4] sm:%s172] %v183
                  %v185 = vld [vmem:[%s179 + $0x20] sm:%s172]
                  %186 = vst [vmem:[%s180 + $0x8] sm:%s172] %v185
                  %v187 = vld [vmem:[%s179 + $0x30] sm:%s172]
                  %188 = vst [vmem:[%s180 + $0xc] sm:%s172] %v187
                  %v189 = vld [vmem:[%s179 + $0x40] sm:%s172]
                  %190 = vst [vmem:[%s180 + $0x10] sm:%s172] %v189
                  %v191 = vld [vmem:[%s179 + $0x50] sm:%s172]
                  %192 = vst [vmem:[%s180 + $0x14] sm:%s172] %v191
                  %v193 = vld [vmem:[%s179 + $0x60] sm:%s172]
                  %194 = vst [vmem:[%s180 + $0x18] sm:%s172] %v193
                  %v195 = vld [vmem:[%s179 + $0x70] sm:%s172]
                  %196 = vst [vmem:[%s180 + $0x1c] sm:%s172] %v195
                  %v197 = vld [vmem:[%s179 + $0x80] sm:%s172]
                  %198 = vst [vmem:[%s180 + $0x20] sm:%s172] %v197
                  %v199 = vld [vmem:[%s179 + $0x90] sm:%s172]
                  %200 = vst [vmem:[%s180 + $0x24] sm:%s172] %v199
                  %v201 = vld [vmem:[%s179 + $0xa0] sm:%s172]
                  %202 = vst [vmem:[%s180 + $0x28] sm:%s172] %v201
                  %v203 = vld [vmem:[%s179 + $0xb0] sm:%s172]
                  %204 = vst [vmem:[%s180 + $0x2c] sm:%s172] %v203
                  %v205 = vld [vmem:[%s179 + $0xc0] sm:%s172]
                  %206 = vst [vmem:[%s180 + $0x30] sm:%s172] %v205
                  %v207 = vld [vmem:[%s179 + $0xd0] sm:%s172]
                  %208 = vst [vmem:[%s180 + $0x34] sm:%s172] %v207
                  %v209 = vld [vmem:[%s179 + $0xe0] sm:%s172]
                  %210 = vst [vmem:[%s180 + $0x38] sm:%s172] %v209
                  %v211 = vld [vmem:[%s179 + $0xf0] sm:%s172]
                  %212 = vst [vmem:[%s180 + $0x3c] sm:%s172] %v211
                  %v213 = vld [vmem:[%s179 + $0x100] sm:%s172]
                  %214 = vst [vmem:[%s180 + $0x40] sm:%s172] %v213
                  %v215 = vld [vmem:[%s179 + $0x110] sm:%s172]
                  %216 = vst [vmem:[%s180 + $0x44] sm:%s172] %v215
                  %v217 = vld [vmem:[%s179 + $0x120] sm:%s172]
                  %218 = vst [vmem:[%s180 + $0x48] sm:%s172] %v217
                  %v219 = vld [vmem:[%s179 + $0x130] sm:%s172]
                  %220 = vst [vmem:[%s180 + $0x4c] sm:%s172] %v219
                $region55: #{_lambda_.13} parent=42 // loop_footer
                  %s178 = sadd.s32 1, %s174
                $region56: #{_lambda_.13} parent=42 // loop_footer_branch
                  %173 = sbr.rel target = $region52
                $region57: #{_lambda_.13} parent=42 // loop_exit
                  _
              $region43: #{_lambda_.13} parent=27 // pred_fallthru
                _
            $region28: #{_lambda_.13} parent=23 // pred_fallthru
              _
            // Predicated region
            $region29: #{_lambda_.13} parent=23 // pred_check
              _
            $region30: #{_lambda_.13} parent=23 // pred_check_branch
              %110 = sbr.rel (0) target = $region32
            $region31: #{_lambda_.13} parent=23 // pred_region
              %s112 = ssub.s32 16, 1
              loop: start=0, step=1, limit=1
              $region33: #{_lambda_.13} parent=31 // loop_pre_header
                _
              $region34: #{_lambda_.13} parent=31 // loop_header
                %s114 = sphi 0, %s118
                %p115 = scmp.ge.s32.totalorder %s114, 1
                %s119 = sphi %s104, %s104
                %s120 = sphi %s100, %s100
              $region35: #{_lambda_.13} parent=31 // loop_header_branch
                %117 = sbr.rel (%p115) target = $region39
              $region36: #{_lambda_.13} parent=31 // loop_body
                %v121 = vld [vmem:[%s119] sm:%s112]
                %122 = vst [vmem:[%s120] sm:%s112] %v121
                %v123 = vld [vmem:[%s119 + $0x10] sm:%s112]
                %124 = vst [vmem:[%s120 + $0x4] sm:%s112] %v123
                %v125 = vld [vmem:[%s119 + $0x20] sm:%s112]
                %126 = vst [vmem:[%s120 + $0x8] sm:%s112] %v125
                %v127 = vld [vmem:[%s119 + $0x30] sm:%s112]
                %128 = vst [vmem:[%s120 + $0xc] sm:%s112] %v127
                %v129 = vld [vmem:[%s119 + $0x40] sm:%s112]
                %130 = vst [vmem:[%s120 + $0x10] sm:%s112] %v129
                %v131 = vld [vmem:[%s119 + $0x50] sm:%s112]
                %132 = vst [vmem:[%s120 + $0x14] sm:%s112] %v131
                %v133 = vld [vmem:[%s119 + $0x60] sm:%s112]
                %134 = vst [vmem:[%s120 + $0x18] sm:%s112] %v133
                %v135 = vld [vmem:[%s119 + $0x70] sm:%s112]
                %136 = vst [vmem:[%s120 + $0x1c] sm:%s112] %v135
                %v137 = vld [vmem:[%s119 + $0x80] sm:%s112]
                %138 = vst [vmem:[%s120 + $0x20] sm:%s112] %v137
                %v139 = vld [vmem:[%s119 + $0x90] sm:%s112]
                %140 = vst [vmem:[%s120 + $0x24] sm:%s112] %v139
                %v141 = vld [vmem:[%s119 + $0xa0] sm:%s112]
                %142 = vst [vmem:[%s120 + $0x28] sm:%s112] %v141
                %v143 = vld [vmem:[%s119 + $0xb0] sm:%s112]
                %144 = vst [vmem:[%s120 + $0x2c] sm:%s112] %v143
                %v145 = vld [vmem:[%s119 + $0xc0] sm:%s112]
                %146 = vst [vmem:[%s120 + $0x30] sm:%s112] %v145
                %v147 = vld [vmem:[%s119 + $0xd0] sm:%s112]
                %148 = vst [vmem:[%s120 + $0x34] sm:%s112] %v147
                %v149 = vld [vmem:[%s119 + $0xe0] sm:%s112]
                %150 = vst [vmem:[%s120 + $0x38] sm:%s112] %v149
                %v151 = vld [vmem:[%s119 + $0xf0] sm:%s112]
                %152 = vst [vmem:[%s120 + $0x3c] sm:%s112] %v151
                %v153 = vld [vmem:[%s119 + $0x100] sm:%s112]
                %154 = vst [vmem:[%s120 + $0x40] sm:%s112] %v153
                %v155 = vld [vmem:[%s119 + $0x110] sm:%s112]
                %156 = vst [vmem:[%s120 + $0x44] sm:%s112] %v155
                %v157 = vld [vmem:[%s119 + $0x120] sm:%s112]
                %158 = vst [vmem:[%s120 + $0x48] sm:%s112] %v157
                %v159 = vld [vmem:[%s119 + $0x130] sm:%s112]
                %160 = vst [vmem:[%s120 + $0x4c] sm:%s112] %v159
              $region37: #{_lambda_.13} parent=31 // loop_footer
                %s118 = sadd.s32 1, %s114
              $region38: #{_lambda_.13} parent=31 // loop_footer_branch
                %113 = sbr.rel target = $region34
              $region39: #{_lambda_.13} parent=31 // loop_exit
                _
            $region32: #{_lambda_.13} parent=23 // pred_fallthru
              _
          $region24: #{_lambda_.13} parent=19 // pred_fallthru
            _
          %221 = vnop
        $region20: #{_lambda_.13} parent=15 // pred_fallthru
          _
      $region16: #{_lambda_.13} parent=5 // pred_fallthru
        _
      %p222 = scmp.le.s32.totalorder 1, %s7
      %p223 = scmp.lt.s32.totalorder %s7, 9
      %p224 = pnand %p222, %p223
      %p225 = pneg %p224
      // Predicated region
      $region58: #{_lambda_.13} parent=5 // pred_check
        _
      $region59: #{_lambda_.13} parent=5 // pred_check_branch
        %227 = sbr.rel (%p224) target = $region61
      $region60: #{_lambda_.13} parent=5 // pred_region
        %s228 = ssub.s32 %s7, 1
        %s229 = sand.u32 %s34, 1
        %s230 = sand.u32 %s34, 1
        %s231 = smul.addr %s230, 80
        %s232 = scalar_lea.vmem [#allocation2], %s231
        // Predicated region
        $region62: #{_lambda_.13} parent=60 // pred_check
          %p233 = pneg %p47
        $region63: #{_lambda_.13} parent=60 // pred_check_branch
          %235 = sbr.rel (%p233) target = $region65
        $region64: #{_lambda_.13} parent=60 // pred_region
          _
        $region65: #{_lambda_.13} parent=60 // pred_fallthru
          _
        %s236 = sand.u32 %s34, 1
        %s237 = sand.u32 %s34, 1
        %s238 = smul.addr %s237, 80
        %s239 = scalar_lea.vmem [#allocation2], %s238
        %p240 = pneg %p47
        %p241 = pneg %p44
        %p242 = pneg %p75
        %p243 = pneg %p72
        %s244 = sand.u32 %s62, 1
        %s245 = sand.u32 %s62, 1
        %s246 = smul.addr %s245, 28
        %s247 = scalar_lea.vmem [#allocation3], %s246
        %v248 = vld [vmem:[%s232] sm:$0xf]
        %v249 = vld [vmem:[%s232 + $0x4] sm:$0x1]
        %v250 = vld [vmem:[%s232 + $0x8] sm:$0xf]
        %v251 = vld [vmem:[%s232 + $0xc] sm:$0x1]
        %v252 = vld [vmem:[%s232 + $0x10] sm:$0xf]
        %v253 = vld [vmem:[%s232 + $0x14] sm:$0x1]
        %v254 = vld [vmem:[%s232 + $0x18] sm:$0xf]
        %v255 = vld [vmem:[%s232 + $0x1c] sm:$0x1]
        %v256 = vld [vmem:[%s232 + $0x20] sm:$0xf]
        %v257 = vld [vmem:[%s232 + $0x24] sm:$0x1]
        %v258 = vld [vmem:[%s232 + $0x28] sm:$0xf]
        %v259 = vld [vmem:[%s232 + $0x2c] sm:$0x1]
        %v260 = vld [vmem:[%s232 + $0x30] sm:$0xf]
        %v261 = vld [vmem:[%s232 + $0x34] sm:$0x1]
        %v262 = vld [vmem:[%s232 + $0x38] sm:$0xf]
        %v263 = vld [vmem:[%s232 + $0x3c] sm:$0x1]
        %v264 = vld [vmem:[%s232 + $0x40] sm:$0xf]
        %v265 = vld [vmem:[%s232 + $0x44] sm:$0x1]
        %v266 = vld [vmem:[%s232 + $0x48] sm:$0xf]
        %v267 = vld [vmem:[%s232 + $0x4c] sm:$0x1]
        %v268 = vunpack.c.l.bf16 %v248
        %v269 = vunpack.c.l.bf16 %v249
        %v270 = vunpack.c.l.bf16 %v250
        %v271 = vunpack.c.l.bf16 %v251
        %v272 = vunpack.c.l.bf16 %v252
        %v273 = vunpack.c.l.bf16 %v253
        %v274 = vunpack.c.l.bf16 %v254
        %v275 = vunpack.c.l.bf16 %v255
        %v276 = vunpack.c.l.bf16 %v256
        %v277 = vunpack.c.l.bf16 %v257
        %v278 = vunpack.c.l.bf16 %v258
        %v279 = vunpack.c.l.bf16 %v259
        %v280 = vunpack.c.l.bf16 %v260
        %v281 = vunpack.c.l.bf16 %v261
        %v282 = vunpack.c.l.bf16 %v262
        %v283 = vunpack.c.l.bf16 %v263
        %v284 = vunpack.c.l.bf16 %v264
        %v285 = vunpack.c.l.bf16 %v265
        %v286 = vunpack.c.l.bf16 %v266
        %v287 = vunpack.c.l.bf16 %v267
        %v288 = vmul.f32 %v268, 0.125
        %v289 = vmul.f32 %v269, 0.125
        %v290 = vmul.f32 %v270, 0.125
        %v291 = vmul.f32 %v271, 0.125
        %v292 = vmul.f32 %v272, 0.125
        %v293 = vmul.f32 %v273, 0.125
        %v294 = vmul.f32 %v274, 0.125
        %v295 = vmul.f32 %v275, 0.125
        %v296 = vmul.f32 %v276, 0.125
        %v297 = vmul.f32 %v277, 0.125
        %v298 = vmul.f32 %v278, 0.125
        %v299 = vmul.f32 %v279, 0.125
        %v300 = vmul.f32 %v280, 0.125
        %v301 = vmul.f32 %v281, 0.125
        %v302 = vmul.f32 %v270, 0.375
        %v303 = vmul.f32 %v271, 0.375
        %v304 = vmul.f32 %v272, 0.375
        %v305 = vmul.f32 %v273, 0.375
        %v306 = vmul.f32 %v274, 0.375
        %v307 = vmul.f32 %v275, 0.375
        %v308 = vmul.f32 %v276, 0.375
        %v309 = vmul.f32 %v277, 0.375
        %v310 = vmul.f32 %v278, 0.375
        %v311 = vmul.f32 %v279, 0.375
        %v312 = vmul.f32 %v280, 0.375
        %v313 = vmul.f32 %v281, 0.375
        %v314 = vmul.f32 %v282, 0.375
        %v315 = vmul.f32 %v283, 0.375
        %v316 = vadd.f32 %v288, %v302
        %v317 = vadd.f32 %v289, %v303
        %v318 = vadd.f32 %v290, %v304
        %v319 = vadd.f32 %v291, %v305
        %v320 = vadd.f32 %v292, %v306
        %v321 = vadd.f32 %v293, %v307
        %v322 = vadd.f32 %v294, %v308
        %v323 = vadd.f32 %v295, %v309
        %v324 = vadd.f32 %v296, %v310
        %v325 = vadd.f32 %v297, %v311
        %v326 = vadd.f32 %v298, %v312
        %v327 = vadd.f32 %v299, %v313
        %v328 = vadd.f32 %v300, %v314
        %v329 = vadd.f32 %v301, %v315
        %v330 = vmul.f32 %v284, 0.375
        %v331 = vmul.f32 %v285, 0.375
        %v332 = vadd.f32 %v316, %v304
        %v333 = vadd.f32 %v317, %v305
        %v334 = vadd.f32 %v318, %v306
        %v335 = vadd.f32 %v319, %v307
        %v336 = vadd.f32 %v320, %v308
        %v337 = vadd.f32 %v321, %v309
        %v338 = vadd.f32 %v322, %v310
        %v339 = vadd.f32 %v323, %v311
        %v340 = vadd.f32 %v324, %v312
        %v341 = vadd.f32 %v325, %v313
        %v342 = vadd.f32 %v326, %v314
        %v343 = vadd.f32 %v327, %v315
        %v344 = vadd.f32 %v328, %v330
        %v345 = vadd.f32 %v329, %v331
        %v346 = vmul.f32 %v282, 0.125
        %v347 = vmul.f32 %v283, 0.125
        %v348 = vmul.f32 %v284, 0.125
        %v349 = vmul.f32 %v285, 0.125
        %v350 = vmul.f32 %v286, 0.125
        %v351 = vmul.f32 %v287, 0.125
        %v352 = vadd.f32 %v332, %v294
        %v353 = vadd.f32 %v333, %v295
        %v354 = vadd.f32 %v334, %v296
        %v355 = vadd.f32 %v335, %v297
        %v356 = vadd.f32 %v336, %v298
        %v357 = vadd.f32 %v337, %v299
        %v358 = vadd.f32 %v338, %v300
        %v359 = vadd.f32 %v339, %v301
        %v360 = vadd.f32 %v340, %v346
        %v361 = vadd.f32 %v341, %v347
        %v362 = vadd.f32 %v342, %v348
        %v363 = vadd.f32 %v343, %v349
        %v364 = vadd.f32 %v344, %v350
        %v365 = vadd.f32 %v345, %v351
        %v366 = vmul.f32 %v352, 0.125
        %v367 = vmul.f32 %v354, 0.125
        %v368 = vmul.f32 %v356, 0.125
        %v369 = vmul.f32 %v358, 0.125
        %v370 = vmul.f32 %v360, 0.125
        %v371 = vmul.f32 %v362, 0.125
        %v372 = vmul.f32 %v364, 0.125
        %v373 = vmul.f32 %v352, 0.375
        %v374 = vmul.f32 %v354, 0.375
        %v375 = vmul.f32 %v356, 0.375
        %v376 = vmul.f32 %v358, 0.375
        %v377 = vmul.f32 %v360, 0.375
        %v378 = vmul.f32 %v362, 0.375
        %v379 = vmul.f32 %v364, 0.375
        %v387 = vrot.slane %v373, 1
        %v388 = vrot.slane %v374, 1
        %v389 = vrot.slane %v375, 1
        %v390 = vrot.slane %v376, 1
        %v391 = vrot.slane %v377, 1
        %v392 = vrot.slane %v378, 1
        %v393 = vrot.slane %v379, 1
        %v401 = vadd.f32 %v366, %v387
        %v402 = vadd.f32 %v367, %v388
        %v403 = vadd.f32 %v368, %v389
        %v404 = vadd.f32 %v369, %v390
        %v405 = vadd.f32 %v370, %v391
        %v406 = vadd.f32 %v371, %v392
        %v407 = vadd.f32 %v372, %v393
        %v408 = vmul.f32 %v353, 0.375
        %v409 = vmul.f32 %v355, 0.375
        %v410 = vmul.f32 %v357, 0.375
        %v411 = vmul.f32 %v359, 0.375
        %v412 = vmul.f32 %v361, 0.375
        %v413 = vmul.f32 %v363, 0.375
        %v414 = vmul.f32 %v365, 0.375
        %vm422 = vcmask 1045504
        %v423 = vrot.slane %v373, 2
        %v424 = vrot.slane %v408, 2
        %v425 = vsel %vm422, %v423, %v424
        %v426 = vrot.slane %v374, 2
        %v427 = vrot.slane %v409, 2
        %v428 = vsel %vm422, %v426, %v427
        %v429 = vrot.slane %v375, 2
        %v430 = vrot.slane %v410, 2
        %v431 = vsel %vm422, %v429, %v430
        %v432 = vrot.slane %v376, 2
        %v433 = vrot.slane %v411, 2
        %v434 = vsel %vm422, %v432, %v433
        %v435 = vrot.slane %v377, 2
        %v436 = vrot.slane %v412, 2
        %v437 = vsel %vm422, %v435, %v436
        %v438 = vrot.slane %v378, 2
        %v439 = vrot.slane %v413, 2
        %v440 = vsel %vm422, %v438, %v439
        %v441 = vrot.slane %v379, 2
        %v442 = vrot.slane %v414, 2
        %v443 = vsel %vm422, %v441, %v442
        %v451 = vadd.f32 %v401, %v425
        %v452 = vadd.f32 %v402, %v428
        %v453 = vadd.f32 %v403, %v431
        %v454 = vadd.f32 %v404, %v434
        %v455 = vadd.f32 %v405, %v437
        %v456 = vadd.f32 %v406, %v440
        %v457 = vadd.f32 %v407, %v443
        %v458 = vmul.f32 %v353, 0.125
        %v459 = vmul.f32 %v355, 0.125
        %v460 = vmul.f32 %v357, 0.125
        %v461 = vmul.f32 %v359, 0.125
        %v462 = vmul.f32 %v361, 0.125
        %v463 = vmul.f32 %v363, 0.125
        %v464 = vmul.f32 %v365, 0.125
        %vm479 = vcmask 1044480
        %v480 = vrot.slane %v366, 3
        %v481 = vrot.slane %v458, 3
        %v482 = vsel %vm479, %v480, %v481
        %v483 = vrot.slane %v367, 3
        %v484 = vrot.slane %v459, 3
        %v485 = vsel %vm479, %v483, %v484
        %v486 = vrot.slane %v368, 3
        %v487 = vrot.slane %v460, 3
        %v488 = vsel %vm479, %v486, %v487
        %v489 = vrot.slane %v369, 3
        %v490 = vrot.slane %v461, 3
        %v491 = vsel %vm479, %v489, %v490
        %v492 = vrot.slane %v370, 3
        %v493 = vrot.slane %v462, 3
        %v494 = vsel %vm479, %v492, %v493
        %v495 = vrot.slane %v371, 3
        %v496 = vrot.slane %v463, 3
        %v497 = vsel %vm479, %v495, %v496
        %v498 = vrot.slane %v372, 3
        %v499 = vrot.slane %v464, 3
        %v500 = vsel %vm479, %v498, %v499
        %v508 = vadd.f32 %v451, %v482
        %v509 = vadd.f32 %v452, %v485
        %v510 = vadd.f32 %v453, %v488
        %v511 = vadd.f32 %v454, %v491
        %v512 = vadd.f32 %v455, %v494
        %v513 = vadd.f32 %v456, %v497
        %v514 = vadd.f32 %v457, %v500
        %v515 = vpack.c.bf16 %v508, %v508
        %v516 = vpack.c.bf16 %v509, %v509
        %v517 = vpack.c.bf16 %v510, %v510
        %v518 = vpack.c.bf16 %v511, %v511
        %v519 = vpack.c.bf16 %v512, %v512
        %v520 = vpack.c.bf16 %v513, %v513
        %v521 = vpack.c.bf16 %v514, %v514
        %vm522 = vcmask 1043456
        %vm523 = vsmask.f32 3328
        %vm524 = vmand %vm522, %vm523
        %v525 = vld [vmem:[%s247] sm:$0xf]
        %v526 = vsel %vm524, %v515, %v525
        %527 = vst [vmem:[%s247] sm:$0xf] %v526
        %v528 = vld [vmem:[%s247 + $0x4] sm:$0xf]
        %v529 = vsel %vm524, %v516, %v528
        %530 = vst [vmem:[%s247 + $0x4] sm:$0xf] %v529
        %v531 = vld [vmem:[%s247 + $0x8] sm:$0xf]
        %v532 = vsel %vm524, %v517, %v531
        %533 = vst [vmem:[%s247 + $0x8] sm:$0xf] %v532
        %v534 = vld [vmem:[%s247 + $0xc] sm:$0xf]
        %v535 = vsel %vm524, %v518, %v534
        %536 = vst [vmem:[%s247 + $0xc] sm:$0xf] %v535
        %v537 = vld [vmem:[%s247 + $0x10] sm:$0xf]
        %v538 = vsel %vm524, %v519, %v537
        %539 = vst [vmem:[%s247 + $0x10] sm:$0xf] %v538
        %v540 = vld [vmem:[%s247 + $0x14] sm:$0xf]
        %v541 = vsel %vm524, %v520, %v540
        %542 = vst [vmem:[%s247 + $0x14] sm:$0xf] %v541
        %v543 = vld [vmem:[%s247 + $0x18] sm:$0xf]
        %v544 = vsel %vm524, %v521, %v543
        %545 = vst [vmem:[%s247 + $0x18] sm:$0xf] %v544
        %s546 = sand.u32 %s62, 1
        %s547 = sand.u32 %s62, 1
        %s548 = smul.addr %s547, 28
        %s549 = scalar_lea.vmem [#allocation3], %s548
        // Predicated region
        $region66: #{_lambda_.13} parent=60 // pred_check
          %p550 = pneg %p72
        $region67: #{_lambda_.13} parent=60 // pred_check_branch
          %552 = sbr.rel (%p550) target = $region69
        $region68: #{_lambda_.13} parent=60 // pred_region
          %s553 = smul.addr %s16, 28
          %s554 = sadd.s32 %s17, %s553
          %s555 = smul.addr %s554, 4
          %s556 = scalar_lea.vmem %s1, %s555
          // Predicated region
          $region70: #{_lambda_.13} parent=68 // pred_check
            _
          $region71: #{_lambda_.13} parent=68 // pred_check_branch
            %558 = sbr.rel (0) target = $region73
          $region72: #{_lambda_.13} parent=68 // pred_region
            // Predicated region
            $region74: #{_lambda_.13} parent=72 // pred_check
              _
            $region75: #{_lambda_.13} parent=72 // pred_check_branch
              %560 = sbr.rel target = $region77
            $region76: #{_lambda_.13} parent=72 // pred_region
              // Predicated region
              $region89: #{_lambda_.13} parent=76 // pred_check
                _
              $region90: #{_lambda_.13} parent=76 // pred_check_branch
                %588 = sbr.rel (0) target = $region92
              $region91: #{_lambda_.13} parent=76 // pred_region
                loop: start=0, step=1, limit=1
                $region93: #{_lambda_.13} parent=91 // loop_pre_header
                  _
                $region94: #{_lambda_.13} parent=91 // loop_header
                  %s590 = sphi 0, %s594
                  %p591 = scmp.ge.s32.totalorder %s590, 1
                  %s595 = sphi %s549, %s549
                  %s596 = sphi %s556, %s556
                $region95: #{_lambda_.13} parent=91 // loop_header_branch
                  %593 = sbr.rel (%p591) target = $region99
                $region96: #{_lambda_.13} parent=91 // loop_body
                  _
                $region97: #{_lambda_.13} parent=91 // loop_footer
                  %s594 = sadd.s32 1, %s590
                $region98: #{_lambda_.13} parent=91 // loop_footer_branch
                  %589 = sbr.rel target = $region94
                $region99: #{_lambda_.13} parent=91 // loop_exit
                  _
                %s598 = ssub.s32 16, 1
                loop: start=0, step=1, limit=1
                $region100: #{_lambda_.13} parent=91 // loop_pre_header
                  _
                $region101: #{_lambda_.13} parent=91 // loop_header
                  %s600 = sphi 0, %s604
                  %p601 = scmp.ge.s32.totalorder %s600, 1
                  %s605 = sphi %s549, %s549
                  %s606 = sphi %s556, %s556
                $region102: #{_lambda_.13} parent=91 // loop_header_branch
                  %603 = sbr.rel (%p601) target = $region106
                $region103: #{_lambda_.13} parent=91 // loop_body
                  %v607 = vld [vmem:[%s605] sm:%s598]
                  %608 = vst [vmem:[%s606] sm:%s598] %v607
                  %v609 = vld [vmem:[%s605 + $0x4] sm:%s598]
                  %610 = vst [vmem:[%s606 + $0x10] sm:%s598] %v609
                  %v611 = vld [vmem:[%s605 + $0x8] sm:%s598]
                  %612 = vst [vmem:[%s606 + $0x20] sm:%s598] %v611
                  %v613 = vld [vmem:[%s605 + $0xc] sm:%s598]
                  %614 = vst [vmem:[%s606 + $0x30] sm:%s598] %v613
                  %v615 = vld [vmem:[%s605 + $0x10] sm:%s598]
                  %616 = vst [vmem:[%s606 + $0x40] sm:%s598] %v615
                  %v617 = vld [vmem:[%s605 + $0x14] sm:%s598]
                  %618 = vst [vmem:[%s606 + $0x50] sm:%s598] %v617
                  %v619 = vld [vmem:[%s605 + $0x18] sm:%s598]
                  %620 = vst [vmem:[%s606 + $0x60] sm:%s598] %v619
                $region104: #{_lambda_.13} parent=91 // loop_footer
                  %s604 = sadd.s32 1, %s600
                $region105: #{_lambda_.13} parent=91 // loop_footer_branch
                  %599 = sbr.rel target = $region101
                $region106: #{_lambda_.13} parent=91 // loop_exit
                  _
              $region92: #{_lambda_.13} parent=76 // pred_fallthru
                _
            $region77: #{_lambda_.13} parent=72 // pred_fallthru
              _
            // Predicated region
            $region78: #{_lambda_.13} parent=72 // pred_check
              _
            $region79: #{_lambda_.13} parent=72 // pred_check_branch
              %562 = sbr.rel (0) target = $region81
            $region80: #{_lambda_.13} parent=72 // pred_region
              %s564 = ssub.s32 16, 1
              loop: start=0, step=1, limit=1
              $region82: #{_lambda_.13} parent=80 // loop_pre_header
                _
              $region83: #{_lambda_.13} parent=80 // loop_header
                %s566 = sphi 0, %s570
                %p567 = scmp.ge.s32.totalorder %s566, 1
                %s571 = sphi %s549, %s549
                %s572 = sphi %s556, %s556
              $region84: #{_lambda_.13} parent=80 // loop_header_branch
                %569 = sbr.rel (%p567) target = $region88
              $region85: #{_lambda_.13} parent=80 // loop_body
                %v573 = vld [vmem:[%s571] sm:%s564]
                %574 = vst [vmem:[%s572] sm:%s564] %v573
                %v575 = vld [vmem:[%s571 + $0x4] sm:%s564]
                %576 = vst [vmem:[%s572 + $0x10] sm:%s564] %v575
                %v577 = vld [vmem:[%s571 + $0x8] sm:%s564]
                %578 = vst [vmem:[%s572 + $0x20] sm:%s564] %v577
                %v579 = vld [vmem:[%s571 + $0xc] sm:%s564]
                %580 = vst [vmem:[%s572 + $0x30] sm:%s564] %v579
                %v581 = vld [vmem:[%s571 + $0x10] sm:%s564]
                %582 = vst [vmem:[%s572 + $0x40] sm:%s564] %v581
                %v583 = vld [vmem:[%s571 + $0x14] sm:%s564]
                %584 = vst [vmem:[%s572 + $0x50] sm:%s564] %v583
                %v585 = vld [vmem:[%s571 + $0x18] sm:%s564]
                %586 = vst [vmem:[%s572 + $0x60] sm:%s564] %v585
              $region86: #{_lambda_.13} parent=80 // loop_footer
                %s570 = sadd.s32 1, %s566
              $region87: #{_lambda_.13} parent=80 // loop_footer_branch
                %565 = sbr.rel target = $region83
              $region88: #{_lambda_.13} parent=80 // loop_exit
                _
            $region81: #{_lambda_.13} parent=72 // pred_fallthru
              _
          $region73: #{_lambda_.13} parent=68 // pred_fallthru
            _
          %621 = vnop
        $region69: #{_lambda_.13} parent=60 // pred_fallthru
          _
      $region61: #{_lambda_.13} parent=5 // pred_fallthru
        _
      %p622 = scmp.le.s32.totalorder 2, %s7
      // Predicated region
      $region107: #{_lambda_.13} parent=5 // pred_check
        %p623 = pneg %p622
      $region108: #{_lambda_.13} parent=5 // pred_check_branch
        %625 = sbr.rel (%p623) target = $region110
      $region109: #{_lambda_.13} parent=5 // pred_region
        %s626 = ssub.s32 %s7, 2
        // Predicated region
        $region111: #{_lambda_.13} parent=109 // pred_check
          %p627 = pneg %p78
        $region112: #{_lambda_.13} parent=109 // pred_check_branch
          %629 = sbr.rel (%p627) target = $region114
        $region113: #{_lambda_.13} parent=109 // pred_region
          %s630 = sand.u32 %s63, 1
          %s631 = sand.u32 %s63, 1
          %s632 = smul.addr %s631, 28
          %s633 = scalar_lea.vmem [#allocation3], %s632
        $region114: #{_lambda_.13} parent=109 // pred_fallthru
          _
      $region110: #{_lambda_.13} parent=5 // pred_fallthru
        _
    $region6: #{_lambda_.13} parent=1 // loop_footer
      %s11 = sadd.s32 1, %s7
    $region7: #{_lambda_.13} parent=1 // loop_footer_branch
      %6 = sbr.rel target = $region3
    $region8: #{_lambda_.13} parent=1 // loop_exit
      _

// kernel: _lambda_.14
$region0: #{_lambda_.14}
  #allocation0 [shape = 'u32[]', space=smem, size = 0x4, offset = 0x4, fixed_abs, tag = 'smem constant byte address 0x4 - core index']
  #allocation1 [shape = 'u32[72,128]{1,0:T(1,128)}', space=vmem, size = 0x9000, scoped, tag = 'internal scratch']
  #allocation2 [shape = 'f32[32,128]{1,0:T(8,128)}', space=vmem, size = 0x4000, scoped, tag = 'scratch operand']
  %s0 = inlined_call_operand.vmem [shape: bf16[32,512], index: 0, kind: input, shape index: {}]
  %s1 = inlined_call_operand.vmem [shape: bf16[512,512], index: 1, kind: input, shape index: {}]
  %s2 = inlined_call_operand.vmem [shape: f32[1,512], index: 2, kind: input, shape index: {}]
  %s3 = inlined_call_operand.vmem [shape: bf16[32,512], index: 3, kind: input, shape index: {}]
  %s4 = inlined_call_operand.vmem [shape: bf16[32,512], index: 4, kind: output, shape index: {}]
  %s5 = sld [smem:[#allocation0]]
  $region176: #{_lambda_.14} parent=0
    _
  %s7 = ssub.s32 1, %s5
  %s8 = scalar_select 0, %s7, %s5
  $region1: #{_lambda_.14} parent=0
    #allocation3 [shape = 'u8[262144]{0}', space=vmem, size = 0x40000, scoped, tag = 'input window, operand 1']
    #allocation4 [shape = 'u8[16384]{0}', space=vmem, size = 0x4000, scoped, tag = 'input window, operand 3']
    #allocation5 [shape = 'u8[16384]{0}', space=vmem, size = 0x4000, scoped, tag = 'output window, operand 0']
    loop: start=0, step=1, limit=6
    $region2: #{_lambda_.14} parent=1 // loop_pre_header
      _
    $region3: #{_lambda_.14} parent=1 // loop_header
      %s10 = sphi 0, %s14
      %p11 = scmp.ge.s32.totalorder %s10, 6
      %s17 = sphi 0, %s36
      %s18 = sphi 0, %s32
      %s19 = sphi 0, %s28
      %s20 = sphi 0, %s17
      %s21 = sphi 0, %s18
      %s22 = sphi 0, %s19
      %s23 = sphi 0, %s20
      %s24 = sphi 0, %s21
      %s25 = sphi 0, %s22
      %s41 = sphi 0, %s43
      %s44 = sphi 0, %s41
      %s45 = sphi 0, %s44
      %s61 = sphi 0, %s45
      %s69 = sphi 0, %s71
      %s72 = sphi 0, %s69
      %s73 = sphi 0, %s72
      %s89 = sphi 0, %s73
      %s95 = sphi 0, %s97
      %s98 = sphi 0, %s95
      %s99 = sphi 0, %s98
      %s115 = sphi 0, %s99
      %s123 = sphi 0, %s125
      %s126 = sphi 0, %s123
      %s127 = sphi 0, %s126
      %s143 = sphi 0, %s127
      %s151 = sphi 0, %s153
      %s154 = sphi 0, %s151
      %s155 = sphi 0, %s154
      %s171 = sphi 0, %s155
    $region4: #{_lambda_.14} parent=1 // loop_header_branch
      %13 = sbr.rel (%p11) target = $region8
    $region5: #{_lambda_.14} parent=1 // loop_body
      %s15 = ssub.s32 %s10, 1
      %s16 = ssub.s32 %s10, 2
      %s26 = sadd.s32 1, %s19
      %p27 = scmp.ge.s32.totalorder %s26, 1
      %s28 = scalar_select %p27, 0, %s26
      %s29 = sadd.s32 1, %s18
      %s30 = scalar_select %p27, %s29, %s18
      %p31 = scmp.ge.s32.totalorder %s30, 4
      %s32 = scalar_select %p31, 0, %s30
      %s33 = sadd.s32 1, %s17
      %s34 = scalar_select %p31, %s33, %s17
      %p35 = scmp.ge.s32.totalorder %s34, 1
      %s36 = scalar_select %p35, 0, %s34
      %s37 = ssub.s32 %s17, %s36
      %s38 = ssub.s32 %s19, %s28
      %s39 = sor.u32 %s37, %s38
      %p40 = scmp.eq.s32.totalorder %s39, 0
      %s42 = sadd.s32 %s41, 1
      %s43 = scalar_select %p40, %s41, %s42
      %p46 = pneg %p40
      %p47 = scmp.eq.s32.totalorder %s10, 3
      %p48 = por %p46, %p47
      %p49 = scmp.ne.s32.totalorder %s41, %s44
      %p50 = scmp.eq.s32.totalorder %s10, 0
      %p51 = por %p49, %p50
      %p52 = scmp.ne.s32.totalorder %s41, %s44
      %p53 = scmp.eq.s32.totalorder %s15, 3
      %p54 = por %p52, %p53
      %p55 = scmp.ne.s32.totalorder %s44, %s45
      %p56 = scmp.eq.s32.totalorder %s15, 0
      %p57 = por %p55, %p56
      %p58 = scmp.ne.s32.totalorder %s44, %s45
      %p59 = scmp.eq.s32.totalorder %s16, 3
      %p60 = por %p58, %p59
      %p62 = scmp.ne.s32.totalorder %s45, %s61
      %p63 = scmp.eq.s32.totalorder %s16, 0
      %p64 = por %p62, %p63
      %s65 = ssub.s32 %s19, %s28
      %s66 = ssub.s32 %s18, %s32
      %s67 = sor.u32 %s65, %s66
      %p68 = scmp.eq.s32.totalorder %s67, 0
      %s70 = sadd.s32 %s69, 1
      %s71 = scalar_select %p68, %s69, %s70
      %p74 = pneg %p68
      %p75 = scmp.eq.s32.totalorder %s10, 3
      %p76 = por %p74, %p75
      %p77 = scmp.ne.s32.totalorder %s69, %s72
      %p78 = scmp.eq.s32.totalorder %s10, 0
      %p79 = por %p77, %p78
      %p80 = scmp.ne.s32.totalorder %s69, %s72
      %p81 = scmp.eq.s32.totalorder %s15, 3
      %p82 = por %p80, %p81
      %p83 = scmp.ne.s32.totalorder %s72, %s73
      %p84 = scmp.eq.s32.totalorder %s15, 0
      %p85 = por %p83, %p84
      %p86 = scmp.ne.s32.totalorder %s72, %s73
      %p87 = scmp.eq.s32.totalorder %s16, 3
      %p88 = por %p86, %p87
      %p90 = scmp.ne.s32.totalorder %s73, %s89
      %p91 = scmp.eq.s32.totalorder %s16, 0
      %p92 = por %p90, %p91
      %s93 = ssub.s32 %s18, %s32
      %p94 = scmp.eq.s32.totalorder %s93, 0
      %s96 = sadd.s32 %s95, 1
      %s97 = scalar_select %p94, %s95, %s96
      %p100 = pneg %p94
      %p101 = scmp.eq.s32.totalorder %s10, 3
      %p102 = por %p100, %p101
      %p103 = scmp.ne.s32.totalorder %s95, %s98
      %p104 = scmp.eq.s32.totalorder %s10, 0
      %p105 = por %p103, %p104
      %p106 = scmp.ne.s32.totalorder %s95, %s98
      %p107 = scmp.eq.s32.totalorder %s15, 3
      %p108 = por %p106, %p107
      %p109 = scmp.ne.s32.totalorder %s98, %s99
      %p110 = scmp.eq.s32.totalorder %s15, 0
      %p111 = por %p109, %p110
      %p112 = scmp.ne.s32.totalorder %s98, %s99
      %p113 = scmp.eq.s32.totalorder %s16, 3
      %p114 = por %p112, %p113
      %p116 = scmp.ne.s32.totalorder %s99, %s115
      %p117 = scmp.eq.s32.totalorder %s16, 0
      %p118 = por %p116, %p117
      %s119 = ssub.s32 %s17, %s36
      %s120 = ssub.s32 %s18, %s32
      %s121 = sor.u32 %s119, %s120
      %p122 = scmp.eq.s32.totalorder %s121, 0
      %s124 = sadd.s32 %s123, 1
      %s125 = scalar_select %p122, %s123, %s124
      %p128 = pneg %p122
      %p129 = scmp.eq.s32.totalorder %s10, 3
      %p130 = por %p128, %p129
      %p131 = scmp.ne.s32.totalorder %s123, %s126
      %p132 = scmp.eq.s32.totalorder %s10, 0
      %p133 = por %p131, %p132
      %p134 = scmp.ne.s32.totalorder %s123, %s126
      %p135 = scmp.eq.s32.totalorder %s15, 3
      %p136 = por %p134, %p135
      %p137 = scmp.ne.s32.totalorder %s126, %s127
      %p138 = scmp.eq.s32.totalorder %s15, 0
      %p139 = por %p137, %p138
      %p140 = scmp.ne.s32.totalorder %s126, %s127
      %p141 = scmp.eq.s32.totalorder %s16, 3
      %p142 = por %p140, %p141
      %p144 = scmp.ne.s32.totalorder %s127, %s143
      %p145 = scmp.eq.s32.totalorder %s16, 0
      %p146 = por %p144, %p145
      %s147 = ssub.s32 %s17, %s36
      %s148 = ssub.s32 %s18, %s32
      %s149 = sor.u32 %s147, %s148
      %p150 = scmp.eq.s32.totalorder %s149, 0
      %s152 = sadd.s32 %s151, 1
      %s153 = scalar_select %p150, %s151, %s152
      %p156 = pneg %p150
      %p157 = scmp.eq.s32.totalorder %s10, 3
      %p158 = por %p156, %p157
      %p159 = scmp.ne.s32.totalorder %s151, %s154
      %p160 = scmp.eq.s32.totalorder %s10, 0
      %p161 = por %p159, %p160
      %p162 = scmp.ne.s32.totalorder %s151, %s154
      %p163 = scmp.eq.s32.totalorder %s15, 3
      %p164 = por %p162, %p163
      %p165 = scmp.ne.s32.totalorder %s154, %s155
      %p166 = scmp.eq.s32.totalorder %s15, 0
      %p167 = por %p165, %p166
      %p168 = scmp.ne.s32.totalorder %s154, %s155
      %p169 = scmp.eq.s32.totalorder %s16, 3
      %p170 = por %p168, %p169
      %p172 = scmp.ne.s32.totalorder %s155, %s171
      %p173 = scmp.eq.s32.totalorder %s16, 0
      %p174 = por %p172, %p173
      %p175 = scmp.le.s32.totalorder 1, %s10
      %p176 = scmp.lt.s32.totalorder %s10, 5
      %p177 = pnand %p175, %p176
      %p178 = pneg %p177
      // Predicated region
      $region9: #{_lambda_.14} parent=5 // pred_check
        _
      $region10: #{_lambda_.14} parent=5 // pred_check_branch
        %180 = sbr.rel (%p177) target = $region12
      $region11: #{_lambda_.14} parent=5 // pred_region
        %s181 = ssub.s32 %s10, 1
        // Predicated region
        $region13: #{_lambda_.14} parent=11 // pred_check
          %p182 = pneg %p57
        $region14: #{_lambda_.14} parent=11 // pred_check_branch
          %184 = sbr.rel (%p182) target = $region16
        $region15: #{_lambda_.14} parent=11 // pred_region
          %s185 = smul.u32 4, %s20
          %s186 = smul.u32 4, %s22
          %p187 = scmp.lt.s32.totalorder %s185, 3
          %s188 = scalar_select %p187, %s185, 3
          %p189 = scmp.lt.s32.totalorder %s186, 3
          %s190 = scalar_select %p189, %s186, 3
          %s191 = smul.addr %s188, 4
          %s192 = sadd.s32 %s190, %s191
          %s193 = smul.addr %s192, 4
          %s194 = scalar_lea.vmem %s0, %s193
          %s195 = smul.u32 4, %s20
          %s196 = smul.u32 4, %s22
        $region16: #{_lambda_.14} parent=11 // pred_fallthru
          _
      $region12: #{_lambda_.14} parent=5 // pred_fallthru
        _
      %p197 = scmp.lt.s32.totalorder %s10, 4
      // Predicated region
      $region17: #{_lambda_.14} parent=5 // pred_check
        %p198 = pneg %p197
      $region18: #{_lambda_.14} parent=5 // pred_check_branch
        %200 = sbr.rel (%p198) target = $region20
      $region19: #{_lambda_.14} parent=5 // pred_region
        // Predicated region
        $region21: #{_lambda_.14} parent=19 // pred_check
          %p201 = pneg %p79
        $region22: #{_lambda_.14} parent=19 // pred_check_branch
          %203 = sbr.rel (%p201) target = $region24
        $region23: #{_lambda_.14} parent=19 // pred_region
          %s204 = sand.u32 %s69, 1
          %s205 = sand.u32 %s69, 1
          %s206 = smul.addr %s205, 256
          %s207 = scalar_lea.vmem [#allocation3], %s206
          %s208 = smul.u32 64, %s19
          %s209 = smul.addr %s208, 4
          %s210 = sadd.s32 %s18, %s209
          %s211 = smul.addr %s210, 4
          %s212 = scalar_lea.vmem %s1, %s211
          // Predicated region
          $region25: #{_lambda_.14} parent=23 // pred_check
            _
          $region26: #{_lambda_.14} parent=23 // pred_check_branch
            %214 = sbr.rel (0) target = $region28
          $region27: #{_lambda_.14} parent=23 // pred_region
            // Predicated region
            $region29: #{_lambda_.14} parent=27 // pred_check
              _
            $region30: #{_lambda_.14} parent=27 // pred_check_branch
              %216 = sbr.rel target = $region32
            $region31: #{_lambda_.14} parent=27 // pred_region
              // Predicated region
              $region44: #{_lambda_.14} parent=31 // pred_check
                _
              $region45: #{_lambda_.14} parent=31 // pred_check_branch
                %358 = sbr.rel (0) target = $region47
              $region46: #{_lambda_.14} parent=31 // pred_region
                loop: start=0, step=1, limit=1
                $region48: #{_lambda_.14} parent=46 // loop_pre_header
                  _
                $region49: #{_lambda_.14} parent=46 // loop_header
                  %s360 = sphi 0, %s364
                  %p361 = scmp.ge.s32.totalorder %s360, 1
                  %s365 = sphi %s212, %s212
                  %s366 = sphi %s207, %s207
                $region50: #{_lambda_.14} parent=46 // loop_header_branch
                  %363 = sbr.rel (%p361) target = $region54
                $region51: #{_lambda_.14} parent=46 // loop_body
                  _
                $region52: #{_lambda_.14} parent=46 // loop_footer
                  %s364 = sadd.s32 1, %s360
                $region53: #{_lambda_.14} parent=46 // loop_footer_branch
                  %359 = sbr.rel target = $region49
                $region54: #{_lambda_.14} parent=46 // loop_exit
                  _
                %s368 = ssub.s32 16, 1
                loop: start=0, step=1, limit=1
                $region55: #{_lambda_.14} parent=46 // loop_pre_header
                  _
                $region56: #{_lambda_.14} parent=46 // loop_header
                  %s370 = sphi 0, %s374
                  %p371 = scmp.ge.s32.totalorder %s370, 1
                  %s375 = sphi %s212, %s212
                  %s376 = sphi %s207, %s207
                $region57: #{_lambda_.14} parent=46 // loop_header_branch
                  %373 = sbr.rel (%p371) target = $region61
                $region58: #{_lambda_.14} parent=46 // loop_body
                  %v377 = vld [vmem:[%s375] sm:%s368]
                  %378 = vst [vmem:[%s376] sm:%s368] %v377
                  %v379 = vld [vmem:[%s375 + $0x10] sm:%s368]
                  %380 = vst [vmem:[%s376 + $0x4] sm:%s368] %v379
                  %v381 = vld [vmem:[%s375 + $0x20] sm:%s368]
                  %382 = vst [vmem:[%s376 + $0x8] sm:%s368] %v381
                  %v383 = vld [vmem:[%s375 + $0x30] sm:%s368]
                  %384 = vst [vmem:[%s376 + $0xc] sm:%s368] %v383
                  %v385 = vld [vmem:[%s375 + $0x40] sm:%s368]
                  %386 = vst [vmem:[%s376 + $0x10] sm:%s368] %v385
                  %v387 = vld [vmem:[%s375 + $0x50] sm:%s368]
                  %388 = vst [vmem:[%s376 + $0x14] sm:%s368] %v387
                  %v389 = vld [vmem:[%s375 + $0x60] sm:%s368]
                  %390 = vst [vmem:[%s376 + $0x18] sm:%s368] %v389
                  %v391 = vld [vmem:[%s375 + $0x70] sm:%s368]
                  %392 = vst [vmem:[%s376 + $0x1c] sm:%s368] %v391
                  %v393 = vld [vmem:[%s375 + $0x80] sm:%s368]
                  %394 = vst [vmem:[%s376 + $0x20] sm:%s368] %v393
                  %v395 = vld [vmem:[%s375 + $0x90] sm:%s368]
                  %396 = vst [vmem:[%s376 + $0x24] sm:%s368] %v395
                  %v397 = vld [vmem:[%s375 + $0xa0] sm:%s368]
                  %398 = vst [vmem:[%s376 + $0x28] sm:%s368] %v397
                  %v399 = vld [vmem:[%s375 + $0xb0] sm:%s368]
                  %400 = vst [vmem:[%s376 + $0x2c] sm:%s368] %v399
                  %v401 = vld [vmem:[%s375 + $0xc0] sm:%s368]
                  %402 = vst [vmem:[%s376 + $0x30] sm:%s368] %v401
                  %v403 = vld [vmem:[%s375 + $0xd0] sm:%s368]
                  %404 = vst [vmem:[%s376 + $0x34] sm:%s368] %v403
                  %v405 = vld [vmem:[%s375 + $0xe0] sm:%s368]
                  %406 = vst [vmem:[%s376 + $0x38] sm:%s368] %v405
                  %v407 = vld [vmem:[%s375 + $0xf0] sm:%s368]
                  %408 = vst [vmem:[%s376 + $0x3c] sm:%s368] %v407
                  %v409 = vld [vmem:[%s375 + $0x100] sm:%s368]
                  %410 = vst [vmem:[%s376 + $0x40] sm:%s368] %v409
                  %v411 = vld [vmem:[%s375 + $0x110] sm:%s368]
                  %412 = vst [vmem:[%s376 + $0x44] sm:%s368] %v411
                  %v413 = vld [vmem:[%s375 + $0x120] sm:%s368]
                  %414 = vst [vmem:[%s376 + $0x48] sm:%s368] %v413
                  %v415 = vld [vmem:[%s375 + $0x130] sm:%s368]
                  %416 = vst [vmem:[%s376 + $0x4c] sm:%s368] %v415
                  %v417 = vld [vmem:[%s375 + $0x140] sm:%s368]
                  %418 = vst [vmem:[%s376 + $0x50] sm:%s368] %v417
                  %v419 = vld [vmem:[%s375 + $0x150] sm:%s368]
                  %420 = vst [vmem:[%s376 + $0x54] sm:%s368] %v419
                  %v421 = vld [vmem:[%s375 + $0x160] sm:%s368]
                  %422 = vst [vmem:[%s376 + $0x58] sm:%s368] %v421
                  %v423 = vld [vmem:[%s375 + $0x170] sm:%s368]
                  %424 = vst [vmem:[%s376 + $0x5c] sm:%s368] %v423
                  %v425 = vld [vmem:[%s375 + $0x180] sm:%s368]
                  %426 = vst [vmem:[%s376 + $0x60] sm:%s368] %v425
                  %v427 = vld [vmem:[%s375 + $0x190] sm:%s368]
                  %428 = vst [vmem:[%s376 + $0x64] sm:%s368] %v427
                  %v429 = vld [vmem:[%s375 + $0x1a0] sm:%s368]
                  %430 = vst [vmem:[%s376 + $0x68] sm:%s368] %v429
                  %v431 = vld [vmem:[%s375 + $0x1b0] sm:%s368]
                  %432 = vst [vmem:[%s376 + $0x6c] sm:%s368] %v431
                  %v433 = vld [vmem:[%s375 + $0x1c0] sm:%s368]
                  %434 = vst [vmem:[%s376 + $0x70] sm:%s368] %v433
                  %v435 = vld [vmem:[%s375 + $0x1d0] sm:%s368]
                  %436 = vst [vmem:[%s376 + $0x74] sm:%s368] %v435
                  %v437 = vld [vmem:[%s375 + $0x1e0] sm:%s368]
                  %438 = vst [vmem:[%s376 + $0x78] sm:%s368] %v437
                  %v439 = vld [vmem:[%s375 + $0x1f0] sm:%s368]
                  %440 = vst [vmem:[%s376 + $0x7c] sm:%s368] %v439
                  %v441 = vld [vmem:[%s375 + $0x200] sm:%s368]
                  %442 = vst [vmem:[%s376 + $0x80] sm:%s368] %v441
                  %v443 = vld [vmem:[%s375 + $0x210] sm:%s368]
                  %444 = vst [vmem:[%s376 + $0x84] sm:%s368] %v443
                  %v445 = vld [vmem:[%s375 + $0x220] sm:%s368]
                  %446 = vst [vmem:[%s376 + $0x88] sm:%s368] %v445
                  %v447 = vld [vmem:[%s375 + $0x230] sm:%s368]
                  %448 = vst [vmem:[%s376 + $0x8c] sm:%s368] %v447
                  %v449 = vld [vmem:[%s375 + $0x240] sm:%s368]
                  %450 = vst [vmem:[%s376 + $0x90] sm:%s368] %v449
                  %v451 = vld [vmem:[%s375 + $0x250] sm:%s368]
                  %452 = vst [vmem:[%s376 + $0x94] sm:%s368] %v451
                  %v453 = vld [vmem:[%s375 + $0x260] sm:%s368]
                  %454 = vst [vmem:[%s376 + $0x98] sm:%s368] %v453
                  %v455 = vld [vmem:[%s375 + $0x270] sm:%s368]
                  %456 = vst [vmem:[%s376 + $0x9c] sm:%s368] %v455
                  %v457 = vld [vmem:[%s375 + $0x280] sm:%s368]
                  %458 = vst [vmem:[%s376 + $0xa0] sm:%s368] %v457
                  %v459 = vld [vmem:[%s375 + $0x290] sm:%s368]
                  %460 = vst [vmem:[%s376 + $0xa4] sm:%s368] %v459
                  %v461 = vld [vmem:[%s375 + $0x2a0] sm:%s368]
                  %462 = vst [vmem:[%s376 + $0xa8] sm:%s368] %v461
                  %v463 = vld [vmem:[%s375 + $0x2b0] sm:%s368]
                  %464 = vst [vmem:[%s376 + $0xac] sm:%s368] %v463
                  %v465 = vld [vmem:[%s375 + $0x2c0] sm:%s368]
                  %466 = vst [vmem:[%s376 + $0xb0] sm:%s368] %v465
                  %v467 = vld [vmem:[%s375 + $0x2d0] sm:%s368]
                  %468 = vst [vmem:[%s376 + $0xb4] sm:%s368] %v467
                  %v469 = vld [vmem:[%s375 + $0x2e0] sm:%s368]
                  %470 = vst [vmem:[%s376 + $0xb8] sm:%s368] %v469
                  %v471 = vld [vmem:[%s375 + $0x2f0] sm:%s368]
                  %472 = vst [vmem:[%s376 + $0xbc] sm:%s368] %v471
                  %v473 = vld [vmem:[%s375 + $0x300] sm:%s368]
                  %474 = vst [vmem:[%s376 + $0xc0] sm:%s368] %v473
                  %v475 = vld [vmem:[%s375 + $0x310] sm:%s368]
                  %476 = vst [vmem:[%s376 + $0xc4] sm:%s368] %v475
                  %v477 = vld [vmem:[%s375 + $0x320] sm:%s368]
                  %478 = vst [vmem:[%s376 + $0xc8] sm:%s368] %v477
                  %v479 = vld [vmem:[%s375 + $0x330] sm:%s368]
                  %480 = vst [vmem:[%s376 + $0xcc] sm:%s368] %v479
                  %v481 = vld [vmem:[%s375 + $0x340] sm:%s368]
                  %482 = vst [vmem:[%s376 + $0xd0] sm:%s368] %v481
                  %v483 = vld [vmem:[%s375 + $0x350] sm:%s368]
                  %484 = vst [vmem:[%s376 + $0xd4] sm:%s368] %v483
                  %v485 = vld [vmem:[%s375 + $0x360] sm:%s368]
                  %486 = vst [vmem:[%s376 + $0xd8] sm:%s368] %v485
                  %v487 = vld [vmem:[%s375 + $0x370] sm:%s368]
                  %488 = vst [vmem:[%s376 + $0xdc] sm:%s368] %v487
                  %v489 = vld [vmem:[%s375 + $0x380] sm:%s368]
                  %490 = vst [vmem:[%s376 + $0xe0] sm:%s368] %v489
                  %v491 = vld [vmem:[%s375 + $0x390] sm:%s368]
                  %492 = vst [vmem:[%s376 + $0xe4] sm:%s368] %v491
                  %v493 = vld [vmem:[%s375 + $0x3a0] sm:%s368]
                  %494 = vst [vmem:[%s376 + $0xe8] sm:%s368] %v493
                  %v495 = vld [vmem:[%s375 + $0x3b0] sm:%s368]
                  %496 = vst [vmem:[%s376 + $0xec] sm:%s368] %v495
                  %v497 = vld [vmem:[%s375 + $0x3c0] sm:%s368]
                  %498 = vst [vmem:[%s376 + $0xf0] sm:%s368] %v497
                  %v499 = vld [vmem:[%s375 + $0x3d0] sm:%s368]
                  %500 = vst [vmem:[%s376 + $0xf4] sm:%s368] %v499
                  %v501 = vld [vmem:[%s375 + $0x3e0] sm:%s368]
                  %502 = vst [vmem:[%s376 + $0xf8] sm:%s368] %v501
                  %v503 = vld [vmem:[%s375 + $0x3f0] sm:%s368]
                  %504 = vst [vmem:[%s376 + $0xfc] sm:%s368] %v503
                $region59: #{_lambda_.14} parent=46 // loop_footer
                  %s374 = sadd.s32 1, %s370
                $region60: #{_lambda_.14} parent=46 // loop_footer_branch
                  %369 = sbr.rel target = $region56
                $region61: #{_lambda_.14} parent=46 // loop_exit
                  _
              $region47: #{_lambda_.14} parent=31 // pred_fallthru
                _
            $region32: #{_lambda_.14} parent=27 // pred_fallthru
              _
            // Predicated region
            $region33: #{_lambda_.14} parent=27 // pred_check
              _
            $region34: #{_lambda_.14} parent=27 // pred_check_branch
              %218 = sbr.rel (0) target = $region36
            $region35: #{_lambda_.14} parent=27 // pred_region
              %s220 = ssub.s32 16, 1
              loop: start=0, step=1, limit=1
              $region37: #{_lambda_.14} parent=35 // loop_pre_header
                _
              $region38: #{_lambda_.14} parent=35 // loop_header
                %s222 = sphi 0, %s226
                %p223 = scmp.ge.s32.totalorder %s222, 1
                %s227 = sphi %s212, %s212
                %s228 = sphi %s207, %s207
              $region39: #{_lambda_.14} parent=35 // loop_header_branch
                %225 = sbr.rel (%p223) target = $region43
              $region40: #{_lambda_.14} parent=35 // loop_body
                %v229 = vld [vmem:[%s227] sm:%s220]
                %230 = vst [vmem:[%s228] sm:%s220] %v229
                %v231 = vld [vmem:[%s227 + $0x10] sm:%s220]
                %232 = vst [vmem:[%s228 + $0x4] sm:%s220] %v231
                %v233 = vld [vmem:[%s227 + $0x20] sm:%s220]
                %234 = vst [vmem:[%s228 + $0x8] sm:%s220] %v233
                %v235 = vld [vmem:[%s227 + $0x30] sm:%s220]
                %236 = vst [vmem:[%s228 + $0xc] sm:%s220] %v235
                %v237 = vld [vmem:[%s227 + $0x40] sm:%s220]
                %238 = vst [vmem:[%s228 + $0x10] sm:%s220] %v237
                %v239 = vld [vmem:[%s227 + $0x50] sm:%s220]
                %240 = vst [vmem:[%s228 + $0x14] sm:%s220] %v239
                %v241 = vld [vmem:[%s227 + $0x60] sm:%s220]
                %242 = vst [vmem:[%s228 + $0x18] sm:%s220] %v241
                %v243 = vld [vmem:[%s227 + $0x70] sm:%s220]
                %244 = vst [vmem:[%s228 + $0x1c] sm:%s220] %v243
                %v245 = vld [vmem:[%s227 + $0x80] sm:%s220]
                %246 = vst [vmem:[%s228 + $0x20] sm:%s220] %v245
                %v247 = vld [vmem:[%s227 + $0x90] sm:%s220]
                %248 = vst [vmem:[%s228 + $0x24] sm:%s220] %v247
                %v249 = vld [vmem:[%s227 + $0xa0] sm:%s220]
                %250 = vst [vmem:[%s228 + $0x28] sm:%s220] %v249
                %v251 = vld [vmem:[%s227 + $0xb0] sm:%s220]
                %252 = vst [vmem:[%s228 + $0x2c] sm:%s220] %v251
                %v253 = vld [vmem:[%s227 + $0xc0] sm:%s220]
                %254 = vst [vmem:[%s228 + $0x30] sm:%s220] %v253
                %v255 = vld [vmem:[%s227 + $0xd0] sm:%s220]
                %256 = vst [vmem:[%s228 + $0x34] sm:%s220] %v255
                %v257 = vld [vmem:[%s227 + $0xe0] sm:%s220]
                %258 = vst [vmem:[%s228 + $0x38] sm:%s220] %v257
                %v259 = vld [vmem:[%s227 + $0xf0] sm:%s220]
                %260 = vst [vmem:[%s228 + $0x3c] sm:%s220] %v259
                %v261 = vld [vmem:[%s227 + $0x100] sm:%s220]
                %262 = vst [vmem:[%s228 + $0x40] sm:%s220] %v261
                %v263 = vld [vmem:[%s227 + $0x110] sm:%s220]
                %264 = vst [vmem:[%s228 + $0x44] sm:%s220] %v263
                %v265 = vld [vmem:[%s227 + $0x120] sm:%s220]
                %266 = vst [vmem:[%s228 + $0x48] sm:%s220] %v265
                %v267 = vld [vmem:[%s227 + $0x130] sm:%s220]
                %268 = vst [vmem:[%s228 + $0x4c] sm:%s220] %v267
                %v269 = vld [vmem:[%s227 + $0x140] sm:%s220]
                %270 = vst [vmem:[%s228 + $0x50] sm:%s220] %v269
                %v271 = vld [vmem:[%s227 + $0x150] sm:%s220]
                %272 = vst [vmem:[%s228 + $0x54] sm:%s220] %v271
                %v273 = vld [vmem:[%s227 + $0x160] sm:%s220]
                %274 = vst [vmem:[%s228 + $0x58] sm:%s220] %v273
                %v275 = vld [vmem:[%s227 + $0x170] sm:%s220]
                %276 = vst [vmem:[%s228 + $0x5c] sm:%s220] %v275
                %v277 = vld [vmem:[%s227 + $0x180] sm:%s220]
                %278 = vst [vmem:[%s228 + $0x60] sm:%s220] %v277
                %v279 = vld [vmem:[%s227 + $0x190] sm:%s220]
                %280 = vst [vmem:[%s228 + $0x64] sm:%s220] %v279
                %v281 = vld [vmem:[%s227 + $0x1a0] sm:%s220]
                %282 = vst [vmem:[%s228 + $0x68] sm:%s220] %v281
                %v283 = vld [vmem:[%s227 + $0x1b0] sm:%s220]
                %284 = vst [vmem:[%s228 + $0x6c] sm:%s220] %v283
                %v285 = vld [vmem:[%s227 + $0x1c0] sm:%s220]
                %286 = vst [vmem:[%s228 + $0x70] sm:%s220] %v285
                %v287 = vld [vmem:[%s227 + $0x1d0] sm:%s220]
                %288 = vst [vmem:[%s228 + $0x74] sm:%s220] %v287
                %v289 = vld [vmem:[%s227 + $0x1e0] sm:%s220]
                %290 = vst [vmem:[%s228 + $0x78] sm:%s220] %v289
                %v291 = vld [vmem:[%s227 + $0x1f0] sm:%s220]
                %292 = vst [vmem:[%s228 + $0x7c] sm:%s220] %v291
                %v293 = vld [vmem:[%s227 + $0x200] sm:%s220]
                %294 = vst [vmem:[%s228 + $0x80] sm:%s220] %v293
                %v295 = vld [vmem:[%s227 + $0x210] sm:%s220]
                %296 = vst [vmem:[%s228 + $0x84] sm:%s220] %v295
                %v297 = vld [vmem:[%s227 + $0x220] sm:%s220]
                %298 = vst [vmem:[%s228 + $0x88] sm:%s220] %v297
                %v299 = vld [vmem:[%s227 + $0x230] sm:%s220]
                %300 = vst [vmem:[%s228 + $0x8c] sm:%s220] %v299
                %v301 = vld [vmem:[%s227 + $0x240] sm:%s220]
                %302 = vst [vmem:[%s228 + $0x90] sm:%s220] %v301
                %v303 = vld [vmem:[%s227 + $0x250] sm:%s220]
                %304 = vst [vmem:[%s228 + $0x94] sm:%s220] %v303
                %v305 = vld [vmem:[%s227 + $0x260] sm:%s220]
                %306 = vst [vmem:[%s228 + $0x98] sm:%s220] %v305
                %v307 = vld [vmem:[%s227 + $0x270] sm:%s220]
                %308 = vst [vmem:[%s228 + $0x9c] sm:%s220] %v307
                %v309 = vld [vmem:[%s227 + $0x280] sm:%s220]
                %310 = vst [vmem:[%s228 + $0xa0] sm:%s220] %v309
                %v311 = vld [vmem:[%s227 + $0x290] sm:%s220]
                %312 = vst [vmem:[%s228 + $0xa4] sm:%s220] %v311
                %v313 = vld [vmem:[%s227 + $0x2a0] sm:%s220]
                %314 = vst [vmem:[%s228 + $0xa8] sm:%s220] %v313
                %v315 = vld [vmem:[%s227 + $0x2b0] sm:%s220]
                %316 = vst [vmem:[%s228 + $0xac] sm:%s220] %v315
                %v317 = vld [vmem:[%s227 + $0x2c0] sm:%s220]
                %318 = vst [vmem:[%s228 + $0xb0] sm:%s220] %v317
                %v319 = vld [vmem:[%s227 + $0x2d0] sm:%s220]
                %320 = vst [vmem:[%s228 + $0xb4] sm:%s220] %v319
                %v321 = vld [vmem:[%s227 + $0x2e0] sm:%s220]
                %322 = vst [vmem:[%s228 + $0xb8] sm:%s220] %v321
                %v323 = vld [vmem:[%s227 + $0x2f0] sm:%s220]
                %324 = vst [vmem:[%s228 + $0xbc] sm:%s220] %v323
                %v325 = vld [vmem:[%s227 + $0x300] sm:%s220]
                %326 = vst [vmem:[%s228 + $0xc0] sm:%s220] %v325
                %v327 = vld [vmem:[%s227 + $0x310] sm:%s220]
                %328 = vst [vmem:[%s228 + $0xc4] sm:%s220] %v327
                %v329 = vld [vmem:[%s227 + $0x320] sm:%s220]
                %330 = vst [vmem:[%s228 + $0xc8] sm:%s220] %v329
                %v331 = vld [vmem:[%s227 + $0x330] sm:%s220]
                %332 = vst [vmem:[%s228 + $0xcc] sm:%s220] %v331
                %v333 = vld [vmem:[%s227 + $0x340] sm:%s220]
                %334 = vst [vmem:[%s228 + $0xd0] sm:%s220] %v333
                %v335 = vld [vmem:[%s227 + $0x350] sm:%s220]
                %336 = vst [vmem:[%s228 + $0xd4] sm:%s220] %v335
                %v337 = vld [vmem:[%s227 + $0x360] sm:%s220]
                %338 = vst [vmem:[%s228 + $0xd8] sm:%s220] %v337
                %v339 = vld [vmem:[%s227 + $0x370] sm:%s220]
                %340 = vst [vmem:[%s228 + $0xdc] sm:%s220] %v339
                %v341 = vld [vmem:[%s227 + $0x380] sm:%s220]
                %342 = vst [vmem:[%s228 + $0xe0] sm:%s220] %v341
                %v343 = vld [vmem:[%s227 + $0x390] sm:%s220]
                %344 = vst [vmem:[%s228 + $0xe4] sm:%s220] %v343
                %v345 = vld [vmem:[%s227 + $0x3a0] sm:%s220]
                %346 = vst [vmem:[%s228 + $0xe8] sm:%s220] %v345
                %v347 = vld [vmem:[%s227 + $0x3b0] sm:%s220]
                %348 = vst [vmem:[%s228 + $0xec] sm:%s220] %v347
                %v349 = vld [vmem:[%s227 + $0x3c0] sm:%s220]
                %350 = vst [vmem:[%s228 + $0xf0] sm:%s220] %v349
                %v351 = vld [vmem:[%s227 + $0x3d0] sm:%s220]
                %352 = vst [vmem:[%s228 + $0xf4] sm:%s220] %v351
                %v353 = vld [vmem:[%s227 + $0x3e0] sm:%s220]
                %354 = vst [vmem:[%s228 + $0xf8] sm:%s220] %v353
                %v355 = vld [vmem:[%s227 + $0x3f0] sm:%s220]
                %356 = vst [vmem:[%s228 + $0xfc] sm:%s220] %v355
              $region41: #{_lambda_.14} parent=35 // loop_footer
                %s226 = sadd.s32 1, %s222
              $region42: #{_lambda_.14} parent=35 // loop_footer_branch
                %221 = sbr.rel target = $region38
              $region43: #{_lambda_.14} parent=35 // loop_exit
                _
            $region36: #{_lambda_.14} parent=27 // pred_fallthru
              _
          $region28: #{_lambda_.14} parent=23 // pred_fallthru
            _
          %505 = vnop
        $region24: #{_lambda_.14} parent=19 // pred_fallthru
          _
        // Predicated region
        $region62: #{_lambda_.14} parent=19 // pred_check
          %p506 = pneg %p105
        $region63: #{_lambda_.14} parent=19 // pred_check_branch
          %508 = sbr.rel (%p506) target = $region65
        $region64: #{_lambda_.14} parent=19 // pred_region
          %p509 = scmp.lt.s32.totalorder %s18, 3
          %s510 = scalar_select %p509, %s18, 3
          %s511 = scalar_lea.vmem %s2, %s510
        $region65: #{_lambda_.14} parent=19 // pred_fallthru
          _
        // Predicated region
        $region66: #{_lambda_.14} parent=19 // pred_check
          %p512 = pneg %p133
        $region67: #{_lambda_.14} parent=19 // pred_check_branch
          %514 = sbr.rel (%p512) target = $region69
        $region68: #{_lambda_.14} parent=19 // pred_region
          %s515 = sand.u32 %s123, 1
          %s516 = sand.u32 %s123, 1
          %s517 = smul.addr %s516, 16
          %s518 = scalar_lea.vmem [#allocation4], %s517
          %s519 = smul.u32 4, %s17
          %s520 = smul.addr %s519, 4
          %s521 = sadd.s32 %s18, %s520
          %s522 = smul.addr %s521, 4
          %s523 = scalar_lea.vmem %s3, %s522
          // Predicated region
          $region70: #{_lambda_.14} parent=68 // pred_check
            _
          $region71: #{_lambda_.14} parent=68 // pred_check_branch
            %525 = sbr.rel (0) target = $region73
          $region72: #{_lambda_.14} parent=68 // pred_region
            // Predicated region
            $region74: #{_lambda_.14} parent=72 // pred_check
              _
            $region75: #{_lambda_.14} parent=72 // pred_check_branch
              %527 = sbr.rel target = $region77
            $region76: #{_lambda_.14} parent=72 // pred_region
              // Predicated region
              $region89: #{_lambda_.14} parent=76 // pred_check
                _
              $region90: #{_lambda_.14} parent=76 // pred_check_branch
                %549 = sbr.rel (0) target = $region92
              $region91: #{_lambda_.14} parent=76 // pred_region
                loop: start=0, step=1, limit=1
                $region93: #{_lambda_.14} parent=91 // loop_pre_header
                  _
                $region94: #{_lambda_.14} parent=91 // loop_header
                  %s551 = sphi 0, %s555
                  %p552 = scmp.ge.s32.totalorder %s551, 1
                  %s556 = sphi %s523, %s523
                  %s557 = sphi %s518, %s518
                $region95: #{_lambda_.14} parent=91 // loop_header_branch
                  %554 = sbr.rel (%p552) target = $region99
                $region96: #{_lambda_.14} parent=91 // loop_body
                  _
                $region97: #{_lambda_.14} parent=91 // loop_footer
                  %s555 = sadd.s32 1, %s551
                $region98: #{_lambda_.14} parent=91 // loop_footer_branch
                  %550 = sbr.rel target = $region94
                $region99: #{_lambda_.14} parent=91 // loop_exit
                  _
                %s559 = ssub.s32 16, 1
                loop: start=0, step=1, limit=1
                $region100: #{_lambda_.14} parent=91 // loop_pre_header
                  _
                $region101: #{_lambda_.14} parent=91 // loop_header
                  %s561 = sphi 0, %s565
                  %p562 = scmp.ge.s32.totalorder %s561, 1
                  %s566 = sphi %s523, %s523
                  %s567 = sphi %s518, %s518
                $region102: #{_lambda_.14} parent=91 // loop_header_branch
                  %564 = sbr.rel (%p562) target = $region106
                $region103: #{_lambda_.14} parent=91 // loop_body
                  %v568 = vld [vmem:[%s566] sm:%s559]
                  %569 = vst [vmem:[%s567] sm:%s559] %v568
                  %v570 = vld [vmem:[%s566 + $0x10] sm:%s559]
                  %571 = vst [vmem:[%s567 + $0x4] sm:%s559] %v570
                  %v572 = vld [vmem:[%s566 + $0x20] sm:%s559]
                  %573 = vst [vmem:[%s567 + $0x8] sm:%s559] %v572
                  %v574 = vld [vmem:[%s566 + $0x30] sm:%s559]
                  %575 = vst [vmem:[%s567 + $0xc] sm:%s559] %v574
                $region104: #{_lambda_.14} parent=91 // loop_footer
                  %s565 = sadd.s32 1, %s561
                $region105: #{_lambda_.14} parent=91 // loop_footer_branch
                  %560 = sbr.rel target = $region101
                $region106: #{_lambda_.14} parent=91 // loop_exit
                  _
              $region92: #{_lambda_.14} parent=76 // pred_fallthru
                _
            $region77: #{_lambda_.14} parent=72 // pred_fallthru
              _
            // Predicated region
            $region78: #{_lambda_.14} parent=72 // pred_check
              _
            $region79: #{_lambda_.14} parent=72 // pred_check_branch
              %529 = sbr.rel (0) target = $region81
            $region80: #{_lambda_.14} parent=72 // pred_region
              %s531 = ssub.s32 16, 1
              loop: start=0, step=1, limit=1
              $region82: #{_lambda_.14} parent=80 // loop_pre_header
                _
              $region83: #{_lambda_.14} parent=80 // loop_header
                %s533 = sphi 0, %s537
                %p534 = scmp.ge.s32.totalorder %s533, 1
                %s538 = sphi %s523, %s523
                %s539 = sphi %s518, %s518
              $region84: #{_lambda_.14} parent=80 // loop_header_branch
                %536 = sbr.rel (%p534) target = $region88
              $region85: #{_lambda_.14} parent=80 // loop_body
                %v540 = vld [vmem:[%s538] sm:%s531]
                %541 = vst [vmem:[%s539] sm:%s531] %v540
                %v542 = vld [vmem:[%s538 + $0x10] sm:%s531]
                %543 = vst [vmem:[%s539 + $0x4] sm:%s531] %v542
                %v544 = vld [vmem:[%s538 + $0x20] sm:%s531]
                %545 = vst [vmem:[%s539 + $0x8] sm:%s531] %v544
                %v546 = vld [vmem:[%s538 + $0x30] sm:%s531]
                %547 = vst [vmem:[%s539 + $0xc] sm:%s531] %v546
              $region86: #{_lambda_.14} parent=80 // loop_footer
                %s537 = sadd.s32 1, %s533
              $region87: #{_lambda_.14} parent=80 // loop_footer_branch
                %532 = sbr.rel target = $region83
              $region88: #{_lambda_.14} parent=80 // loop_exit
                _
            $region81: #{_lambda_.14} parent=72 // pred_fallthru
              _
          $region73: #{_lambda_.14} parent=68 // pred_fallthru
            _
          %576 = vnop
        $region69: #{_lambda_.14} parent=19 // pred_fallthru
          _
      $region20: #{_lambda_.14} parent=5 // pred_fallthru
        _
      %p577 = scmp.le.s32.totalorder 1, %s10
      %p578 = scmp.lt.s32.totalorder %s10, 5
      %p579 = pnand %p577, %p578
      %p580 = pneg %p579
      // Predicated region
      $region107: #{_lambda_.14} parent=5 // pred_check
        _
      $region108: #{_lambda_.14} parent=5 // pred_check_branch
        %582 = sbr.rel (%p579) target = $region110
      $region109: #{_lambda_.14} parent=5 // pred_region
        %s583 = ssub.s32 %s10, 1
        %s584 = sand.u32 %s72, 1
        %s585 = sand.u32 %s72, 1
        %s586 = smul.addr %s585, 256
        %s587 = scalar_lea.vmem [#allocation3], %s586
        // Predicated region
        $region111: #{_lambda_.14} parent=109 // pred_check
          %p588 = pneg %p85
        $region112: #{_lambda_.14} parent=109 // pred_check_branch
          %590 = sbr.rel (%p588) target = $region114
        $region113: #{_lambda_.14} parent=109 // pred_region
          _
        $region114: #{_lambda_.14} parent=109 // pred_fallthru
          _
        %s591 = sand.u32 %s126, 1
        %s592 = sand.u32 %s126, 1
        %s593 = smul.addr %s592, 16
        %s594 = scalar_lea.vmem [#allocation4], %s593
        // Predicated region
        $region115: #{_lambda_.14} parent=109 // pred_check
          %p595 = pneg %p139
        $region116: #{_lambda_.14} parent=109 // pred_check_branch
          %597 = sbr.rel (%p595) target = $region118
        $region117: #{_lambda_.14} parent=109 // pred_region
          _
        $region118: #{_lambda_.14} parent=109 // pred_fallthru
          _
        %s598 = smul.u32 4, %s20
        %s599 = smul.u32 4, %s22
        %p600 = scmp.lt.s32.totalorder %s598, 3
        %s601 = scalar_select %p600, %s598, 3
        %p602 = scmp.lt.s32.totalorder %s599, 3
        %s603 = scalar_select %p602, %s599, 3
        %s604 = smul.addr %s601, 4
        %s605 = sadd.s32 %s603, %s604
        %s606 = smul.addr %s605, 4
        %s607 = scalar_lea.vmem %s0, %s606
        %p608 = pneg %p57
        %p609 = pneg %p54
        %s610 = sand.u32 %s72, 1
        %s611 = sand.u32 %s72, 1
        %s612 = smul.addr %s611, 256
        %s613 = scalar_lea.vmem [#allocation3], %s612
        %p614 = pneg %p85
        %p615 = pneg %p82
        %p616 = scmp.lt.s32.totalorder %s21, 3
        %s617 = scalar_select %p616, %s21, 3
        %s618 = scalar_lea.vmem %s2, %s617
        %p619 = pneg %p111
        %p620 = pneg %p108
        %s621 = sand.u32 %s126, 1
        %s622 = sand.u32 %s126, 1
        %s623 = smul.addr %s622, 16
        %s624 = scalar_lea.vmem [#allocation4], %s623
        %p625 = pneg %p139
        %p626 = pneg %p136
        %p627 = pneg %p167
        %p628 = pneg %p164
        %s629 = sand.u32 %s154, 1
        %s630 = sand.u32 %s154, 1
        %s631 = smul.addr %s630, 16
        %s632 = scalar_lea.vmem [#allocation5], %s631
        %s633 = smul.u32 4, %s20
        %s634 = smul.u32 4, %s22
        %p635 = scmp.lt.s32.totalorder %s633, 3
        %s636 = scalar_select %p635, %s633, 3
        %p637 = scmp.lt.s32.totalorder %s634, 3
        %s638 = scalar_select %p637, %s634, 3
        %s639 = smul.addr %s636, 4
        %s640 = sadd.s32 %s638, %s639
        %s641 = smul.addr %s640, 4
        %s642 = scalar_lea.vmem %s0, %s641
        %s643 = smul.u32 4, %s20
        %s644 = smul.u32 4, %s22
        %s645 = smul.u32 64, %s22
        %p646 = scmp.lt.s32.totalorder %s21, 3
        %s647 = scalar_select %p646, %s21, 3
        %s648 = scalar_lea.vmem %s2, %s647
        %s649 = smul.u32 4, %s20
        %s650 = smul.u32 4, %s20
        %p651 = scmp.eq.s32.totalorder %s22, 0
        // Predicated region
        $region119: #{_lambda_.14} parent=109 // pred_check
          %p652 = pneg %p651
        $region120: #{_lambda_.14} parent=109 // pred_check_branch
          %654 = sbr.rel (%p652) target = $region122
        $region121: #{_lambda_.14} parent=109 // pred_region
          %655 = vst [vmem:[#allocation2] sm:$0xff] 0.0
          %656 = vst [vmem:[#allocation2 + $0x8] sm:$0xff] 0.0
          %657 = vst [vmem:[#allocation2 + $0x10] sm:$0xff] 0.0
          %658 = vst [vmem:[#allocation2 + $0x18] sm:$0xff] 0.0
        $region122: #{_lambda_.14} parent=109 // pred_fallthru
          _
        %v659 = vld [vmem:[#allocation2] sm:$0xff]
        %v660 = vld [vmem:[#allocation2 + $0x8] sm:$0xff]
        %v661 = vld [vmem:[#allocation2 + $0x10] sm:$0xff]
        %v662 = vld [vmem:[#allocation2 + $0x18] sm:$0xff]
        %v663 = vld [vmem:[%s642] sm:$0xff]
        %v664 = vld [vmem:[%s642 + $0x8] sm:$0xff]
        %v665 = vld [vmem:[%s642 + $0x10] sm:$0xff]
        %v666 = vld [vmem:[%s642 + $0x18] sm:$0xff]
        %v667 = vld [vmem:[%s642 + $0x20] sm:$0xff]
        %v668 = vld [vmem:[%s642 + $0x28] sm:$0xff]
        %v669 = vld [vmem:[%s642 + $0x30] sm:$0xff]
        %v670 = vld [vmem:[%s642 + $0x38] sm:$0xff]
        %v671 = vld [vmem:[%s587] sm:$0xf]
        %v672 = vld [vmem:[%s587 + $0x4] sm:$0xf]
        %v673 = vld [vmem:[%s587 + $0x8] sm:$0xf]
        %v674 = vld [vmem:[%s587 + $0xc] sm:$0xf]
        %v675 = vld [vmem:[%s587 + $0x10] sm:$0xf]
        %v676 = vld [vmem:[%s587 + $0x14] sm:$0xf]
        %v677 = vld [vmem:[%s587 + $0x18] sm:$0xf]
        %v678 = vld [vmem:[%s587 + $0x1c] sm:$0xf]
        %v679 = vld [vmem:[%s587 + $0x20] sm:$0xf]
        %v680 = vld [vmem:[%s587 + $0x24] sm:$0xf]
        %v681 = vld [vmem:[%s587 + $0x28] sm:$0xf]
        %v682 = vld [vmem:[%s587 + $0x2c] sm:$0xf]
        %v683 = vld [vmem:[%s587 + $0x30] sm:$0xf]
        %v684 = vld [vmem:[%s587 + $0x34] sm:$0xf]
        %v685 = vld [vmem:[%s587 + $0x38] sm:$0xf]
        %v686 = vld [vmem:[%s587 + $0x3c] sm:$0xf]
        %v687 = vld [vmem:[%s587 + $0x40] sm:$0xf]
        %v688 = vld [vmem:[%s587 + $0x44] sm:$0xf]
        %v689 = vld [vmem:[%s587 + $0x48] sm:$0xf]
        %v690 = vld [vmem:[%s587 + $0x4c] sm:$0xf]
        %v691 = vld [vmem:[%s587 + $0x50] sm:$0xf]
        %v692 = vld [vmem:[%s587 + $0x54] sm:$0xf]
        %v693 = vld [vmem:[%s587 + $0x58] sm:$0xf]
        %v694 = vld [vmem:[%s587 + $0x5c] sm:$0xf]
        %v695 = vld [vmem:[%s587 + $0x60] sm:$0xf]
        %v696 = vld [vmem:[%s587 + $0x64] sm:$0xf]
        %v697 = vld [vmem:[%s587 + $0x68] sm:$0xf]
        %v698 = vld [vmem:[%s587 + $0x6c] sm:$0xf]
        %v699 = vld [vmem:[%s587 + $0x70] sm:$0xf]
        %v700 = vld [vmem:[%s587 + $0x74] sm:$0xf]
        %v701 = vld [vmem:[%s587 + $0x78] sm:$0xf]
        %v702 = vld [vmem:[%s587 + $0x7c] sm:$0xf]
        %v703 = vld [vmem:[%s587 + $0x80] sm:$0xf]
        %v704 = vld [vmem:[%s587 + $0x84] sm:$0xf]
        %v705 = vld [vmem:[%s587 + $0x88] sm:$0xf]
        %v706 = vld [vmem:[%s587 + $0x8c] sm:$0xf]
        %v707 = vld [vmem:[%s587 + $0x90] sm:$0xf]
        %v708 = vld [vmem:[%s587 + $0x94] sm:$0xf]
        %v709 = vld [vmem:[%s587 + $0x98] sm:$0xf]
        %v710 = vld [vmem:[%s587 + $0x9c] sm:$0xf]
        %v711 = vld [vmem:[%s587 + $0xa0] sm:$0xf]
        %v712 = vld [vmem:[%s587 + $0xa4] sm:$0xf]
        %v713 = vld [vmem:[%s587 + $0xa8] sm:$0xf]
        %v714 = vld [vmem:[%s587 + $0xac] sm:$0xf]
        %v715 = vld [vmem:[%s587 + $0xb0] sm:$0xf]
        %v716 = vld [vmem:[%s587 + $0xb4] sm:$0xf]
        %v717 = vld [vmem:[%s587 + $0xb8] sm:$0xf]
        %v718 = vld [vmem:[%s587 + $0xbc] sm:$0xf]
        %v719 = vld [vmem:[%s587 + $0xc0] sm:$0xf]
        %v720 = vld [vmem:[%s587 + $0xc4] sm:$0xf]
        %v721 = vld [vmem:[%s587 + $0xc8] sm:$0xf]
        %v722 = vld [vmem:[%s587 + $0xcc] sm:$0xf]
        %v723 = vld [vmem:[%s587 + $0xd0] sm:$0xf]
        %v724 = vld [vmem:[%s587 + $0xd4] sm:$0xf]
        %v725 = vld [vmem:[%s587 + $0xd8] sm:$0xf]
        %v726 = vld [vmem:[%s587 + $0xdc] sm:$0xf]
        %v727 = vld [vmem:[%s587 + $0xe0] sm:$0xf]
        %v728 = vld [vmem:[%s587 + $0xe4] sm:$0xf]
        %v729 = vld [vmem:[%s587 + $0xe8] sm:$0xf]
        %v730 = vld [vmem:[%s587 + $0xec] sm:$0xf]
        %v731 = vld [vmem:[%s587 + $0xf0] sm:$0xf]
        %v732 = vld [vmem:[%s587 + $0xf4] sm:$0xf]
        %v733 = vld [vmem:[%s587 + $0xf8] sm:$0xf]
        %v734 = vld [vmem:[%s587 + $0xfc] sm:$0xf]
        %v743 = vunpack.c.l.b16 %v663
        %v744 = vunpack.c.h.b16 %v663
        %v745 = vunpack.c.l.b16 %v664
        %v746 = vunpack.c.h.b16 %v664
        %v747 = vunpack.c.l.b16 %v665
        %v748 = vunpack.c.h.b16 %v665
        %v749 = vunpack.c.l.b16 %v666
        %v750 = vunpack.c.h.b16 %v666
        %v751 = vunpack.c.l.b16 %v667
        %v752 = vunpack.c.h.b16 %v667
        %v753 = vunpack.c.l.b16 %v668
        %v754 = vunpack.c.h.b16 %v668
        %v755 = vunpack.c.l.b16 %v669
        %v756 = vunpack.c.h.b16 %v669
        %v757 = vunpack.c.l.b16 %v670
        %v758 = vunpack.c.h.b16 %v670
        %v759 = vpack.c.b16 %v747, %v743
        %v760 = vpack.c.b16 %v748, %v744
        %v761 = vpack.c.b16 %v749, %v745
        %v762 = vpack.c.b16 %v750, %v746
        %v763 = vpack.c.b16 %v755, %v751
        %v764 = vpack.c.b16 %v756, %v752
        %v765 = vpack.c.b16 %v757, %v753
        %v766 = vpack.c.b16 %v758, %v754
        %v839 = vunpack.c.l.b16 %v671
        %v840 = vunpack.c.l.b16 %v672
        %v841 = vunpack.c.l.b16 %v673
        %v842 = vunpack.c.l.b16 %v674
        %v843 = vunpack.c.l.b16 %v675
        %v844 = vunpack.c.l.b16 %v676
        %v845 = vunpack.c.l.b16 %v677
        %v846 = vunpack.c.l.b16 %v678
        %v847 = vunpack.c.l.b16 %v679
        %v848 = vunpack.c.l.b16 %v680
        %v849 = vunpack.c.l.b16 %v681
        %v850 = vunpack.c.l.b16 %v682
        %v851 = vunpack.c.l.b16 %v683
        %v852 = vunpack.c.l.b16 %v684
        %v853 = vunpack.c.l.b16 %v685
        %v854 = vunpack.c.l.b16 %v686
        %v855 = vunpack.c.l.b16 %v687
        %v856 = vunpack.c.l.b16 %v688
        %v857 = vunpack.c.l.b16 %v689
        %v858 = vunpack.c.l.b16 %v690
        %v859 = vunpack.c.l.b16 %v691
        %v860 = vunpack.c.l.b16 %v692
        %v861 = vunpack.c.l.b16 %v693
        %v862 = vunpack.c.l.b16 %v694
        %v863 = vunpack.c.l.b16 %v695
        %v864 = vunpack.c.l.b16 %v696
        %v865 = vunpack.c.l.b16 %v697
        %v866 = vunpack.c.l.b16 %v698
        %v867 = vunpack.c.l.b16 %v699
        %v868 = vunpack.c.l.b16 %v700
        %v869 = vunpack.c.l.b16 %v701
        %v870 = vunpack.c.l.b16 %v702
        %v871 = vunpack.c.l.b16 %v703
        %v872 = vunpack.c.l.b16 %v704
        %v873 = vunpack.c.l.b16 %v705
        %v874 = vunpack.c.l.b16 %v706
        %v875 = vunpack.c.l.b16 %v707
        %v876 = vunpack.c.l.b16 %v708
        %v877 = vunpack.c.l.b16 %v709
        %v878 = vunpack.c.l.b16 %v710
        %v879 = vunpack.c.l.b16 %v711
        %v880 = vunpack.c.l.b16 %v712
        %v881 = vunpack.c.l.b16 %v713
        %v882 = vunpack.c.l.b16 %v714
        %v883 = vunpack.c.l.b16 %v715
        %v884 = vunpack.c.l.b16 %v716
        %v885 = vunpack.c.l.b16 %v717
        %v886 = vunpack.c.l.b16 %v718
        %v887 = vunpack.c.l.b16 %v719
        %v888 = vunpack.c.l.b16 %v720
        %v889 = vunpack.c.l.b16 %v721
        %v890 = vunpack.c.l.b16 %v722
        %v891 = vunpack.c.l.b16 %v723
        %v892 = vunpack.c.l.b16 %v724
        %v893 = vunpack.c.l.b16 %v725
        %v894 = vunpack.c.l.b16 %v726
        %v895 = vunpack.c.l.b16 %v727
        %v896 = vunpack.c.l.b16 %v728
        %v897 = vunpack.c.l.b16 %v729
        %v898 = vunpack.c.l.b16 %v730
        %v899 = vunpack.c.l.b16 %v731
        %v900 = vunpack.c.l.b16 %v732
        %v901 = vunpack.c.l.b16 %v733
        %v902 = vunpack.c.l.b16 %v734
        %v903 = vpack.c.b16 %v840, %v839
        %v904 = vpack.c.b16 %v842, %v841
        %v905 = vpack.c.b16 %v844, %v843
        %v906 = vpack.c.b16 %v846, %v845
        %v907 = vpack.c.b16 %v848, %v847
        %v908 = vpack.c.b16 %v850, %v849
        %v909 = vpack.c.b16 %v852, %v851
        %v910 = vpack.c.b16 %v854, %v853
        %v911 = vpack.c.b16 %v856, %v855
        %v912 = vpack.c.b16 %v858, %v857
        %v913 = vpack.c.b16 %v860, %v859
        %v914 = vpack.c.b16 %v862, %v861
        %v915 = vpack.c.b16 %v864, %v863
        %v916 = vpack.c.b16 %v866, %v865
        %v917 = vpack.c.b16 %v868, %v867
        %v918 = vpack.c.b16 %v870, %v869
        %v919 = vpack.c.b16 %v872, %v871
        %v920 = vpack.c.b16 %v874, %v873
        %v921 = vpack.c.b16 %v876, %v875
        %v922 = vpack.c.b16 %v878, %v877
        %v923 = vpack.c.b16 %v880, %v879
        %v924 = vpack.c.b16 %v882, %v881
        %v925 = vpack.c.b16 %v884, %v883
        %v926 = vpack.c.b16 %v886, %v885
        %v927 = vpack.c.b16 %v888, %v887
        %v928 = vpack.c.b16 %v890, %v889
        %v929 = vpack.c.b16 %v892, %v891
        %v930 = vpack.c.b16 %v894, %v893
        %v931 = vpack.c.b16 %v896, %v895
        %v932 = vpack.c.b16 %v898, %v897
        %v933 = vpack.c.b16 %v900, %v899
        %v934 = vpack.c.b16 %v902, %v901
        %967 = vmatpush.bf16.msra.mxu0 %v910
        %968 = vmatpush.bf16.msra.mxu0 %v909
        %969 = vmatpush.bf16.msra.mxu0 %v908
        %970 = vmatpush.bf16.msra.mxu0 %v907
        %971 = vmatpush.bf16.msra.mxu0 %v906
        %972 = vmatpush.bf16.msra.mxu0 %v905
        %973 = vmatpush.bf16.msra.mxu0 %v904
        %974 = vmatpush.bf16.msra.mxu0 %v903
        %975 = vmatmul.bf16.gmra.mxu0 %v759
        %v976 = vpop.f32.mrf.mxu0
        %v977 = vadd.f32 0.0, %v976
        %v978 = vpop.f32.mrf.mxu0
        %v979 = vadd.f32 0.0, %v978
        %980 = vmatmul.bf16.gmra.mxu0 %v763
        %v981 = vpop.f32.mrf.mxu0
        %v982 = vadd.f32 0.0, %v981
        %v983 = vpop.f32.mrf.mxu0
        %v984 = vadd.f32 0.0, %v983
        %985 = vdwg.mxu0
        %986 = vmatpush.bf16.msra.mxu0 %v918
        %987 = vmatpush.bf16.msra.mxu0 %v917
        %988 = vmatpush.bf16.msra.mxu0 %v916
        %989 = vmatpush.bf16.msra.mxu0 %v915
        %990 = vmatpush.bf16.msra.mxu0 %v914
        %991 = vmatpush.bf16.msra.mxu0 %v913
        %992 = vmatpush.bf16.msra.mxu0 %v912
        %993 = vmatpush.bf16.msra.mxu0 %v911
        %994 = vmatmul.bf16.gmra.mxu0 %v760
        %v995 = vpop.f32.mrf.mxu0
        %v996 = vadd.f32 %v977, %v995
        %v997 = vpop.f32.mrf.mxu0
        %v998 = vadd.f32 %v979, %v997
        %999 = vmatmul.bf16.gmra.mxu0 %v764
        %v1000 = vpop.f32.mrf.mxu0
        %v1001 = vadd.f32 %v982, %v1000
        %v1002 = vpop.f32.mrf.mxu0
        %v1003 = vadd.f32 %v984, %v1002
        %1004 = vdwg.mxu0
        %1005 = vmatpush.bf16.msra.mxu0 %v926
        %1006 = vmatpush.bf16.msra.mxu0 %v925
        %1007 = vmatpush.bf16.msra.mxu0 %v924
        %1008 = vmatpush.bf16.msra.mxu0 %v923
        %1009 = vmatpush.bf16.msra.mxu0 %v922
        %1010 = vmatpush.bf16.msra.mxu0 %v921
        %1011 = vmatpush.bf16.msra.mxu0 %v920
        %1012 = vmatpush.bf16.msra.mxu0 %v919
        %1013 = vmatmul.bf16.gmra.mxu0 %v761
        %v1014 = vpop.f32.mrf.mxu0
        %v1015 = vadd.f32 %v996, %v1014
        %v1016 = vpop.f32.mrf.mxu0
        %v1017 = vadd.f32 %v998, %v1016
        %1018 = vmatmul.bf16.gmra.mxu0 %v765
        %v1019 = vpop.f32.mrf.mxu0
        %v1020 = vadd.f32 %v1001, %v1019
        %v1021 = vpop.f32.mrf.mxu0
        %v1022 = vadd.f32 %v1003, %v1021
        %1023 = vdwg.mxu0
        %1024 = vmatpush.bf16.msra.mxu0 %v934
        %1025 = vmatpush.bf16.msra.mxu0 %v933
        %1026 = vmatpush.bf16.msra.mxu0 %v932
        %1027 = vmatpush.bf16.msra.mxu0 %v931
        %1028 = vmatpush.bf16.msra.mxu0 %v930
        %1029 = vmatpush.bf16.msra.mxu0 %v929
        %1030 = vmatpush.bf16.msra.mxu0 %v928
        %1031 = vmatpush.bf16.msra.mxu0 %v927
        %1032 = vmatmul.bf16.gmra.mxu0 %v762
        %v1033 = vpop.f32.mrf.mxu0
        %v1034 = vadd.f32 %v1015, %v1033
        %v1035 = vpop.f32.mrf.mxu0
        %v1036 = vadd.f32 %v1017, %v1035
        %1037 = vmatmul.bf16.gmra.mxu0 %v766
        %v1038 = vpop.f32.mrf.mxu0
        %v1039 = vadd.f32 %v1020, %v1038
        %v1040 = vpop.f32.mrf.mxu0
        %v1041 = vadd.f32 %v1022, %v1040
        %1042 = vdwg.mxu0
        %v1043 = vadd.f32 %v659, %v1034
        %v1044 = vadd.f32 %v660, %v1036
        %v1045 = vadd.f32 %v661, %v1039
        %v1046 = vadd.f32 %v662, %v1041
        %1047 = vst [vmem:[#allocation2] sm:$0xff] %v1043
        %1048 = vst [vmem:[#allocation2 + $0x8] sm:$0xff] %v1044
        %1049 = vst [vmem:[#allocation2 + $0x10] sm:$0xff] %v1045
        %1050 = vst [vmem:[#allocation2 + $0x18] sm:$0xff] %v1046
        // Predicated region
        $region123: #{_lambda_.14} parent=109 // pred_check
          %p1051 = pneg %p651
        $region124: #{_lambda_.14} parent=109 // pred_check_branch
          %1053 = sbr.rel (%p1051) target = $region126
        $region125: #{_lambda_.14} parent=109 // pred_region
          %v1054 = vld [vmem:[#allocation2] sm:$0xff]
          %v1055 = vld [vmem:[#allocation2 + $0x8] sm:$0xff]
          %v1056 = vld [vmem:[#allocation2 + $0x10] sm:$0xff]
          %v1057 = vld [vmem:[#allocation2 + $0x18] sm:$0xff]
          %v1058 = vld [vmem:[%s648] sm:$0x1]
          %v1060 = vperm.slane %v1058, 0
          %v1062 = vadd.f32 %v1054, %v1060
          %v1063 = vadd.f32 %v1055, %v1060
          %v1064 = vadd.f32 %v1056, %v1060
          %v1065 = vadd.f32 %v1057, %v1060
          %v1066 = vld [vmem:[%s594] sm:$0xf]
          %v1067 = vld [vmem:[%s594 + $0x4] sm:$0xf]
          %v1068 = vld [vmem:[%s594 + $0x8] sm:$0xf]
          %v1069 = vld [vmem:[%s594 + $0xc] sm:$0xf]
          %v1070 = vunpack.c.l.bf16 %v1066
          %v1071 = vunpack.c.l.bf16 %v1067
          %v1072 = vunpack.c.l.bf16 %v1068
          %v1073 = vunpack.c.l.bf16 %v1069
          %v1074 = vadd.f32 %v1062, %v1070
          %v1075 = vadd.f32 %v1063, %v1071
          %v1076 = vadd.f32 %v1064, %v1072
          %v1077 = vadd.f32 %v1065, %v1073
          %v1078 = vmul.f32 %v1074, 0.70710677
          %v1079 = vmul.f32 %v1075, 0.70710677
          %v1080 = vmul.f32 %v1076, 0.70710677
          %v1081 = vmul.f32 %v1077, 0.70710677
          %v1082 = vpack.c.bf16 %v1078, %v1078
          %v1083 = vpack.c.bf16 %v1079, %v1079
          %v1084 = vpack.c.bf16 %v1080, %v1080
          %v1085 = vpack.c.bf16 %v1081, %v1081
          %1086 = vst [vmem:[%s632] sm:$0xf] %v1082
          %1087 = vst [vmem:[%s632 + $0x4] sm:$0xf] %v1083
          %1088 = vst [vmem:[%s632 + $0x8] sm:$0xf] %v1084
          %1089 = vst [vmem:[%s632 + $0xc] sm:$0xf] %v1085
        $region126: #{_lambda_.14} parent=109 // pred_fallthru
          _
        %s1090 = sand.u32 %s154, 1
        %s1091 = sand.u32 %s154, 1
        %s1092 = smul.addr %s1091, 16
        %s1093 = scalar_lea.vmem [#allocation5], %s1092
        // Predicated region
        $region127: #{_lambda_.14} parent=109 // pred_check
          %p1094 = pneg %p164
        $region128: #{_lambda_.14} parent=109 // pred_check_branch
          %1096 = sbr.rel (%p1094) target = $region130
        $region129: #{_lambda_.14} parent=109 // pred_region
          %s1097 = smul.u32 4, %s20
          %s1098 = smul.addr %s1097, 4
          %s1099 = sadd.s32 %s21, %s1098
          %s1100 = smul.addr %s1099, 4
          %s1101 = scalar_lea.vmem %s4, %s1100
          // Predicated region
          $region131: #{_lambda_.14} parent=129 // pred_check
            _
          $region132: #{_lambda_.14} parent=129 // pred_check_branch
            %1103 = sbr.rel (0) target = $region134
          $region133: #{_lambda_.14} parent=129 // pred_region
            // Predicated region
            $region135: #{_lambda_.14} parent=133 // pred_check
              _
            $region136: #{_lambda_.14} parent=133 // pred_check_branch
              %1105 = sbr.rel target = $region138
            $region137: #{_lambda_.14} parent=133 // pred_region
              // Predicated region
              $region150: #{_lambda_.14} parent=137 // pred_check
                _
              $region151: #{_lambda_.14} parent=137 // pred_check_branch
                %1127 = sbr.rel (0) target = $region153
              $region152: #{_lambda_.14} parent=137 // pred_region
                loop: start=0, step=1, limit=1
                $region154: #{_lambda_.14} parent=152 // loop_pre_header
                  _
                $region155: #{_lambda_.14} parent=152 // loop_header
                  %s1129 = sphi 0, %s1133
                  %p1130 = scmp.ge.s32.totalorder %s1129, 1
                  %s1134 = sphi %s1093, %s1093
                  %s1135 = sphi %s1101, %s1101
                $region156: #{_lambda_.14} parent=152 // loop_header_branch
                  %1132 = sbr.rel (%p1130) target = $region160
                $region157: #{_lambda_.14} parent=152 // loop_body
                  _
                $region158: #{_lambda_.14} parent=152 // loop_footer
                  %s1133 = sadd.s32 1, %s1129
                $region159: #{_lambda_.14} parent=152 // loop_footer_branch
                  %1128 = sbr.rel target = $region155
                $region160: #{_lambda_.14} parent=152 // loop_exit
                  _
                %s1137 = ssub.s32 16, 1
                loop: start=0, step=1, limit=1
                $region161: #{_lambda_.14} parent=152 // loop_pre_header
                  _
                $region162: #{_lambda_.14} parent=152 // loop_header
                  %s1139 = sphi 0, %s1143
                  %p1140 = scmp.ge.s32.totalorder %s1139, 1
                  %s1144 = sphi %s1093, %s1093
                  %s1145 = sphi %s1101, %s1101
                $region163: #{_lambda_.14} parent=152 // loop_header_branch
                  %1142 = sbr.rel (%p1140) target = $region167
                $region164: #{_lambda_.14} parent=152 // loop_body
                  %v1146 = vld [vmem:[%s1144] sm:%s1137]
                  %1147 = vst [vmem:[%s1145] sm:%s1137] %v1146
                  %v1148 = vld [vmem:[%s1144 + $0x4] sm:%s1137]
                  %1149 = vst [vmem:[%s1145 + $0x10] sm:%s1137] %v1148
                  %v1150 = vld [vmem:[%s1144 + $0x8] sm:%s1137]
                  %1151 = vst [vmem:[%s1145 + $0x20] sm:%s1137] %v1150
                  %v1152 = vld [vmem:[%s1144 + $0xc] sm:%s1137]
                  %1153 = vst [vmem:[%s1145 + $0x30] sm:%s1137] %v1152
                $region165: #{_lambda_.14} parent=152 // loop_footer
                  %s1143 = sadd.s32 1, %s1139
                $region166: #{_lambda_.14} parent=152 // loop_footer_branch
                  %1138 = sbr.rel target = $region162
                $region167: #{_lambda_.14} parent=152 // loop_exit
                  _
              $region153: #{_lambda_.14} parent=137 // pred_fallthru
                _
            $region138: #{_lambda_.14} parent=133 // pred_fallthru
              _
            // Predicated region
            $region139: #{_lambda_.14} parent=133 // pred_check
              _
            $region140: #{_lambda_.14} parent=133 // pred_check_branch
              %1107 = sbr.rel (0) target = $region142
            $region141: #{_lambda_.14} parent=133 // pred_region
              %s1109 = ssub.s32 16, 1
              loop: start=0, step=1, limit=1
              $region143: #{_lambda_.14} parent=141 // loop_pre_header
                _
              $region144: #{_lambda_.14} parent=141 // loop_header
                %s1111 = sphi 0, %s1115
                %p1112 = scmp.ge.s32.totalorder %s1111, 1
                %s1116 = sphi %s1093, %s1093
                %s1117 = sphi %s1101, %s1101
              $region145: #{_lambda_.14} parent=141 // loop_header_branch
                %1114 = sbr.rel (%p1112) target = $region149
              $region146: #{_lambda_.14} parent=141 // loop_body
                %v1118 = vld [vmem:[%s1116] sm:%s1109]
                %1119 = vst [vmem:[%s1117] sm:%s1109] %v1118
                %v1120 = vld [vmem:[%s1116 + $0x4] sm:%s1109]
                %1121 = vst [vmem:[%s1117 + $0x10] sm:%s1109] %v1120
                %v1122 = vld [vmem:[%s1116 + $0x8] sm:%s1109]
                %1123 = vst [vmem:[%s1117 + $0x20] sm:%s1109] %v1122
                %v1124 = vld [vmem:[%s1116 + $0xc] sm:%s1109]
                %1125 = vst [vmem:[%s1117 + $0x30] sm:%s1109] %v1124
              $region147: #{_lambda_.14} parent=141 // loop_footer
                %s1115 = sadd.s32 1, %s1111
              $region148: #{_lambda_.14} parent=141 // loop_footer_branch
                %1110 = sbr.rel target = $region144
              $region149: #{_lambda_.14} parent=141 // loop_exit
                _
            $region142: #{_lambda_.14} parent=133 // pred_fallthru
              _
          $region134: #{_lambda_.14} parent=129 // pred_fallthru
            _
          %1154 = vnop
        $region130: #{_lambda_.14} parent=109 // pred_fallthru
          _
      $region110: #{_lambda_.14} parent=5 // pred_fallthru
        _
      %p1155 = scmp.le.s32.totalorder 2, %s10
      // Predicated region
      $region168: #{_lambda_.14} parent=5 // pred_check
        %p1156 = pneg %p1155
      $region169: #{_lambda_.14} parent=5 // pred_check_branch
        %1158 = sbr.rel (%p1156) target = $region171
      $region170: #{_lambda_.14} parent=5 // pred_region
        %s1159 = ssub.s32 %s10, 2
        // Predicated region
        $region172: #{_lambda_.14} parent=170 // pred_check
          %p1160 = pneg %p170
        $region173: #{_lambda_.14} parent=170 // pred_check_branch
          %1162 = sbr.rel (%p1160) target = $region175
        $region174: #{_lambda_.14} parent=170 // pred_region
          %s1163 = sand.u32 %s155, 1
          %s1164 = sand.u32 %s155, 1
          %s1165 = smul.addr %s1164, 16
          %s1166 = scalar_lea.vmem [#allocation5], %s1165
        $region175: #{_lambda_.14} parent=170 // pred_fallthru
          _
      $region171: #{_lambda_.14} parent=5 // pred_fallthru
        _
    $region6: #{_lambda_.14} parent=1 // loop_footer
      %s14 = sadd.s32 1, %s10
    $region7: #{_lambda_.14} parent=1 // loop_footer_branch
      %9 = sbr.rel target = $region3
    $region8: #{_lambda_.14} parent=1 // loop_exit
      _

// kernel: _lambda_.16
$region0: #{_lambda_.16}
  #allocation0 [shape = 'u32[]', space=smem, size = 0x4, offset = 0x4, fixed_abs, tag = 'smem constant byte address 0x4 - core index']
  #allocation1 [shape = 'u32[72,128]{1,0:T(1,128)}', space=vmem, size = 0x9000, scoped, tag = 'internal scratch']
  #allocation2 [shape = 'f32[16,128]{1,0:T(8,128)}', space=vmem, size = 0x2000, scoped, tag = 'scratch operand']
  %s0 = inlined_call_operand.vmem [shape: bf16[16,8192], index: 0, kind: input, shape index: {}]
  %s1 = inlined_call_operand.vmem [shape: bf16[8192,512], index: 1, kind: input, shape index: {}]
  %s2 = inlined_call_operand.vmem [shape: f32[1,512], index: 2, kind: input, shape index: {}]
  %s3 = inlined_call_operand.vmem [shape: bf16[16,512], index: 3, kind: output, shape index: {}]
  %s4 = sld [smem:[#allocation0]]
  $region154: #{_lambda_.16} parent=0
    _
  %s6 = ssub.s32 1, %s4
  %s7 = scalar_select 0, %s6, %s4
  $region1: #{_lambda_.16} parent=0
    #allocation3 [shape = 'u8[65536]{0}', space=vmem, size = 0x10000, scoped, tag = 'input window, operand 0']
    #allocation4 [shape = 'u8[524288]{0}', space=vmem, size = 0x80000, scoped, tag = 'input window, operand 1']
    #allocation5 [shape = 'u8[8192]{0}', space=vmem, size = 0x2000, scoped, tag = 'output window, operand 0']
    loop: start=0, step=1, limit=34
    $region2: #{_lambda_.16} parent=1 // loop_pre_header
      _
    $region3: #{_lambda_.16} parent=1 // loop_header
      %s9 = sphi 0, %s13
      %p10 = scmp.ge.s32.totalorder %s9, 34
      %s16 = sphi 0, %s35
      %s17 = sphi 0, %s31
      %s18 = sphi 0, %s27
      %s19 = sphi 0, %s16
      %s20 = sphi 0, %s17
      %s21 = sphi 0, %s18
      %s22 = sphi 0, %s19
      %s23 = sphi 0, %s20
      %s24 = sphi 0, %s21
      %s40 = sphi 0, %s42
      %s43 = sphi 0, %s40
      %s44 = sphi 0, %s43
      %s60 = sphi 0, %s44
      %s68 = sphi 0, %s70
      %s71 = sphi 0, %s68
      %s72 = sphi 0, %s71
      %s88 = sphi 0, %s72
      %s94 = sphi 0, %s96
      %s97 = sphi 0, %s94
      %s98 = sphi 0, %s97
      %s114 = sphi 0, %s98
      %s122 = sphi 0, %s124
      %s125 = sphi 0, %s122
      %s126 = sphi 0, %s125
      %s142 = sphi 0, %s126
    $region4: #{_lambda_.16} parent=1 // loop_header_branch
      %12 = sbr.rel (%p10) target = $region8
    $region5: #{_lambda_.16} parent=1 // loop_body
      %s14 = ssub.s32 %s9, 1
      %s15 = ssub.s32 %s9, 2
      %s25 = sadd.s32 1, %s18
      %p26 = scmp.ge.s32.totalorder %s25, 8
      %s27 = scalar_select %p26, 0, %s25
      %s28 = sadd.s32 1, %s17
      %s29 = scalar_select %p26, %s28, %s17
      %p30 = scmp.ge.s32.totalorder %s29, 4
      %s31 = scalar_select %p30, 0, %s29
      %s32 = sadd.s32 1, %s16
      %s33 = scalar_select %p30, %s32, %s16
      %p34 = scmp.ge.s32.totalorder %s33, 1
      %s35 = scalar_select %p34, 0, %s33
      %s36 = ssub.s32 %s16, %s35
      %s37 = ssub.s32 %s18, %s27
      %s38 = sor.u32 %s36, %s37
      %p39 = scmp.eq.s32.totalorder %s38, 0
      %s41 = sadd.s32 %s40, 1
      %s42 = scalar_select %p39, %s40, %s41
      %p45 = pneg %p39
      %p46 = scmp.eq.s32.totalorder %s9, 31
      %p47 = por %p45, %p46
      %p48 = scmp.ne.s32.totalorder %s40, %s43
      %p49 = scmp.eq.s32.totalorder %s9, 0
      %p50 = por %p48, %p49
      %p51 = scmp.ne.s32.totalorder %s40, %s43
      %p52 = scmp.eq.s32.totalorder %s14, 31
      %p53 = por %p51, %p52
      %p54 = scmp.ne.s32.totalorder %s43, %s44
      %p55 = scmp.eq.s32.totalorder %s14, 0
      %p56 = por %p54, %p55
      %p57 = scmp.ne.s32.totalorder %s43, %s44
      %p58 = scmp.eq.s32.totalorder %s15, 31
      %p59 = por %p57, %p58
      %p61 = scmp.ne.s32.totalorder %s44, %s60
      %p62 = scmp.eq.s32.totalorder %s15, 0
      %p63 = por %p61, %p62
      %s64 = ssub.s32 %s18, %s27
      %s65 = ssub.s32 %s17, %s31
      %s66 = sor.u32 %s64, %s65
      %p67 = scmp.eq.s32.totalorder %s66, 0
      %s69 = sadd.s32 %s68, 1
      %s70 = scalar_select %p67, %s68, %s69
      %p73 = pneg %p67
      %p74 = scmp.eq.s32.totalorder %s9, 31
      %p75 = por %p73, %p74
      %p76 = scmp.ne.s32.totalorder %s68, %s71
      %p77 = scmp.eq.s32.totalorder %s9, 0
      %p78 = por %p76, %p77
      %p79 = scmp.ne.s32.totalorder %s68, %s71
      %p80 = scmp.eq.s32.totalorder %s14, 31
      %p81 = por %p79, %p80
      %p82 = scmp.ne.s32.totalorder %s71, %s72
      %p83 = scmp.eq.s32.totalorder %s14, 0
      %p84 = por %p82, %p83
      %p85 = scmp.ne.s32.totalorder %s71, %s72
      %p86 = scmp.eq.s32.totalorder %s15, 31
      %p87 = por %p85, %p86
      %p89 = scmp.ne.s32.totalorder %s72, %s88
      %p90 = scmp.eq.s32.totalorder %s15, 0
      %p91 = por %p89, %p90
      %s92 = ssub.s32 %s17, %s31
      %p93 = scmp.eq.s32.totalorder %s92, 0
      %s95 = sadd.s32 %s94, 1
      %s96 = scalar_select %p93, %s94, %s95
      %p99 = pneg %p93
      %p100 = scmp.eq.s32.totalorder %s9, 31
      %p101 = por %p99, %p100
      %p102 = scmp.ne.s32.totalorder %s94, %s97
      %p103 = scmp.eq.s32.totalorder %s9, 0
      %p104 = por %p102, %p103
      %p105 = scmp.ne.s32.totalorder %s94, %s97
      %p106 = scmp.eq.s32.totalorder %s14, 31
      %p107 = por %p105, %p106
      %p108 = scmp.ne.s32.totalorder %s97, %s98
      %p109 = scmp.eq.s32.totalorder %s14, 0
      %p110 = por %p108, %p109
      %p111 = scmp.ne.s32.totalorder %s97, %s98
      %p112 = scmp.eq.s32.totalorder %s15, 31
      %p113 = por %p111, %p112
      %p115 = scmp.ne.s32.totalorder %s98, %s114
      %p116 = scmp.eq.s32.totalorder %s15, 0
      %p117 = por %p115, %p116
      %s118 = ssub.s32 %s16, %s35
      %s119 = ssub.s32 %s17, %s31
      %s120 = sor.u32 %s118, %s119
      %p121 = scmp.eq.s32.totalorder %s120, 0
      %s123 = sadd.s32 %s122, 1
      %s124 = scalar_select %p121, %s122, %s123
      %p127 = pneg %p121
      %p128 = scmp.eq.s32.totalorder %s9, 31
      %p129 = por %p127, %p128
      %p130 = scmp.ne.s32.totalorder %s122, %s125
      %p131 = scmp.eq.s32.totalorder %s9, 0
      %p132 = por %p130, %p131
      %p133 = scmp.ne.s32.totalorder %s122, %s125
      %p134 = scmp.eq.s32.totalorder %s14, 31
      %p135 = por %p133, %p134
      %p136 = scmp.ne.s32.totalorder %s125, %s126
      %p137 = scmp.eq.s32.totalorder %s14, 0
      %p138 = por %p136, %p137
      %p139 = scmp.ne.s32.totalorder %s125, %s126
      %p140 = scmp.eq.s32.totalorder %s15, 31
      %p141 = por %p139, %p140
      %p143 = scmp.ne.s32.totalorder %s126, %s142
      %p144 = scmp.eq.s32.totalorder %s15, 0
      %p145 = por %p143, %p144
      %p146 = scmp.le.s32.totalorder 1, %s9
      %p147 = scmp.lt.s32.totalorder %s9, 33
      %p148 = pnand %p146, %p147
      %p149 = pneg %p148
      // Predicated region
      $region9: #{_lambda_.16} parent=5 // pred_check
        _
      $region10: #{_lambda_.16} parent=5 // pred_check_branch
        %151 = sbr.rel (%p148) target = $region12
      $region11: #{_lambda_.16} parent=5 // pred_region
        %s152 = ssub.s32 %s9, 1
      $region12: #{_lambda_.16} parent=5 // pred_fallthru
        _
      %p153 = scmp.lt.s32.totalorder %s9, 32
      // Predicated region
      $region13: #{_lambda_.16} parent=5 // pred_check
        %p154 = pneg %p153
      $region14: #{_lambda_.16} parent=5 // pred_check_branch
        %156 = sbr.rel (%p154) target = $region16
      $region15: #{_lambda_.16} parent=5 // pred_region
        // Predicated region
        $region17: #{_lambda_.16} parent=15 // pred_check
          %p157 = pneg %p50
        $region18: #{_lambda_.16} parent=15 // pred_check_branch
          %159 = sbr.rel (%p157) target = $region20
        $region19: #{_lambda_.16} parent=15 // pred_region
          %s160 = sand.u32 %s40, 1
          %s161 = sand.u32 %s40, 1
          %s162 = smul.addr %s161, 64
          %s163 = scalar_lea.vmem [#allocation3], %s162
          %s164 = smul.u32 2, %s16
          %s165 = smul.u32 8, %s18
          %s166 = smul.addr %s164, 64
          %s167 = sadd.s32 %s165, %s166
          %s168 = smul.addr %s167, 4
          %s169 = scalar_lea.vmem %s0, %s168
          // Predicated region
          $region21: #{_lambda_.16} parent=19 // pred_check
            _
          $region22: #{_lambda_.16} parent=19 // pred_check_branch
            %171 = sbr.rel (0) target = $region24
          $region23: #{_lambda_.16} parent=19 // pred_region
            // Predicated region
            $region25: #{_lambda_.16} parent=23 // pred_check
              _
            $region26: #{_lambda_.16} parent=23 // pred_check_branch
              %173 = sbr.rel (0) target = $region28
            $region27: #{_lambda_.16} parent=23 // pred_region
              loop: start=0, step=1, limit=1
              $region29: #{_lambda_.16} parent=27 // loop_pre_header
                _
              $region30: #{_lambda_.16} parent=27 // loop_header
                %s175 = sphi 0, %s179
                %p176 = scmp.ge.s32.totalorder %s175, 1
                %s180 = sphi %s169, %s169
                %s181 = sphi %s163, %s163
              $region31: #{_lambda_.16} parent=27 // loop_header_branch
                %178 = sbr.rel (%p176) target = $region35
              $region32: #{_lambda_.16} parent=27 // loop_body
                %v182 = vld [vmem:[%s180] sm:$0xff]
                %183 = vst [vmem:[%s181] sm:$0xff] %v182
                %v184 = vld [vmem:[%s180 + $0x8] sm:$0xff]
                %185 = vst [vmem:[%s181 + $0x8] sm:$0xff] %v184
                %v186 = vld [vmem:[%s180 + $0x10] sm:$0xff]
                %187 = vst [vmem:[%s181 + $0x10] sm:$0xff] %v186
                %v188 = vld [vmem:[%s180 + $0x18] sm:$0xff]
                %189 = vst [vmem:[%s181 + $0x18] sm:$0xff] %v188
                %v190 = vld [vmem:[%s180 + $0x100] sm:$0xff]
                %191 = vst [vmem:[%s181 + $0x20] sm:$0xff] %v190
                %v192 = vld [vmem:[%s180 + $0x108] sm:$0xff]
                %193 = vst [vmem:[%s181 + $0x28] sm:$0xff] %v192
                %v194 = vld [vmem:[%s180 + $0x110] sm:$0xff]
                %195 = vst [vmem:[%s181 + $0x30] sm:$0xff] %v194
                %v196 = vld [vmem:[%s180 + $0x118] sm:$0xff]
                %197 = vst [vmem:[%s181 + $0x38] sm:$0xff] %v196
              $region33: #{_lambda_.16} parent=27 // loop_footer
                %s179 = sadd.s32 1, %s175
              $region34: #{_lambda_.16} parent=27 // loop_footer_branch
                %174 = sbr.rel target = $region30
              $region35: #{_lambda_.16} parent=27 // loop_exit
                _
            $region28: #{_lambda_.16} parent=23 // pred_fallthru
              _
            // Predicated region
            $region36: #{_lambda_.16} parent=23 // pred_check
              _
            $region37: #{_lambda_.16} parent=23 // pred_check_branch
              %199 = sbr.rel target = $region39
            $region38: #{_lambda_.16} parent=23 // pred_region
              _
            $region39: #{_lambda_.16} parent=23 // pred_fallthru
              _
          $region24: #{_lambda_.16} parent=19 // pred_fallthru
            _
          %200 = vnop
        $region20: #{_lambda_.16} parent=15 // pred_fallthru
          _
        // Predicated region
        $region40: #{_lambda_.16} parent=15 // pred_check
          %p201 = pneg %p78
        $region41: #{_lambda_.16} parent=15 // pred_check_branch
          %203 = sbr.rel (%p201) target = $region43
        $region42: #{_lambda_.16} parent=15 // pred_region
          %s204 = sand.u32 %s68, 1
          %s205 = sand.u32 %s68, 1
          %s206 = smul.addr %s205, 512
          %s207 = scalar_lea.vmem [#allocation4], %s206
          %s208 = smul.u32 128, %s18
          %s209 = smul.addr %s208, 4
          %s210 = sadd.s32 %s17, %s209
          %s211 = smul.addr %s210, 4
          %s212 = scalar_lea.vmem %s1, %s211
          // Predicated region
          $region44: #{_lambda_.16} parent=42 // pred_check
            _
          $region45: #{_lambda_.16} parent=42 // pred_check_branch
            %214 = sbr.rel (0) target = $region47
          $region46: #{_lambda_.16} parent=42 // pred_region
            // Predicated region
            $region48: #{_lambda_.16} parent=46 // pred_check
              _
            $region49: #{_lambda_.16} parent=46 // pred_check_branch
              %216 = sbr.rel target = $region51
            $region50: #{_lambda_.16} parent=46 // pred_region
              // Predicated region
              $region63: #{_lambda_.16} parent=50 // pred_check
                _
              $region64: #{_lambda_.16} parent=50 // pred_check_branch
                %486 = sbr.rel (0) target = $region66
              $region65: #{_lambda_.16} parent=50 // pred_region
                loop: start=0, step=1, limit=1
                $region67: #{_lambda_.16} parent=65 // loop_pre_header
                  _
                $region68: #{_lambda_.16} parent=65 // loop_header
                  %s488 = sphi 0, %s492
                  %p489 = scmp.ge.s32.totalorder %s488, 1
                  %s493 = sphi %s212, %s212
                  %s494 = sphi %s207, %s207
                $region69: #{_lambda_.16} parent=65 // loop_header_branch
                  %491 = sbr.rel (%p489) target = $region73
                $region70: #{_lambda_.16} parent=65 // loop_body
                  _
                $region71: #{_lambda_.16} parent=65 // loop_footer
                  %s492 = sadd.s32 1, %s488
                $region72: #{_lambda_.16} parent=65 // loop_footer_branch
                  %487 = sbr.rel target = $region68
                $region73: #{_lambda_.16} parent=65 // loop_exit
                  _
                %s496 = ssub.s32 16, 1
                loop: start=0, step=1, limit=1
                $region74: #{_lambda_.16} parent=65 // loop_pre_header
                  _
                $region75: #{_lambda_.16} parent=65 // loop_header
                  %s498 = sphi 0, %s502
                  %p499 = scmp.ge.s32.totalorder %s498, 1
                  %s503 = sphi %s212, %s212
                  %s504 = sphi %s207, %s207
                $region76: #{_lambda_.16} parent=65 // loop_header_branch
                  %501 = sbr.rel (%p499) target = $region80
                $region77: #{_lambda_.16} parent=65 // loop_body
                  %v505 = vld [vmem:[%s503] sm:%s496]
                  %506 = vst [vmem:[%s504] sm:%s496] %v505
                  %v507 = vld [vmem:[%s503 + $0x10] sm:%s496]
                  %508 = vst [vmem:[%s504 + $0x4] sm:%s496] %v507
                  %v509 = vld [vmem:[%s503 + $0x20] sm:%s496]
                  %510 = vst [vmem:[%s504 + $0x8] sm:%s496] %v509
                  %v511 = vld [vmem:[%s503 + $0x30] sm:%s496]
                  %512 = vst [vmem:[%s504 + $0xc] sm:%s496] %v511
                  %v513 = vld [vmem:[%s503 + $0x40] sm:%s496]
                  %514 = vst [vmem:[%s504 + $0x10] sm:%s496] %v513
                  %v515 = vld [vmem:[%s503 + $0x50] sm:%s496]
                  %516 = vst [vmem:[%s504 + $0x14] sm:%s496] %v515
                  %v517 = vld [vmem:[%s503 + $0x60] sm:%s496]
                  %518 = vst [vmem:[%s504 + $0x18] sm:%s496] %v517
                  %v519 = vld [vmem:[%s503 + $0x70] sm:%s496]
                  %520 = vst [vmem:[%s504 + $0x1c] sm:%s496] %v519
                  %v521 = vld [vmem:[%s503 + $0x80] sm:%s496]
                  %522 = vst [vmem:[%s504 + $0x20] sm:%s496] %v521
                  %v523 = vld [vmem:[%s503 + $0x90] sm:%s496]
                  %524 = vst [vmem:[%s504 + $0x24] sm:%s496] %v523
                  %v525 = vld [vmem:[%s503 + $0xa0] sm:%s496]
                  %526 = vst [vmem:[%s504 + $0x28] sm:%s496] %v525
                  %v527 = vld [vmem:[%s503 + $0xb0] sm:%s496]
                  %528 = vst [vmem:[%s504 + $0x2c] sm:%s496] %v527
                  %v529 = vld [vmem:[%s503 + $0xc0] sm:%s496]
                  %530 = vst [vmem:[%s504 + $0x30] sm:%s496] %v529
                  %v531 = vld [vmem:[%s503 + $0xd0] sm:%s496]
                  %532 = vst [vmem:[%s504 + $0x34] sm:%s496] %v531
                  %v533 = vld [vmem:[%s503 + $0xe0] sm:%s496]
                  %534 = vst [vmem:[%s504 + $0x38] sm:%s496] %v533
                  %v535 = vld [vmem:[%s503 + $0xf0] sm:%s496]
                  %536 = vst [vmem:[%s504 + $0x3c] sm:%s496] %v535
                  %v537 = vld [vmem:[%s503 + $0x100] sm:%s496]
                  %538 = vst [vmem:[%s504 + $0x40] sm:%s496] %v537
                  %v539 = vld [vmem:[%s503 + $0x110] sm:%s496]
                  %540 = vst [vmem:[%s504 + $0x44] sm:%s496] %v539
                  %v541 = vld [vmem:[%s503 + $0x120] sm:%s496]
                  %542 = vst [vmem:[%s504 + $0x48] sm:%s496] %v541
                  %v543 = vld [vmem:[%s503 + $0x130] sm:%s496]
                  %544 = vst [vmem:[%s504 + $0x4c] sm:%s496] %v543
                  %v545 = vld [vmem:[%s503 + $0x140] sm:%s496]
                  %546 = vst [vmem:[%s504 + $0x50] sm:%s496] %v545
                  %v547 = vld [vmem:[%s503 + $0x150] sm:%s496]
                  %548 = vst [vmem:[%s504 + $0x54] sm:%s496] %v547
                  %v549 = vld [vmem:[%s503 + $0x160] sm:%s496]
                  %550 = vst [vmem:[%s504 + $0x58] sm:%s496] %v549
                  %v551 = vld [vmem:[%s503 + $0x170] sm:%s496]
                  %552 = vst [vmem:[%s504 + $0x5c] sm:%s496] %v551
                  %v553 = vld [vmem:[%s503 + $0x180] sm:%s496]
                  %554 = vst [vmem:[%s504 + $0x60] sm:%s496] %v553
                  %v555 = vld [vmem:[%s503 + $0x190] sm:%s496]
                  %556 = vst [vmem:[%s504 + $0x64] sm:%s496] %v555
                  %v557 = vld [vmem:[%s503 + $0x1a0] sm:%s496]
                  %558 = vst [vmem:[%s504 + $0x68] sm:%s496] %v557
                  %v559 = vld [vmem:[%s503 + $0x1b0] sm:%s496]
                  %560 = vst [vmem:[%s504 + $0x6c] sm:%s496] %v559
                  %v561 = vld [vmem:[%s503 + $0x1c0] sm:%s496]
                  %562 = vst [vmem:[%s504 + $0x70] sm:%s496] %v561
                  %v563 = vld [vmem:[%s503 + $0x1d0] sm:%s496]
                  %564 = vst [vmem:[%s504 + $0x74] sm:%s496] %v563
                  %v565 = vld [vmem:[%s503 + $0x1e0] sm:%s496]
                  %566 = vst [vmem:[%s504 + $0x78] sm:%s496] %v565
                  %v567 = vld [vmem:[%s503 + $0x1f0] sm:%s496]
                  %568 = vst [vmem:[%s504 + $0x7c] sm:%s496] %v567
                  %v569 = vld [vmem:[%s503 + $0x200] sm:%s496]
                  %570 = vst [vmem:[%s504 + $0x80] sm:%s496] %v569
                  %v571 = vld [vmem:[%s503 + $0x210] sm:%s496]
                  %572 = vst [vmem:[%s504 + $0x84] sm:%s496] %v571
                  %v573 = vld [vmem:[%s503 + $0x220] sm:%s496]
                  %574 = vst [vmem:[%s504 + $0x88] sm:%s496] %v573
                  %v575 = vld [vmem:[%s503 + $0x230] sm:%s496]
                  %576 = vst [vmem:[%s504 + $0x8c] sm:%s496] %v575
                  %v577 = vld [vmem:[%s503 + $0x240] sm:%s496]
                  %578 = vst [vmem:[%s504 + $0x90] sm:%s496] %v577
                  %v579 = vld [vmem:[%s503 + $0x250] sm:%s496]
                  %580 = vst [vmem:[%s504 + $0x94] sm:%s496] %v579
                  %v581 = vld [vmem:[%s503 + $0x260] sm:%s496]
                  %582 = vst [vmem:[%s504 + $0x98] sm:%s496] %v581
                  %v583 = vld [vmem:[%s503 + $0x270] sm:%s496]
                  %584 = vst [vmem:[%s504 + $0x9c] sm:%s496] %v583
                  %v585 = vld [vmem:[%s503 + $0x280] sm:%s496]
                  %586 = vst [vmem:[%s504 + $0xa0] sm:%s496] %v585
                  %v587 = vld [vmem:[%s503 + $0x290] sm:%s496]
                  %588 = vst [vmem:[%s504 + $0xa4] sm:%s496] %v587
                  %v589 = vld [vmem:[%s503 + $0x2a0] sm:%s496]
                  %590 = vst [vmem:[%s504 + $0xa8] sm:%s496] %v589
                  %v591 = vld [vmem:[%s503 + $0x2b0] sm:%s496]
                  %592 = vst [vmem:[%s504 + $0xac] sm:%s496] %v591
                  %v593 = vld [vmem:[%s503 + $0x2c0] sm:%s496]
                  %594 = vst [vmem:[%s504 + $0xb0] sm:%s496] %v593
                  %v595 = vld [vmem:[%s503 + $0x2d0] sm:%s496]
                  %596 = vst [vmem:[%s504 + $0xb4] sm:%s496] %v595
                  %v597 = vld [vmem:[%s503 + $0x2e0] sm:%s496]
                  %598 = vst [vmem:[%s504 + $0xb8] sm:%s496] %v597
                  %v599 = vld [vmem:[%s503 + $0x2f0] sm:%s496]
                  %600 = vst [vmem:[%s504 + $0xbc] sm:%s496] %v599
                  %v601 = vld [vmem:[%s503 + $0x300] sm:%s496]
                  %602 = vst [vmem:[%s504 + $0xc0] sm:%s496] %v601
                  %v603 = vld [vmem:[%s503 + $0x310] sm:%s496]
                  %604 = vst [vmem:[%s504 + $0xc4] sm:%s496] %v603
                  %v605 = vld [vmem:[%s503 + $0x320] sm:%s496]
                  %606 = vst [vmem:[%s504 + $0xc8] sm:%s496] %v605
                  %v607 = vld [vmem:[%s503 + $0x330] sm:%s496]
                  %608 = vst [vmem:[%s504 + $0xcc] sm:%s496] %v607
                  %v609 = vld [vmem:[%s503 + $0x340] sm:%s496]
                  %610 = vst [vmem:[%s504 + $0xd0] sm:%s496] %v609
                  %v611 = vld [vmem:[%s503 + $0x350] sm:%s496]
                  %612 = vst [vmem:[%s504 + $0xd4] sm:%s496] %v611
                  %v613 = vld [vmem:[%s503 + $0x360] sm:%s496]
                  %614 = vst [vmem:[%s504 + $0xd8] sm:%s496] %v613
                  %v615 = vld [vmem:[%s503 + $0x370] sm:%s496]
                  %616 = vst [vmem:[%s504 + $0xdc] sm:%s496] %v615
                  %v617 = vld [vmem:[%s503 + $0x380] sm:%s496]
                  %618 = vst [vmem:[%s504 + $0xe0] sm:%s496] %v617
                  %v619 = vld [vmem:[%s503 + $0x390] sm:%s496]
                  %620 = vst [vmem:[%s504 + $0xe4] sm:%s496] %v619
                  %v621 = vld [vmem:[%s503 + $0x3a0] sm:%s496]
                  %622 = vst [vmem:[%s504 + $0xe8] sm:%s496] %v621
                  %v623 = vld [vmem:[%s503 + $0x3b0] sm:%s496]
                  %624 = vst [vmem:[%s504 + $0xec] sm:%s496] %v623
                  %v625 = vld [vmem:[%s503 + $0x3c0] sm:%s496]
                  %626 = vst [vmem:[%s504 + $0xf0] sm:%s496] %v625
                  %v627 = vld [vmem:[%s503 + $0x3d0] sm:%s496]
                  %628 = vst [vmem:[%s504 + $0xf4] sm:%s496] %v627
                  %v629 = vld [vmem:[%s503 + $0x3e0] sm:%s496]
                  %630 = vst [vmem:[%s504 + $0xf8] sm:%s496] %v629
                  %v631 = vld [vmem:[%s503 + $0x3f0] sm:%s496]
                  %632 = vst [vmem:[%s504 + $0xfc] sm:%s496] %v631
                  %v633 = vld [vmem:[%s503 + $0x400] sm:%s496]
                  %634 = vst [vmem:[%s504 + $0x100] sm:%s496] %v633
                  %v635 = vld [vmem:[%s503 + $0x410] sm:%s496]
                  %636 = vst [vmem:[%s504 + $0x104] sm:%s496] %v635
                  %v637 = vld [vmem:[%s503 + $0x420] sm:%s496]
                  %638 = vst [vmem:[%s504 + $0x108] sm:%s496] %v637
                  %v639 = vld [vmem:[%s503 + $0x430] sm:%s496]
                  %640 = vst [vmem:[%s504 + $0x10c] sm:%s496] %v639
                  %v641 = vld [vmem:[%s503 + $0x440] sm:%s496]
                  %642 = vst [vmem:[%s504 + $0x110] sm:%s496] %v641
                  %v643 = vld [vmem:[%s503 + $0x450] sm:%s496]
                  %644 = vst [vmem:[%s504 + $0x114] sm:%s496] %v643
                  %v645 = vld [vmem:[%s503 + $0x460] sm:%s496]
                  %646 = vst [vmem:[%s504 + $0x118] sm:%s496] %v645
                  %v647 = vld [vmem:[%s503 + $0x470] sm:%s496]
                  %648 = vst [vmem:[%s504 + $0x11c] sm:%s496] %v647
                  %v649 = vld [vmem:[%s503 + $0x480] sm:%s496]
                  %650 = vst [vmem:[%s504 + $0x120] sm:%s496] %v649
                  %v651 = vld [vmem:[%s503 + $0x490] sm:%s496]
                  %652 = vst [vmem:[%s504 + $0x124] sm:%s496] %v651
                  %v653 = vld [vmem:[%s503 + $0x4a0] sm:%s496]
                  %654 = vst [vmem:[%s504 + $0x128] sm:%s496] %v653
                  %v655 = vld [vmem:[%s503 + $0x4b0] sm:%s496]
                  %656 = vst [vmem:[%s504 + $0x12c] sm:%s496] %v655
                  %v657 = vld [vmem:[%s503 + $0x4c0] sm:%s496]
                  %658 = vst [vmem:[%s504 + $0x130] sm:%s496] %v657
                  %v659 = vld [vmem:[%s503 + $0x4d0] sm:%s496]
                  %660 = vst [vmem:[%s504 + $0x134] sm:%s496] %v659
                  %v661 = vld [vmem:[%s503 + $0x4e0] sm:%s496]
                  %662 = vst [vmem:[%s504 + $0x138] sm:%s496] %v661
                  %v663 = vld [vmem:[%s503 + $0x4f0] sm:%s496]
                  %664 = vst [vmem:[%s504 + $0x13c] sm:%s496] %v663
                  %v665 = vld [vmem:[%s503 + $0x500] sm:%s496]
                  %666 = vst [vmem:[%s504 + $0x140] sm:%s496] %v665
                  %v667 = vld [vmem:[%s503 + $0x510] sm:%s496]
                  %668 = vst [vmem:[%s504 + $0x144] sm:%s496] %v667
                  %v669 = vld [vmem:[%s503 + $0x520] sm:%s496]
                  %670 = vst [vmem:[%s504 + $0x148] sm:%s496] %v669
                  %v671 = vld [vmem:[%s503 + $0x530] sm:%s496]
                  %672 = vst [vmem:[%s504 + $0x14c] sm:%s496] %v671
                  %v673 = vld [vmem:[%s503 + $0x540] sm:%s496]
                  %674 = vst [vmem:[%s504 + $0x150] sm:%s496] %v673
                  %v675 = vld [vmem:[%s503 + $0x550] sm:%s496]
                  %676 = vst [vmem:[%s504 + $0x154] sm:%s496] %v675
                  %v677 = vld [vmem:[%s503 + $0x560] sm:%s496]
                  %678 = vst [vmem:[%s504 + $0x158] sm:%s496] %v677
                  %v679 = vld [vmem:[%s503 + $0x570] sm:%s496]
                  %680 = vst [vmem:[%s504 + $0x15c] sm:%s496] %v679
                  %v681 = vld [vmem:[%s503 + $0x580] sm:%s496]
                  %682 = vst [vmem:[%s504 + $0x160] sm:%s496] %v681
                  %v683 = vld [vmem:[%s503 + $0x590] sm:%s496]
                  %684 = vst [vmem:[%s504 + $0x164] sm:%s496] %v683
                  %v685 = vld [vmem:[%s503 + $0x5a0] sm:%s496]
                  %686 = vst [vmem:[%s504 + $0x168] sm:%s496] %v685
                  %v687 = vld [vmem:[%s503 + $0x5b0] sm:%s496]
                  %688 = vst [vmem:[%s504 + $0x16c] sm:%s496] %v687
                  %v689 = vld [vmem:[%s503 + $0x5c0] sm:%s496]
                  %690 = vst [vmem:[%s504 + $0x170] sm:%s496] %v689
                  %v691 = vld [vmem:[%s503 + $0x5d0] sm:%s496]
                  %692 = vst [vmem:[%s504 + $0x174] sm:%s496] %v691
                  %v693 = vld [vmem:[%s503 + $0x5e0] sm:%s496]
                  %694 = vst [vmem:[%s504 + $0x178] sm:%s496] %v693
                  %v695 = vld [vmem:[%s503 + $0x5f0] sm:%s496]
                  %696 = vst [vmem:[%s504 + $0x17c] sm:%s496] %v695
                  %v697 = vld [vmem:[%s503 + $0x600] sm:%s496]
                  %698 = vst [vmem:[%s504 + $0x180] sm:%s496] %v697
                  %v699 = vld [vmem:[%s503 + $0x610] sm:%s496]
                  %700 = vst [vmem:[%s504 + $0x184] sm:%s496] %v699
                  %v701 = vld [vmem:[%s503 + $0x620] sm:%s496]
                  %702 = vst [vmem:[%s504 + $0x188] sm:%s496] %v701
                  %v703 = vld [vmem:[%s503 + $0x630] sm:%s496]
                  %704 = vst [vmem:[%s504 + $0x18c] sm:%s496] %v703
                  %v705 = vld [vmem:[%s503 + $0x640] sm:%s496]
                  %706 = vst [vmem:[%s504 + $0x190] sm:%s496] %v705
                  %v707 = vld [vmem:[%s503 + $0x650] sm:%s496]
                  %708 = vst [vmem:[%s504 + $0x194] sm:%s496] %v707
                  %v709 = vld [vmem:[%s503 + $0x660] sm:%s496]
                  %710 = vst [vmem:[%s504 + $0x198] sm:%s496] %v709
                  %v711 = vld [vmem:[%s503 + $0x670] sm:%s496]
                  %712 = vst [vmem:[%s504 + $0x19c] sm:%s496] %v711
                  %v713 = vld [vmem:[%s503 + $0x680] sm:%s496]
                  %714 = vst [vmem:[%s504 + $0x1a0] sm:%s496] %v713
                  %v715 = vld [vmem:[%s503 + $0x690] sm:%s496]
                  %716 = vst [vmem:[%s504 + $0x1a4] sm:%s496] %v715
                  %v717 = vld [vmem:[%s503 + $0x6a0] sm:%s496]
                  %718 = vst [vmem:[%s504 + $0x1a8] sm:%s496] %v717
                  %v719 = vld [vmem:[%s503 + $0x6b0] sm:%s496]
                  %720 = vst [vmem:[%s504 + $0x1ac] sm:%s496] %v719
                  %v721 = vld [vmem:[%s503 + $0x6c0] sm:%s496]
                  %722 = vst [vmem:[%s504 + $0x1b0] sm:%s496] %v721
                  %v723 = vld [vmem:[%s503 + $0x6d0] sm:%s496]
                  %724 = vst [vmem:[%s504 + $0x1b4] sm:%s496] %v723
                  %v725 = vld [vmem:[%s503 + $0x6e0] sm:%s496]
                  %726 = vst [vmem:[%s504 + $0x1b8] sm:%s496] %v725
                  %v727 = vld [vmem:[%s503 + $0x6f0] sm:%s496]
                  %728 = vst [vmem:[%s504 + $0x1bc] sm:%s496] %v727
                  %v729 = vld [vmem:[%s503 + $0x700] sm:%s496]
                  %730 = vst [vmem:[%s504 + $0x1c0] sm:%s496] %v729
                  %v731 = vld [vmem:[%s503 + $0x710] sm:%s496]
                  %732 = vst [vmem:[%s504 + $0x1c4] sm:%s496] %v731
                  %v733 = vld [vmem:[%s503 + $0x720] sm:%s496]
                  %734 = vst [vmem:[%s504 + $0x1c8] sm:%s496] %v733
                  %v735 = vld [vmem:[%s503 + $0x730] sm:%s496]
                  %736 = vst [vmem:[%s504 + $0x1cc] sm:%s496] %v735
                  %v737 = vld [vmem:[%s503 + $0x740] sm:%s496]
                  %738 = vst [vmem:[%s504 + $0x1d0] sm:%s496] %v737
                  %v739 = vld [vmem:[%s503 + $0x750] sm:%s496]
                  %740 = vst [vmem:[%s504 + $0x1d4] sm:%s496] %v739
                  %v741 = vld [vmem:[%s503 + $0x760] sm:%s496]
                  %742 = vst [vmem:[%s504 + $0x1d8] sm:%s496] %v741
                  %v743 = vld [vmem:[%s503 + $0x770] sm:%s496]
                  %744 = vst [vmem:[%s504 + $0x1dc] sm:%s496] %v743
                  %v745 = vld [vmem:[%s503 + $0x780] sm:%s496]
                  %746 = vst [vmem:[%s504 + $0x1e0] sm:%s496] %v745
                  %v747 = vld [vmem:[%s503 + $0x790] sm:%s496]
                  %748 = vst [vmem:[%s504 + $0x1e4] sm:%s496] %v747
                  %v749 = vld [vmem:[%s503 + $0x7a0] sm:%s496]
                  %750 = vst [vmem:[%s504 + $0x1e8] sm:%s496] %v749
                  %v751 = vld [vmem:[%s503 + $0x7b0] sm:%s496]
                  %752 = vst [vmem:[%s504 + $0x1ec] sm:%s496] %v751
                  %v753 = vld [vmem:[%s503 + $0x7c0] sm:%s496]
                  %754 = vst [vmem:[%s504 + $0x1f0] sm:%s496] %v753
                  %v755 = vld [vmem:[%s503 + $0x7d0] sm:%s496]
                  %756 = vst [vmem:[%s504 + $0x1f4] sm:%s496] %v755
                  %v757 = vld [vmem:[%s503 + $0x7e0] sm:%s496]
                  %758 = vst [vmem:[%s504 + $0x1f8] sm:%s496] %v757
                  %v759 = vld [vmem:[%s503 + $0x7f0] sm:%s496]
                  %760 = vst [vmem:[%s504 + $0x1fc] sm:%s496] %v759
                $region78: #{_lambda_.16} parent=65 // loop_footer
                  %s502 = sadd.s32 1, %s498
                $region79: #{_lambda_.16} parent=65 // loop_footer_branch
                  %497 = sbr.rel target = $region75
                $region80: #{_lambda_.16} parent=65 // loop_exit
                  _
              $region66: #{_lambda_.16} parent=50 // pred_fallthru
                _
            $region51: #{_lambda_.16} parent=46 // pred_fallthru
              _
            // Predicated region
            $region52: #{_lambda_.16} parent=46 // pred_check
              _
            $region53: #{_lambda_.16} parent=46 // pred_check_branch
              %218 = sbr.rel (0) target = $region55
            $region54: #{_lambda_.16} parent=46 // pred_region
              %s220 = ssub.s32 16, 1
              loop: start=0, step=1, limit=1
              $region56: #{_lambda_.16} parent=54 // loop_pre_header
                _
              $region57: #{_lambda_.16} parent=54 // loop_header
                %s222 = sphi 0, %s226
                %p223 = scmp.ge.s32.totalorder %s222, 1
                %s227 = sphi %s212, %s212
                %s228 = sphi %s207, %s207
              $region58: #{_lambda_.16} parent=54 // loop_header_branch
                %225 = sbr.rel (%p223) target = $region62
              $region59: #{_lambda_.16} parent=54 // loop_body
                %v229 = vld [vmem:[%s227] sm:%s220]
                %230 = vst [vmem:[%s228] sm:%s220] %v229
                %v231 = vld [vmem:[%s227 + $0x10] sm:%s220]
                %232 = vst [vmem:[%s228 + $0x4] sm:%s220] %v231
                %v233 = vld [vmem:[%s227 + $0x20] sm:%s220]
                %234 = vst [vmem:[%s228 + $0x8] sm:%s220] %v233
                %v235 = vld [vmem:[%s227 + $0x30] sm:%s220]
                %236 = vst [vmem:[%s228 + $0xc] sm:%s220] %v235
                %v237 = vld [vmem:[%s227 + $0x40] sm:%s220]
                %238 = vst [vmem:[%s228 + $0x10] sm:%s220] %v237
                %v239 = vld [vmem:[%s227 + $0x50] sm:%s220]
                %240 = vst [vmem:[%s228 + $0x14] sm:%s220] %v239
                %v241 = vld [vmem:[%s227 + $0x60] sm:%s220]
                %242 = vst [vmem:[%s228 + $0x18] sm:%s220] %v241
                %v243 = vld [vmem:[%s227 + $0x70] sm:%s220]
                %244 = vst [vmem:[%s228 + $0x1c] sm:%s220] %v243
                %v245 = vld [vmem:[%s227 + $0x80] sm:%s220]
                %246 = vst [vmem:[%s228 + $0x20] sm:%s220] %v245
                %v247 = vld [vmem:[%s227 + $0x90] sm:%s220]
                %248 = vst [vmem:[%s228 + $0x24] sm:%s220] %v247
                %v249 = vld [vmem:[%s227 + $0xa0] sm:%s220]
                %250 = vst [vmem:[%s228 + $0x28] sm:%s220] %v249
                %v251 = vld [vmem:[%s227 + $0xb0] sm:%s220]
                %252 = vst [vmem:[%s228 + $0x2c] sm:%s220] %v251
                %v253 = vld [vmem:[%s227 + $0xc0] sm:%s220]
                %254 = vst [vmem:[%s228 + $0x30] sm:%s220] %v253
                %v255 = vld [vmem:[%s227 + $0xd0] sm:%s220]
                %256 = vst [vmem:[%s228 + $0x34] sm:%s220] %v255
                %v257 = vld [vmem:[%s227 + $0xe0] sm:%s220]
                %258 = vst [vmem:[%s228 + $0x38] sm:%s220] %v257
                %v259 = vld [vmem:[%s227 + $0xf0] sm:%s220]
                %260 = vst [vmem:[%s228 + $0x3c] sm:%s220] %v259
                %v261 = vld [vmem:[%s227 + $0x100] sm:%s220]
                %262 = vst [vmem:[%s228 + $0x40] sm:%s220] %v261
                %v263 = vld [vmem:[%s227 + $0x110] sm:%s220]
                %264 = vst [vmem:[%s228 + $0x44] sm:%s220] %v263
                %v265 = vld [vmem:[%s227 + $0x120] sm:%s220]
                %266 = vst [vmem:[%s228 + $0x48] sm:%s220] %v265
                %v267 = vld [vmem:[%s227 + $0x130] sm:%s220]
                %268 = vst [vmem:[%s228 + $0x4c] sm:%s220] %v267
                %v269 = vld [vmem:[%s227 + $0x140] sm:%s220]
                %270 = vst [vmem:[%s228 + $0x50] sm:%s220] %v269
                %v271 = vld [vmem:[%s227 + $0x150] sm:%s220]
                %272 = vst [vmem:[%s228 + $0x54] sm:%s220] %v271
                %v273 = vld [vmem:[%s227 + $0x160] sm:%s220]
                %274 = vst [vmem:[%s228 + $0x58] sm:%s220] %v273
                %v275 = vld [vmem:[%s227 + $0x170] sm:%s220]
                %276 = vst [vmem:[%s228 + $0x5c] sm:%s220] %v275
                %v277 = vld [vmem:[%s227 + $0x180] sm:%s220]
                %278 = vst [vmem:[%s228 + $0x60] sm:%s220] %v277
                %v279 = vld [vmem:[%s227 + $0x190] sm:%s220]
                %280 = vst [vmem:[%s228 + $0x64] sm:%s220] %v279
                %v281 = vld [vmem:[%s227 + $0x1a0] sm:%s220]
                %282 = vst [vmem:[%s228 + $0x68] sm:%s220] %v281
                %v283 = vld [vmem:[%s227 + $0x1b0] sm:%s220]
                %284 = vst [vmem:[%s228 + $0x6c] sm:%s220] %v283
                %v285 = vld [vmem:[%s227 + $0x1c0] sm:%s220]
                %286 = vst [vmem:[%s228 + $0x70] sm:%s220] %v285
                %v287 = vld [vmem:[%s227 + $0x1d0] sm:%s220]
                %288 = vst [vmem:[%s228 + $0x74] sm:%s220] %v287
                %v289 = vld [vmem:[%s227 + $0x1e0] sm:%s220]
                %290 = vst [vmem:[%s228 + $0x78] sm:%s220] %v289
                %v291 = vld [vmem:[%s227 + $0x1f0] sm:%s220]
                %292 = vst [vmem:[%s228 + $0x7c] sm:%s220] %v291
                %v293 = vld [vmem:[%s227 + $0x200] sm:%s220]
                %294 = vst [vmem:[%s228 + $0x80] sm:%s220] %v293
                %v295 = vld [vmem:[%s227 + $0x210] sm:%s220]
                %296 = vst [vmem:[%s228 + $0x84] sm:%s220] %v295
                %v297 = vld [vmem:[%s227 + $0x220] sm:%s220]
                %298 = vst [vmem:[%s228 + $0x88] sm:%s220] %v297
                %v299 = vld [vmem:[%s227 + $0x230] sm:%s220]
                %300 = vst [vmem:[%s228 + $0x8c] sm:%s220] %v299
                %v301 = vld [vmem:[%s227 + $0x240] sm:%s220]
                %302 = vst [vmem:[%s228 + $0x90] sm:%s220] %v301
                %v303 = vld [vmem:[%s227 + $0x250] sm:%s220]
                %304 = vst [vmem:[%s228 + $0x94] sm:%s220] %v303
                %v305 = vld [vmem:[%s227 + $0x260] sm:%s220]
                %306 = vst [vmem:[%s228 + $0x98] sm:%s220] %v305
                %v307 = vld [vmem:[%s227 + $0x270] sm:%s220]
                %308 = vst [vmem:[%s228 + $0x9c] sm:%s220] %v307
                %v309 = vld [vmem:[%s227 + $0x280] sm:%s220]
                %310 = vst [vmem:[%s228 + $0xa0] sm:%s220] %v309
                %v311 = vld [vmem:[%s227 + $0x290] sm:%s220]
                %312 = vst [vmem:[%s228 + $0xa4] sm:%s220] %v311
                %v313 = vld [vmem:[%s227 + $0x2a0] sm:%s220]
                %314 = vst [vmem:[%s228 + $0xa8] sm:%s220] %v313
                %v315 = vld [vmem:[%s227 + $0x2b0] sm:%s220]
                %316 = vst [vmem:[%s228 + $0xac] sm:%s220] %v315
                %v317 = vld [vmem:[%s227 + $0x2c0] sm:%s220]
                %318 = vst [vmem:[%s228 + $0xb0] sm:%s220] %v317
                %v319 = vld [vmem:[%s227 + $0x2d0] sm:%s220]
                %320 = vst [vmem:[%s228 + $0xb4] sm:%s220] %v319
                %v321 = vld [vmem:[%s227 + $0x2e0] sm:%s220]
                %322 = vst [vmem:[%s228 + $0xb8] sm:%s220] %v321
                %v323 = vld [vmem:[%s227 + $0x2f0] sm:%s220]
                %324 = vst [vmem:[%s228 + $0xbc] sm:%s220] %v323
                %v325 = vld [vmem:[%s227 + $0x300] sm:%s220]
                %326 = vst [vmem:[%s228 + $0xc0] sm:%s220] %v325
                %v327 = vld [vmem:[%s227 + $0x310] sm:%s220]
                %328 = vst [vmem:[%s228 + $0xc4] sm:%s220] %v327
                %v329 = vld [vmem:[%s227 + $0x320] sm:%s220]
                %330 = vst [vmem:[%s228 + $0xc8] sm:%s220] %v329
                %v331 = vld [vmem:[%s227 + $0x330] sm:%s220]
                %332 = vst [vmem:[%s228 + $0xcc] sm:%s220] %v331
                %v333 = vld [vmem:[%s227 + $0x340] sm:%s220]
                %334 = vst [vmem:[%s228 + $0xd0] sm:%s220] %v333
                %v335 = vld [vmem:[%s227 + $0x350] sm:%s220]
                %336 = vst [vmem:[%s228 + $0xd4] sm:%s220] %v335
                %v337 = vld [vmem:[%s227 + $0x360] sm:%s220]
                %338 = vst [vmem:[%s228 + $0xd8] sm:%s220] %v337
                %v339 = vld [vmem:[%s227 + $0x370] sm:%s220]
                %340 = vst [vmem:[%s228 + $0xdc] sm:%s220] %v339
                %v341 = vld [vmem:[%s227 + $0x380] sm:%s220]
                %342 = vst [vmem:[%s228 + $0xe0] sm:%s220] %v341
                %v343 = vld [vmem:[%s227 + $0x390] sm:%s220]
                %344 = vst [vmem:[%s228 + $0xe4] sm:%s220] %v343
                %v345 = vld [vmem:[%s227 + $0x3a0] sm:%s220]
                %346 = vst [vmem:[%s228 + $0xe8] sm:%s220] %v345
                %v347 = vld [vmem:[%s227 + $0x3b0] sm:%s220]
                %348 = vst [vmem:[%s228 + $0xec] sm:%s220] %v347
                %v349 = vld [vmem:[%s227 + $0x3c0] sm:%s220]
                %350 = vst [vmem:[%s228 + $0xf0] sm:%s220] %v349
                %v351 = vld [vmem:[%s227 + $0x3d0] sm:%s220]
                %352 = vst [vmem:[%s228 + $0xf4] sm:%s220] %v351
                %v353 = vld [vmem:[%s227 + $0x3e0] sm:%s220]
                %354 = vst [vmem:[%s228 + $0xf8] sm:%s220] %v353
                %v355 = vld [vmem:[%s227 + $0x3f0] sm:%s220]
                %356 = vst [vmem:[%s228 + $0xfc] sm:%s220] %v355
                %v357 = vld [vmem:[%s227 + $0x400] sm:%s220]
                %358 = vst [vmem:[%s228 + $0x100] sm:%s220] %v357
                %v359 = vld [vmem:[%s227 + $0x410] sm:%s220]
                %360 = vst [vmem:[%s228 + $0x104] sm:%s220] %v359
                %v361 = vld [vmem:[%s227 + $0x420] sm:%s220]
                %362 = vst [vmem:[%s228 + $0x108] sm:%s220] %v361
                %v363 = vld [vmem:[%s227 + $0x430] sm:%s220]
                %364 = vst [vmem:[%s228 + $0x10c] sm:%s220] %v363
                %v365 = vld [vmem:[%s227 + $0x440] sm:%s220]
                %366 = vst [vmem:[%s228 + $0x110] sm:%s220] %v365
                %v367 = vld [vmem:[%s227 + $0x450] sm:%s220]
                %368 = vst [vmem:[%s228 + $0x114] sm:%s220] %v367
                %v369 = vld [vmem:[%s227 + $0x460] sm:%s220]
                %370 = vst [vmem:[%s228 + $0x118] sm:%s220] %v369
                %v371 = vld [vmem:[%s227 + $0x470] sm:%s220]
                %372 = vst [vmem:[%s228 + $0x11c] sm:%s220] %v371
                %v373 = vld [vmem:[%s227 + $0x480] sm:%s220]
                %374 = vst [vmem:[%s228 + $0x120] sm:%s220] %v373
                %v375 = vld [vmem:[%s227 + $0x490] sm:%s220]
                %376 = vst [vmem:[%s228 + $0x124] sm:%s220] %v375
                %v377 = vld [vmem:[%s227 + $0x4a0] sm:%s220]
                %378 = vst [vmem:[%s228 + $0x128] sm:%s220] %v377
                %v379 = vld [vmem:[%s227 + $0x4b0] sm:%s220]
                %380 = vst [vmem:[%s228 + $0x12c] sm:%s220] %v379
                %v381 = vld [vmem:[%s227 + $0x4c0] sm:%s220]
                %382 = vst [vmem:[%s228 + $0x130] sm:%s220] %v381
                %v383 = vld [vmem:[%s227 + $0x4d0] sm:%s220]
                %384 = vst [vmem:[%s228 + $0x134] sm:%s220] %v383
                %v385 = vld [vmem:[%s227 + $0x4e0] sm:%s220]
                %386 = vst [vmem:[%s228 + $0x138] sm:%s220] %v385
                %v387 = vld [vmem:[%s227 + $0x4f0] sm:%s220]
                %388 = vst [vmem:[%s228 + $0x13c] sm:%s220] %v387
                %v389 = vld [vmem:[%s227 + $0x500] sm:%s220]
                %390 = vst [vmem:[%s228 + $0x140] sm:%s220] %v389
                %v391 = vld [vmem:[%s227 + $0x510] sm:%s220]
                %392 = vst [vmem:[%s228 + $0x144] sm:%s220] %v391
                %v393 = vld [vmem:[%s227 + $0x520] sm:%s220]
                %394 = vst [vmem:[%s228 + $0x148] sm:%s220] %v393
                %v395 = vld [vmem:[%s227 + $0x530] sm:%s220]
                %396 = vst [vmem:[%s228 + $0x14c] sm:%s220] %v395
                %v397 = vld [vmem:[%s227 + $0x540] sm:%s220]
                %398 = vst [vmem:[%s228 + $0x150] sm:%s220] %v397
                %v399 = vld [vmem:[%s227 + $0x550] sm:%s220]
                %400 = vst [vmem:[%s228 + $0x154] sm:%s220] %v399
                %v401 = vld [vmem:[%s227 + $0x560] sm:%s220]
                %402 = vst [vmem:[%s228 + $0x158] sm:%s220] %v401
                %v403 = vld [vmem:[%s227 + $0x570] sm:%s220]
                %404 = vst [vmem:[%s228 + $0x15c] sm:%s220] %v403
                %v405 = vld [vmem:[%s227 + $0x580] sm:%s220]
                %406 = vst [vmem:[%s228 + $0x160] sm:%s220] %v405
                %v407 = vld [vmem:[%s227 + $0x590] sm:%s220]
                %408 = vst [vmem:[%s228 + $0x164] sm:%s220] %v407
                %v409 = vld [vmem:[%s227 + $0x5a0] sm:%s220]
                %410 = vst [vmem:[%s228 + $0x168] sm:%s220] %v409
                %v411 = vld [vmem:[%s227 + $0x5b0] sm:%s220]
                %412 = vst [vmem:[%s228 + $0x16c] sm:%s220] %v411
                %v413 = vld [vmem:[%s227 + $0x5c0] sm:%s220]
                %414 = vst [vmem:[%s228 + $0x170] sm:%s220] %v413
                %v415 = vld [vmem:[%s227 + $0x5d0] sm:%s220]
                %416 = vst [vmem:[%s228 + $0x174] sm:%s220] %v415
                %v417 = vld [vmem:[%s227 + $0x5e0] sm:%s220]
                %418 = vst [vmem:[%s228 + $0x178] sm:%s220] %v417
                %v419 = vld [vmem:[%s227 + $0x5f0] sm:%s220]
                %420 = vst [vmem:[%s228 + $0x17c] sm:%s220] %v419
                %v421 = vld [vmem:[%s227 + $0x600] sm:%s220]
                %422 = vst [vmem:[%s228 + $0x180] sm:%s220] %v421
                %v423 = vld [vmem:[%s227 + $0x610] sm:%s220]
                %424 = vst [vmem:[%s228 + $0x184] sm:%s220] %v423
                %v425 = vld [vmem:[%s227 + $0x620] sm:%s220]
                %426 = vst [vmem:[%s228 + $0x188] sm:%s220] %v425
                %v427 = vld [vmem:[%s227 + $0x630] sm:%s220]
                %428 = vst [vmem:[%s228 + $0x18c] sm:%s220] %v427
                %v429 = vld [vmem:[%s227 + $0x640] sm:%s220]
                %430 = vst [vmem:[%s228 + $0x190] sm:%s220] %v429
                %v431 = vld [vmem:[%s227 + $0x650] sm:%s220]
                %432 = vst [vmem:[%s228 + $0x194] sm:%s220] %v431
                %v433 = vld [vmem:[%s227 + $0x660] sm:%s220]
                %434 = vst [vmem:[%s228 + $0x198] sm:%s220] %v433
                %v435 = vld [vmem:[%s227 + $0x670] sm:%s220]
                %436 = vst [vmem:[%s228 + $0x19c] sm:%s220] %v435
                %v437 = vld [vmem:[%s227 + $0x680] sm:%s220]
                %438 = vst [vmem:[%s228 + $0x1a0] sm:%s220] %v437
                %v439 = vld [vmem:[%s227 + $0x690] sm:%s220]
                %440 = vst [vmem:[%s228 + $0x1a4] sm:%s220] %v439
                %v441 = vld [vmem:[%s227 + $0x6a0] sm:%s220]
                %442 = vst [vmem:[%s228 + $0x1a8] sm:%s220] %v441
                %v443 = vld [vmem:[%s227 + $0x6b0] sm:%s220]
                %444 = vst [vmem:[%s228 + $0x1ac] sm:%s220] %v443
                %v445 = vld [vmem:[%s227 + $0x6c0] sm:%s220]
                %446 = vst [vmem:[%s228 + $0x1b0] sm:%s220] %v445
                %v447 = vld [vmem:[%s227 + $0x6d0] sm:%s220]
                %448 = vst [vmem:[%s228 + $0x1b4] sm:%s220] %v447
                %v449 = vld [vmem:[%s227 + $0x6e0] sm:%s220]
                %450 = vst [vmem:[%s228 + $0x1b8] sm:%s220] %v449
                %v451 = vld [vmem:[%s227 + $0x6f0] sm:%s220]
                %452 = vst [vmem:[%s228 + $0x1bc] sm:%s220] %v451
                %v453 = vld [vmem:[%s227 + $0x700] sm:%s220]
                %454 = vst [vmem:[%s228 + $0x1c0] sm:%s220] %v453
                %v455 = vld [vmem:[%s227 + $0x710] sm:%s220]
                %456 = vst [vmem:[%s228 + $0x1c4] sm:%s220] %v455
                %v457 = vld [vmem:[%s227 + $0x720] sm:%s220]
                %458 = vst [vmem:[%s228 + $0x1c8] sm:%s220] %v457
                %v459 = vld [vmem:[%s227 + $0x730] sm:%s220]
                %460 = vst [vmem:[%s228 + $0x1cc] sm:%s220] %v459
                %v461 = vld [vmem:[%s227 + $0x740] sm:%s220]
                %462 = vst [vmem:[%s228 + $0x1d0] sm:%s220] %v461
                %v463 = vld [vmem:[%s227 + $0x750] sm:%s220]
                %464 = vst [vmem:[%s228 + $0x1d4] sm:%s220] %v463
                %v465 = vld [vmem:[%s227 + $0x760] sm:%s220]
                %466 = vst [vmem:[%s228 + $0x1d8] sm:%s220] %v465
                %v467 = vld [vmem:[%s227 + $0x770] sm:%s220]
                %468 = vst [vmem:[%s228 + $0x1dc] sm:%s220] %v467
                %v469 = vld [vmem:[%s227 + $0x780] sm:%s220]
                %470 = vst [vmem:[%s228 + $0x1e0] sm:%s220] %v469
                %v471 = vld [vmem:[%s227 + $0x790] sm:%s220]
                %472 = vst [vmem:[%s228 + $0x1e4] sm:%s220] %v471
                %v473 = vld [vmem:[%s227 + $0x7a0] sm:%s220]
                %474 = vst [vmem:[%s228 + $0x1e8] sm:%s220] %v473
                %v475 = vld [vmem:[%s227 + $0x7b0] sm:%s220]
                %476 = vst [vmem:[%s228 + $0x1ec] sm:%s220] %v475
                %v477 = vld [vmem:[%s227 + $0x7c0] sm:%s220]
                %478 = vst [vmem:[%s228 + $0x1f0] sm:%s220] %v477
                %v479 = vld [vmem:[%s227 + $0x7d0] sm:%s220]
                %480 = vst [vmem:[%s228 + $0x1f4] sm:%s220] %v479
                %v481 = vld [vmem:[%s227 + $0x7e0] sm:%s220]
                %482 = vst [vmem:[%s228 + $0x1f8] sm:%s220] %v481
                %v483 = vld [vmem:[%s227 + $0x7f0] sm:%s220]
                %484 = vst [vmem:[%s228 + $0x1fc] sm:%s220] %v483
              $region60: #{_lambda_.16} parent=54 // loop_footer
                %s226 = sadd.s32 1, %s222
              $region61: #{_lambda_.16} parent=54 // loop_footer_branch
                %221 = sbr.rel target = $region57
              $region62: #{_lambda_.16} parent=54 // loop_exit
                _
            $region55: #{_lambda_.16} parent=46 // pred_fallthru
              _
          $region47: #{_lambda_.16} parent=42 // pred_fallthru
            _
          %761 = vnop
        $region43: #{_lambda_.16} parent=15 // pred_fallthru
          _
        // Predicated region
        $region81: #{_lambda_.16} parent=15 // pred_check
          %p762 = pneg %p104
        $region82: #{_lambda_.16} parent=15 // pred_check_branch
          %764 = sbr.rel (%p762) target = $region84
        $region83: #{_lambda_.16} parent=15 // pred_region
          %p765 = scmp.lt.s32.totalorder %s17, 3
          %s766 = scalar_select %p765, %s17, 3
          %s767 = scalar_lea.vmem %s2, %s766
        $region84: #{_lambda_.16} parent=15 // pred_fallthru
          _
      $region16: #{_lambda_.16} parent=5 // pred_fallthru
        _
      %p768 = scmp.le.s32.totalorder 1, %s9
      %p769 = scmp.lt.s32.totalorder %s9, 33
      %p770 = pnand %p768, %p769
      %p771 = pneg %p770
      // Predicated region
      $region85: #{_lambda_.16} parent=5 // pred_check
        _
      $region86: #{_lambda_.16} parent=5 // pred_check_branch
        %773 = sbr.rel (%p770) target = $region88
      $region87: #{_lambda_.16} parent=5 // pred_region
        %s774 = ssub.s32 %s9, 1
        %s775 = sand.u32 %s43, 1
        %s776 = sand.u32 %s43, 1
        %s777 = smul.addr %s776, 64
        %s778 = scalar_lea.vmem [#allocation3], %s777
        // Predicated region
        $region89: #{_lambda_.16} parent=87 // pred_check
          %p779 = pneg %p56
        $region90: #{_lambda_.16} parent=87 // pred_check_branch
          %781 = sbr.rel (%p779) target = $region92
        $region91: #{_lambda_.16} parent=87 // pred_region
          _
        $region92: #{_lambda_.16} parent=87 // pred_fallthru
          _
        %s782 = sand.u32 %s71, 1
        %s783 = sand.u32 %s71, 1
        %s784 = smul.addr %s783, 512
        %s785 = scalar_lea.vmem [#allocation4], %s784
        // Predicated region
        $region93: #{_lambda_.16} parent=87 // pred_check
          %p786 = pneg %p84
        $region94: #{_lambda_.16} parent=87 // pred_check_branch
          %788 = sbr.rel (%p786) target = $region96
        $region95: #{_lambda_.16} parent=87 // pred_region
          _
        $region96: #{_lambda_.16} parent=87 // pred_fallthru
          _
        %s789 = sand.u32 %s43, 1
        %s790 = sand.u32 %s43, 1
        %s791 = smul.addr %s790, 64
        %s792 = scalar_lea.vmem [#allocation3], %s791
        %p793 = pneg %p56
        %p794 = pneg %p53
        %s795 = sand.u32 %s71, 1
        %s796 = sand.u32 %s71, 1
        %s797 = smul.addr %s796, 512
        %s798 = scalar_lea.vmem [#allocation4], %s797
        %p799 = pneg %p84
        %p800 = pneg %p81
        %p801 = scmp.lt.s32.totalorder %s20, 3
        %s802 = scalar_select %p801, %s20, 3
        %s803 = scalar_lea.vmem %s2, %s802
        %p804 = pneg %p110
        %p805 = pneg %p107
        %p806 = pneg %p138
        %p807 = pneg %p135
        %s808 = sand.u32 %s125, 1
        %s809 = sand.u32 %s125, 1
        %s810 = smul.addr %s809, 8
        %s811 = scalar_lea.vmem [#allocation5], %s810
        %s812 = smul.u32 2, %s19
        %s813 = smul.u32 8, %s21
        %s814 = smul.u32 128, %s21
        %p815 = scmp.lt.s32.totalorder %s20, 3
        %s816 = scalar_select %p815, %s20, 3
        %s817 = scalar_lea.vmem %s2, %s816
        %s818 = smul.u32 2, %s19
        %p819 = scmp.eq.s32.totalorder %s21, 0
        // Predicated region
        $region97: #{_lambda_.16} parent=87 // pred_check
          %p820 = pneg %p819
        $region98: #{_lambda_.16} parent=87 // pred_check_branch
          %822 = sbr.rel (%p820) target = $region100
        $region99: #{_lambda_.16} parent=87 // pred_region
          %823 = vst [vmem:[#allocation2] sm:$0xff] 0.0
          %824 = vst [vmem:[#allocation2 + $0x8] sm:$0xff] 0.0
        $region100: #{_lambda_.16} parent=87 // pred_fallthru
          _
        %v825 = vld [vmem:[#allocation2] sm:$0xff]
        %v826 = vld [vmem:[#allocation2 + $0x8] sm:$0xff]
        %v827 = vld [vmem:[%s778] sm:$0xff]
        %v828 = vld [vmem:[%s778 + $0x8] sm:$0xff]
        %v829 = vld [vmem:[%s778 + $0x10] sm:$0xff]
        %v830 = vld [vmem:[%s778 + $0x18] sm:$0xff]
        %v831 = vld [vmem:[%s778 + $0x20] sm:$0xff]
        %v832 = vld [vmem:[%s778 + $0x28] sm:$0xff]
        %v833 = vld [vmem:[%s778 + $0x30] sm:$0xff]
        %v834 = vld [vmem:[%s778 + $0x38] sm:$0xff]
        %v835 = vld [vmem:[%s785] sm:$0xf]
        %v836 = vld [vmem:[%s785 + $0x4] sm:$0xf]
        %v837 = vld [vmem:[%s785 + $0x8] sm:$0xf]
        %v838 = vld [vmem:[%s785 + $0xc] sm:$0xf]
        %v839 = vld [vmem:[%s785 + $0x10] sm:$0xf]
        %v840 = vld [vmem:[%s785 + $0x14] sm:$0xf]
        %v841 = vld [vmem:[%s785 + $0x18] sm:$0xf]
        %v842 = vld [vmem:[%s785 + $0x1c] sm:$0xf]
        %v843 = vld [vmem:[%s785 + $0x20] sm:$0xf]
        %v844 = vld [vmem:[%s785 + $0x24] sm:$0xf]
        %v845 = vld [vmem:[%s785 + $0x28] sm:$0xf]
        %v846 = vld [vmem:[%s785 + $0x2c] sm:$0xf]
        %v847 = vld [vmem:[%s785 + $0x30] sm:$0xf]
        %v848 = vld [vmem:[%s785 + $0x34] sm:$0xf]
        %v849 = vld [vmem:[%s785 + $0x38] sm:$0xf]
        %v850 = vld [vmem:[%s785 + $0x3c] sm:$0xf]
        %v851 = vld [vmem:[%s785 + $0x40] sm:$0xf]
        %v852 = vld [vmem:[%s785 + $0x44] sm:$0xf]
        %v853 = vld [vmem:[%s785 + $0x48] sm:$0xf]
        %v854 = vld [vmem:[%s785 + $0x4c] sm:$0xf]
        %v855 = vld [vmem:[%s785 + $0x50] sm:$0xf]
        %v856 = vld [vmem:[%s785 + $0x54] sm:$0xf]
        %v857 = vld [vmem:[%s785 + $0x58] sm:$0xf]
        %v858 = vld [vmem:[%s785 + $0x5c] sm:$0xf]
        %v859 = vld [vmem:[%s785 + $0x60] sm:$0xf]
        %v860 = vld [vmem:[%s785 + $0x64] sm:$0xf]
        %v861 = vld [vmem:[%s785 + $0x68] sm:$0xf]
        %v862 = vld [vmem:[%s785 + $0x6c] sm:$0xf]
        %v863 = vld [vmem:[%s785 + $0x70] sm:$0xf]
        %v864 = vld [vmem:[%s785 + $0x74] sm:$0xf]
        %v865 = vld [vmem:[%s785 + $0x78] sm:$0xf]
        %v866 = vld [vmem:[%s785 + $0x7c] sm:$0xf]
        %v867 = vld [vmem:[%s785 + $0x80] sm:$0xf]
        %v868 = vld [vmem:[%s785 + $0x84] sm:$0xf]
        %v869 = vld [vmem:[%s785 + $0x88] sm:$0xf]
        %v870 = vld [vmem:[%s785 + $0x8c] sm:$0xf]
        %v871 = vld [vmem:[%s785 + $0x90] sm:$0xf]
        %v872 = vld [vmem:[%s785 + $0x94] sm:$0xf]
        %v873 = vld [vmem:[%s785 + $0x98] sm:$0xf]
        %v874 = vld [vmem:[%s785 + $0x9c] sm:$0xf]
        %v875 = vld [vmem:[%s785 + $0xa0] sm:$0xf]
        %v876 = vld [vmem:[%s785 + $0xa4] sm:$0xf]
        %v877 = vld [vmem:[%s785 + $0xa8] sm:$0xf]
        %v878 = vld [vmem:[%s785 + $0xac] sm:$0xf]
        %v879 = vld [vmem:[%s785 + $0xb0] sm:$0xf]
        %v880 = vld [vmem:[%s785 + $0xb4] sm:$0xf]
        %v881 = vld [vmem:[%s785 + $0xb8] sm:$0xf]
        %v882 = vld [vmem:[%s785 + $0xbc] sm:$0xf]
        %v883 = vld [vmem:[%s785 + $0xc0] sm:$0xf]
        %v884 = vld [vmem:[%s785 + $0xc4] sm:$0xf]
        %v885 = vld [vmem:[%s785 + $0xc8] sm:$0xf]
        %v886 = vld [vmem:[%s785 + $0xcc] sm:$0xf]
        %v887 = vld [vmem:[%s785 + $0xd0] sm:$0xf]
        %v888 = vld [vmem:[%s785 + $0xd4] sm:$0xf]
        %v889 = vld [vmem:[%s785 + $0xd8] sm:$0xf]
        %v890 = vld [vmem:[%s785 + $0xdc] sm:$0xf]
        %v891 = vld [vmem:[%s785 + $0xe0] sm:$0xf]
        %v892 = vld [vmem:[%s785 + $0xe4] sm:$0xf]
        %v893 = vld [vmem:[%s785 + $0xe8] sm:$0xf]
        %v894 = vld [vmem:[%s785 + $0xec] sm:$0xf]
        %v895 = vld [vmem:[%s785 + $0xf0] sm:$0xf]
        %v896 = vld [vmem:[%s785 + $0xf4] sm:$0xf]
        %v897 = vld [vmem:[%s785 + $0xf8] sm:$0xf]
        %v898 = vld [vmem:[%s785 + $0xfc] sm:$0xf]
        %v899 = vld [vmem:[%s785 + $0x100] sm:$0xf]
        %v900 = vld [vmem:[%s785 + $0x104] sm:$0xf]
        %v901 = vld [vmem:[%s785 + $0x108] sm:$0xf]
        %v902 = vld [vmem:[%s785 + $0x10c] sm:$0xf]
        %v903 = vld [vmem:[%s785 + $0x110] sm:$0xf]
        %v904 = vld [vmem:[%s785 + $0x114] sm:$0xf]
        %v905 = vld [vmem:[%s785 + $0x118] sm:$0xf]
        %v906 = vld [vmem:[%s785 + $0x11c] sm:$0xf]
        %v907 = vld [vmem:[%s785 + $0x120] sm:$0xf]
        %v908 = vld [vmem:[%s785 + $0x124] sm:$0xf]
        %v909 = vld [vmem:[%s785 + $0x128] sm:$0xf]
        %v910 = vld [vmem:[%s785 + $0x12c] sm:$0xf]
        %v911 = vld [vmem:[%s785 + $0x130] sm:$0xf]
        %v912 = vld [vmem:[%s785 + $0x134] sm:$0xf]
        %v913 = vld [vmem:[%s785 + $0x138] sm:$0xf]
        %v914 = vld [vmem:[%s785 + $0x13c] sm:$0xf]
        %v915 = vld [vmem:[%s785 + $0x140] sm:$0xf]
        %v916 = vld [vmem:[%s785 + $0x144] sm:$0xf]
        %v917 = vld [vmem:[%s785 + $0x148] sm:$0xf]
        %v918 = vld [vmem:[%s785 + $0x14c] sm:$0xf]
        %v919 = vld [vmem:[%s785 + $0x150] sm:$0xf]
        %v920 = vld [vmem:[%s785 + $0x154] sm:$0xf]
        %v921 = vld [vmem:[%s785 + $0x158] sm:$0xf]
        %v922 = vld [vmem:[%s785 + $0x15c] sm:$0xf]
        %v923 = vld [vmem:[%s785 + $0x160] sm:$0xf]
        %v924 = vld [vmem:[%s785 + $0x164] sm:$0xf]
        %v925 = vld [vmem:[%s785 + $0x168] sm:$0xf]
        %v926 = vld [vmem:[%s785 + $0x16c] sm:$0xf]
        %v927 = vld [vmem:[%s785 + $0x170] sm:$0xf]
        %v928 = vld [vmem:[%s785 + $0x174] sm:$0xf]
        %v929 = vld [vmem:[%s785 + $0x178] sm:$0xf]
        %v930 = vld [vmem:[%s785 + $0x17c] sm:$0xf]
        %v931 = vld [vmem:[%s785 + $0x180] sm:$0xf]
        %v932 = vld [vmem:[%s785 + $0x184] sm:$0xf]
        %v933 = vld [vmem:[%s785 + $0x188] sm:$0xf]
        %v934 = vld [vmem:[%s785 + $0x18c] sm:$0xf]
        %v935 = vld [vmem:[%s785 + $0x190] sm:$0xf]
        %v936 = vld [vmem:[%s785 + $0x194] sm:$0xf]
        %v937 = vld [vmem:[%s785 + $0x198] sm:$0xf]
        %v938 = vld [vmem:[%s785 + $0x19c] sm:$0xf]
        %v939 = vld [vmem:[%s785 + $0x1a0] sm:$0xf]
        %v940 = vld [vmem:[%s785 + $0x1a4] sm:$0xf]
        %v941 = vld [vmem:[%s785 + $0x1a8] sm:$0xf]
        %v942 = vld [vmem:[%s785 + $0x1ac] sm:$0xf]
        %v943 = vld [vmem:[%s785 + $0x1b0] sm:$0xf]
        %v944 = vld [vmem:[%s785 + $0x1b4] sm:$0xf]
        %v945 = vld [vmem:[%s785 + $0x1b8] sm:$0xf]
        %v946 = vld [vmem:[%s785 + $0x1bc] sm:$0xf]
        %v947 = vld [vmem:[%s785 + $0x1c0] sm:$0xf]
        %v948 = vld [vmem:[%s785 + $0x1c4] sm:$0xf]
        %v949 = vld [vmem:[%s785 + $0x1c8] sm:$0xf]
        %v950 = vld [vmem:[%s785 + $0x1cc] sm:$0xf]
        %v951 = vld [vmem:[%s785 + $0x1d0] sm:$0xf]
        %v952 = vld [vmem:[%s785 + $0x1d4] sm:$0xf]
        %v953 = vld [vmem:[%s785 + $0x1d8] sm:$0xf]
        %v954 = vld [vmem:[%s785 + $0x1dc] sm:$0xf]
        %v955 = vld [vmem:[%s785 + $0x1e0] sm:$0xf]
        %v956 = vld [vmem:[%s785 + $0x1e4] sm:$0xf]
        %v957 = vld [vmem:[%s785 + $0x1e8] sm:$0xf]
        %v958 = vld [vmem:[%s785 + $0x1ec] sm:$0xf]
        %v959 = vld [vmem:[%s785 + $0x1f0] sm:$0xf]
        %v960 = vld [vmem:[%s785 + $0x1f4] sm:$0xf]
        %v961 = vld [vmem:[%s785 + $0x1f8] sm:$0xf]
        %v962 = vld [vmem:[%s785 + $0x1fc] sm:$0xf]
        %v971 = vunpack.c.l.b16 %v827
        %v972 = vunpack.c.h.b16 %v827
        %v973 = vunpack.c.l.b16 %v828
        %v974 = vunpack.c.h.b16 %v828
        %v975 = vunpack.c.l.b16 %v829
        %v976 = vunpack.c.h.b16 %v829
        %v977 = vunpack.c.l.b16 %v830
        %v978 = vunpack.c.h.b16 %v830
        %v979 = vunpack.c.l.b16 %v831
        %v980 = vunpack.c.h.b16 %v831
        %v981 = vunpack.c.l.b16 %v832
        %v982 = vunpack.c.h.b16 %v832
        %v983 = vunpack.c.l.b16 %v833
        %v984 = vunpack.c.h.b16 %v833
        %v985 = vunpack.c.l.b16 %v834
        %v986 = vunpack.c.h.b16 %v834
        %v987 = vpack.c.b16 %v979, %v971
        %v988 = vpack.c.b16 %v980, %v972
        %v989 = vpack.c.b16 %v981, %v973
        %v990 = vpack.c.b16 %v982, %v974
        %v991 = vpack.c.b16 %v983, %v975
        %v992 = vpack.c.b16 %v984, %v976
        %v993 = vpack.c.b16 %v985, %v977
        %v994 = vpack.c.b16 %v986, %v978
        %v1131 = vunpack.c.l.b16 %v835
        %v1132 = vunpack.c.l.b16 %v836
        %v1133 = vunpack.c.l.b16 %v837
        %v1134 = vunpack.c.l.b16 %v838
        %v1135 = vunpack.c.l.b16 %v839
        %v1136 = vunpack.c.l.b16 %v840
        %v1137 = vunpack.c.l.b16 %v841
        %v1138 = vunpack.c.l.b16 %v842
        %v1139 = vunpack.c.l.b16 %v843
        %v1140 = vunpack.c.l.b16 %v844
        %v1141 = vunpack.c.l.b16 %v845
        %v1142 = vunpack.c.l.b16 %v846
        %v1143 = vunpack.c.l.b16 %v847
        %v1144 = vunpack.c.l.b16 %v848
        %v1145 = vunpack.c.l.b16 %v849
        %v1146 = vunpack.c.l.b16 %v850
        %v1147 = vunpack.c.l.b16 %v851
        %v1148 = vunpack.c.l.b16 %v852
        %v1149 = vunpack.c.l.b16 %v853
        %v1150 = vunpack.c.l.b16 %v854
        %v1151 = vunpack.c.l.b16 %v855
        %v1152 = vunpack.c.l.b16 %v856
        %v1153 = vunpack.c.l.b16 %v857
        %v1154 = vunpack.c.l.b16 %v858
        %v1155 = vunpack.c.l.b16 %v859
        %v1156 = vunpack.c.l.b16 %v860
        %v1157 = vunpack.c.l.b16 %v861
        %v1158 = vunpack.c.l.b16 %v862
        %v1159 = vunpack.c.l.b16 %v863
        %v1160 = vunpack.c.l.b16 %v864
        %v1161 = vunpack.c.l.b16 %v865
        %v1162 = vunpack.c.l.b16 %v866
        %v1163 = vunpack.c.l.b16 %v867
        %v1164 = vunpack.c.l.b16 %v868
        %v1165 = vunpack.c.l.b16 %v869
        %v1166 = vunpack.c.l.b16 %v870
        %v1167 = vunpack.c.l.b16 %v871
        %v1168 = vunpack.c.l.b16 %v872
        %v1169 = vunpack.c.l.b16 %v873
        %v1170 = vunpack.c.l.b16 %v874
        %v1171 = vunpack.c.l.b16 %v875
        %v1172 = vunpack.c.l.b16 %v876
        %v1173 = vunpack.c.l.b16 %v877
        %v1174 = vunpack.c.l.b16 %v878
        %v1175 = vunpack.c.l.b16 %v879
        %v1176 = vunpack.c.l.b16 %v880
        %v1177 = vunpack.c.l.b16 %v881
        %v1178 = vunpack.c.l.b16 %v882
        %v1179 = vunpack.c.l.b16 %v883
        %v1180 = vunpack.c.l.b16 %v884
        %v1181 = vunpack.c.l.b16 %v885
        %v1182 = vunpack.c.l.b16 %v886
        %v1183 = vunpack.c.l.b16 %v887
        %v1184 = vunpack.c.l.b16 %v888
        %v1185 = vunpack.c.l.b16 %v889
        %v1186 = vunpack.c.l.b16 %v890
        %v1187 = vunpack.c.l.b16 %v891
        %v1188 = vunpack.c.l.b16 %v892
        %v1189 = vunpack.c.l.b16 %v893
        %v1190 = vunpack.c.l.b16 %v894
        %v1191 = vunpack.c.l.b16 %v895
        %v1192 = vunpack.c.l.b16 %v896
        %v1193 = vunpack.c.l.b16 %v897
        %v1194 = vunpack.c.l.b16 %v898
        %v1195 = vunpack.c.l.b16 %v899
        %v1196 = vunpack.c.l.b16 %v900
        %v1197 = vunpack.c.l.b16 %v901
        %v1198 = vunpack.c.l.b16 %v902
        %v1199 = vunpack.c.l.b16 %v903
        %v1200 = vunpack.c.l.b16 %v904
        %v1201 = vunpack.c.l.b16 %v905
        %v1202 = vunpack.c.l.b16 %v906
        %v1203 = vunpack.c.l.b16 %v907
        %v1204 = vunpack.c.l.b16 %v908
        %v1205 = vunpack.c.l.b16 %v909
        %v1206 = vunpack.c.l.b16 %v910
        %v1207 = vunpack.c.l.b16 %v911
        %v1208 = vunpack.c.l.b16 %v912
        %v1209 = vunpack.c.l.b16 %v913
        %v1210 = vunpack.c.l.b16 %v914
        %v1211 = vunpack.c.l.b16 %v915
        %v1212 = vunpack.c.l.b16 %v916
        %v1213 = vunpack.c.l.b16 %v917
        %v1214 = vunpack.c.l.b16 %v918
        %v1215 = vunpack.c.l.b16 %v919
        %v1216 = vunpack.c.l.b16 %v920
        %v1217 = vunpack.c.l.b16 %v921
        %v1218 = vunpack.c.l.b16 %v922
        %v1219 = vunpack.c.l.b16 %v923
        %v1220 = vunpack.c.l.b16 %v924
        %v1221 = vunpack.c.l.b16 %v925
        %v1222 = vunpack.c.l.b16 %v926
        %v1223 = vunpack.c.l.b16 %v927
        %v1224 = vunpack.c.l.b16 %v928
        %v1225 = vunpack.c.l.b16 %v929
        %v1226 = vunpack.c.l.b16 %v930
        %v1227 = vunpack.c.l.b16 %v931
        %v1228 = vunpack.c.l.b16 %v932
        %v1229 = vunpack.c.l.b16 %v933
        %v1230 = vunpack.c.l.b16 %v934
        %v1231 = vunpack.c.l.b16 %v935
        %v1232 = vunpack.c.l.b16 %v936
        %v1233 = vunpack.c.l.b16 %v937
        %v1234 = vunpack.c.l.b16 %v938
        %v1235 = vunpack.c.l.b16 %v939
        %v1236 = vunpack.c.l.b16 %v940
        %v1237 = vunpack.c.l.b16 %v941
        %v1238 = vunpack.c.l.b16 %v942
        %v1239 = vunpack.c.l.b16 %v943
        %v1240 = vunpack.c.l.b16 %v944
        %v1241 = vunpack.c.l.b16 %v945
        %v1242 = vunpack.c.l.b16 %v946
        %v1243 = vunpack.c.l.b16 %v947
        %v1244 = vunpack.c.l.b16 %v948
        %v1245 = vunpack.c.l.b16 %v949
        %v1246 = vunpack.c.l.b16 %v950
        %v1247 = vunpack.c.l.b16 %v951
        %v1248 = vunpack.c.l.b16 %v952
        %v1249 = vunpack.c.l.b16 %v953
        %v1250 = vunpack.c.l.b16 %v954
        %v1251 = vunpack.c.l.b16 %v955
        %v1252 = vunpack.c.l.b16 %v956
        %v1253 = vunpack.c.l.b16 %v957
        %v1254 = vunpack.c.l.b16 %v958
        %v1255 = vunpack.c.l.b16 %v959
        %v1256 = vunpack.c.l.b16 %v960
        %v1257 = vunpack.c.l.b16 %v961
        %v1258 = vunpack.c.l.b16 %v962
        %v1259 = vpack.c.b16 %v1132, %v1131
        %v1260 = vpack.c.b16 %v1134, %v1133
        %v1261 = vpack.c.b16 %v1136, %v1135
        %v1262 = vpack.c.b16 %v1138, %v1137
        %v1263 = vpack.c.b16 %v1140, %v1139
        %v1264 = vpack.c.b16 %v1142, %v1141
        %v1265 = vpack.c.b16 %v1144, %v1143
        %v1266 = vpack.c.b16 %v1146, %v1145
        %v1267 = vpack.c.b16 %v1148, %v1147
        %v1268 = vpack.c.b16 %v1150, %v1149
        %v1269 = vpack.c.b16 %v1152, %v1151
        %v1270 = vpack.c.b16 %v1154, %v1153
        %v1271 = vpack.c.b16 %v1156, %v1155
        %v1272 = vpack.c.b16 %v1158, %v1157
        %v1273 = vpack.c.b16 %v1160, %v1159
        %v1274 = vpack.c.b16 %v1162, %v1161
        %v1275 = vpack.c.b16 %v1164, %v1163
        %v1276 = vpack.c.b16 %v1166, %v1165
        %v1277 = vpack.c.b16 %v1168, %v1167
        %v1278 = vpack.c.b16 %v1170, %v1169
        %v1279 = vpack.c.b16 %v1172, %v1171
        %v1280 = vpack.c.b16 %v1174, %v1173
        %v1281 = vpack.c.b16 %v1176, %v1175
        %v1282 = vpack.c.b16 %v1178, %v1177
        %v1283 = vpack.c.b16 %v1180, %v1179
        %v1284 = vpack.c.b16 %v1182, %v1181
        %v1285 = vpack.c.b16 %v1184, %v1183
        %v1286 = vpack.c.b16 %v1186, %v1185
        %v1287 = vpack.c.b16 %v1188, %v1187
        %v1288 = vpack.c.b16 %v1190, %v1189
        %v1289 = vpack.c.b16 %v1192, %v1191
        %v1290 = vpack.c.b16 %v1194, %v1193
        %v1291 = vpack.c.b16 %v1196, %v1195
        %v1292 = vpack.c.b16 %v1198, %v1197
        %v1293 = vpack.c.b16 %v1200, %v1199
        %v1294 = vpack.c.b16 %v1202, %v1201
        %v1295 = vpack.c.b16 %v1204, %v1203
        %v1296 = vpack.c.b16 %v1206, %v1205
        %v1297 = vpack.c.b16 %v1208, %v1207
        %v1298 = vpack.c.b16 %v1210, %v1209
        %v1299 = vpack.c.b16 %v1212, %v1211
        %v1300 = vpack.c.b16 %v1214, %v1213
        %v1301 = vpack.c.b16 %v1216, %v1215
        %v1302 = vpack.c.b16 %v1218, %v1217
        %v1303 = vpack.c.b16 %v1220, %v1219
        %v1304 = vpack.c.b16 %v1222, %v1221
        %v1305 = vpack.c.b16 %v1224, %v1223
        %v1306 = vpack.c.b16 %v1226, %v1225
        %v1307 = vpack.c.b16 %v1228, %v1227
        %v1308 = vpack.c.b16 %v1230, %v1229
        %v1309 = vpack.c.b16 %v1232, %v1231
        %v1310 = vpack.c.b16 %v1234, %v1233
        %v1311 = vpack.c.b16 %v1236, %v1235
        %v1312 = vpack.c.b16 %v1238, %v1237
        %v1313 = vpack.c.b16 %v1240, %v1239
        %v1314 = vpack.c.b16 %v1242, %v1241
        %v1315 = vpack.c.b16 %v1244, %v1243
        %v1316 = vpack.c.b16 %v1246, %v1245
        %v1317 = vpack.c.b16 %v1248, %v1247
        %v1318 = vpack.c.b16 %v1250, %v1249
        %v1319 = vpack.c.b16 %v1252, %v1251
        %v1320 = vpack.c.b16 %v1254, %v1253
        %v1321 = vpack.c.b16 %v1256, %v1255
        %v1322 = vpack.c.b16 %v1258, %v1257
        %1387 = vmatpush.bf16.msra.mxu0 %v1266
        %1388 = vmatpush.bf16.msra.mxu0 %v1265
        %1389 = vmatpush.bf16.msra.mxu0 %v1264
        %1390 = vmatpush.bf16.msra.mxu0 %v1263
        %1391 = vmatpush.bf16.msra.mxu0 %v1262
        %1392 = vmatpush.bf16.msra.mxu0 %v1261
        %1393 = vmatpush.bf16.msra.mxu0 %v1260
        %1394 = vmatpush.bf16.msra.mxu0 %v1259
        %1395 = vmatmul.bf16.gmra.mxu0 %v987
        %v1396 = vpop.f32.mrf.mxu0
        %v1397 = vadd.f32 0.0, %v1396
        %v1398 = vpop.f32.mrf.mxu0
        %v1399 = vadd.f32 0.0, %v1398
        %1400 = vdwg.mxu0
        %1401 = vmatpush.bf16.msra.mxu0 %v1274
        %1402 = vmatpush.bf16.msra.mxu0 %v1273
        %1403 = vmatpush.bf16.msra.mxu0 %v1272
        %1404 = vmatpush.bf16.msra.mxu0 %v1271
        %1405 = vmatpush.bf16.msra.mxu0 %v1270
        %1406 = vmatpush.bf16.msra.mxu0 %v1269
        %1407 = vmatpush.bf16.msra.mxu0 %v1268
        %1408 = vmatpush.bf16.msra.mxu0 %v1267
        %1409 = vmatmul.bf16.gmra.mxu0 %v988
        %v1410 = vpop.f32.mrf.mxu0
        %v1411 = vadd.f32 %v1397, %v1410
        %v1412 = vpop.f32.mrf.mxu0
        %v1413 = vadd.f32 %v1399, %v1412
        %1414 = vdwg.mxu0
        %1415 = vmatpush.bf16.msra.mxu0 %v1282
        %1416 = vmatpush.bf16.msra.mxu0 %v1281
        %1417 = vmatpush.bf16.msra.mxu0 %v1280
        %1418 = vmatpush.bf16.msra.mxu0 %v1279
        %1419 = vmatpush.bf16.msra.mxu0 %v1278
        %1420 = vmatpush.bf16.msra.mxu0 %v1277
        %1421 = vmatpush.bf16.msra.mxu0 %v1276
        %1422 = vmatpush.bf16.msra.mxu0 %v1275
        %1423 = vmatmul.bf16.gmra.mxu0 %v989
        %v1424 = vpop.f32.mrf.mxu0
        %v1425 = vadd.f32 %v1411, %v1424
        %v1426 = vpop.f32.mrf.mxu0
        %v1427 = vadd.f32 %v1413, %v1426
        %1428 = vdwg.mxu0
        %1429 = vmatpush.bf16.msra.mxu0 %v1290
        %1430 = vmatpush.bf16.msra.mxu0 %v1289
        %1431 = vmatpush.bf16.msra.mxu0 %v1288
        %1432 = vmatpush.bf16.msra.mxu0 %v1287
        %1433 = vmatpush.bf16.msra.mxu0 %v1286
        %1434 = vmatpush.bf16.msra.mxu0 %v1285
        %1435 = vmatpush.bf16.msra.mxu0 %v1284
        %1436 = vmatpush.bf16.msra.mxu0 %v1283
        %1437 = vmatmul.bf16.gmra.mxu0 %v990
        %v1438 = vpop.f32.mrf.mxu0
        %v1439 = vadd.f32 %v1425, %v1438
        %v1440 = vpop.f32.mrf.mxu0
        %v1441 = vadd.f32 %v1427, %v1440
        %1442 = vdwg.mxu0
        %1443 = vmatpush.bf16.msra.mxu0 %v1298
        %1444 = vmatpush.bf16.msra.mxu0 %v1297
        %1445 = vmatpush.bf16.msra.mxu0 %v1296
        %1446 = vmatpush.bf16.msra.mxu0 %v1295
        %1447 = vmatpush.bf16.msra.mxu0 %v1294
        %1448 = vmatpush.bf16.msra.mxu0 %v1293
        %1449 = vmatpush.bf16.msra.mxu0 %v1292
        %1450 = vmatpush.bf16.msra.mxu0 %v1291
        %1451 = vmatmul.bf16.gmra.mxu0 %v991
        %v1452 = vpop.f32.mrf.mxu0
        %v1453 = vadd.f32 %v1439, %v1452
        %v1454 = vpop.f32.mrf.mxu0
        %v1455 = vadd.f32 %v1441, %v1454
        %1456 = vdwg.mxu0
        %1457 = vmatpush.bf16.msra.mxu0 %v1306
        %1458 = vmatpush.bf16.msra.mxu0 %v1305
        %1459 = vmatpush.bf16.msra.mxu0 %v1304
        %1460 = vmatpush.bf16.msra.mxu0 %v1303
        %1461 = vmatpush.bf16.msra.mxu0 %v1302
        %1462 = vmatpush.bf16.msra.mxu0 %v1301
        %1463 = vmatpush.bf16.msra.mxu0 %v1300
        %1464 = vmatpush.bf16.msra.mxu0 %v1299
        %1465 = vmatmul.bf16.gmra.mxu0 %v992
        %v1466 = vpop.f32.mrf.mxu0
        %v1467 = vadd.f32 %v1453, %v1466
        %v1468 = vpop.f32.mrf.mxu0
        %v1469 = vadd.f32 %v1455, %v1468
        %1470 = vdwg.mxu0
        %1471 = vmatpush.bf16.msra.mxu0 %v1314
        %1472 = vmatpush.bf16.msra.mxu0 %v1313
        %1473 = vmatpush.bf16.msra.mxu0 %v1312
        %1474 = vmatpush.bf16.msra.mxu0 %v1311
        %1475 = vmatpush.bf16.msra.mxu0 %v1310
        %1476 = vmatpush.bf16.msra.mxu0 %v1309
        %1477 = vmatpush.bf16.msra.mxu0 %v1308
        %1478 = vmatpush.bf16.msra.mxu0 %v1307
        %1479 = vmatmul.bf16.gmra.mxu0 %v993
        %v1480 = vpop.f32.mrf.mxu0
        %v1481 = vadd.f32 %v1467, %v1480
        %v1482 = vpop.f32.mrf.mxu0
        %v1483 = vadd.f32 %v1469, %v1482
        %1484 = vdwg.mxu0
        %1485 = vmatpush.bf16.msra.mxu0 %v1322
        %1486 = vmatpush.bf16.msra.mxu0 %v1321
        %1487 = vmatpush.bf16.msra.mxu0 %v1320
        %1488 = vmatpush.bf16.msra.mxu0 %v1319
        %1489 = vmatpush.bf16.msra.mxu0 %v1318
        %1490 = vmatpush.bf16.msra.mxu0 %v1317
        %1491 = vmatpush.bf16.msra.mxu0 %v1316
        %1492 = vmatpush.bf16.msra.mxu0 %v1315
        %1493 = vmatmul.bf16.gmra.mxu0 %v994
        %v1494 = vpop.f32.mrf.mxu0
        %v1495 = vadd.f32 %v1481, %v1494
        %v1496 = vpop.f32.mrf.mxu0
        %v1497 = vadd.f32 %v1483, %v1496
        %1498 = vdwg.mxu0
        %v1499 = vadd.f32 %v825, %v1495
        %v1500 = vadd.f32 %v826, %v1497
        %1501 = vst [vmem:[#allocation2] sm:$0xff] %v1499
        %1502 = vst [vmem:[#allocation2 + $0x8] sm:$0xff] %v1500
        %p1503 = scmp.eq.s32.totalorder %s21, 7
        // Predicated region
        $region101: #{_lambda_.16} parent=87 // pred_check
          %p1504 = pneg %p1503
        $region102: #{_lambda_.16} parent=87 // pred_check_branch
          %1506 = sbr.rel (%p1504) target = $region104
        $region103: #{_lambda_.16} parent=87 // pred_region
          %v1507 = vld [vmem:[#allocation2] sm:$0xff]
          %v1508 = vld [vmem:[#allocation2 + $0x8] sm:$0xff]
          %v1509 = vld [vmem:[%s817] sm:$0x1]
          %v1511 = vperm.slane %v1509, 0
          %v1513 = vadd.f32 %v1507, %v1511
          %v1514 = vadd.f32 %v1508, %v1511
          %vm1515 = vcmp.ge.f32.partialorder %v1513, 0.0
          %vm1516 = vcmp.ge.f32.partialorder %v1514, 0.0
          %v1517 = vmul.f32 %v1513, 0.2
          %v1518 = vmul.f32 %v1514, 0.2
          %v1519 = vsel %vm1515, %v1513, %v1517
          %v1520 = vsel %vm1516, %v1514, %v1518
          %v1521 = vmul.f32 %v1519, 1.4142135
          %v1522 = vmul.f32 %v1520, 1.4142135
          %v1523 = vpack.c.bf16 %v1521, %v1521
          %v1524 = vpack.c.bf16 %v1522, %v1522
          %1525 = vst [vmem:[%s811] sm:$0xf] %v1523
          %1526 = vst [vmem:[%s811 + $0x4] sm:$0xf] %v1524
        $region104: #{_lambda_.16} parent=87 // pred_fallthru
          _
        %s1527 = sand.u32 %s125, 1
        %s1528 = sand.u32 %s125, 1
        %s1529 = smul.addr %s1528, 8
        %s1530 = scalar_lea.vmem [#allocation5], %s1529
        // Predicated region
        $region105: #{_lambda_.16} parent=87 // pred_check
          %p1531 = pneg %p135
        $region106: #{_lambda_.16} parent=87 // pred_check_branch
          %1533 = sbr.rel (%p1531) target = $region108
        $region107: #{_lambda_.16} parent=87 // pred_region
          %s1534 = smul.u32 2, %s19
          %s1535 = smul.addr %s1534, 4
          %s1536 = sadd.s32 %s20, %s1535
          %s1537 = smul.addr %s1536, 4
          %s1538 = scalar_lea.vmem %s3, %s1537
          // Predicated region
          $region109: #{_lambda_.16} parent=107 // pred_check
            _
          $region110: #{_lambda_.16} parent=107 // pred_check_branch
            %1540 = sbr.rel (0) target = $region112
          $region111: #{_lambda_.16} parent=107 // pred_region
            // Predicated region
            $region113: #{_lambda_.16} parent=111 // pred_check
              _
            $region114: #{_lambda_.16} parent=111 // pred_check_branch
              %1542 = sbr.rel target = $region116
            $region115: #{_lambda_.16} parent=111 // pred_region
              // Predicated region
              $region128: #{_lambda_.16} parent=115 // pred_check
                _
              $region129: #{_lambda_.16} parent=115 // pred_check_branch
                %1560 = sbr.rel (0) target = $region131
              $region130: #{_lambda_.16} parent=115 // pred_region
                loop: start=0, step=1, limit=1
                $region132: #{_lambda_.16} parent=130 // loop_pre_header
                  _
                $region133: #{_lambda_.16} parent=130 // loop_header
                  %s1562 = sphi 0, %s1566
                  %p1563 = scmp.ge.s32.totalorder %s1562, 1
                  %s1567 = sphi %s1530, %s1530
                  %s1568 = sphi %s1538, %s1538
                $region134: #{_lambda_.16} parent=130 // loop_header_branch
                  %1565 = sbr.rel (%p1563) target = $region138
                $region135: #{_lambda_.16} parent=130 // loop_body
                  _
                $region136: #{_lambda_.16} parent=130 // loop_footer
                  %s1566 = sadd.s32 1, %s1562
                $region137: #{_lambda_.16} parent=130 // loop_footer_branch
                  %1561 = sbr.rel target = $region133
                $region138: #{_lambda_.16} parent=130 // loop_exit
                  _
                %s1570 = ssub.s32 16, 1
                loop: start=0, step=1, limit=1
                $region139: #{_lambda_.16} parent=130 // loop_pre_header
                  _
                $region140: #{_lambda_.16} parent=130 // loop_header
                  %s1572 = sphi 0, %s1576
                  %p1573 = scmp.ge.s32.totalorder %s1572, 1
                  %s1577 = sphi %s1530, %s1530
                  %s1578 = sphi %s1538, %s1538
                $region141: #{_lambda_.16} parent=130 // loop_header_branch
                  %1575 = sbr.rel (%p1573) target = $region145
                $region142: #{_lambda_.16} parent=130 // loop_body
                  %v1579 = vld [vmem:[%s1577] sm:%s1570]
                  %1580 = vst [vmem:[%s1578] sm:%s1570] %v1579
                  %v1581 = vld [vmem:[%s1577 + $0x4] sm:%s1570]
                  %1582 = vst [vmem:[%s1578 + $0x10] sm:%s1570] %v1581
                $region143: #{_lambda_.16} parent=130 // loop_footer
                  %s1576 = sadd.s32 1, %s1572
                $region144: #{_lambda_.16} parent=130 // loop_footer_branch
                  %1571 = sbr.rel target = $region140
                $region145: #{_lambda_.16} parent=130 // loop_exit
                  _
              $region131: #{_lambda_.16} parent=115 // pred_fallthru
                _
            $region116: #{_lambda_.16} parent=111 // pred_fallthru
              _
            // Predicated region
            $region117: #{_lambda_.16} parent=111 // pred_check
              _
            $region118: #{_lambda_.16} parent=111 // pred_check_branch
              %1544 = sbr.rel (0) target = $region120
            $region119: #{_lambda_.16} parent=111 // pred_region
              %s1546 = ssub.s32 16, 1
              loop: start=0, step=1, limit=1
              $region121: #{_lambda_.16} parent=119 // loop_pre_header
                _
              $region122: #{_lambda_.16} parent=119 // loop_header
                %s1548 = sphi 0, %s1552
                %p1549 = scmp.ge.s32.totalorder %s1548, 1
                %s1553 = sphi %s1530, %s1530
                %s1554 = sphi %s1538, %s1538
              $region123: #{_lambda_.16} parent=119 // loop_header_branch
                %1551 = sbr.rel (%p1549) target = $region127
              $region124: #{_lambda_.16} parent=119 // loop_body
                %v1555 = vld [vmem:[%s1553] sm:%s1546]
                %1556 = vst [vmem:[%s1554] sm:%s1546] %v1555
                %v1557 = vld [vmem:[%s1553 + $0x4] sm:%s1546]
                %1558 = vst [vmem:[%s1554 + $0x10] sm:%s1546] %v1557
              $region125: #{_lambda_.16} parent=119 // loop_footer
                %s1552 = sadd.s32 1, %s1548
              $region126: #{_lambda_.16} parent=119 // loop_footer_branch
                %1547 = sbr.rel target = $region122
              $region127: #{_lambda_.16} parent=119 // loop_exit
                _
            $region120: #{_lambda_.16} parent=111 // pred_fallthru
              _
          $region112: #{_lambda_.16} parent=107 // pred_fallthru
            _
          %1583 = vnop
        $region108: #{_lambda_.16} parent=87 // pred_fallthru
          _
      $region88: #{_lambda_.16} parent=5 // pred_fallthru
        _
      %p1584 = scmp.le.s32.totalorder 2, %s9
      // Predicated region
      $region146: #{_lambda_.16} parent=5 // pred_check
        %p1585 = pneg %p1584
      $region147: #{_lambda_.16} parent=5 // pred_check_branch
        %1587 = sbr.rel (%p1585) target = $region149
      $region148: #{_lambda_.16} parent=5 // pred_region
        %s1588 = ssub.s32 %s9, 2
        // Predicated region
        $region150: #{_lambda_.16} parent=148 // pred_check
          %p1589 = pneg %p141
        $region151: #{_lambda_.16} parent=148 // pred_check_branch
          %1591 = sbr.rel (%p1589) target = $region153
        $region152: #{_lambda_.16} parent=148 // pred_region
          %s1592 = sand.u32 %s126, 1
          %s1593 = sand.u32 %s126, 1
          %s1594 = smul.addr %s1593, 8
          %s1595 = scalar_lea.vmem [#allocation5], %s1594
        $region153: #{_lambda_.16} parent=148 // pred_fallthru
          _
      $region149: #{_lambda_.16} parent=5 // pred_fallthru
        _
    $region6: #{_lambda_.16} parent=1 // loop_footer
      %s13 = sadd.s32 1, %s9
    $region7: #{_lambda_.16} parent=1 // loop_footer_branch
      %8 = sbr.rel target = $region3
    $region8: #{_lambda_.16} parent=1 // loop_exit
      _

// kernel: _lambda_.17
$region0: #{_lambda_.17}
  #allocation0 [shape = 'u32[]', space=smem, size = 0x4, offset = 0x4, fixed_abs, tag = 'smem constant byte address 0x4 - core index']
  #allocation1 [shape = 'u32[72,128]{1,0:T(1,128)}', space=vmem, size = 0x9000, scoped, tag = 'internal scratch']
  #allocation2 [shape = 'f32[16,128]{1,0:T(8,128)}', space=vmem, size = 0x2000, scoped, tag = 'scratch operand']
  %s0 = inlined_call_operand.vmem [shape: bf16[16,512], index: 0, kind: input, shape index: {}]
  %s1 = inlined_call_operand.vmem [shape: bf16[512,128], index: 1, kind: input, shape index: {}]
  %s2 = inlined_call_operand.vmem [shape: f32[1,128], index: 2, kind: input, shape index: {}]
  %s3 = inlined_call_operand.vmem [shape: f32[16,128], index: 3, kind: output, shape index: {}]
  %s4 = sld [smem:[#allocation0]]
  $region30: #{_lambda_.17} parent=0
    _
  %s6 = ssub.s32 1, %s4
  %s7 = scalar_select 0, %s6, %s4
  // Predicated region
  $region2: #{_lambda_.17} parent=0 // pred_check
    _
  $region3: #{_lambda_.17} parent=0 // pred_check_branch
    %9 = sbr.rel (0) target = $region5
  $region4: #{_lambda_.17} parent=0 // pred_region
    _
  $region5: #{_lambda_.17} parent=0 // pred_fallthru
    _
  // Predicated region
  $region6: #{_lambda_.17} parent=0 // pred_check
    _
  $region7: #{_lambda_.17} parent=0 // pred_check_branch
    %11 = sbr.rel (0) target = $region9
  $region8: #{_lambda_.17} parent=0 // pred_region
    _
  $region9: #{_lambda_.17} parent=0 // pred_fallthru
    _
  // Predicated region
  $region10: #{_lambda_.17} parent=0 // pred_check
    _
  $region11: #{_lambda_.17} parent=0 // pred_check_branch
    %13 = sbr.rel (0) target = $region13
  $region12: #{_lambda_.17} parent=0 // pred_region
    _
  $region13: #{_lambda_.17} parent=0 // pred_fallthru
    _
  %p14 = scmp.eq.s32.totalorder 0, 0
  // Predicated region
  $region14: #{_lambda_.17} parent=0 // pred_check
    %p15 = pneg %p14
  $region15: #{_lambda_.17} parent=0 // pred_check_branch
    %17 = sbr.rel (%p15) target = $region17
  $region16: #{_lambda_.17} parent=0 // pred_region
    %18 = vst [vmem:[#allocation2] sm:$0xff] 0.0
    %19 = vst [vmem:[#allocation2 + $0x8] sm:$0xff] 0.0
  $region17: #{_lambda_.17} parent=0 // pred_fallthru
    _
  %v20 = vld [vmem:[#allocation2] sm:$0xff]
  %v21 = vld [vmem:[#allocation2 + $0x8] sm:$0xff]
  %v22 = vld [vmem:[%s0] sm:$0xff]
  %v23 = vld [vmem:[%s0 + $0x8] sm:$0xff]
  %v24 = vld [vmem:[%s0 + $0x10] sm:$0xff]
  %v25 = vld [vmem:[%s0 + $0x18] sm:$0xff]
  %v26 = vld [vmem:[%s1] sm:$0xf]
  %v27 = vld [vmem:[%s1 + $0x4] sm:$0xf]
  %v28 = vld [vmem:[%s1 + $0x8] sm:$0xf]
  %v29 = vld [vmem:[%s1 + $0xc] sm:$0xf]
  %v30 = vld [vmem:[%s1 + $0x10] sm:$0xf]
  %v31 = vld [vmem:[%s1 + $0x14] sm:$0xf]
  %v32 = vld [vmem:[%s1 + $0x18] sm:$0xf]
  %v33 = vld [vmem:[%s1 + $0x1c] sm:$0xf]
  %v34 = vld [vmem:[%s1 + $0x20] sm:$0xf]
  %v35 = vld [vmem:[%s1 + $0x24] sm:$0xf]
  %v36 = vld [vmem:[%s1 + $0x28] sm:$0xf]
  %v37 = vld [vmem:[%s1 + $0x2c] sm:$0xf]
  %v38 = vld [vmem:[%s1 + $0x30] sm:$0xf]
  %v39 = vld [vmem:[%s1 + $0x34] sm:$0xf]
  %v40 = vld [vmem:[%s1 + $0x38] sm:$0xf]
  %v41 = vld [vmem:[%s1 + $0x3c] sm:$0xf]
  %v42 = vld [vmem:[%s1 + $0x40] sm:$0xf]
  %v43 = vld [vmem:[%s1 + $0x44] sm:$0xf]
  %v44 = vld [vmem:[%s1 + $0x48] sm:$0xf]
  %v45 = vld [vmem:[%s1 + $0x4c] sm:$0xf]
  %v46 = vld [vmem:[%s1 + $0x50] sm:$0xf]
  %v47 = vld [vmem:[%s1 + $0x54] sm:$0xf]
  %v48 = vld [vmem:[%s1 + $0x58] sm:$0xf]
  %v49 = vld [vmem:[%s1 + $0x5c] sm:$0xf]
  %v50 = vld [vmem:[%s1 + $0x60] sm:$0xf]
  %v51 = vld [vmem:[%s1 + $0x64] sm:$0xf]
  %v52 = vld [vmem:[%s1 + $0x68] sm:$0xf]
  %v53 = vld [vmem:[%s1 + $0x6c] sm:$0xf]
  %v54 = vld [vmem:[%s1 + $0x70] sm:$0xf]
  %v55 = vld [vmem:[%s1 + $0x74] sm:$0xf]
  %v56 = vld [vmem:[%s1 + $0x78] sm:$0xf]
  %v57 = vld [vmem:[%s1 + $0x7c] sm:$0xf]
  %v58 = vld [vmem:[%s1 + $0x80] sm:$0xf]
  %v59 = vld [vmem:[%s1 + $0x84] sm:$0xf]
  %v60 = vld [vmem:[%s1 + $0x88] sm:$0xf]
  %v61 = vld [vmem:[%s1 + $0x8c] sm:$0xf]
  %v62 = vld [vmem:[%s1 + $0x90] sm:$0xf]
  %v63 = vld [vmem:[%s1 + $0x94] sm:$0xf]
  %v64 = vld [vmem:[%s1 + $0x98] sm:$0xf]
  %v65 = vld [vmem:[%s1 + $0x9c] sm:$0xf]
  %v66 = vld [vmem:[%s1 + $0xa0] sm:$0xf]
  %v67 = vld [vmem:[%s1 + $0xa4] sm:$0xf]
  %v68 = vld [vmem:[%s1 + $0xa8] sm:$0xf]
  %v69 = vld [vmem:[%s1 + $0xac] sm:$0xf]
  %v70 = vld [vmem:[%s1 + $0xb0] sm:$0xf]
  %v71 = vld [vmem:[%s1 + $0xb4] sm:$0xf]
  %v72 = vld [vmem:[%s1 + $0xb8] sm:$0xf]
  %v73 = vld [vmem:[%s1 + $0xbc] sm:$0xf]
  %v74 = vld [vmem:[%s1 + $0xc0] sm:$0xf]
  %v75 = vld [vmem:[%s1 + $0xc4] sm:$0xf]
  %v76 = vld [vmem:[%s1 + $0xc8] sm:$0xf]
  %v77 = vld [vmem:[%s1 + $0xcc] sm:$0xf]
  %v78 = vld [vmem:[%s1 + $0xd0] sm:$0xf]
  %v79 = vld [vmem:[%s1 + $0xd4] sm:$0xf]
  %v80 = vld [vmem:[%s1 + $0xd8] sm:$0xf]
  %v81 = vld [vmem:[%s1 + $0xdc] sm:$0xf]
  %v82 = vld [vmem:[%s1 + $0xe0] sm:$0xf]
  %v83 = vld [vmem:[%s1 + $0xe4] sm:$0xf]
  %v84 = vld [vmem:[%s1 + $0xe8] sm:$0xf]
  %v85 = vld [vmem:[%s1 + $0xec] sm:$0xf]
  %v86 = vld [vmem:[%s1 + $0xf0] sm:$0xf]
  %v87 = vld [vmem:[%s1 + $0xf4] sm:$0xf]
  %v88 = vld [vmem:[%s1 + $0xf8] sm:$0xf]
  %v89 = vld [vmem:[%s1 + $0xfc] sm:$0xf]
  %v94 = vunpack.c.l.b16 %v22
  %v95 = vunpack.c.h.b16 %v22
  %v96 = vunpack.c.l.b16 %v23
  %v97 = vunpack.c.h.b16 %v23
  %v98 = vunpack.c.l.b16 %v24
  %v99 = vunpack.c.h.b16 %v24
  %v100 = vunpack.c.l.b16 %v25
  %v101 = vunpack.c.h.b16 %v25
  %v102 = vpack.c.b16 %v98, %v94
  %v103 = vpack.c.b16 %v99, %v95
  %v104 = vpack.c.b16 %v100, %v96
  %v105 = vpack.c.b16 %v101, %v97
  %v174 = vunpack.c.l.b16 %v26
  %v175 = vunpack.c.l.b16 %v27
  %v176 = vunpack.c.l.b16 %v28
  %v177 = vunpack.c.l.b16 %v29
  %v178 = vunpack.c.l.b16 %v30
  %v179 = vunpack.c.l.b16 %v31
  %v180 = vunpack.c.l.b16 %v32
  %v181 = vunpack.c.l.b16 %v33
  %v182 = vunpack.c.l.b16 %v34
  %v183 = vunpack.c.l.b16 %v35
  %v184 = vunpack.c.l.b16 %v36
  %v185 = vunpack.c.l.b16 %v37
  %v186 = vunpack.c.l.b16 %v38
  %v187 = vunpack.c.l.b16 %v39
  %v188 = vunpack.c.l.b16 %v40
  %v189 = vunpack.c.l.b16 %v41
  %v190 = vunpack.c.l.b16 %v42
  %v191 = vunpack.c.l.b16 %v43
  %v192 = vunpack.c.l.b16 %v44
  %v193 = vunpack.c.l.b16 %v45
  %v194 = vunpack.c.l.b16 %v46
  %v195 = vunpack.c.l.b16 %v47
  %v196 = vunpack.c.l.b16 %v48
  %v197 = vunpack.c.l.b16 %v49
  %v198 = vunpack.c.l.b16 %v50
  %v199 = vunpack.c.l.b16 %v51
  %v200 = vunpack.c.l.b16 %v52
  %v201 = vunpack.c.l.b16 %v53
  %v202 = vunpack.c.l.b16 %v54
  %v203 = vunpack.c.l.b16 %v55
  %v204 = vunpack.c.l.b16 %v56
  %v205 = vunpack.c.l.b16 %v57
  %v206 = vunpack.c.l.b16 %v58
  %v207 = vunpack.c.l.b16 %v59
  %v208 = vunpack.c.l.b16 %v60
  %v209 = vunpack.c.l.b16 %v61
  %v210 = vunpack.c.l.b16 %v62
  %v211 = vunpack.c.l.b16 %v63
  %v212 = vunpack.c.l.b16 %v64
  %v213 = vunpack.c.l.b16 %v65
  %v214 = vunpack.c.l.b16 %v66
  %v215 = vunpack.c.l.b16 %v67
  %v216 = vunpack.c.l.b16 %v68
  %v217 = vunpack.c.l.b16 %v69
  %v218 = vunpack.c.l.b16 %v70
  %v219 = vunpack.c.l.b16 %v71
  %v220 = vunpack.c.l.b16 %v72
  %v221 = vunpack.c.l.b16 %v73
  %v222 = vunpack.c.l.b16 %v74
  %v223 = vunpack.c.l.b16 %v75
  %v224 = vunpack.c.l.b16 %v76
  %v225 = vunpack.c.l.b16 %v77
  %v226 = vunpack.c.l.b16 %v78
  %v227 = vunpack.c.l.b16 %v79
  %v228 = vunpack.c.l.b16 %v80
  %v229 = vunpack.c.l.b16 %v81
  %v230 = vunpack.c.l.b16 %v82
  %v231 = vunpack.c.l.b16 %v83
  %v232 = vunpack.c.l.b16 %v84
  %v233 = vunpack.c.l.b16 %v85
  %v234 = vunpack.c.l.b16 %v86
  %v235 = vunpack.c.l.b16 %v87
  %v236 = vunpack.c.l.b16 %v88
  %v237 = vunpack.c.l.b16 %v89
  %v238 = vpack.c.b16 %v175, %v174
  %v239 = vpack.c.b16 %v177, %v176
  %v240 = vpack.c.b16 %v179, %v178
  %v241 = vpack.c.b16 %v181, %v180
  %v242 = vpack.c.b16 %v183, %v182
  %v243 = vpack.c.b16 %v185, %v184
  %v244 = vpack.c.b16 %v187, %v186
  %v245 = vpack.c.b16 %v189, %v188
  %v246 = vpack.c.b16 %v191, %v190
  %v247 = vpack.c.b16 %v193, %v192
  %v248 = vpack.c.b16 %v195, %v194
  %v249 = vpack.c.b16 %v197, %v196
  %v250 = vpack.c.b16 %v199, %v198
  %v251 = vpack.c.b16 %v201, %v200
  %v252 = vpack.c.b16 %v203, %v202
  %v253 = vpack.c.b16 %v205, %v204
  %v254 = vpack.c.b16 %v207, %v206
  %v255 = vpack.c.b16 %v209, %v208
  %v256 = vpack.c.b16 %v211, %v210
  %v257 = vpack.c.b16 %v213, %v212
  %v258 = vpack.c.b16 %v215, %v214
  %v259 = vpack.c.b16 %v217, %v216
  %v260 = vpack.c.b16 %v219, %v218
  %v261 = vpack.c.b16 %v221, %v220
  %v262 = vpack.c.b16 %v223, %v222
  %v263 = vpack.c.b16 %v225, %v224
  %v264 = vpack.c.b16 %v227, %v226
  %v265 = vpack.c.b16 %v229, %v228
  %v266 = vpack.c.b16 %v231, %v230
  %v267 = vpack.c.b16 %v233, %v232
  %v268 = vpack.c.b16 %v235, %v234
  %v269 = vpack.c.b16 %v237, %v236
  %302 = vmatpush.bf16.msra.mxu0 %v245
  %303 = vmatpush.bf16.msra.mxu0 %v244
  %304 = vmatpush.bf16.msra.mxu0 %v243
  %305 = vmatpush.bf16.msra.mxu0 %v242
  %306 = vmatpush.bf16.msra.mxu0 %v241
  %307 = vmatpush.bf16.msra.mxu0 %v240
  %308 = vmatpush.bf16.msra.mxu0 %v239
  %309 = vmatpush.bf16.msra.mxu0 %v238
  %310 = vmatmul.bf16.gmra.mxu0 %v102
  %v311 = vpop.f32.mrf.mxu0
  %v312 = vadd.f32 0.0, %v311
  %v313 = vpop.f32.mrf.mxu0
  %v314 = vadd.f32 0.0, %v313
  %315 = vdwg.mxu0
  %316 = vmatpush.bf16.msra.mxu0 %v253
  %317 = vmatpush.bf16.msra.mxu0 %v252
  %318 = vmatpush.bf16.msra.mxu0 %v251
  %319 = vmatpush.bf16.msra.mxu0 %v250
  %320 = vmatpush.bf16.msra.mxu0 %v249
  %321 = vmatpush.bf16.msra.mxu0 %v248
  %322 = vmatpush.bf16.msra.mxu0 %v247
  %323 = vmatpush.bf16.msra.mxu0 %v246
  %324 = vmatmul.bf16.gmra.mxu0 %v103
  %v325 = vpop.f32.mrf.mxu0
  %v326 = vadd.f32 %v312, %v325
  %v327 = vpop.f32.mrf.mxu0
  %v328 = vadd.f32 %v314, %v327
  %329 = vdwg.mxu0
  %330 = vmatpush.bf16.msra.mxu0 %v261
  %331 = vmatpush.bf16.msra.mxu0 %v260
  %332 = vmatpush.bf16.msra.mxu0 %v259
  %333 = vmatpush.bf16.msra.mxu0 %v258
  %334 = vmatpush.bf16.msra.mxu0 %v257
  %335 = vmatpush.bf16.msra.mxu0 %v256
  %336 = vmatpush.bf16.msra.mxu0 %v255
  %337 = vmatpush.bf16.msra.mxu0 %v254
  %338 = vmatmul.bf16.gmra.mxu0 %v104
  %v339 = vpop.f32.mrf.mxu0
  %v340 = vadd.f32 %v326, %v339
  %v341 = vpop.f32.mrf.mxu0
  %v342 = vadd.f32 %v328, %v341
  %343 = vdwg.mxu0
  %344 = vmatpush.bf16.msra.mxu0 %v269
  %345 = vmatpush.bf16.msra.mxu0 %v268
  %346 = vmatpush.bf16.msra.mxu0 %v267
  %347 = vmatpush.bf16.msra.mxu0 %v266
  %348 = vmatpush.bf16.msra.mxu0 %v265
  %349 = vmatpush.bf16.msra.mxu0 %v264
  %350 = vmatpush.bf16.msra.mxu0 %v263
  %351 = vmatpush.bf16.msra.mxu0 %v262
  %352 = vmatmul.bf16.gmra.mxu0 %v105
  %v353 = vpop.f32.mrf.mxu0
  %v354 = vadd.f32 %v340, %v353
  %v355 = vpop.f32.mrf.mxu0
  %v356 = vadd.f32 %v342, %v355
  %357 = vdwg.mxu0
  %v358 = vadd.f32 %v20, %v354
  %v359 = vadd.f32 %v21, %v356
  %360 = vst [vmem:[#allocation2] sm:$0xff] %v358
  %361 = vst [vmem:[#allocation2 + $0x8] sm:$0xff] %v359
  // Predicated region
  $region18: #{_lambda_.17} parent=0 // pred_check
    %p362 = pneg %p14
  $region19: #{_lambda_.17} parent=0 // pred_check_branch
    %364 = sbr.rel (%p362) target = $region21
  $region20: #{_lambda_.17} parent=0 // pred_region
    %v365 = vld [vmem:[#allocation2] sm:$0xff]
    %v366 = vld [vmem:[#allocation2 + $0x8] sm:$0xff]
    %v367 = vld [vmem:[%s2] sm:$0x1]
    %v369 = vperm.slane %v367, 0
    %v371 = vadd.f32 %v365, %v369
    %v372 = vadd.f32 %v366, %v369
    %373 = vst [vmem:[%s3] sm:$0xff] %v371
    %374 = vst [vmem:[%s3 + $0x8] sm:$0xff] %v372
  $region21: #{_lambda_.17} parent=0 // pred_fallthru
    _
  // Predicated region
  $region22: #{_lambda_.17} parent=0 // pred_check
    _
  $region23: #{_lambda_.17} parent=0 // pred_check_branch
    %376 = sbr.rel (0) target = $region25
  $region24: #{_lambda_.17} parent=0 // pred_region
    _
  $region25: #{_lambda_.17} parent=0 // pred_fallthru
    _
  // Predicated region
  $region26: #{_lambda_.17} parent=0 // pred_check
    _
  $region27: #{_lambda_.17} parent=0 // pred_check_branch
    %378 = sbr.rel (0) target = $region29
  $region28: #{_lambda_.17} parent=0 // pred_region
    _
  $region29: #{_lambda_.17} parent=0 // pred_fallthru
    _

</llo_original>
